<compile_context>
chip_gen: v6e
topology: v6e:2x2x1
jax: 0.10.0
libtpu: 0.0.40
codegen_flags: <defaults>
</compile_context>

<pallas_src>
import jax
import jax.numpy as jnp
from jax import lax
from jax.experimental import pallas as pl
from jax.experimental.pallas import tpu as pltpu

EPS = 1e-5                    # PyTorch BatchNorm2d default eps
MATMUL_DTYPE = jnp.bfloat16   # MXU operand dtype (accumulation stays f32)


# ---------------- fused whole-block Pallas kernel ----------------

def make_dense_block_kernel(num_layers, C0, C_total, H, W, K4, G, cdt):
    """All `num_layers` DenseBasic layers fused; grid is (N,) over batch images."""
    M = H * W
    f32 = jnp.float32

    def kernel(x_ref, s1_ref, h1_ref, w1_ref, h2_ref, w2_ref, b2_ref,
               o_ref, taps_ref):
        # --- running concat = this image's output tile (VMEM).  Zero-init the
        #     not-yet-written growth channels so the zero-padded 1x1 weights see
        #     finite zeros (never uninitialised VMEM).
        o_ref[0, 0:C0, :] = x_ref[0]
        o_ref[0, C0:C_total, :] = jnp.zeros((C_total - C0, M), f32)

        # pixel-id / column iotas for the 3x3 tap validity masks (built once)
        r = lax.broadcasted_iota(jnp.int32, (1, M), 1)       # flat pixel index
        col = r % W                                          # pixel column

        for l in range(num_layers):
            c_out = C0 + l * G    # channel offset of this layer's growth output

            # --- BN1 (folded affine; zero beyond the current prefix) + ReLU.
            xc = o_ref[0]                                               # (C_total, M)
            t = jnp.maximum(xc * s1_ref[l] + h1_ref[l], 0.0)

            # --- 1x1 conv over the whole (padded) concat: ONE MXU matmul.
            #     BN2 scale is pre-folded into w1; padded weight columns are zero.
            z = jnp.dot(w1_ref[l], t.astype(cdt),
                        preferred_element_type=f32)                      # (K4, M)

            # --- BN2 shift + ReLU (scale already folded into w1).
            y = jnp.maximum(z + h2_ref[l], 0.0)                          # (K4, M) f32

            # --- 9 spatially shifted taps of the zero-padded activation via masked
            #     lane rolls; stored bf16 into the VMEM taps scratch (no HBM im2col).
            t_idx = 0
            for dh in (-1, 0, 1):
                for dw in (-1, 0, 1):
                    if dh == 0 and dw == 0:
                        tap = y
                    else:
                        s = dh * W + dw
                        shifted = pltpu.roll(y, (-s) % M, 1)  # tap[r] = y[r+s] (mod M)
                        valid = ((col + dw >= 0) & (col + dw < W) &
                                 (r + s >= 0) & (r + s < M))
                        tap = jnp.where(valid, shifted, 0.0)
                    taps_ref[t_idx * K4:(t_idx + 1) * K4, :] = tap.astype(cdt)
                    t_idx += 1

            # --- 3x3 conv as ONE lane-dense MXU matmul (contraction 9*K4), then
            #     append the growth channels into the running concat.
            out = jnp.dot(w2_ref[l], taps_ref[...],
                          preferred_element_type=f32)                    # (G, M)
            o_ref[0, c_out:c_out + G, :] = out + b2_ref[l]

    return kernel


# ---------------- wrapper: parameter folding + single pallas_call ----------------

def dense_block_forward(x_nchw, params, compute_dtype=MATMUL_DTYPE):
    N, C0, H, W = x_nchw.shape
    M = H * W
    assert M % 128 == 0, "lane-roll tap construction assumes H*W is a multiple of 128"
    L = len(params)
    G = int(params[0]["conv2_b"].shape[0])
    K4 = 4 * G
    C_total = C0 + L * G
    f32 = jnp.float32

    s1_all, h1_all, w1_all, h2_all, w2_all, b2_all = [], [], [], [], [], []
    for l, prm in enumerate(params):
        c_in = C0 + l * G
        # fold BN1 (running stats) into per-channel scale/shift
        s1 = (prm["bn1_gamma"] / jnp.sqrt(prm["bn1_var"] + EPS)).astype(f32)
        h1 = (prm["bn1_beta"] - prm["bn1_mean"] * s1).astype(f32)
        # fold BN2 scale into the 1x1 weight rows; shift absorbs the conv1 bias
        s2 = (prm["bn2_gamma"] / jnp.sqrt(prm["bn2_var"] + EPS)).astype(f32)
        h2 = ((prm["conv1_b"] - prm["bn2_mean"]) * s2 + prm["bn2_beta"]).astype(f32)
        w1s = (prm["conv1_w"][:, :, 0, 0] * s2[:, None]).astype(f32)     # (K4, c_in)
        pad = C_total - c_in
        s1_all.append(jnp.pad(s1, (0, pad)))                 # zero scale on padded chans
        h1_all.append(jnp.pad(h1, (0, pad)))
        w1_all.append(jnp.pad(w1s, ((0, 0), (0, pad))))      # zero weight columns
        h2_all.append(h2)
        # (G, K4, 3, 3) -> (G, 9*K4), matching tap order (dh, dw) row-major
        w2_all.append(jnp.transpose(prm["conv2_w"], (0, 2, 3, 1)).reshape(G, 9 * K4))
        b2_all.append(prm["conv2_b"].astype(f32))

    s1_all = jnp.stack(s1_all).reshape(L, C_total, 1).astype(f32)
    h1_all = jnp.stack(h1_all).reshape(L, C_total, 1).astype(f32)
    w1_all = jnp.stack(w1_all).astype(compute_dtype)                     # (L, K4, C_total)
    h2_all = jnp.stack(h2_all).reshape(L, K4, 1).astype(f32)
    w2_all = jnp.stack(w2_all).astype(compute_dtype)                     # (L, G, 9*K4)
    b2_all = jnp.stack(b2_all).reshape(L, G, 1).astype(f32)

    # NCHW maps directly onto the (C, H*W) kernel layout — no transposes needed.
    x = x_nchw.reshape(N, C0, M).astype(f32)

    kernel = make_dense_block_kernel(L, C0, C_total, H, W, K4, G, compute_dtype)

    grid_spec = pltpu.PrefetchScalarGridSpec(
        num_scalar_prefetch=0,
        grid=(N,),
        in_specs=[
            pl.BlockSpec((1, C0, M), lambda n: (n, 0, 0)),
            pl.BlockSpec((L, C_total, 1), lambda n: (0, 0, 0)),
            pl.BlockSpec((L, C_total, 1), lambda n: (0, 0, 0)),
            pl.BlockSpec((L, K4, C_total), lambda n: (0, 0, 0)),
            pl.BlockSpec((L, K4, 1), lambda n: (0, 0, 0)),
            pl.BlockSpec((L, G, 9 * K4), lambda n: (0, 0, 0)),
            pl.BlockSpec((L, G, 1), lambda n: (0, 0, 0)),
        ],
        out_specs=pl.BlockSpec((1, C_total, M), lambda n: (n, 0, 0)),
        scratch_shapes=[pltpu.VMEM((9 * K4, M), compute_dtype)],  # bf16 taps scratch
    )

    out = pl.pallas_call(
        kernel,
        out_shape=jax.ShapeDtypeStruct((N, C_total, M), jnp.float32),
        grid_spec=grid_spec,
        compiler_params=pltpu.CompilerParams(
            dimension_semantics=("parallel",),   # batch axis sharded on v7x's 2 TCs
            vmem_limit_bytes=32 * 1024 * 1024,   # tiny footprint; safe on v5e/v6e/v7x
        ),
    )(x, s1_all, h1_all, w1_all, h2_all, w2_all, b2_all)

    return out.reshape(N, C_total, H, W)


# ---------------- parameter init (deterministic, synthetic) ----------------

def init_dense_block_params(key, in_channels, growth_rate, num_layers=6):
    params = []
    c = in_channels
    g = growth_rate
    for i in range(num_layers):
        keys = jax.random.split(jax.random.fold_in(key, i), 12)
        k4 = 4 * g
        p = dict(
            bn1_gamma=1.0 + 0.1 * jax.random.normal(keys[0], (c,)),
            bn1_beta=0.1 * jax.random.normal(keys[1], (c,)),
            bn1_mean=0.1 * jax.random.normal(keys[2], (c,)),
            bn1_var=jax.random.uniform(keys[3], (c,), minval=0.5, maxval=1.5),
            conv1_w=jax.random.normal(keys[4], (k4, c, 1, 1)) / jnp.sqrt(c),
            conv1_b=0.1 * jax.random.normal(keys[5], (k4,)),
            bn2_gamma=1.0 + 0.1 * jax.random.normal(keys[6], (k4,)),
            bn2_beta=0.1 * jax.random.normal(keys[7], (k4,)),
            bn2_mean=0.1 * jax.random.normal(keys[8], (k4,)),
            bn2_var=jax.random.uniform(keys[9], (k4,), minval=0.5, maxval=1.5),
            conv2_w=jax.random.normal(keys[10], (g, k4, 3, 3)) / jnp.sqrt(9 * k4),
            conv2_b=0.1 * jax.random.normal(keys[11], (g,)),
        )
        params.append(p)
        c += g
    return params


# ---------------- pure-JAX reference (eval-mode BN), for a loose sanity check ----------------

def dense_block_reference(x, params):
    out = x.astype(jnp.float32)
    dn = ("NCHW", "OIHW", "NCHW")
    for prm in params:
        s1 = prm["bn1_gamma"] / jnp.sqrt(prm["bn1_var"] + EPS)
        h1 = prm["bn1_beta"] - prm["bn1_mean"] * s1
        a = jnp.maximum(out * s1[None, :, None, None] + h1[None, :, None, None], 0.0)
        z = lax.conv_general_dilated(a, prm["conv1_w"], (1, 1), "VALID",
                                     dimension_numbers=dn)
        z = z + prm["conv1_b"][None, :, None, None]
        s2 = prm["bn2_gamma"] / jnp.sqrt(prm["bn2_var"] + EPS)
        hb = prm["bn2_beta"] - prm["bn2_mean"] * s2
        y = jnp.maximum(z * s2[None, :, None, None] + hb[None, :, None, None], 0.0)
        g = lax.conv_general_dilated(y, prm["conv2_w"], (1, 1), ((1, 1), (1, 1)),
                                     dimension_numbers=dn)
        g = g + prm["conv2_b"][None, :, None, None]
        out = jnp.concatenate([out, g], axis=1)
    return out


if __name__ == "__main__":
    key = jax.random.PRNGKey(0)
    kx, kp = jax.random.split(key)

    N, C0, H, W = 2, 4, 16, 16
    GROWTH = 4

    x = jax.random.normal(kx, (N, C0, H, W), dtype=jnp.float32)
    params = init_dense_block_params(kp, C0, GROWTH, num_layers=6)

    out = jax.jit(dense_block_forward)(x, params)
    out = jax.block_until_ready(out)

    assert out.shape == (N, C0 + 6 * GROWTH, H, W), out.shape
    assert bool(jnp.all(jnp.isfinite(out)))

    ref = dense_block_reference(x, params)
    max_err = float(jnp.max(jnp.abs(out - ref)))
    assert max_err < 0.2, f"max abs err vs f32 reference: {max_err}"  # bf16 MXU tolerance

    print("KERNEL_OK")
</pallas_src>

<mosaic_0001>
module attributes {stable_mosaic.version = 11 : i64} {
  func.func @kernel(%arg0: i32, %arg1: memref<1x4x256xf32, #tpu.memory_space<vmem>>, %arg2: memref<6x28x1xf32, #tpu.memory_space<vmem>>, %arg3: memref<6x28x1xf32, #tpu.memory_space<vmem>>, %arg4: memref<6x16x28xbf16, #tpu.memory_space<vmem>>, %arg5: memref<6x16x1xf32, #tpu.memory_space<vmem>>, %arg6: memref<6x4x144xbf16, #tpu.memory_space<vmem>>, %arg7: memref<6x4x1xf32, #tpu.memory_space<vmem>>, %arg8: memref<1x28x256xf32, #tpu.memory_space<vmem>>, %arg9: memref<144x256xbf16, #tpu.memory_space<vmem>>) attributes {dimension_semantics = [#tpu.dimension_semantics<parallel>], iteration_bounds = array<i64: 2>, scalar_prefetch = 0 : i64, scratch_operands = 1 : i64, tpu.core_type = #tpu.core_type<tc>, window_params = [{transform_indices = @transform_0, window_bounds = array<i64: 1, 4, 256>}, {pipeline_mode = #tpu.pipeline_mode<synchronous>, transform_indices = @transform_1, window_bounds = array<i64: 6, 28, 1>}, {pipeline_mode = #tpu.pipeline_mode<synchronous>, transform_indices = @transform_2, window_bounds = array<i64: 6, 28, 1>}, {pipeline_mode = #tpu.pipeline_mode<synchronous>, transform_indices = @transform_3, window_bounds = array<i64: 6, 16, 28>}, {pipeline_mode = #tpu.pipeline_mode<synchronous>, transform_indices = @transform_4, window_bounds = array<i64: 6, 16, 1>}, {pipeline_mode = #tpu.pipeline_mode<synchronous>, transform_indices = @transform_5, window_bounds = array<i64: 6, 4, 144>}, {pipeline_mode = #tpu.pipeline_mode<synchronous>, transform_indices = @transform_6, window_bounds = array<i64: 6, 4, 1>}, {transform_indices = @transform_7, window_bounds = array<i64: 1, 28, 256>}]} {
    %c0 = arith.constant 0 : index
    %c0_0 = arith.constant 0 : index
    %c0_1 = arith.constant 0 : index
    %0 = vector.load %arg1[%c0, %c0_0, %c0_1] : memref<1x4x256xf32, #tpu.memory_space<vmem>>, vector<1x4x256xf32>
    %1 = vector.shape_cast %0 : vector<1x4x256xf32> to vector<4x256xf32>
    %c0_2 = arith.constant 0 : index
    %c0_3 = arith.constant 0 : index
    %c0_4 = arith.constant 0 : index
    %2 = vector.load %arg8[%c0_2, %c0_3, %c0_4] : memref<1x28x256xf32, #tpu.memory_space<vmem>>, vector<1x4x256xf32>
    %3 = vector.shape_cast %2 : vector<1x4x256xf32> to vector<4x256xf32>
    %4 = vector.shape_cast %1 : vector<4x256xf32> to vector<1x4x256xf32>
    tpu.vector_store %arg8[%c0_2, %c0_3, %c0_4], %4 {strides = array<i32>} : memref<1x28x256xf32, #tpu.memory_space<vmem>>, vector<1x4x256xf32>,
    %cst = arith.constant 0.000000e+00 : f32
    %5 = vector.broadcast %cst : f32 to vector<24x256xf32>
    %c0_5 = arith.constant 0 : index
    %c4 = arith.constant 4 : index
    %c0_6 = arith.constant 0 : index
    %6 = vector.load %arg8[%c0_5, %c4, %c0_6] : memref<1x28x256xf32, #tpu.memory_space<vmem>>, vector<1x24x256xf32>
    %7 = vector.shape_cast %6 : vector<1x24x256xf32> to vector<24x256xf32>
    %8 = vector.shape_cast %5 : vector<24x256xf32> to vector<1x24x256xf32>
    tpu.vector_store %arg8[%c0_5, %c4, %c0_6], %8 {strides = array<i32>} : memref<1x28x256xf32, #tpu.memory_space<vmem>>, vector<1x24x256xf32>,
    %9 = tpu.iota {dimensions = array<i32: 1>} : vector<1x256xi32>
    %c16_i32 = arith.constant 16 : i32
    %c0_i32 = arith.constant 0 : i32
    %10 = arith.cmpi eq, %c16_i32, %c0_i32 : i32
    %c1_i32 = arith.constant 1 : i32
    %11 = arith.select %10, %c1_i32, %c16_i32 : i32
    %12 = vector.broadcast %11 : i32 to vector<1x256xi32>
    %13 = arith.remsi %9, %12 : vector<1x256xi32>
    %c0_i32_7 = arith.constant 0 : i32
    %14 = vector.broadcast %c0_i32_7 : i32 to vector<1x256xi32>
    %15 = arith.cmpi ne, %13, %14 : vector<1x256xi32>
    %c0_i32_8 = arith.constant 0 : i32
    %16 = vector.broadcast %c0_i32_8 : i32 to vector<1x256xi32>
    %17 = arith.cmpi slt, %13, %16 : vector<1x256xi32>
    %c0_i32_9 = arith.constant 0 : i32
    %18 = arith.cmpi slt, %11, %c0_i32_9 : i32
    %19 = vector.broadcast %18 : i1 to vector<1x256xi1>
    %20 = vector.broadcast %19 : vector<1x256xi1> to vector<1x256xi1>
    %21 = arith.xori %17, %20 : vector<1x256xi1>
    %22 = arith.andi %21, %15 : vector<1x256xi1>
    %23 = vector.broadcast %11 : i32 to vector<1x256xi32>
    %24 = arith.addi %13, %23 : vector<1x256xi32>
    %25 = arith.select %22, %24, %13 : vector<1x256xi1>, vector<1x256xi32>
    %c0_10 = arith.constant 0 : index
    %c0_11 = arith.constant 0 : index
    %c0_12 = arith.constant 0 : index
    %26 = vector.load %arg8[%c0_10, %c0_11, %c0_12] : memref<1x28x256xf32, #tpu.memory_space<vmem>>, vector<1x28x256xf32>
    %27 = vector.shape_cast %26 : vector<1x28x256xf32> to vector<28x256xf32>
    %c0_13 = arith.constant 0 : index
    %c0_14 = arith.constant 0 : index
    %c0_15 = arith.constant 0 : index
    %28 = vector.load %arg2[%c0_13, %c0_14, %c0_15] : memref<6x28x1xf32, #tpu.memory_space<vmem>>, vector<1x28x1xf32>
    %29 = vector.shape_cast %28 : vector<1x28x1xf32> to vector<28x1xf32>
    %30 = vector.broadcast %29 : vector<28x1xf32> to vector<28x256xf32>
    %31 = arith.mulf %27, %30 : vector<28x256xf32>
    %c0_16 = arith.constant 0 : index
    %c0_17 = arith.constant 0 : index
    %c0_18 = arith.constant 0 : index
    %32 = vector.load %arg3[%c0_16, %c0_17, %c0_18] : memref<6x28x1xf32, #tpu.memory_space<vmem>>, vector<1x28x1xf32>
    %33 = vector.shape_cast %32 : vector<1x28x1xf32> to vector<28x1xf32>
    %34 = vector.broadcast %33 : vector<28x1xf32> to vector<28x256xf32>
    %35 = arith.addf %31, %34 : vector<28x256xf32>
    %cst_19 = arith.constant 0.000000e+00 : f32
    %36 = vector.broadcast %cst_19 : f32 to vector<28x256xf32>
    %37 = arith.maximumf %35, %36 : vector<28x256xf32>
    %c0_20 = arith.constant 0 : index
    %c0_21 = arith.constant 0 : index
    %c0_22 = arith.constant 0 : index
    %38 = vector.load %arg4[%c0_20, %c0_21, %c0_22] : memref<6x16x28xbf16, #tpu.memory_space<vmem>>, vector<1x16x28xbf16>
    %39 = vector.shape_cast %38 : vector<1x16x28xbf16> to vector<16x28xbf16>
    %40 = arith.truncf %37 : vector<28x256xf32> to vector<28x256xbf16>
    %cst_23 = arith.constant dense<0.000000e+00> : vector<16x256xf32>
    %41 = tpu.matmul %39, %40, %cst_23 {dimension_numbers = #tpu.dot_dimension_numbers<[1], [0], [0], [1], [0, 0, 1, 1], [], []>} : vector<16x28xbf16>, vector<28x256xbf16>, vector<16x256xf32> -> vector<16x256xf32>
    %c0_24 = arith.constant 0 : index
    %c0_25 = arith.constant 0 : index
    %c0_26 = arith.constant 0 : index
    %42 = vector.load %arg5[%c0_24, %c0_25, %c0_26] : memref<6x16x1xf32, #tpu.memory_space<vmem>>, vector<1x16x1xf32>
    %43 = vector.shape_cast %42 : vector<1x16x1xf32> to vector<16x1xf32>
    %44 = vector.broadcast %43 : vector<16x1xf32> to vector<16x256xf32>
    %45 = arith.addf %41, %44 : vector<16x256xf32>
    %cst_27 = arith.constant 0.000000e+00 : f32
    %46 = vector.broadcast %cst_27 : f32 to vector<16x256xf32>
    %47 = arith.maximumf %45, %46 : vector<16x256xf32>
    %c17_i32 = arith.constant 17 : i32
    %48 = tpu.dynamic_rotate %47 by %c17_i32 dim 1 : vector<16x256xf32>, i32 -> vector<16x256xf32>
    %c-1_i32 = arith.constant -1 : i32
    %49 = vector.broadcast %c-1_i32 : i32 to vector<1x256xi32>
    %50 = arith.addi %25, %49 : vector<1x256xi32>
    %c0_i32_28 = arith.constant 0 : i32
    %51 = vector.broadcast %c0_i32_28 : i32 to vector<1x256xi32>
    %52 = arith.cmpi sge, %50, %51 : vector<1x256xi32>
    %c-1_i32_29 = arith.constant -1 : i32
    %53 = vector.broadcast %c-1_i32_29 : i32 to vector<1x256xi32>
    %54 = arith.addi %25, %53 : vector<1x256xi32>
    %c16_i32_30 = arith.constant 16 : i32
    %55 = vector.broadcast %c16_i32_30 : i32 to vector<1x256xi32>
    %56 = arith.cmpi slt, %54, %55 : vector<1x256xi32>
    %57 = arith.andi %52, %56 : vector<1x256xi1>
    %c-17_i32 = arith.constant -17 : i32
    %58 = vector.broadcast %c-17_i32 : i32 to vector<1x256xi32>
    %59 = arith.addi %9, %58 : vector<1x256xi32>
    %c0_i32_31 = arith.constant 0 : i32
    %60 = vector.broadcast %c0_i32_31 : i32 to vector<1x256xi32>
    %61 = arith.cmpi sge, %59, %60 : vector<1x256xi32>
    %62 = arith.andi %57, %61 : vector<1x256xi1>
    %c-17_i32_32 = arith.constant -17 : i32
    %63 = vector.broadcast %c-17_i32_32 : i32 to vector<1x256xi32>
    %64 = arith.addi %9, %63 : vector<1x256xi32>
    %c256_i32 = arith.constant 256 : i32
    %65 = vector.broadcast %c256_i32 : i32 to vector<1x256xi32>
    %66 = arith.cmpi slt, %64, %65 : vector<1x256xi32>
    %67 = arith.andi %62, %66 : vector<1x256xi1>
    %cst_33 = arith.constant 0.000000e+00 : f32
    %68 = vector.shape_cast %67 : vector<1x256xi1> to vector<1x256xi1>
    %69 = vector.broadcast %68 : vector<1x256xi1> to vector<16x256xi1>
    %70 = vector.broadcast %cst_33 : f32 to vector<16x256xf32>
    %71 = arith.select %69, %48, %70 : vector<16x256xi1>, vector<16x256xf32>
    %72 = arith.truncf %71 : vector<16x256xf32> to vector<16x256xbf16>
    %c0_34 = arith.constant 0 : index
    %c0_35 = arith.constant 0 : index
    %73 = vector.load %arg9[%c0_34, %c0_35] : memref<144x256xbf16, #tpu.memory_space<vmem>>, vector<16x256xbf16>
    tpu.vector_store %arg9[%c0_34, %c0_35], %72 {strides = array<i32>} : memref<144x256xbf16, #tpu.memory_space<vmem>>, vector<16x256xbf16>,
    %c16_i32_36 = arith.constant 16 : i32
    %74 = tpu.dynamic_rotate %47 by %c16_i32_36 dim 1 : vector<16x256xf32>, i32 -> vector<16x256xf32>
    %c0_i32_37 = arith.constant 0 : i32
    %75 = vector.broadcast %c0_i32_37 : i32 to vector<1x256xi32>
    %76 = arith.addi %25, %75 : vector<1x256xi32>
    %c0_i32_38 = arith.constant 0 : i32
    %77 = vector.broadcast %c0_i32_38 : i32 to vector<1x256xi32>
    %78 = arith.cmpi sge, %76, %77 : vector<1x256xi32>
    %c0_i32_39 = arith.constant 0 : i32
    %79 = vector.broadcast %c0_i32_39 : i32 to vector<1x256xi32>
    %80 = arith.addi %25, %79 : vector<1x256xi32>
    %c16_i32_40 = arith.constant 16 : i32
    %81 = vector.broadcast %c16_i32_40 : i32 to vector<1x256xi32>
    %82 = arith.cmpi slt, %80, %81 : vector<1x256xi32>
    %83 = arith.andi %78, %82 : vector<1x256xi1>
    %c-16_i32 = arith.constant -16 : i32
    %84 = vector.broadcast %c-16_i32 : i32 to vector<1x256xi32>
    %85 = arith.addi %9, %84 : vector<1x256xi32>
    %c0_i32_41 = arith.constant 0 : i32
    %86 = vector.broadcast %c0_i32_41 : i32 to vector<1x256xi32>
    %87 = arith.cmpi sge, %85, %86 : vector<1x256xi32>
    %88 = arith.andi %83, %87 : vector<1x256xi1>
    %c-16_i32_42 = arith.constant -16 : i32
    %89 = vector.broadcast %c-16_i32_42 : i32 to vector<1x256xi32>
    %90 = arith.addi %9, %89 : vector<1x256xi32>
    %c256_i32_43 = arith.constant 256 : i32
    %91 = vector.broadcast %c256_i32_43 : i32 to vector<1x256xi32>
    %92 = arith.cmpi slt, %90, %91 : vector<1x256xi32>
    %93 = arith.andi %88, %92 : vector<1x256xi1>
    %cst_44 = arith.constant 0.000000e+00 : f32
    %94 = vector.shape_cast %93 : vector<1x256xi1> to vector<1x256xi1>
    %95 = vector.broadcast %94 : vector<1x256xi1> to vector<16x256xi1>
    %96 = vector.broadcast %cst_44 : f32 to vector<16x256xf32>
    %97 = arith.select %95, %74, %96 : vector<16x256xi1>, vector<16x256xf32>
    %98 = arith.truncf %97 : vector<16x256xf32> to vector<16x256xbf16>
    %c16 = arith.constant 16 : index
    %c0_45 = arith.constant 0 : index
    %99 = vector.load %arg9[%c16, %c0_45] : memref<144x256xbf16, #tpu.memory_space<vmem>>, vector<16x256xbf16>
    tpu.vector_store %arg9[%c16, %c0_45], %98 {strides = array<i32>} : memref<144x256xbf16, #tpu.memory_space<vmem>>, vector<16x256xbf16>,
    %c15_i32 = arith.constant 15 : i32
    %100 = tpu.dynamic_rotate %47 by %c15_i32 dim 1 : vector<16x256xf32>, i32 -> vector<16x256xf32>
    %c1_i32_46 = arith.constant 1 : i32
    %101 = vector.broadcast %c1_i32_46 : i32 to vector<1x256xi32>
    %102 = arith.addi %25, %101 : vector<1x256xi32>
    %c0_i32_47 = arith.constant 0 : i32
    %103 = vector.broadcast %c0_i32_47 : i32 to vector<1x256xi32>
    %104 = arith.cmpi sge, %102, %103 : vector<1x256xi32>
    %c1_i32_48 = arith.constant 1 : i32
    %105 = vector.broadcast %c1_i32_48 : i32 to vector<1x256xi32>
    %106 = arith.addi %25, %105 : vector<1x256xi32>
    %c16_i32_49 = arith.constant 16 : i32
    %107 = vector.broadcast %c16_i32_49 : i32 to vector<1x256xi32>
    %108 = arith.cmpi slt, %106, %107 : vector<1x256xi32>
    %109 = arith.andi %104, %108 : vector<1x256xi1>
    %c-15_i32 = arith.constant -15 : i32
    %110 = vector.broadcast %c-15_i32 : i32 to vector<1x256xi32>
    %111 = arith.addi %9, %110 : vector<1x256xi32>
    %c0_i32_50 = arith.constant 0 : i32
    %112 = vector.broadcast %c0_i32_50 : i32 to vector<1x256xi32>
    %113 = arith.cmpi sge, %111, %112 : vector<1x256xi32>
    %114 = arith.andi %109, %113 : vector<1x256xi1>
    %c-15_i32_51 = arith.constant -15 : i32
    %115 = vector.broadcast %c-15_i32_51 : i32 to vector<1x256xi32>
    %116 = arith.addi %9, %115 : vector<1x256xi32>
    %c256_i32_52 = arith.constant 256 : i32
    %117 = vector.broadcast %c256_i32_52 : i32 to vector<1x256xi32>
    %118 = arith.cmpi slt, %116, %117 : vector<1x256xi32>
    %119 = arith.andi %114, %118 : vector<1x256xi1>
    %cst_53 = arith.constant 0.000000e+00 : f32
    %120 = vector.shape_cast %119 : vector<1x256xi1> to vector<1x256xi1>
    %121 = vector.broadcast %120 : vector<1x256xi1> to vector<16x256xi1>
    %122 = vector.broadcast %cst_53 : f32 to vector<16x256xf32>
    %123 = arith.select %121, %100, %122 : vector<16x256xi1>, vector<16x256xf32>
    %124 = arith.truncf %123 : vector<16x256xf32> to vector<16x256xbf16>
    %c32 = arith.constant 32 : index
    %c0_54 = arith.constant 0 : index
    %125 = vector.load %arg9[%c32, %c0_54] : memref<144x256xbf16, #tpu.memory_space<vmem>>, vector<16x256xbf16>
    tpu.vector_store %arg9[%c32, %c0_54], %124 {strides = array<i32>} : memref<144x256xbf16, #tpu.memory_space<vmem>>, vector<16x256xbf16>,
    %c1_i32_55 = arith.constant 1 : i32
    %126 = tpu.dynamic_rotate %47 by %c1_i32_55 dim 1 : vector<16x256xf32>, i32 -> vector<16x256xf32>
    %c-1_i32_56 = arith.constant -1 : i32
    %127 = vector.broadcast %c-1_i32_56 : i32 to vector<1x256xi32>
    %128 = arith.addi %25, %127 : vector<1x256xi32>
    %c0_i32_57 = arith.constant 0 : i32
    %129 = vector.broadcast %c0_i32_57 : i32 to vector<1x256xi32>
    %130 = arith.cmpi sge, %128, %129 : vector<1x256xi32>
    %c-1_i32_58 = arith.constant -1 : i32
    %131 = vector.broadcast %c-1_i32_58 : i32 to vector<1x256xi32>
    %132 = arith.addi %25, %131 : vector<1x256xi32>
    %c16_i32_59 = arith.constant 16 : i32
    %133 = vector.broadcast %c16_i32_59 : i32 to vector<1x256xi32>
    %134 = arith.cmpi slt, %132, %133 : vector<1x256xi32>
    %135 = arith.andi %130, %134 : vector<1x256xi1>
    %c-1_i32_60 = arith.constant -1 : i32
    %136 = vector.broadcast %c-1_i32_60 : i32 to vector<1x256xi32>
    %137 = arith.addi %9, %136 : vector<1x256xi32>
    %c0_i32_61 = arith.constant 0 : i32
    %138 = vector.broadcast %c0_i32_61 : i32 to vector<1x256xi32>
    %139 = arith.cmpi sge, %137, %138 : vector<1x256xi32>
    %140 = arith.andi %135, %139 : vector<1x256xi1>
    %c-1_i32_62 = arith.constant -1 : i32
    %141 = vector.broadcast %c-1_i32_62 : i32 to vector<1x256xi32>
    %142 = arith.addi %9, %141 : vector<1x256xi32>
    %c256_i32_63 = arith.constant 256 : i32
    %143 = vector.broadcast %c256_i32_63 : i32 to vector<1x256xi32>
    %144 = arith.cmpi slt, %142, %143 : vector<1x256xi32>
    %145 = arith.andi %140, %144 : vector<1x256xi1>
    %cst_64 = arith.constant 0.000000e+00 : f32
    %146 = vector.shape_cast %145 : vector<1x256xi1> to vector<1x256xi1>
    %147 = vector.broadcast %146 : vector<1x256xi1> to vector<16x256xi1>
    %148 = vector.broadcast %cst_64 : f32 to vector<16x256xf32>
    %149 = arith.select %147, %126, %148 : vector<16x256xi1>, vector<16x256xf32>
    %150 = arith.truncf %149 : vector<16x256xf32> to vector<16x256xbf16>
    %c48 = arith.constant 48 : index
    %c0_65 = arith.constant 0 : index
    %151 = vector.load %arg9[%c48, %c0_65] : memref<144x256xbf16, #tpu.memory_space<vmem>>, vector<16x256xbf16>
    tpu.vector_store %arg9[%c48, %c0_65], %150 {strides = array<i32>} : memref<144x256xbf16, #tpu.memory_space<vmem>>, vector<16x256xbf16>,
    %152 = arith.truncf %47 : vector<16x256xf32> to vector<16x256xbf16>
    %c64 = arith.constant 64 : index
    %c0_66 = arith.constant 0 : index
    %153 = vector.load %arg9[%c64, %c0_66] : memref<144x256xbf16, #tpu.memory_space<vmem>>, vector<16x256xbf16>
    tpu.vector_store %arg9[%c64, %c0_66], %152 {strides = array<i32>} : memref<144x256xbf16, #tpu.memory_space<vmem>>, vector<16x256xbf16>,
    %c255_i32 = arith.constant 255 : i32
    %154 = tpu.dynamic_rotate %47 by %c255_i32 dim 1 : vector<16x256xf32>, i32 -> vector<16x256xf32>
    %c1_i32_67 = arith.constant 1 : i32
    %155 = vector.broadcast %c1_i32_67 : i32 to vector<1x256xi32>
    %156 = arith.addi %25, %155 : vector<1x256xi32>
    %c0_i32_68 = arith.constant 0 : i32
    %157 = vector.broadcast %c0_i32_68 : i32 to vector<1x256xi32>
    %158 = arith.cmpi sge, %156, %157 : vector<1x256xi32>
    %c1_i32_69 = arith.constant 1 : i32
    %159 = vector.broadcast %c1_i32_69 : i32 to vector<1x256xi32>
    %160 = arith.addi %25, %159 : vector<1x256xi32>
    %c16_i32_70 = arith.constant 16 : i32
    %161 = vector.broadcast %c16_i32_70 : i32 to vector<1x256xi32>
    %162 = arith.cmpi slt, %160, %161 : vector<1x256xi32>
    %163 = arith.andi %158, %162 : vector<1x256xi1>
    %c1_i32_71 = arith.constant 1 : i32
    %164 = vector.broadcast %c1_i32_71 : i32 to vector<1x256xi32>
    %165 = arith.addi %9, %164 : vector<1x256xi32>
    %c0_i32_72 = arith.constant 0 : i32
    %166 = vector.broadcast %c0_i32_72 : i32 to vector<1x256xi32>
    %167 = arith.cmpi sge, %165, %166 : vector<1x256xi32>
    %168 = arith.andi %163, %167 : vector<1x256xi1>
    %c1_i32_73 = arith.constant 1 : i32
    %169 = vector.broadcast %c1_i32_73 : i32 to vector<1x256xi32>
    %170 = arith.addi %9, %169 : vector<1x256xi32>
    %c256_i32_74 = arith.constant 256 : i32
    %171 = vector.broadcast %c256_i32_74 : i32 to vector<1x256xi32>
    %172 = arith.cmpi slt, %170, %171 : vector<1x256xi32>
    %173 = arith.andi %168, %172 : vector<1x256xi1>
    %cst_75 = arith.constant 0.000000e+00 : f32
    %174 = vector.shape_cast %173 : vector<1x256xi1> to vector<1x256xi1>
    %175 = vector.broadcast %174 : vector<1x256xi1> to vector<16x256xi1>
    %176 = vector.broadcast %cst_75 : f32 to vector<16x256xf32>
    %177 = arith.select %175, %154, %176 : vector<16x256xi1>, vector<16x256xf32>
    %178 = arith.truncf %177 : vector<16x256xf32> to vector<16x256xbf16>
    %c80 = arith.constant 80 : index
    %c0_76 = arith.constant 0 : index
    %179 = vector.load %arg9[%c80, %c0_76] : memref<144x256xbf16, #tpu.memory_space<vmem>>, vector<16x256xbf16>
    tpu.vector_store %arg9[%c80, %c0_76], %178 {strides = array<i32>} : memref<144x256xbf16, #tpu.memory_space<vmem>>, vector<16x256xbf16>,
    %c241_i32 = arith.constant 241 : i32
    %180 = tpu.dynamic_rotate %47 by %c241_i32 dim 1 : vector<16x256xf32>, i32 -> vector<16x256xf32>
    %c-1_i32_77 = arith.constant -1 : i32
    %181 = vector.broadcast %c-1_i32_77 : i32 to vector<1x256xi32>
    %182 = arith.addi %25, %181 : vector<1x256xi32>
    %c0_i32_78 = arith.constant 0 : i32
    %183 = vector.broadcast %c0_i32_78 : i32 to vector<1x256xi32>
    %184 = arith.cmpi sge, %182, %183 : vector<1x256xi32>
    %c-1_i32_79 = arith.constant -1 : i32
    %185 = vector.broadcast %c-1_i32_79 : i32 to vector<1x256xi32>
    %186 = arith.addi %25, %185 : vector<1x256xi32>
    %c16_i32_80 = arith.constant 16 : i32
    %187 = vector.broadcast %c16_i32_80 : i32 to vector<1x256xi32>
    %188 = arith.cmpi slt, %186, %187 : vector<1x256xi32>
    %189 = arith.andi %184, %188 : vector<1x256xi1>
    %c15_i32_81 = arith.constant 15 : i32
    %190 = vector.broadcast %c15_i32_81 : i32 to vector<1x256xi32>
    %191 = arith.addi %9, %190 : vector<1x256xi32>
    %c0_i32_82 = arith.constant 0 : i32
    %192 = vector.broadcast %c0_i32_82 : i32 to vector<1x256xi32>
    %193 = arith.cmpi sge, %191, %192 : vector<1x256xi32>
    %194 = arith.andi %189, %193 : vector<1x256xi1>
    %c15_i32_83 = arith.constant 15 : i32
    %195 = vector.broadcast %c15_i32_83 : i32 to vector<1x256xi32>
    %196 = arith.addi %9, %195 : vector<1x256xi32>
    %c256_i32_84 = arith.constant 256 : i32
    %197 = vector.broadcast %c256_i32_84 : i32 to vector<1x256xi32>
    %198 = arith.cmpi slt, %196, %197 : vector<1x256xi32>
    %199 = arith.andi %194, %198 : vector<1x256xi1>
    %cst_85 = arith.constant 0.000000e+00 : f32
    %200 = vector.shape_cast %199 : vector<1x256xi1> to vector<1x256xi1>
    %201 = vector.broadcast %200 : vector<1x256xi1> to vector<16x256xi1>
    %202 = vector.broadcast %cst_85 : f32 to vector<16x256xf32>
    %203 = arith.select %201, %180, %202 : vector<16x256xi1>, vector<16x256xf32>
    %204 = arith.truncf %203 : vector<16x256xf32> to vector<16x256xbf16>
    %c96 = arith.constant 96 : index
    %c0_86 = arith.constant 0 : index
    %205 = vector.load %arg9[%c96, %c0_86] : memref<144x256xbf16, #tpu.memory_space<vmem>>, vector<16x256xbf16>
    tpu.vector_store %arg9[%c96, %c0_86], %204 {strides = array<i32>} : memref<144x256xbf16, #tpu.memory_space<vmem>>, vector<16x256xbf16>,
    %c240_i32 = arith.constant 240 : i32
    %206 = tpu.dynamic_rotate %47 by %c240_i32 dim 1 : vector<16x256xf32>, i32 -> vector<16x256xf32>
    %c0_i32_87 = arith.constant 0 : i32
    %207 = vector.broadcast %c0_i32_87 : i32 to vector<1x256xi32>
    %208 = arith.addi %25, %207 : vector<1x256xi32>
    %c0_i32_88 = arith.constant 0 : i32
    %209 = vector.broadcast %c0_i32_88 : i32 to vector<1x256xi32>
    %210 = arith.cmpi sge, %208, %209 : vector<1x256xi32>
    %c0_i32_89 = arith.constant 0 : i32
    %211 = vector.broadcast %c0_i32_89 : i32 to vector<1x256xi32>
    %212 = arith.addi %25, %211 : vector<1x256xi32>
    %c16_i32_90 = arith.constant 16 : i32
    %213 = vector.broadcast %c16_i32_90 : i32 to vector<1x256xi32>
    %214 = arith.cmpi slt, %212, %213 : vector<1x256xi32>
    %215 = arith.andi %210, %214 : vector<1x256xi1>
    %c16_i32_91 = arith.constant 16 : i32
    %216 = vector.broadcast %c16_i32_91 : i32 to vector<1x256xi32>
    %217 = arith.addi %9, %216 : vector<1x256xi32>
    %c0_i32_92 = arith.constant 0 : i32
    %218 = vector.broadcast %c0_i32_92 : i32 to vector<1x256xi32>
    %219 = arith.cmpi sge, %217, %218 : vector<1x256xi32>
    %220 = arith.andi %215, %219 : vector<1x256xi1>
    %c16_i32_93 = arith.constant 16 : i32
    %221 = vector.broadcast %c16_i32_93 : i32 to vector<1x256xi32>
    %222 = arith.addi %9, %221 : vector<1x256xi32>
    %c256_i32_94 = arith.constant 256 : i32
    %223 = vector.broadcast %c256_i32_94 : i32 to vector<1x256xi32>
    %224 = arith.cmpi slt, %222, %223 : vector<1x256xi32>
    %225 = arith.andi %220, %224 : vector<1x256xi1>
    %cst_95 = arith.constant 0.000000e+00 : f32
    %226 = vector.shape_cast %225 : vector<1x256xi1> to vector<1x256xi1>
    %227 = vector.broadcast %226 : vector<1x256xi1> to vector<16x256xi1>
    %228 = vector.broadcast %cst_95 : f32 to vector<16x256xf32>
    %229 = arith.select %227, %206, %228 : vector<16x256xi1>, vector<16x256xf32>
    %230 = arith.truncf %229 : vector<16x256xf32> to vector<16x256xbf16>
    %c112 = arith.constant 112 : index
    %c0_96 = arith.constant 0 : index
    %231 = vector.load %arg9[%c112, %c0_96] : memref<144x256xbf16, #tpu.memory_space<vmem>>, vector<16x256xbf16>
    tpu.vector_store %arg9[%c112, %c0_96], %230 {strides = array<i32>} : memref<144x256xbf16, #tpu.memory_space<vmem>>, vector<16x256xbf16>,
    %c239_i32 = arith.constant 239 : i32
    %232 = tpu.dynamic_rotate %47 by %c239_i32 dim 1 : vector<16x256xf32>, i32 -> vector<16x256xf32>
    %c1_i32_97 = arith.constant 1 : i32
    %233 = vector.broadcast %c1_i32_97 : i32 to vector<1x256xi32>
    %234 = arith.addi %25, %233 : vector<1x256xi32>
    %c0_i32_98 = arith.constant 0 : i32
    %235 = vector.broadcast %c0_i32_98 : i32 to vector<1x256xi32>
    %236 = arith.cmpi sge, %234, %235 : vector<1x256xi32>
    %c1_i32_99 = arith.constant 1 : i32
    %237 = vector.broadcast %c1_i32_99 : i32 to vector<1x256xi32>
    %238 = arith.addi %25, %237 : vector<1x256xi32>
    %c16_i32_100 = arith.constant 16 : i32
    %239 = vector.broadcast %c16_i32_100 : i32 to vector<1x256xi32>
    %240 = arith.cmpi slt, %238, %239 : vector<1x256xi32>
    %241 = arith.andi %236, %240 : vector<1x256xi1>
    %c17_i32_101 = arith.constant 17 : i32
    %242 = vector.broadcast %c17_i32_101 : i32 to vector<1x256xi32>
    %243 = arith.addi %9, %242 : vector<1x256xi32>
    %c0_i32_102 = arith.constant 0 : i32
    %244 = vector.broadcast %c0_i32_102 : i32 to vector<1x256xi32>
    %245 = arith.cmpi sge, %243, %244 : vector<1x256xi32>
    %246 = arith.andi %241, %245 : vector<1x256xi1>
    %c17_i32_103 = arith.constant 17 : i32
    %247 = vector.broadcast %c17_i32_103 : i32 to vector<1x256xi32>
    %248 = arith.addi %9, %247 : vector<1x256xi32>
    %c256_i32_104 = arith.constant 256 : i32
    %249 = vector.broadcast %c256_i32_104 : i32 to vector<1x256xi32>
    %250 = arith.cmpi slt, %248, %249 : vector<1x256xi32>
    %251 = arith.andi %246, %250 : vector<1x256xi1>
    %cst_105 = arith.constant 0.000000e+00 : f32
    %252 = vector.shape_cast %251 : vector<1x256xi1> to vector<1x256xi1>
    %253 = vector.broadcast %252 : vector<1x256xi1> to vector<16x256xi1>
    %254 = vector.broadcast %cst_105 : f32 to vector<16x256xf32>
    %255 = arith.select %253, %232, %254 : vector<16x256xi1>, vector<16x256xf32>
    %256 = arith.truncf %255 : vector<16x256xf32> to vector<16x256xbf16>
    %c128 = arith.constant 128 : index
    %c0_106 = arith.constant 0 : index
    %257 = vector.load %arg9[%c128, %c0_106] : memref<144x256xbf16, #tpu.memory_space<vmem>>, vector<16x256xbf16>
    tpu.vector_store %arg9[%c128, %c0_106], %256 {strides = array<i32>} : memref<144x256xbf16, #tpu.memory_space<vmem>>, vector<16x256xbf16>,
    %c0_107 = arith.constant 0 : index
    %c0_108 = arith.constant 0 : index
    %c0_109 = arith.constant 0 : index
    %258 = vector.load %arg6[%c0_107, %c0_108, %c0_109] : memref<6x4x144xbf16, #tpu.memory_space<vmem>>, vector<1x4x144xbf16>
    %259 = vector.shape_cast %258 : vector<1x4x144xbf16> to vector<4x144xbf16>
    %c0_110 = arith.constant 0 : index
    %c0_111 = arith.constant 0 : index
    %260 = vector.load %arg9[%c0_110, %c0_111] : memref<144x256xbf16, #tpu.memory_space<vmem>>, vector<144x256xbf16>
    %cst_112 = arith.constant dense<0.000000e+00> : vector<4x256xf32>
    %261 = tpu.matmul %259, %260, %cst_112 {dimension_numbers = #tpu.dot_dimension_numbers<[1], [0], [0], [1], [0, 0, 1, 1], [], []>} : vector<4x144xbf16>, vector<144x256xbf16>, vector<4x256xf32> -> vector<4x256xf32>
    %c0_113 = arith.constant 0 : index
    %c0_114 = arith.constant 0 : index
    %c0_115 = arith.constant 0 : index
    %262 = vector.load %arg7[%c0_113, %c0_114, %c0_115] : memref<6x4x1xf32, #tpu.memory_space<vmem>>, vector<1x4x1xf32>
    %263 = vector.shape_cast %262 : vector<1x4x1xf32> to vector<4x1xf32>
    %264 = vector.broadcast %263 : vector<4x1xf32> to vector<4x256xf32>
    %265 = arith.addf %261, %264 : vector<4x256xf32>
    %c0_116 = arith.constant 0 : index
    %c4_117 = arith.constant 4 : index
    %c0_118 = arith.constant 0 : index
    %266 = vector.load %arg8[%c0_116, %c4_117, %c0_118] : memref<1x28x256xf32, #tpu.memory_space<vmem>>, vector<1x4x256xf32>
    %267 = vector.shape_cast %266 : vector<1x4x256xf32> to vector<4x256xf32>
    %268 = vector.shape_cast %265 : vector<4x256xf32> to vector<1x4x256xf32>
    tpu.vector_store %arg8[%c0_116, %c4_117, %c0_118], %268 {strides = array<i32>} : memref<1x28x256xf32, #tpu.memory_space<vmem>>, vector<1x4x256xf32>,
    %c0_119 = arith.constant 0 : index
    %c0_120 = arith.constant 0 : index
    %c0_121 = arith.constant 0 : index
    %269 = vector.load %arg8[%c0_119, %c0_120, %c0_121] : memref<1x28x256xf32, #tpu.memory_space<vmem>>, vector<1x28x256xf32>
    %270 = vector.shape_cast %269 : vector<1x28x256xf32> to vector<28x256xf32>
    %c1 = arith.constant 1 : index
    %c0_122 = arith.constant 0 : index
    %c0_123 = arith.constant 0 : index
    %271 = vector.load %arg2[%c1, %c0_122, %c0_123] : memref<6x28x1xf32, #tpu.memory_space<vmem>>, vector<1x28x1xf32>
    %272 = vector.shape_cast %271 : vector<1x28x1xf32> to vector<28x1xf32>
    %273 = vector.broadcast %272 : vector<28x1xf32> to vector<28x256xf32>
    %274 = arith.mulf %270, %273 : vector<28x256xf32>
    %c1_124 = arith.constant 1 : index
    %c0_125 = arith.constant 0 : index
    %c0_126 = arith.constant 0 : index
    %275 = vector.load %arg3[%c1_124, %c0_125, %c0_126] : memref<6x28x1xf32, #tpu.memory_space<vmem>>, vector<1x28x1xf32>
    %276 = vector.shape_cast %275 : vector<1x28x1xf32> to vector<28x1xf32>
    %277 = vector.broadcast %276 : vector<28x1xf32> to vector<28x256xf32>
    %278 = arith.addf %274, %277 : vector<28x256xf32>
    %cst_127 = arith.constant 0.000000e+00 : f32
    %279 = vector.broadcast %cst_127 : f32 to vector<28x256xf32>
    %280 = arith.maximumf %278, %279 : vector<28x256xf32>
    %c1_128 = arith.constant 1 : index
    %c0_129 = arith.constant 0 : index
    %c0_130 = arith.constant 0 : index
    %281 = vector.load %arg4[%c1_128, %c0_129, %c0_130] : memref<6x16x28xbf16, #tpu.memory_space<vmem>>, vector<1x16x28xbf16>
    %282 = vector.shape_cast %281 : vector<1x16x28xbf16> to vector<16x28xbf16>
    %283 = arith.truncf %280 : vector<28x256xf32> to vector<28x256xbf16>
    %cst_131 = arith.constant dense<0.000000e+00> : vector<16x256xf32>
    %284 = tpu.matmul %282, %283, %cst_131 {dimension_numbers = #tpu.dot_dimension_numbers<[1], [0], [0], [1], [0, 0, 1, 1], [], []>} : vector<16x28xbf16>, vector<28x256xbf16>, vector<16x256xf32> -> vector<16x256xf32>
    %c1_132 = arith.constant 1 : index
    %c0_133 = arith.constant 0 : index
    %c0_134 = arith.constant 0 : index
    %285 = vector.load %arg5[%c1_132, %c0_133, %c0_134] : memref<6x16x1xf32, #tpu.memory_space<vmem>>, vector<1x16x1xf32>
    %286 = vector.shape_cast %285 : vector<1x16x1xf32> to vector<16x1xf32>
    %287 = vector.broadcast %286 : vector<16x1xf32> to vector<16x256xf32>
    %288 = arith.addf %284, %287 : vector<16x256xf32>
    %cst_135 = arith.constant 0.000000e+00 : f32
    %289 = vector.broadcast %cst_135 : f32 to vector<16x256xf32>
    %290 = arith.maximumf %288, %289 : vector<16x256xf32>
    %c17_i32_136 = arith.constant 17 : i32
    %291 = tpu.dynamic_rotate %290 by %c17_i32_136 dim 1 : vector<16x256xf32>, i32 -> vector<16x256xf32>
    %c-1_i32_137 = arith.constant -1 : i32
    %292 = vector.broadcast %c-1_i32_137 : i32 to vector<1x256xi32>
    %293 = arith.addi %25, %292 : vector<1x256xi32>
    %c0_i32_138 = arith.constant 0 : i32
    %294 = vector.broadcast %c0_i32_138 : i32 to vector<1x256xi32>
    %295 = arith.cmpi sge, %293, %294 : vector<1x256xi32>
    %c-1_i32_139 = arith.constant -1 : i32
    %296 = vector.broadcast %c-1_i32_139 : i32 to vector<1x256xi32>
    %297 = arith.addi %25, %296 : vector<1x256xi32>
    %c16_i32_140 = arith.constant 16 : i32
    %298 = vector.broadcast %c16_i32_140 : i32 to vector<1x256xi32>
    %299 = arith.cmpi slt, %297, %298 : vector<1x256xi32>
    %300 = arith.andi %295, %299 : vector<1x256xi1>
    %c-17_i32_141 = arith.constant -17 : i32
    %301 = vector.broadcast %c-17_i32_141 : i32 to vector<1x256xi32>
    %302 = arith.addi %9, %301 : vector<1x256xi32>
    %c0_i32_142 = arith.constant 0 : i32
    %303 = vector.broadcast %c0_i32_142 : i32 to vector<1x256xi32>
    %304 = arith.cmpi sge, %302, %303 : vector<1x256xi32>
    %305 = arith.andi %300, %304 : vector<1x256xi1>
    %c-17_i32_143 = arith.constant -17 : i32
    %306 = vector.broadcast %c-17_i32_143 : i32 to vector<1x256xi32>
    %307 = arith.addi %9, %306 : vector<1x256xi32>
    %c256_i32_144 = arith.constant 256 : i32
    %308 = vector.broadcast %c256_i32_144 : i32 to vector<1x256xi32>
    %309 = arith.cmpi slt, %307, %308 : vector<1x256xi32>
    %310 = arith.andi %305, %309 : vector<1x256xi1>
    %cst_145 = arith.constant 0.000000e+00 : f32
    %311 = vector.shape_cast %310 : vector<1x256xi1> to vector<1x256xi1>
    %312 = vector.broadcast %311 : vector<1x256xi1> to vector<16x256xi1>
    %313 = vector.broadcast %cst_145 : f32 to vector<16x256xf32>
    %314 = arith.select %312, %291, %313 : vector<16x256xi1>, vector<16x256xf32>
    %315 = arith.truncf %314 : vector<16x256xf32> to vector<16x256xbf16>
    %c0_146 = arith.constant 0 : index
    %c0_147 = arith.constant 0 : index
    %316 = vector.load %arg9[%c0_146, %c0_147] : memref<144x256xbf16, #tpu.memory_space<vmem>>, vector<16x256xbf16>
    tpu.vector_store %arg9[%c0_146, %c0_147], %315 {strides = array<i32>} : memref<144x256xbf16, #tpu.memory_space<vmem>>, vector<16x256xbf16>,
    %c16_i32_148 = arith.constant 16 : i32
    %317 = tpu.dynamic_rotate %290 by %c16_i32_148 dim 1 : vector<16x256xf32>, i32 -> vector<16x256xf32>
    %c0_i32_149 = arith.constant 0 : i32
    %318 = vector.broadcast %c0_i32_149 : i32 to vector<1x256xi32>
    %319 = arith.addi %25, %318 : vector<1x256xi32>
    %c0_i32_150 = arith.constant 0 : i32
    %320 = vector.broadcast %c0_i32_150 : i32 to vector<1x256xi32>
    %321 = arith.cmpi sge, %319, %320 : vector<1x256xi32>
    %c0_i32_151 = arith.constant 0 : i32
    %322 = vector.broadcast %c0_i32_151 : i32 to vector<1x256xi32>
    %323 = arith.addi %25, %322 : vector<1x256xi32>
    %c16_i32_152 = arith.constant 16 : i32
    %324 = vector.broadcast %c16_i32_152 : i32 to vector<1x256xi32>
    %325 = arith.cmpi slt, %323, %324 : vector<1x256xi32>
    %326 = arith.andi %321, %325 : vector<1x256xi1>
    %c-16_i32_153 = arith.constant -16 : i32
    %327 = vector.broadcast %c-16_i32_153 : i32 to vector<1x256xi32>
    %328 = arith.addi %9, %327 : vector<1x256xi32>
    %c0_i32_154 = arith.constant 0 : i32
    %329 = vector.broadcast %c0_i32_154 : i32 to vector<1x256xi32>
    %330 = arith.cmpi sge, %328, %329 : vector<1x256xi32>
    %331 = arith.andi %326, %330 : vector<1x256xi1>
    %c-16_i32_155 = arith.constant -16 : i32
    %332 = vector.broadcast %c-16_i32_155 : i32 to vector<1x256xi32>
    %333 = arith.addi %9, %332 : vector<1x256xi32>
    %c256_i32_156 = arith.constant 256 : i32
    %334 = vector.broadcast %c256_i32_156 : i32 to vector<1x256xi32>
    %335 = arith.cmpi slt, %333, %334 : vector<1x256xi32>
    %336 = arith.andi %331, %335 : vector<1x256xi1>
    %cst_157 = arith.constant 0.000000e+00 : f32
    %337 = vector.shape_cast %336 : vector<1x256xi1> to vector<1x256xi1>
    %338 = vector.broadcast %337 : vector<1x256xi1> to vector<16x256xi1>
    %339 = vector.broadcast %cst_157 : f32 to vector<16x256xf32>
    %340 = arith.select %338, %317, %339 : vector<16x256xi1>, vector<16x256xf32>
    %341 = arith.truncf %340 : vector<16x256xf32> to vector<16x256xbf16>
    %c16_158 = arith.constant 16 : index
    %c0_159 = arith.constant 0 : index
    %342 = vector.load %arg9[%c16_158, %c0_159] : memref<144x256xbf16, #tpu.memory_space<vmem>>, vector<16x256xbf16>
    tpu.vector_store %arg9[%c16_158, %c0_159], %341 {strides = array<i32>} : memref<144x256xbf16, #tpu.memory_space<vmem>>, vector<16x256xbf16>,
    %c15_i32_160 = arith.constant 15 : i32
    %343 = tpu.dynamic_rotate %290 by %c15_i32_160 dim 1 : vector<16x256xf32>, i32 -> vector<16x256xf32>
    %c1_i32_161 = arith.constant 1 : i32
    %344 = vector.broadcast %c1_i32_161 : i32 to vector<1x256xi32>
    %345 = arith.addi %25, %344 : vector<1x256xi32>
    %c0_i32_162 = arith.constant 0 : i32
    %346 = vector.broadcast %c0_i32_162 : i32 to vector<1x256xi32>
    %347 = arith.cmpi sge, %345, %346 : vector<1x256xi32>
    %c1_i32_163 = arith.constant 1 : i32
    %348 = vector.broadcast %c1_i32_163 : i32 to vector<1x256xi32>
    %349 = arith.addi %25, %348 : vector<1x256xi32>
    %c16_i32_164 = arith.constant 16 : i32
    %350 = vector.broadcast %c16_i32_164 : i32 to vector<1x256xi32>
    %351 = arith.cmpi slt, %349, %350 : vector<1x256xi32>
    %352 = arith.andi %347, %351 : vector<1x256xi1>
    %c-15_i32_165 = arith.constant -15 : i32
    %353 = vector.broadcast %c-15_i32_165 : i32 to vector<1x256xi32>
    %354 = arith.addi %9, %353 : vector<1x256xi32>
    %c0_i32_166 = arith.constant 0 : i32
    %355 = vector.broadcast %c0_i32_166 : i32 to vector<1x256xi32>
    %356 = arith.cmpi sge, %354, %355 : vector<1x256xi32>
    %357 = arith.andi %352, %356 : vector<1x256xi1>
    %c-15_i32_167 = arith.constant -15 : i32
    %358 = vector.broadcast %c-15_i32_167 : i32 to vector<1x256xi32>
    %359 = arith.addi %9, %358 : vector<1x256xi32>
    %c256_i32_168 = arith.constant 256 : i32
    %360 = vector.broadcast %c256_i32_168 : i32 to vector<1x256xi32>
    %361 = arith.cmpi slt, %359, %360 : vector<1x256xi32>
    %362 = arith.andi %357, %361 : vector<1x256xi1>
    %cst_169 = arith.constant 0.000000e+00 : f32
    %363 = vector.shape_cast %362 : vector<1x256xi1> to vector<1x256xi1>
    %364 = vector.broadcast %363 : vector<1x256xi1> to vector<16x256xi1>
    %365 = vector.broadcast %cst_169 : f32 to vector<16x256xf32>
    %366 = arith.select %364, %343, %365 : vector<16x256xi1>, vector<16x256xf32>
    %367 = arith.truncf %366 : vector<16x256xf32> to vector<16x256xbf16>
    %c32_170 = arith.constant 32 : index
    %c0_171 = arith.constant 0 : index
    %368 = vector.load %arg9[%c32_170, %c0_171] : memref<144x256xbf16, #tpu.memory_space<vmem>>, vector<16x256xbf16>
    tpu.vector_store %arg9[%c32_170, %c0_171], %367 {strides = array<i32>} : memref<144x256xbf16, #tpu.memory_space<vmem>>, vector<16x256xbf16>,
    %c1_i32_172 = arith.constant 1 : i32
    %369 = tpu.dynamic_rotate %290 by %c1_i32_172 dim 1 : vector<16x256xf32>, i32 -> vector<16x256xf32>
    %c-1_i32_173 = arith.constant -1 : i32
    %370 = vector.broadcast %c-1_i32_173 : i32 to vector<1x256xi32>
    %371 = arith.addi %25, %370 : vector<1x256xi32>
    %c0_i32_174 = arith.constant 0 : i32
    %372 = vector.broadcast %c0_i32_174 : i32 to vector<1x256xi32>
    %373 = arith.cmpi sge, %371, %372 : vector<1x256xi32>
    %c-1_i32_175 = arith.constant -1 : i32
    %374 = vector.broadcast %c-1_i32_175 : i32 to vector<1x256xi32>
    %375 = arith.addi %25, %374 : vector<1x256xi32>
    %c16_i32_176 = arith.constant 16 : i32
    %376 = vector.broadcast %c16_i32_176 : i32 to vector<1x256xi32>
    %377 = arith.cmpi slt, %375, %376 : vector<1x256xi32>
    %378 = arith.andi %373, %377 : vector<1x256xi1>
    %c-1_i32_177 = arith.constant -1 : i32
    %379 = vector.broadcast %c-1_i32_177 : i32 to vector<1x256xi32>
    %380 = arith.addi %9, %379 : vector<1x256xi32>
    %c0_i32_178 = arith.constant 0 : i32
    %381 = vector.broadcast %c0_i32_178 : i32 to vector<1x256xi32>
    %382 = arith.cmpi sge, %380, %381 : vector<1x256xi32>
    %383 = arith.andi %378, %382 : vector<1x256xi1>
    %c-1_i32_179 = arith.constant -1 : i32
    %384 = vector.broadcast %c-1_i32_179 : i32 to vector<1x256xi32>
    %385 = arith.addi %9, %384 : vector<1x256xi32>
    %c256_i32_180 = arith.constant 256 : i32
    %386 = vector.broadcast %c256_i32_180 : i32 to vector<1x256xi32>
    %387 = arith.cmpi slt, %385, %386 : vector<1x256xi32>
    %388 = arith.andi %383, %387 : vector<1x256xi1>
    %cst_181 = arith.constant 0.000000e+00 : f32
    %389 = vector.shape_cast %388 : vector<1x256xi1> to vector<1x256xi1>
    %390 = vector.broadcast %389 : vector<1x256xi1> to vector<16x256xi1>
    %391 = vector.broadcast %cst_181 : f32 to vector<16x256xf32>
    %392 = arith.select %390, %369, %391 : vector<16x256xi1>, vector<16x256xf32>
    %393 = arith.truncf %392 : vector<16x256xf32> to vector<16x256xbf16>
    %c48_182 = arith.constant 48 : index
    %c0_183 = arith.constant 0 : index
    %394 = vector.load %arg9[%c48_182, %c0_183] : memref<144x256xbf16, #tpu.memory_space<vmem>>, vector<16x256xbf16>
    tpu.vector_store %arg9[%c48_182, %c0_183], %393 {strides = array<i32>} : memref<144x256xbf16, #tpu.memory_space<vmem>>, vector<16x256xbf16>,
    %395 = arith.truncf %290 : vector<16x256xf32> to vector<16x256xbf16>
    %c64_184 = arith.constant 64 : index
    %c0_185 = arith.constant 0 : index
    %396 = vector.load %arg9[%c64_184, %c0_185] : memref<144x256xbf16, #tpu.memory_space<vmem>>, vector<16x256xbf16>
    tpu.vector_store %arg9[%c64_184, %c0_185], %395 {strides = array<i32>} : memref<144x256xbf16, #tpu.memory_space<vmem>>, vector<16x256xbf16>,
    %c255_i32_186 = arith.constant 255 : i32
    %397 = tpu.dynamic_rotate %290 by %c255_i32_186 dim 1 : vector<16x256xf32>, i32 -> vector<16x256xf32>
    %c1_i32_187 = arith.constant 1 : i32
    %398 = vector.broadcast %c1_i32_187 : i32 to vector<1x256xi32>
    %399 = arith.addi %25, %398 : vector<1x256xi32>
    %c0_i32_188 = arith.constant 0 : i32
    %400 = vector.broadcast %c0_i32_188 : i32 to vector<1x256xi32>
    %401 = arith.cmpi sge, %399, %400 : vector<1x256xi32>
    %c1_i32_189 = arith.constant 1 : i32
    %402 = vector.broadcast %c1_i32_189 : i32 to vector<1x256xi32>
    %403 = arith.addi %25, %402 : vector<1x256xi32>
    %c16_i32_190 = arith.constant 16 : i32
    %404 = vector.broadcast %c16_i32_190 : i32 to vector<1x256xi32>
    %405 = arith.cmpi slt, %403, %404 : vector<1x256xi32>
    %406 = arith.andi %401, %405 : vector<1x256xi1>
    %c1_i32_191 = arith.constant 1 : i32
    %407 = vector.broadcast %c1_i32_191 : i32 to vector<1x256xi32>
    %408 = arith.addi %9, %407 : vector<1x256xi32>
    %c0_i32_192 = arith.constant 0 : i32
    %409 = vector.broadcast %c0_i32_192 : i32 to vector<1x256xi32>
    %410 = arith.cmpi sge, %408, %409 : vector<1x256xi32>
    %411 = arith.andi %406, %410 : vector<1x256xi1>
    %c1_i32_193 = arith.constant 1 : i32
    %412 = vector.broadcast %c1_i32_193 : i32 to vector<1x256xi32>
    %413 = arith.addi %9, %412 : vector<1x256xi32>
    %c256_i32_194 = arith.constant 256 : i32
    %414 = vector.broadcast %c256_i32_194 : i32 to vector<1x256xi32>
    %415 = arith.cmpi slt, %413, %414 : vector<1x256xi32>
    %416 = arith.andi %411, %415 : vector<1x256xi1>
    %cst_195 = arith.constant 0.000000e+00 : f32
    %417 = vector.shape_cast %416 : vector<1x256xi1> to vector<1x256xi1>
    %418 = vector.broadcast %417 : vector<1x256xi1> to vector<16x256xi1>
    %419 = vector.broadcast %cst_195 : f32 to vector<16x256xf32>
    %420 = arith.select %418, %397, %419 : vector<16x256xi1>, vector<16x256xf32>
    %421 = arith.truncf %420 : vector<16x256xf32> to vector<16x256xbf16>
    %c80_196 = arith.constant 80 : index
    %c0_197 = arith.constant 0 : index
    %422 = vector.load %arg9[%c80_196, %c0_197] : memref<144x256xbf16, #tpu.memory_space<vmem>>, vector<16x256xbf16>
    tpu.vector_store %arg9[%c80_196, %c0_197], %421 {strides = array<i32>} : memref<144x256xbf16, #tpu.memory_space<vmem>>, vector<16x256xbf16>,
    %c241_i32_198 = arith.constant 241 : i32
    %423 = tpu.dynamic_rotate %290 by %c241_i32_198 dim 1 : vector<16x256xf32>, i32 -> vector<16x256xf32>
    %c-1_i32_199 = arith.constant -1 : i32
    %424 = vector.broadcast %c-1_i32_199 : i32 to vector<1x256xi32>
    %425 = arith.addi %25, %424 : vector<1x256xi32>
    %c0_i32_200 = arith.constant 0 : i32
    %426 = vector.broadcast %c0_i32_200 : i32 to vector<1x256xi32>
    %427 = arith.cmpi sge, %425, %426 : vector<1x256xi32>
    %c-1_i32_201 = arith.constant -1 : i32
    %428 = vector.broadcast %c-1_i32_201 : i32 to vector<1x256xi32>
    %429 = arith.addi %25, %428 : vector<1x256xi32>
    %c16_i32_202 = arith.constant 16 : i32
    %430 = vector.broadcast %c16_i32_202 : i32 to vector<1x256xi32>
    %431 = arith.cmpi slt, %429, %430 : vector<1x256xi32>
    %432 = arith.andi %427, %431 : vector<1x256xi1>
    %c15_i32_203 = arith.constant 15 : i32
    %433 = vector.broadcast %c15_i32_203 : i32 to vector<1x256xi32>
    %434 = arith.addi %9, %433 : vector<1x256xi32>
    %c0_i32_204 = arith.constant 0 : i32
    %435 = vector.broadcast %c0_i32_204 : i32 to vector<1x256xi32>
    %436 = arith.cmpi sge, %434, %435 : vector<1x256xi32>
    %437 = arith.andi %432, %436 : vector<1x256xi1>
    %c15_i32_205 = arith.constant 15 : i32
    %438 = vector.broadcast %c15_i32_205 : i32 to vector<1x256xi32>
    %439 = arith.addi %9, %438 : vector<1x256xi32>
    %c256_i32_206 = arith.constant 256 : i32
    %440 = vector.broadcast %c256_i32_206 : i32 to vector<1x256xi32>
    %441 = arith.cmpi slt, %439, %440 : vector<1x256xi32>
    %442 = arith.andi %437, %441 : vector<1x256xi1>
    %cst_207 = arith.constant 0.000000e+00 : f32
    %443 = vector.shape_cast %442 : vector<1x256xi1> to vector<1x256xi1>
    %444 = vector.broadcast %443 : vector<1x256xi1> to vector<16x256xi1>
    %445 = vector.broadcast %cst_207 : f32 to vector<16x256xf32>
    %446 = arith.select %444, %423, %445 : vector<16x256xi1>, vector<16x256xf32>
    %447 = arith.truncf %446 : vector<16x256xf32> to vector<16x256xbf16>
    %c96_208 = arith.constant 96 : index
    %c0_209 = arith.constant 0 : index
    %448 = vector.load %arg9[%c96_208, %c0_209] : memref<144x256xbf16, #tpu.memory_space<vmem>>, vector<16x256xbf16>
    tpu.vector_store %arg9[%c96_208, %c0_209], %447 {strides = array<i32>} : memref<144x256xbf16, #tpu.memory_space<vmem>>, vector<16x256xbf16>,
    %c240_i32_210 = arith.constant 240 : i32
    %449 = tpu.dynamic_rotate %290 by %c240_i32_210 dim 1 : vector<16x256xf32>, i32 -> vector<16x256xf32>
    %c0_i32_211 = arith.constant 0 : i32
    %450 = vector.broadcast %c0_i32_211 : i32 to vector<1x256xi32>
    %451 = arith.addi %25, %450 : vector<1x256xi32>
    %c0_i32_212 = arith.constant 0 : i32
    %452 = vector.broadcast %c0_i32_212 : i32 to vector<1x256xi32>
    %453 = arith.cmpi sge, %451, %452 : vector<1x256xi32>
    %c0_i32_213 = arith.constant 0 : i32
    %454 = vector.broadcast %c0_i32_213 : i32 to vector<1x256xi32>
    %455 = arith.addi %25, %454 : vector<1x256xi32>
    %c16_i32_214 = arith.constant 16 : i32
    %456 = vector.broadcast %c16_i32_214 : i32 to vector<1x256xi32>
    %457 = arith.cmpi slt, %455, %456 : vector<1x256xi32>
    %458 = arith.andi %453, %457 : vector<1x256xi1>
    %c16_i32_215 = arith.constant 16 : i32
    %459 = vector.broadcast %c16_i32_215 : i32 to vector<1x256xi32>
    %460 = arith.addi %9, %459 : vector<1x256xi32>
    %c0_i32_216 = arith.constant 0 : i32
    %461 = vector.broadcast %c0_i32_216 : i32 to vector<1x256xi32>
    %462 = arith.cmpi sge, %460, %461 : vector<1x256xi32>
    %463 = arith.andi %458, %462 : vector<1x256xi1>
    %c16_i32_217 = arith.constant 16 : i32
    %464 = vector.broadcast %c16_i32_217 : i32 to vector<1x256xi32>
    %465 = arith.addi %9, %464 : vector<1x256xi32>
    %c256_i32_218 = arith.constant 256 : i32
    %466 = vector.broadcast %c256_i32_218 : i32 to vector<1x256xi32>
    %467 = arith.cmpi slt, %465, %466 : vector<1x256xi32>
    %468 = arith.andi %463, %467 : vector<1x256xi1>
    %cst_219 = arith.constant 0.000000e+00 : f32
    %469 = vector.shape_cast %468 : vector<1x256xi1> to vector<1x256xi1>
    %470 = vector.broadcast %469 : vector<1x256xi1> to vector<16x256xi1>
    %471 = vector.broadcast %cst_219 : f32 to vector<16x256xf32>
    %472 = arith.select %470, %449, %471 : vector<16x256xi1>, vector<16x256xf32>
    %473 = arith.truncf %472 : vector<16x256xf32> to vector<16x256xbf16>
    %c112_220 = arith.constant 112 : index
    %c0_221 = arith.constant 0 : index
    %474 = vector.load %arg9[%c112_220, %c0_221] : memref<144x256xbf16, #tpu.memory_space<vmem>>, vector<16x256xbf16>
    tpu.vector_store %arg9[%c112_220, %c0_221], %473 {strides = array<i32>} : memref<144x256xbf16, #tpu.memory_space<vmem>>, vector<16x256xbf16>,
    %c239_i32_222 = arith.constant 239 : i32
    %475 = tpu.dynamic_rotate %290 by %c239_i32_222 dim 1 : vector<16x256xf32>, i32 -> vector<16x256xf32>
    %c1_i32_223 = arith.constant 1 : i32
    %476 = vector.broadcast %c1_i32_223 : i32 to vector<1x256xi32>
    %477 = arith.addi %25, %476 : vector<1x256xi32>
    %c0_i32_224 = arith.constant 0 : i32
    %478 = vector.broadcast %c0_i32_224 : i32 to vector<1x256xi32>
    %479 = arith.cmpi sge, %477, %478 : vector<1x256xi32>
    %c1_i32_225 = arith.constant 1 : i32
    %480 = vector.broadcast %c1_i32_225 : i32 to vector<1x256xi32>
    %481 = arith.addi %25, %480 : vector<1x256xi32>
    %c16_i32_226 = arith.constant 16 : i32
    %482 = vector.broadcast %c16_i32_226 : i32 to vector<1x256xi32>
    %483 = arith.cmpi slt, %481, %482 : vector<1x256xi32>
    %484 = arith.andi %479, %483 : vector<1x256xi1>
    %c17_i32_227 = arith.constant 17 : i32
    %485 = vector.broadcast %c17_i32_227 : i32 to vector<1x256xi32>
    %486 = arith.addi %9, %485 : vector<1x256xi32>
    %c0_i32_228 = arith.constant 0 : i32
    %487 = vector.broadcast %c0_i32_228 : i32 to vector<1x256xi32>
    %488 = arith.cmpi sge, %486, %487 : vector<1x256xi32>
    %489 = arith.andi %484, %488 : vector<1x256xi1>
    %c17_i32_229 = arith.constant 17 : i32
    %490 = vector.broadcast %c17_i32_229 : i32 to vector<1x256xi32>
    %491 = arith.addi %9, %490 : vector<1x256xi32>
    %c256_i32_230 = arith.constant 256 : i32
    %492 = vector.broadcast %c256_i32_230 : i32 to vector<1x256xi32>
    %493 = arith.cmpi slt, %491, %492 : vector<1x256xi32>
    %494 = arith.andi %489, %493 : vector<1x256xi1>
    %cst_231 = arith.constant 0.000000e+00 : f32
    %495 = vector.shape_cast %494 : vector<1x256xi1> to vector<1x256xi1>
    %496 = vector.broadcast %495 : vector<1x256xi1> to vector<16x256xi1>
    %497 = vector.broadcast %cst_231 : f32 to vector<16x256xf32>
    %498 = arith.select %496, %475, %497 : vector<16x256xi1>, vector<16x256xf32>
    %499 = arith.truncf %498 : vector<16x256xf32> to vector<16x256xbf16>
    %c128_232 = arith.constant 128 : index
    %c0_233 = arith.constant 0 : index
    %500 = vector.load %arg9[%c128_232, %c0_233] : memref<144x256xbf16, #tpu.memory_space<vmem>>, vector<16x256xbf16>
    tpu.vector_store %arg9[%c128_232, %c0_233], %499 {strides = array<i32>} : memref<144x256xbf16, #tpu.memory_space<vmem>>, vector<16x256xbf16>,
    %c1_234 = arith.constant 1 : index
    %c0_235 = arith.constant 0 : index
    %c0_236 = arith.constant 0 : index
    %501 = vector.load %arg6[%c1_234, %c0_235, %c0_236] : memref<6x4x144xbf16, #tpu.memory_space<vmem>>, vector<1x4x144xbf16>
    %502 = vector.shape_cast %501 : vector<1x4x144xbf16> to vector<4x144xbf16>
    %c0_237 = arith.constant 0 : index
    %c0_238 = arith.constant 0 : index
    %503 = vector.load %arg9[%c0_237, %c0_238] : memref<144x256xbf16, #tpu.memory_space<vmem>>, vector<144x256xbf16>
    %cst_239 = arith.constant dense<0.000000e+00> : vector<4x256xf32>
    %504 = tpu.matmul %502, %503, %cst_239 {dimension_numbers = #tpu.dot_dimension_numbers<[1], [0], [0], [1], [0, 0, 1, 1], [], []>} : vector<4x144xbf16>, vector<144x256xbf16>, vector<4x256xf32> -> vector<4x256xf32>
    %c1_240 = arith.constant 1 : index
    %c0_241 = arith.constant 0 : index
    %c0_242 = arith.constant 0 : index
    %505 = vector.load %arg7[%c1_240, %c0_241, %c0_242] : memref<6x4x1xf32, #tpu.memory_space<vmem>>, vector<1x4x1xf32>
    %506 = vector.shape_cast %505 : vector<1x4x1xf32> to vector<4x1xf32>
    %507 = vector.broadcast %506 : vector<4x1xf32> to vector<4x256xf32>
    %508 = arith.addf %504, %507 : vector<4x256xf32>
    %c0_243 = arith.constant 0 : index
    %c8 = arith.constant 8 : index
    %c0_244 = arith.constant 0 : index
    %509 = vector.load %arg8[%c0_243, %c8, %c0_244] : memref<1x28x256xf32, #tpu.memory_space<vmem>>, vector<1x4x256xf32>
    %510 = vector.shape_cast %509 : vector<1x4x256xf32> to vector<4x256xf32>
    %511 = vector.shape_cast %508 : vector<4x256xf32> to vector<1x4x256xf32>
    tpu.vector_store %arg8[%c0_243, %c8, %c0_244], %511 {strides = array<i32>} : memref<1x28x256xf32, #tpu.memory_space<vmem>>, vector<1x4x256xf32>,
    %c0_245 = arith.constant 0 : index
    %c0_246 = arith.constant 0 : index
    %c0_247 = arith.constant 0 : index
    %512 = vector.load %arg8[%c0_245, %c0_246, %c0_247] : memref<1x28x256xf32, #tpu.memory_space<vmem>>, vector<1x28x256xf32>
    %513 = vector.shape_cast %512 : vector<1x28x256xf32> to vector<28x256xf32>
    %c2 = arith.constant 2 : index
    %c0_248 = arith.constant 0 : index
    %c0_249 = arith.constant 0 : index
    %514 = vector.load %arg2[%c2, %c0_248, %c0_249] : memref<6x28x1xf32, #tpu.memory_space<vmem>>, vector<1x28x1xf32>
    %515 = vector.shape_cast %514 : vector<1x28x1xf32> to vector<28x1xf32>
    %516 = vector.broadcast %515 : vector<28x1xf32> to vector<28x256xf32>
    %517 = arith.mulf %513, %516 : vector<28x256xf32>
    %c2_250 = arith.constant 2 : index
    %c0_251 = arith.constant 0 : index
    %c0_252 = arith.constant 0 : index
    %518 = vector.load %arg3[%c2_250, %c0_251, %c0_252] : memref<6x28x1xf32, #tpu.memory_space<vmem>>, vector<1x28x1xf32>
    %519 = vector.shape_cast %518 : vector<1x28x1xf32> to vector<28x1xf32>
    %520 = vector.broadcast %519 : vector<28x1xf32> to vector<28x256xf32>
    %521 = arith.addf %517, %520 : vector<28x256xf32>
    %cst_253 = arith.constant 0.000000e+00 : f32
    %522 = vector.broadcast %cst_253 : f32 to vector<28x256xf32>
    %523 = arith.maximumf %521, %522 : vector<28x256xf32>
    %c2_254 = arith.constant 2 : index
    %c0_255 = arith.constant 0 : index
    %c0_256 = arith.constant 0 : index
    %524 = vector.load %arg4[%c2_254, %c0_255, %c0_256] : memref<6x16x28xbf16, #tpu.memory_space<vmem>>, vector<1x16x28xbf16>
    %525 = vector.shape_cast %524 : vector<1x16x28xbf16> to vector<16x28xbf16>
    %526 = arith.truncf %523 : vector<28x256xf32> to vector<28x256xbf16>
    %cst_257 = arith.constant dense<0.000000e+00> : vector<16x256xf32>
    %527 = tpu.matmul %525, %526, %cst_257 {dimension_numbers = #tpu.dot_dimension_numbers<[1], [0], [0], [1], [0, 0, 1, 1], [], []>} : vector<16x28xbf16>, vector<28x256xbf16>, vector<16x256xf32> -> vector<16x256xf32>
    %c2_258 = arith.constant 2 : index
    %c0_259 = arith.constant 0 : index
    %c0_260 = arith.constant 0 : index
    %528 = vector.load %arg5[%c2_258, %c0_259, %c0_260] : memref<6x16x1xf32, #tpu.memory_space<vmem>>, vector<1x16x1xf32>
    %529 = vector.shape_cast %528 : vector<1x16x1xf32> to vector<16x1xf32>
    %530 = vector.broadcast %529 : vector<16x1xf32> to vector<16x256xf32>
    %531 = arith.addf %527, %530 : vector<16x256xf32>
    %cst_261 = arith.constant 0.000000e+00 : f32
    %532 = vector.broadcast %cst_261 : f32 to vector<16x256xf32>
    %533 = arith.maximumf %531, %532 : vector<16x256xf32>
    %c17_i32_262 = arith.constant 17 : i32
    %534 = tpu.dynamic_rotate %533 by %c17_i32_262 dim 1 : vector<16x256xf32>, i32 -> vector<16x256xf32>
    %c-1_i32_263 = arith.constant -1 : i32
    %535 = vector.broadcast %c-1_i32_263 : i32 to vector<1x256xi32>
    %536 = arith.addi %25, %535 : vector<1x256xi32>
    %c0_i32_264 = arith.constant 0 : i32
    %537 = vector.broadcast %c0_i32_264 : i32 to vector<1x256xi32>
    %538 = arith.cmpi sge, %536, %537 : vector<1x256xi32>
    %c-1_i32_265 = arith.constant -1 : i32
    %539 = vector.broadcast %c-1_i32_265 : i32 to vector<1x256xi32>
    %540 = arith.addi %25, %539 : vector<1x256xi32>
    %c16_i32_266 = arith.constant 16 : i32
    %541 = vector.broadcast %c16_i32_266 : i32 to vector<1x256xi32>
    %542 = arith.cmpi slt, %540, %541 : vector<1x256xi32>
    %543 = arith.andi %538, %542 : vector<1x256xi1>
    %c-17_i32_267 = arith.constant -17 : i32
    %544 = vector.broadcast %c-17_i32_267 : i32 to vector<1x256xi32>
    %545 = arith.addi %9, %544 : vector<1x256xi32>
    %c0_i32_268 = arith.constant 0 : i32
    %546 = vector.broadcast %c0_i32_268 : i32 to vector<1x256xi32>
    %547 = arith.cmpi sge, %545, %546 : vector<1x256xi32>
    %548 = arith.andi %543, %547 : vector<1x256xi1>
    %c-17_i32_269 = arith.constant -17 : i32
    %549 = vector.broadcast %c-17_i32_269 : i32 to vector<1x256xi32>
    %550 = arith.addi %9, %549 : vector<1x256xi32>
    %c256_i32_270 = arith.constant 256 : i32
    %551 = vector.broadcast %c256_i32_270 : i32 to vector<1x256xi32>
    %552 = arith.cmpi slt, %550, %551 : vector<1x256xi32>
    %553 = arith.andi %548, %552 : vector<1x256xi1>
    %cst_271 = arith.constant 0.000000e+00 : f32
    %554 = vector.shape_cast %553 : vector<1x256xi1> to vector<1x256xi1>
    %555 = vector.broadcast %554 : vector<1x256xi1> to vector<16x256xi1>
    %556 = vector.broadcast %cst_271 : f32 to vector<16x256xf32>
    %557 = arith.select %555, %534, %556 : vector<16x256xi1>, vector<16x256xf32>
    %558 = arith.truncf %557 : vector<16x256xf32> to vector<16x256xbf16>
    %c0_272 = arith.constant 0 : index
    %c0_273 = arith.constant 0 : index
    %559 = vector.load %arg9[%c0_272, %c0_273] : memref<144x256xbf16, #tpu.memory_space<vmem>>, vector<16x256xbf16>
    tpu.vector_store %arg9[%c0_272, %c0_273], %558 {strides = array<i32>} : memref<144x256xbf16, #tpu.memory_space<vmem>>, vector<16x256xbf16>,
    %c16_i32_274 = arith.constant 16 : i32
    %560 = tpu.dynamic_rotate %533 by %c16_i32_274 dim 1 : vector<16x256xf32>, i32 -> vector<16x256xf32>
    %c0_i32_275 = arith.constant 0 : i32
    %561 = vector.broadcast %c0_i32_275 : i32 to vector<1x256xi32>
    %562 = arith.addi %25, %561 : vector<1x256xi32>
    %c0_i32_276 = arith.constant 0 : i32
    %563 = vector.broadcast %c0_i32_276 : i32 to vector<1x256xi32>
    %564 = arith.cmpi sge, %562, %563 : vector<1x256xi32>
    %c0_i32_277 = arith.constant 0 : i32
    %565 = vector.broadcast %c0_i32_277 : i32 to vector<1x256xi32>
    %566 = arith.addi %25, %565 : vector<1x256xi32>
    %c16_i32_278 = arith.constant 16 : i32
    %567 = vector.broadcast %c16_i32_278 : i32 to vector<1x256xi32>
    %568 = arith.cmpi slt, %566, %567 : vector<1x256xi32>
    %569 = arith.andi %564, %568 : vector<1x256xi1>
    %c-16_i32_279 = arith.constant -16 : i32
    %570 = vector.broadcast %c-16_i32_279 : i32 to vector<1x256xi32>
    %571 = arith.addi %9, %570 : vector<1x256xi32>
    %c0_i32_280 = arith.constant 0 : i32
    %572 = vector.broadcast %c0_i32_280 : i32 to vector<1x256xi32>
    %573 = arith.cmpi sge, %571, %572 : vector<1x256xi32>
    %574 = arith.andi %569, %573 : vector<1x256xi1>
    %c-16_i32_281 = arith.constant -16 : i32
    %575 = vector.broadcast %c-16_i32_281 : i32 to vector<1x256xi32>
    %576 = arith.addi %9, %575 : vector<1x256xi32>
    %c256_i32_282 = arith.constant 256 : i32
    %577 = vector.broadcast %c256_i32_282 : i32 to vector<1x256xi32>
    %578 = arith.cmpi slt, %576, %577 : vector<1x256xi32>
    %579 = arith.andi %574, %578 : vector<1x256xi1>
    %cst_283 = arith.constant 0.000000e+00 : f32
    %580 = vector.shape_cast %579 : vector<1x256xi1> to vector<1x256xi1>
    %581 = vector.broadcast %580 : vector<1x256xi1> to vector<16x256xi1>
    %582 = vector.broadcast %cst_283 : f32 to vector<16x256xf32>
    %583 = arith.select %581, %560, %582 : vector<16x256xi1>, vector<16x256xf32>
    %584 = arith.truncf %583 : vector<16x256xf32> to vector<16x256xbf16>
    %c16_284 = arith.constant 16 : index
    %c0_285 = arith.constant 0 : index
    %585 = vector.load %arg9[%c16_284, %c0_285] : memref<144x256xbf16, #tpu.memory_space<vmem>>, vector<16x256xbf16>
    tpu.vector_store %arg9[%c16_284, %c0_285], %584 {strides = array<i32>} : memref<144x256xbf16, #tpu.memory_space<vmem>>, vector<16x256xbf16>,
    %c15_i32_286 = arith.constant 15 : i32
    %586 = tpu.dynamic_rotate %533 by %c15_i32_286 dim 1 : vector<16x256xf32>, i32 -> vector<16x256xf32>
    %c1_i32_287 = arith.constant 1 : i32
    %587 = vector.broadcast %c1_i32_287 : i32 to vector<1x256xi32>
    %588 = arith.addi %25, %587 : vector<1x256xi32>
    %c0_i32_288 = arith.constant 0 : i32
    %589 = vector.broadcast %c0_i32_288 : i32 to vector<1x256xi32>
    %590 = arith.cmpi sge, %588, %589 : vector<1x256xi32>
    %c1_i32_289 = arith.constant 1 : i32
    %591 = vector.broadcast %c1_i32_289 : i32 to vector<1x256xi32>
    %592 = arith.addi %25, %591 : vector<1x256xi32>
    %c16_i32_290 = arith.constant 16 : i32
    %593 = vector.broadcast %c16_i32_290 : i32 to vector<1x256xi32>
    %594 = arith.cmpi slt, %592, %593 : vector<1x256xi32>
    %595 = arith.andi %590, %594 : vector<1x256xi1>
    %c-15_i32_291 = arith.constant -15 : i32
    %596 = vector.broadcast %c-15_i32_291 : i32 to vector<1x256xi32>
    %597 = arith.addi %9, %596 : vector<1x256xi32>
    %c0_i32_292 = arith.constant 0 : i32
    %598 = vector.broadcast %c0_i32_292 : i32 to vector<1x256xi32>
    %599 = arith.cmpi sge, %597, %598 : vector<1x256xi32>
    %600 = arith.andi %595, %599 : vector<1x256xi1>
    %c-15_i32_293 = arith.constant -15 : i32
    %601 = vector.broadcast %c-15_i32_293 : i32 to vector<1x256xi32>
    %602 = arith.addi %9, %601 : vector<1x256xi32>
    %c256_i32_294 = arith.constant 256 : i32
    %603 = vector.broadcast %c256_i32_294 : i32 to vector<1x256xi32>
    %604 = arith.cmpi slt, %602, %603 : vector<1x256xi32>
    %605 = arith.andi %600, %604 : vector<1x256xi1>
    %cst_295 = arith.constant 0.000000e+00 : f32
    %606 = vector.shape_cast %605 : vector<1x256xi1> to vector<1x256xi1>
    %607 = vector.broadcast %606 : vector<1x256xi1> to vector<16x256xi1>
    %608 = vector.broadcast %cst_295 : f32 to vector<16x256xf32>
    %609 = arith.select %607, %586, %608 : vector<16x256xi1>, vector<16x256xf32>
    %610 = arith.truncf %609 : vector<16x256xf32> to vector<16x256xbf16>
    %c32_296 = arith.constant 32 : index
    %c0_297 = arith.constant 0 : index
    %611 = vector.load %arg9[%c32_296, %c0_297] : memref<144x256xbf16, #tpu.memory_space<vmem>>, vector<16x256xbf16>
    tpu.vector_store %arg9[%c32_296, %c0_297], %610 {strides = array<i32>} : memref<144x256xbf16, #tpu.memory_space<vmem>>, vector<16x256xbf16>,
    %c1_i32_298 = arith.constant 1 : i32
    %612 = tpu.dynamic_rotate %533 by %c1_i32_298 dim 1 : vector<16x256xf32>, i32 -> vector<16x256xf32>
    %c-1_i32_299 = arith.constant -1 : i32
    %613 = vector.broadcast %c-1_i32_299 : i32 to vector<1x256xi32>
    %614 = arith.addi %25, %613 : vector<1x256xi32>
    %c0_i32_300 = arith.constant 0 : i32
    %615 = vector.broadcast %c0_i32_300 : i32 to vector<1x256xi32>
    %616 = arith.cmpi sge, %614, %615 : vector<1x256xi32>
    %c-1_i32_301 = arith.constant -1 : i32
    %617 = vector.broadcast %c-1_i32_301 : i32 to vector<1x256xi32>
    %618 = arith.addi %25, %617 : vector<1x256xi32>
    %c16_i32_302 = arith.constant 16 : i32
    %619 = vector.broadcast %c16_i32_302 : i32 to vector<1x256xi32>
    %620 = arith.cmpi slt, %618, %619 : vector<1x256xi32>
    %621 = arith.andi %616, %620 : vector<1x256xi1>
    %c-1_i32_303 = arith.constant -1 : i32
    %622 = vector.broadcast %c-1_i32_303 : i32 to vector<1x256xi32>
    %623 = arith.addi %9, %622 : vector<1x256xi32>
    %c0_i32_304 = arith.constant 0 : i32
    %624 = vector.broadcast %c0_i32_304 : i32 to vector<1x256xi32>
    %625 = arith.cmpi sge, %623, %624 : vector<1x256xi32>
    %626 = arith.andi %621, %625 : vector<1x256xi1>
    %c-1_i32_305 = arith.constant -1 : i32
    %627 = vector.broadcast %c-1_i32_305 : i32 to vector<1x256xi32>
    %628 = arith.addi %9, %627 : vector<1x256xi32>
    %c256_i32_306 = arith.constant 256 : i32
    %629 = vector.broadcast %c256_i32_306 : i32 to vector<1x256xi32>
    %630 = arith.cmpi slt, %628, %629 : vector<1x256xi32>
    %631 = arith.andi %626, %630 : vector<1x256xi1>
    %cst_307 = arith.constant 0.000000e+00 : f32
    %632 = vector.shape_cast %631 : vector<1x256xi1> to vector<1x256xi1>
    %633 = vector.broadcast %632 : vector<1x256xi1> to vector<16x256xi1>
    %634 = vector.broadcast %cst_307 : f32 to vector<16x256xf32>
    %635 = arith.select %633, %612, %634 : vector<16x256xi1>, vector<16x256xf32>
    %636 = arith.truncf %635 : vector<16x256xf32> to vector<16x256xbf16>
    %c48_308 = arith.constant 48 : index
    %c0_309 = arith.constant 0 : index
    %637 = vector.load %arg9[%c48_308, %c0_309] : memref<144x256xbf16, #tpu.memory_space<vmem>>, vector<16x256xbf16>
    tpu.vector_store %arg9[%c48_308, %c0_309], %636 {strides = array<i32>} : memref<144x256xbf16, #tpu.memory_space<vmem>>, vector<16x256xbf16>,
    %638 = arith.truncf %533 : vector<16x256xf32> to vector<16x256xbf16>
    %c64_310 = arith.constant 64 : index
    %c0_311 = arith.constant 0 : index
    %639 = vector.load %arg9[%c64_310, %c0_311] : memref<144x256xbf16, #tpu.memory_space<vmem>>, vector<16x256xbf16>
    tpu.vector_store %arg9[%c64_310, %c0_311], %638 {strides = array<i32>} : memref<144x256xbf16, #tpu.memory_space<vmem>>, vector<16x256xbf16>,
    %c255_i32_312 = arith.constant 255 : i32
    %640 = tpu.dynamic_rotate %533 by %c255_i32_312 dim 1 : vector<16x256xf32>, i32 -> vector<16x256xf32>
    %c1_i32_313 = arith.constant 1 : i32
    %641 = vector.broadcast %c1_i32_313 : i32 to vector<1x256xi32>
    %642 = arith.addi %25, %641 : vector<1x256xi32>
    %c0_i32_314 = arith.constant 0 : i32
    %643 = vector.broadcast %c0_i32_314 : i32 to vector<1x256xi32>
    %644 = arith.cmpi sge, %642, %643 : vector<1x256xi32>
    %c1_i32_315 = arith.constant 1 : i32
    %645 = vector.broadcast %c1_i32_315 : i32 to vector<1x256xi32>
    %646 = arith.addi %25, %645 : vector<1x256xi32>
    %c16_i32_316 = arith.constant 16 : i32
    %647 = vector.broadcast %c16_i32_316 : i32 to vector<1x256xi32>
    %648 = arith.cmpi slt, %646, %647 : vector<1x256xi32>
    %649 = arith.andi %644, %648 : vector<1x256xi1>
    %c1_i32_317 = arith.constant 1 : i32
    %650 = vector.broadcast %c1_i32_317 : i32 to vector<1x256xi32>
    %651 = arith.addi %9, %650 : vector<1x256xi32>
    %c0_i32_318 = arith.constant 0 : i32
    %652 = vector.broadcast %c0_i32_318 : i32 to vector<1x256xi32>
    %653 = arith.cmpi sge, %651, %652 : vector<1x256xi32>
    %654 = arith.andi %649, %653 : vector<1x256xi1>
    %c1_i32_319 = arith.constant 1 : i32
    %655 = vector.broadcast %c1_i32_319 : i32 to vector<1x256xi32>
    %656 = arith.addi %9, %655 : vector<1x256xi32>
    %c256_i32_320 = arith.constant 256 : i32
    %657 = vector.broadcast %c256_i32_320 : i32 to vector<1x256xi32>
    %658 = arith.cmpi slt, %656, %657 : vector<1x256xi32>
    %659 = arith.andi %654, %658 : vector<1x256xi1>
    %cst_321 = arith.constant 0.000000e+00 : f32
    %660 = vector.shape_cast %659 : vector<1x256xi1> to vector<1x256xi1>
    %661 = vector.broadcast %660 : vector<1x256xi1> to vector<16x256xi1>
    %662 = vector.broadcast %cst_321 : f32 to vector<16x256xf32>
    %663 = arith.select %661, %640, %662 : vector<16x256xi1>, vector<16x256xf32>
    %664 = arith.truncf %663 : vector<16x256xf32> to vector<16x256xbf16>
    %c80_322 = arith.constant 80 : index
    %c0_323 = arith.constant 0 : index
    %665 = vector.load %arg9[%c80_322, %c0_323] : memref<144x256xbf16, #tpu.memory_space<vmem>>, vector<16x256xbf16>
    tpu.vector_store %arg9[%c80_322, %c0_323], %664 {strides = array<i32>} : memref<144x256xbf16, #tpu.memory_space<vmem>>, vector<16x256xbf16>,
    %c241_i32_324 = arith.constant 241 : i32
    %666 = tpu.dynamic_rotate %533 by %c241_i32_324 dim 1 : vector<16x256xf32>, i32 -> vector<16x256xf32>
    %c-1_i32_325 = arith.constant -1 : i32
    %667 = vector.broadcast %c-1_i32_325 : i32 to vector<1x256xi32>
    %668 = arith.addi %25, %667 : vector<1x256xi32>
    %c0_i32_326 = arith.constant 0 : i32
    %669 = vector.broadcast %c0_i32_326 : i32 to vector<1x256xi32>
    %670 = arith.cmpi sge, %668, %669 : vector<1x256xi32>
    %c-1_i32_327 = arith.constant -1 : i32
    %671 = vector.broadcast %c-1_i32_327 : i32 to vector<1x256xi32>
    %672 = arith.addi %25, %671 : vector<1x256xi32>
    %c16_i32_328 = arith.constant 16 : i32
    %673 = vector.broadcast %c16_i32_328 : i32 to vector<1x256xi32>
    %674 = arith.cmpi slt, %672, %673 : vector<1x256xi32>
    %675 = arith.andi %670, %674 : vector<1x256xi1>
    %c15_i32_329 = arith.constant 15 : i32
    %676 = vector.broadcast %c15_i32_329 : i32 to vector<1x256xi32>
    %677 = arith.addi %9, %676 : vector<1x256xi32>
    %c0_i32_330 = arith.constant 0 : i32
    %678 = vector.broadcast %c0_i32_330 : i32 to vector<1x256xi32>
    %679 = arith.cmpi sge, %677, %678 : vector<1x256xi32>
    %680 = arith.andi %675, %679 : vector<1x256xi1>
    %c15_i32_331 = arith.constant 15 : i32
    %681 = vector.broadcast %c15_i32_331 : i32 to vector<1x256xi32>
    %682 = arith.addi %9, %681 : vector<1x256xi32>
    %c256_i32_332 = arith.constant 256 : i32
    %683 = vector.broadcast %c256_i32_332 : i32 to vector<1x256xi32>
    %684 = arith.cmpi slt, %682, %683 : vector<1x256xi32>
    %685 = arith.andi %680, %684 : vector<1x256xi1>
    %cst_333 = arith.constant 0.000000e+00 : f32
    %686 = vector.shape_cast %685 : vector<1x256xi1> to vector<1x256xi1>
    %687 = vector.broadcast %686 : vector<1x256xi1> to vector<16x256xi1>
    %688 = vector.broadcast %cst_333 : f32 to vector<16x256xf32>
    %689 = arith.select %687, %666, %688 : vector<16x256xi1>, vector<16x256xf32>
    %690 = arith.truncf %689 : vector<16x256xf32> to vector<16x256xbf16>
    %c96_334 = arith.constant 96 : index
    %c0_335 = arith.constant 0 : index
    %691 = vector.load %arg9[%c96_334, %c0_335] : memref<144x256xbf16, #tpu.memory_space<vmem>>, vector<16x256xbf16>
    tpu.vector_store %arg9[%c96_334, %c0_335], %690 {strides = array<i32>} : memref<144x256xbf16, #tpu.memory_space<vmem>>, vector<16x256xbf16>,
    %c240_i32_336 = arith.constant 240 : i32
    %692 = tpu.dynamic_rotate %533 by %c240_i32_336 dim 1 : vector<16x256xf32>, i32 -> vector<16x256xf32>
    %c0_i32_337 = arith.constant 0 : i32
    %693 = vector.broadcast %c0_i32_337 : i32 to vector<1x256xi32>
    %694 = arith.addi %25, %693 : vector<1x256xi32>
    %c0_i32_338 = arith.constant 0 : i32
    %695 = vector.broadcast %c0_i32_338 : i32 to vector<1x256xi32>
    %696 = arith.cmpi sge, %694, %695 : vector<1x256xi32>
    %c0_i32_339 = arith.constant 0 : i32
    %697 = vector.broadcast %c0_i32_339 : i32 to vector<1x256xi32>
    %698 = arith.addi %25, %697 : vector<1x256xi32>
    %c16_i32_340 = arith.constant 16 : i32
    %699 = vector.broadcast %c16_i32_340 : i32 to vector<1x256xi32>
    %700 = arith.cmpi slt, %698, %699 : vector<1x256xi32>
    %701 = arith.andi %696, %700 : vector<1x256xi1>
    %c16_i32_341 = arith.constant 16 : i32
    %702 = vector.broadcast %c16_i32_341 : i32 to vector<1x256xi32>
    %703 = arith.addi %9, %702 : vector<1x256xi32>
    %c0_i32_342 = arith.constant 0 : i32
    %704 = vector.broadcast %c0_i32_342 : i32 to vector<1x256xi32>
    %705 = arith.cmpi sge, %703, %704 : vector<1x256xi32>
    %706 = arith.andi %701, %705 : vector<1x256xi1>
    %c16_i32_343 = arith.constant 16 : i32
    %707 = vector.broadcast %c16_i32_343 : i32 to vector<1x256xi32>
    %708 = arith.addi %9, %707 : vector<1x256xi32>
    %c256_i32_344 = arith.constant 256 : i32
    %709 = vector.broadcast %c256_i32_344 : i32 to vector<1x256xi32>
    %710 = arith.cmpi slt, %708, %709 : vector<1x256xi32>
    %711 = arith.andi %706, %710 : vector<1x256xi1>
    %cst_345 = arith.constant 0.000000e+00 : f32
    %712 = vector.shape_cast %711 : vector<1x256xi1> to vector<1x256xi1>
    %713 = vector.broadcast %712 : vector<1x256xi1> to vector<16x256xi1>
    %714 = vector.broadcast %cst_345 : f32 to vector<16x256xf32>
    %715 = arith.select %713, %692, %714 : vector<16x256xi1>, vector<16x256xf32>
    %716 = arith.truncf %715 : vector<16x256xf32> to vector<16x256xbf16>
    %c112_346 = arith.constant 112 : index
    %c0_347 = arith.constant 0 : index
    %717 = vector.load %arg9[%c112_346, %c0_347] : memref<144x256xbf16, #tpu.memory_space<vmem>>, vector<16x256xbf16>
    tpu.vector_store %arg9[%c112_346, %c0_347], %716 {strides = array<i32>} : memref<144x256xbf16, #tpu.memory_space<vmem>>, vector<16x256xbf16>,
    %c239_i32_348 = arith.constant 239 : i32
    %718 = tpu.dynamic_rotate %533 by %c239_i32_348 dim 1 : vector<16x256xf32>, i32 -> vector<16x256xf32>
    %c1_i32_349 = arith.constant 1 : i32
    %719 = vector.broadcast %c1_i32_349 : i32 to vector<1x256xi32>
    %720 = arith.addi %25, %719 : vector<1x256xi32>
    %c0_i32_350 = arith.constant 0 : i32
    %721 = vector.broadcast %c0_i32_350 : i32 to vector<1x256xi32>
    %722 = arith.cmpi sge, %720, %721 : vector<1x256xi32>
    %c1_i32_351 = arith.constant 1 : i32
    %723 = vector.broadcast %c1_i32_351 : i32 to vector<1x256xi32>
    %724 = arith.addi %25, %723 : vector<1x256xi32>
    %c16_i32_352 = arith.constant 16 : i32
    %725 = vector.broadcast %c16_i32_352 : i32 to vector<1x256xi32>
    %726 = arith.cmpi slt, %724, %725 : vector<1x256xi32>
    %727 = arith.andi %722, %726 : vector<1x256xi1>
    %c17_i32_353 = arith.constant 17 : i32
    %728 = vector.broadcast %c17_i32_353 : i32 to vector<1x256xi32>
    %729 = arith.addi %9, %728 : vector<1x256xi32>
    %c0_i32_354 = arith.constant 0 : i32
    %730 = vector.broadcast %c0_i32_354 : i32 to vector<1x256xi32>
    %731 = arith.cmpi sge, %729, %730 : vector<1x256xi32>
    %732 = arith.andi %727, %731 : vector<1x256xi1>
    %c17_i32_355 = arith.constant 17 : i32
    %733 = vector.broadcast %c17_i32_355 : i32 to vector<1x256xi32>
    %734 = arith.addi %9, %733 : vector<1x256xi32>
    %c256_i32_356 = arith.constant 256 : i32
    %735 = vector.broadcast %c256_i32_356 : i32 to vector<1x256xi32>
    %736 = arith.cmpi slt, %734, %735 : vector<1x256xi32>
    %737 = arith.andi %732, %736 : vector<1x256xi1>
    %cst_357 = arith.constant 0.000000e+00 : f32
    %738 = vector.shape_cast %737 : vector<1x256xi1> to vector<1x256xi1>
    %739 = vector.broadcast %738 : vector<1x256xi1> to vector<16x256xi1>
    %740 = vector.broadcast %cst_357 : f32 to vector<16x256xf32>
    %741 = arith.select %739, %718, %740 : vector<16x256xi1>, vector<16x256xf32>
    %742 = arith.truncf %741 : vector<16x256xf32> to vector<16x256xbf16>
    %c128_358 = arith.constant 128 : index
    %c0_359 = arith.constant 0 : index
    %743 = vector.load %arg9[%c128_358, %c0_359] : memref<144x256xbf16, #tpu.memory_space<vmem>>, vector<16x256xbf16>
    tpu.vector_store %arg9[%c128_358, %c0_359], %742 {strides = array<i32>} : memref<144x256xbf16, #tpu.memory_space<vmem>>, vector<16x256xbf16>,
    %c2_360 = arith.constant 2 : index
    %c0_361 = arith.constant 0 : index
    %c0_362 = arith.constant 0 : index
    %744 = vector.load %arg6[%c2_360, %c0_361, %c0_362] : memref<6x4x144xbf16, #tpu.memory_space<vmem>>, vector<1x4x144xbf16>
    %745 = vector.shape_cast %744 : vector<1x4x144xbf16> to vector<4x144xbf16>
    %c0_363 = arith.constant 0 : index
    %c0_364 = arith.constant 0 : index
    %746 = vector.load %arg9[%c0_363, %c0_364] : memref<144x256xbf16, #tpu.memory_space<vmem>>, vector<144x256xbf16>
    %cst_365 = arith.constant dense<0.000000e+00> : vector<4x256xf32>
    %747 = tpu.matmul %745, %746, %cst_365 {dimension_numbers = #tpu.dot_dimension_numbers<[1], [0], [0], [1], [0, 0, 1, 1], [], []>} : vector<4x144xbf16>, vector<144x256xbf16>, vector<4x256xf32> -> vector<4x256xf32>
    %c2_366 = arith.constant 2 : index
    %c0_367 = arith.constant 0 : index
    %c0_368 = arith.constant 0 : index
    %748 = vector.load %arg7[%c2_366, %c0_367, %c0_368] : memref<6x4x1xf32, #tpu.memory_space<vmem>>, vector<1x4x1xf32>
    %749 = vector.shape_cast %748 : vector<1x4x1xf32> to vector<4x1xf32>
    %750 = vector.broadcast %749 : vector<4x1xf32> to vector<4x256xf32>
    %751 = arith.addf %747, %750 : vector<4x256xf32>
    %c0_369 = arith.constant 0 : index
    %c12 = arith.constant 12 : index
    %c0_370 = arith.constant 0 : index
    %752 = vector.load %arg8[%c0_369, %c12, %c0_370] : memref<1x28x256xf32, #tpu.memory_space<vmem>>, vector<1x4x256xf32>
    %753 = vector.shape_cast %752 : vector<1x4x256xf32> to vector<4x256xf32>
    %754 = vector.shape_cast %751 : vector<4x256xf32> to vector<1x4x256xf32>
    tpu.vector_store %arg8[%c0_369, %c12, %c0_370], %754 {strides = array<i32>} : memref<1x28x256xf32, #tpu.memory_space<vmem>>, vector<1x4x256xf32>,
    %c0_371 = arith.constant 0 : index
    %c0_372 = arith.constant 0 : index
    %c0_373 = arith.constant 0 : index
    %755 = vector.load %arg8[%c0_371, %c0_372, %c0_373] : memref<1x28x256xf32, #tpu.memory_space<vmem>>, vector<1x28x256xf32>
    %756 = vector.shape_cast %755 : vector<1x28x256xf32> to vector<28x256xf32>
    %c3 = arith.constant 3 : index
    %c0_374 = arith.constant 0 : index
    %c0_375 = arith.constant 0 : index
    %757 = vector.load %arg2[%c3, %c0_374, %c0_375] : memref<6x28x1xf32, #tpu.memory_space<vmem>>, vector<1x28x1xf32>
    %758 = vector.shape_cast %757 : vector<1x28x1xf32> to vector<28x1xf32>
    %759 = vector.broadcast %758 : vector<28x1xf32> to vector<28x256xf32>
    %760 = arith.mulf %756, %759 : vector<28x256xf32>
    %c3_376 = arith.constant 3 : index
    %c0_377 = arith.constant 0 : index
    %c0_378 = arith.constant 0 : index
    %761 = vector.load %arg3[%c3_376, %c0_377, %c0_378] : memref<6x28x1xf32, #tpu.memory_space<vmem>>, vector<1x28x1xf32>
    %762 = vector.shape_cast %761 : vector<1x28x1xf32> to vector<28x1xf32>
    %763 = vector.broadcast %762 : vector<28x1xf32> to vector<28x256xf32>
    %764 = arith.addf %760, %763 : vector<28x256xf32>
    %cst_379 = arith.constant 0.000000e+00 : f32
    %765 = vector.broadcast %cst_379 : f32 to vector<28x256xf32>
    %766 = arith.maximumf %764, %765 : vector<28x256xf32>
    %c3_380 = arith.constant 3 : index
    %c0_381 = arith.constant 0 : index
    %c0_382 = arith.constant 0 : index
    %767 = vector.load %arg4[%c3_380, %c0_381, %c0_382] : memref<6x16x28xbf16, #tpu.memory_space<vmem>>, vector<1x16x28xbf16>
    %768 = vector.shape_cast %767 : vector<1x16x28xbf16> to vector<16x28xbf16>
    %769 = arith.truncf %766 : vector<28x256xf32> to vector<28x256xbf16>
    %cst_383 = arith.constant dense<0.000000e+00> : vector<16x256xf32>
    %770 = tpu.matmul %768, %769, %cst_383 {dimension_numbers = #tpu.dot_dimension_numbers<[1], [0], [0], [1], [0, 0, 1, 1], [], []>} : vector<16x28xbf16>, vector<28x256xbf16>, vector<16x256xf32> -> vector<16x256xf32>
    %c3_384 = arith.constant 3 : index
    %c0_385 = arith.constant 0 : index
    %c0_386 = arith.constant 0 : index
    %771 = vector.load %arg5[%c3_384, %c0_385, %c0_386] : memref<6x16x1xf32, #tpu.memory_space<vmem>>, vector<1x16x1xf32>
    %772 = vector.shape_cast %771 : vector<1x16x1xf32> to vector<16x1xf32>
    %773 = vector.broadcast %772 : vector<16x1xf32> to vector<16x256xf32>
    %774 = arith.addf %770, %773 : vector<16x256xf32>
    %cst_387 = arith.constant 0.000000e+00 : f32
    %775 = vector.broadcast %cst_387 : f32 to vector<16x256xf32>
    %776 = arith.maximumf %774, %775 : vector<16x256xf32>
    %c17_i32_388 = arith.constant 17 : i32
    %777 = tpu.dynamic_rotate %776 by %c17_i32_388 dim 1 : vector<16x256xf32>, i32 -> vector<16x256xf32>
    %c-1_i32_389 = arith.constant -1 : i32
    %778 = vector.broadcast %c-1_i32_389 : i32 to vector<1x256xi32>
    %779 = arith.addi %25, %778 : vector<1x256xi32>
    %c0_i32_390 = arith.constant 0 : i32
    %780 = vector.broadcast %c0_i32_390 : i32 to vector<1x256xi32>
    %781 = arith.cmpi sge, %779, %780 : vector<1x256xi32>
    %c-1_i32_391 = arith.constant -1 : i32
    %782 = vector.broadcast %c-1_i32_391 : i32 to vector<1x256xi32>
    %783 = arith.addi %25, %782 : vector<1x256xi32>
    %c16_i32_392 = arith.constant 16 : i32
    %784 = vector.broadcast %c16_i32_392 : i32 to vector<1x256xi32>
    %785 = arith.cmpi slt, %783, %784 : vector<1x256xi32>
    %786 = arith.andi %781, %785 : vector<1x256xi1>
    %c-17_i32_393 = arith.constant -17 : i32
    %787 = vector.broadcast %c-17_i32_393 : i32 to vector<1x256xi32>
    %788 = arith.addi %9, %787 : vector<1x256xi32>
    %c0_i32_394 = arith.constant 0 : i32
    %789 = vector.broadcast %c0_i32_394 : i32 to vector<1x256xi32>
    %790 = arith.cmpi sge, %788, %789 : vector<1x256xi32>
    %791 = arith.andi %786, %790 : vector<1x256xi1>
    %c-17_i32_395 = arith.constant -17 : i32
    %792 = vector.broadcast %c-17_i32_395 : i32 to vector<1x256xi32>
    %793 = arith.addi %9, %792 : vector<1x256xi32>
    %c256_i32_396 = arith.constant 256 : i32
    %794 = vector.broadcast %c256_i32_396 : i32 to vector<1x256xi32>
    %795 = arith.cmpi slt, %793, %794 : vector<1x256xi32>
    %796 = arith.andi %791, %795 : vector<1x256xi1>
    %cst_397 = arith.constant 0.000000e+00 : f32
    %797 = vector.shape_cast %796 : vector<1x256xi1> to vector<1x256xi1>
    %798 = vector.broadcast %797 : vector<1x256xi1> to vector<16x256xi1>
    %799 = vector.broadcast %cst_397 : f32 to vector<16x256xf32>
    %800 = arith.select %798, %777, %799 : vector<16x256xi1>, vector<16x256xf32>
    %801 = arith.truncf %800 : vector<16x256xf32> to vector<16x256xbf16>
    %c0_398 = arith.constant 0 : index
    %c0_399 = arith.constant 0 : index
    %802 = vector.load %arg9[%c0_398, %c0_399] : memref<144x256xbf16, #tpu.memory_space<vmem>>, vector<16x256xbf16>
    tpu.vector_store %arg9[%c0_398, %c0_399], %801 {strides = array<i32>} : memref<144x256xbf16, #tpu.memory_space<vmem>>, vector<16x256xbf16>,
    %c16_i32_400 = arith.constant 16 : i32
    %803 = tpu.dynamic_rotate %776 by %c16_i32_400 dim 1 : vector<16x256xf32>, i32 -> vector<16x256xf32>
    %c0_i32_401 = arith.constant 0 : i32
    %804 = vector.broadcast %c0_i32_401 : i32 to vector<1x256xi32>
    %805 = arith.addi %25, %804 : vector<1x256xi32>
    %c0_i32_402 = arith.constant 0 : i32
    %806 = vector.broadcast %c0_i32_402 : i32 to vector<1x256xi32>
    %807 = arith.cmpi sge, %805, %806 : vector<1x256xi32>
    %c0_i32_403 = arith.constant 0 : i32
    %808 = vector.broadcast %c0_i32_403 : i32 to vector<1x256xi32>
    %809 = arith.addi %25, %808 : vector<1x256xi32>
    %c16_i32_404 = arith.constant 16 : i32
    %810 = vector.broadcast %c16_i32_404 : i32 to vector<1x256xi32>
    %811 = arith.cmpi slt, %809, %810 : vector<1x256xi32>
    %812 = arith.andi %807, %811 : vector<1x256xi1>
    %c-16_i32_405 = arith.constant -16 : i32
    %813 = vector.broadcast %c-16_i32_405 : i32 to vector<1x256xi32>
    %814 = arith.addi %9, %813 : vector<1x256xi32>
    %c0_i32_406 = arith.constant 0 : i32
    %815 = vector.broadcast %c0_i32_406 : i32 to vector<1x256xi32>
    %816 = arith.cmpi sge, %814, %815 : vector<1x256xi32>
    %817 = arith.andi %812, %816 : vector<1x256xi1>
    %c-16_i32_407 = arith.constant -16 : i32
    %818 = vector.broadcast %c-16_i32_407 : i32 to vector<1x256xi32>
    %819 = arith.addi %9, %818 : vector<1x256xi32>
    %c256_i32_408 = arith.constant 256 : i32
    %820 = vector.broadcast %c256_i32_408 : i32 to vector<1x256xi32>
    %821 = arith.cmpi slt, %819, %820 : vector<1x256xi32>
    %822 = arith.andi %817, %821 : vector<1x256xi1>
    %cst_409 = arith.constant 0.000000e+00 : f32
    %823 = vector.shape_cast %822 : vector<1x256xi1> to vector<1x256xi1>
    %824 = vector.broadcast %823 : vector<1x256xi1> to vector<16x256xi1>
    %825 = vector.broadcast %cst_409 : f32 to vector<16x256xf32>
    %826 = arith.select %824, %803, %825 : vector<16x256xi1>, vector<16x256xf32>
    %827 = arith.truncf %826 : vector<16x256xf32> to vector<16x256xbf16>
    %c16_410 = arith.constant 16 : index
    %c0_411 = arith.constant 0 : index
    %828 = vector.load %arg9[%c16_410, %c0_411] : memref<144x256xbf16, #tpu.memory_space<vmem>>, vector<16x256xbf16>
    tpu.vector_store %arg9[%c16_410, %c0_411], %827 {strides = array<i32>} : memref<144x256xbf16, #tpu.memory_space<vmem>>, vector<16x256xbf16>,
    %c15_i32_412 = arith.constant 15 : i32
    %829 = tpu.dynamic_rotate %776 by %c15_i32_412 dim 1 : vector<16x256xf32>, i32 -> vector<16x256xf32>
    %c1_i32_413 = arith.constant 1 : i32
    %830 = vector.broadcast %c1_i32_413 : i32 to vector<1x256xi32>
    %831 = arith.addi %25, %830 : vector<1x256xi32>
    %c0_i32_414 = arith.constant 0 : i32
    %832 = vector.broadcast %c0_i32_414 : i32 to vector<1x256xi32>
    %833 = arith.cmpi sge, %831, %832 : vector<1x256xi32>
    %c1_i32_415 = arith.constant 1 : i32
    %834 = vector.broadcast %c1_i32_415 : i32 to vector<1x256xi32>
    %835 = arith.addi %25, %834 : vector<1x256xi32>
    %c16_i32_416 = arith.constant 16 : i32
    %836 = vector.broadcast %c16_i32_416 : i32 to vector<1x256xi32>
    %837 = arith.cmpi slt, %835, %836 : vector<1x256xi32>
    %838 = arith.andi %833, %837 : vector<1x256xi1>
    %c-15_i32_417 = arith.constant -15 : i32
    %839 = vector.broadcast %c-15_i32_417 : i32 to vector<1x256xi32>
    %840 = arith.addi %9, %839 : vector<1x256xi32>
    %c0_i32_418 = arith.constant 0 : i32
    %841 = vector.broadcast %c0_i32_418 : i32 to vector<1x256xi32>
    %842 = arith.cmpi sge, %840, %841 : vector<1x256xi32>
    %843 = arith.andi %838, %842 : vector<1x256xi1>
    %c-15_i32_419 = arith.constant -15 : i32
    %844 = vector.broadcast %c-15_i32_419 : i32 to vector<1x256xi32>
    %845 = arith.addi %9, %844 : vector<1x256xi32>
    %c256_i32_420 = arith.constant 256 : i32
    %846 = vector.broadcast %c256_i32_420 : i32 to vector<1x256xi32>
    %847 = arith.cmpi slt, %845, %846 : vector<1x256xi32>
    %848 = arith.andi %843, %847 : vector<1x256xi1>
    %cst_421 = arith.constant 0.000000e+00 : f32
    %849 = vector.shape_cast %848 : vector<1x256xi1> to vector<1x256xi1>
    %850 = vector.broadcast %849 : vector<1x256xi1> to vector<16x256xi1>
    %851 = vector.broadcast %cst_421 : f32 to vector<16x256xf32>
    %852 = arith.select %850, %829, %851 : vector<16x256xi1>, vector<16x256xf32>
    %853 = arith.truncf %852 : vector<16x256xf32> to vector<16x256xbf16>
    %c32_422 = arith.constant 32 : index
    %c0_423 = arith.constant 0 : index
    %854 = vector.load %arg9[%c32_422, %c0_423] : memref<144x256xbf16, #tpu.memory_space<vmem>>, vector<16x256xbf16>
    tpu.vector_store %arg9[%c32_422, %c0_423], %853 {strides = array<i32>} : memref<144x256xbf16, #tpu.memory_space<vmem>>, vector<16x256xbf16>,
    %c1_i32_424 = arith.constant 1 : i32
    %855 = tpu.dynamic_rotate %776 by %c1_i32_424 dim 1 : vector<16x256xf32>, i32 -> vector<16x256xf32>
    %c-1_i32_425 = arith.constant -1 : i32
    %856 = vector.broadcast %c-1_i32_425 : i32 to vector<1x256xi32>
    %857 = arith.addi %25, %856 : vector<1x256xi32>
    %c0_i32_426 = arith.constant 0 : i32
    %858 = vector.broadcast %c0_i32_426 : i32 to vector<1x256xi32>
    %859 = arith.cmpi sge, %857, %858 : vector<1x256xi32>
    %c-1_i32_427 = arith.constant -1 : i32
    %860 = vector.broadcast %c-1_i32_427 : i32 to vector<1x256xi32>
    %861 = arith.addi %25, %860 : vector<1x256xi32>
    %c16_i32_428 = arith.constant 16 : i32
    %862 = vector.broadcast %c16_i32_428 : i32 to vector<1x256xi32>
    %863 = arith.cmpi slt, %861, %862 : vector<1x256xi32>
    %864 = arith.andi %859, %863 : vector<1x256xi1>
    %c-1_i32_429 = arith.constant -1 : i32
    %865 = vector.broadcast %c-1_i32_429 : i32 to vector<1x256xi32>
    %866 = arith.addi %9, %865 : vector<1x256xi32>
    %c0_i32_430 = arith.constant 0 : i32
    %867 = vector.broadcast %c0_i32_430 : i32 to vector<1x256xi32>
    %868 = arith.cmpi sge, %866, %867 : vector<1x256xi32>
    %869 = arith.andi %864, %868 : vector<1x256xi1>
    %c-1_i32_431 = arith.constant -1 : i32
    %870 = vector.broadcast %c-1_i32_431 : i32 to vector<1x256xi32>
    %871 = arith.addi %9, %870 : vector<1x256xi32>
    %c256_i32_432 = arith.constant 256 : i32
    %872 = vector.broadcast %c256_i32_432 : i32 to vector<1x256xi32>
    %873 = arith.cmpi slt, %871, %872 : vector<1x256xi32>
    %874 = arith.andi %869, %873 : vector<1x256xi1>
    %cst_433 = arith.constant 0.000000e+00 : f32
    %875 = vector.shape_cast %874 : vector<1x256xi1> to vector<1x256xi1>
    %876 = vector.broadcast %875 : vector<1x256xi1> to vector<16x256xi1>
    %877 = vector.broadcast %cst_433 : f32 to vector<16x256xf32>
    %878 = arith.select %876, %855, %877 : vector<16x256xi1>, vector<16x256xf32>
    %879 = arith.truncf %878 : vector<16x256xf32> to vector<16x256xbf16>
    %c48_434 = arith.constant 48 : index
    %c0_435 = arith.constant 0 : index
    %880 = vector.load %arg9[%c48_434, %c0_435] : memref<144x256xbf16, #tpu.memory_space<vmem>>, vector<16x256xbf16>
    tpu.vector_store %arg9[%c48_434, %c0_435], %879 {strides = array<i32>} : memref<144x256xbf16, #tpu.memory_space<vmem>>, vector<16x256xbf16>,
    %881 = arith.truncf %776 : vector<16x256xf32> to vector<16x256xbf16>
    %c64_436 = arith.constant 64 : index
    %c0_437 = arith.constant 0 : index
    %882 = vector.load %arg9[%c64_436, %c0_437] : memref<144x256xbf16, #tpu.memory_space<vmem>>, vector<16x256xbf16>
    tpu.vector_store %arg9[%c64_436, %c0_437], %881 {strides = array<i32>} : memref<144x256xbf16, #tpu.memory_space<vmem>>, vector<16x256xbf16>,
    %c255_i32_438 = arith.constant 255 : i32
    %883 = tpu.dynamic_rotate %776 by %c255_i32_438 dim 1 : vector<16x256xf32>, i32 -> vector<16x256xf32>
    %c1_i32_439 = arith.constant 1 : i32
    %884 = vector.broadcast %c1_i32_439 : i32 to vector<1x256xi32>
    %885 = arith.addi %25, %884 : vector<1x256xi32>
    %c0_i32_440 = arith.constant 0 : i32
    %886 = vector.broadcast %c0_i32_440 : i32 to vector<1x256xi32>
    %887 = arith.cmpi sge, %885, %886 : vector<1x256xi32>
    %c1_i32_441 = arith.constant 1 : i32
    %888 = vector.broadcast %c1_i32_441 : i32 to vector<1x256xi32>
    %889 = arith.addi %25, %888 : vector<1x256xi32>
    %c16_i32_442 = arith.constant 16 : i32
    %890 = vector.broadcast %c16_i32_442 : i32 to vector<1x256xi32>
    %891 = arith.cmpi slt, %889, %890 : vector<1x256xi32>
    %892 = arith.andi %887, %891 : vector<1x256xi1>
    %c1_i32_443 = arith.constant 1 : i32
    %893 = vector.broadcast %c1_i32_443 : i32 to vector<1x256xi32>
    %894 = arith.addi %9, %893 : vector<1x256xi32>
    %c0_i32_444 = arith.constant 0 : i32
    %895 = vector.broadcast %c0_i32_444 : i32 to vector<1x256xi32>
    %896 = arith.cmpi sge, %894, %895 : vector<1x256xi32>
    %897 = arith.andi %892, %896 : vector<1x256xi1>
    %c1_i32_445 = arith.constant 1 : i32
    %898 = vector.broadcast %c1_i32_445 : i32 to vector<1x256xi32>
    %899 = arith.addi %9, %898 : vector<1x256xi32>
    %c256_i32_446 = arith.constant 256 : i32
    %900 = vector.broadcast %c256_i32_446 : i32 to vector<1x256xi32>
    %901 = arith.cmpi slt, %899, %900 : vector<1x256xi32>
    %902 = arith.andi %897, %901 : vector<1x256xi1>
    %cst_447 = arith.constant 0.000000e+00 : f32
    %903 = vector.shape_cast %902 : vector<1x256xi1> to vector<1x256xi1>
    %904 = vector.broadcast %903 : vector<1x256xi1> to vector<16x256xi1>
    %905 = vector.broadcast %cst_447 : f32 to vector<16x256xf32>
    %906 = arith.select %904, %883, %905 : vector<16x256xi1>, vector<16x256xf32>
    %907 = arith.truncf %906 : vector<16x256xf32> to vector<16x256xbf16>
    %c80_448 = arith.constant 80 : index
    %c0_449 = arith.constant 0 : index
    %908 = vector.load %arg9[%c80_448, %c0_449] : memref<144x256xbf16, #tpu.memory_space<vmem>>, vector<16x256xbf16>
    tpu.vector_store %arg9[%c80_448, %c0_449], %907 {strides = array<i32>} : memref<144x256xbf16, #tpu.memory_space<vmem>>, vector<16x256xbf16>,
    %c241_i32_450 = arith.constant 241 : i32
    %909 = tpu.dynamic_rotate %776 by %c241_i32_450 dim 1 : vector<16x256xf32>, i32 -> vector<16x256xf32>
    %c-1_i32_451 = arith.constant -1 : i32
    %910 = vector.broadcast %c-1_i32_451 : i32 to vector<1x256xi32>
    %911 = arith.addi %25, %910 : vector<1x256xi32>
    %c0_i32_452 = arith.constant 0 : i32
    %912 = vector.broadcast %c0_i32_452 : i32 to vector<1x256xi32>
    %913 = arith.cmpi sge, %911, %912 : vector<1x256xi32>
    %c-1_i32_453 = arith.constant -1 : i32
    %914 = vector.broadcast %c-1_i32_453 : i32 to vector<1x256xi32>
    %915 = arith.addi %25, %914 : vector<1x256xi32>
    %c16_i32_454 = arith.constant 16 : i32
    %916 = vector.broadcast %c16_i32_454 : i32 to vector<1x256xi32>
    %917 = arith.cmpi slt, %915, %916 : vector<1x256xi32>
    %918 = arith.andi %913, %917 : vector<1x256xi1>
    %c15_i32_455 = arith.constant 15 : i32
    %919 = vector.broadcast %c15_i32_455 : i32 to vector<1x256xi32>
    %920 = arith.addi %9, %919 : vector<1x256xi32>
    %c0_i32_456 = arith.constant 0 : i32
    %921 = vector.broadcast %c0_i32_456 : i32 to vector<1x256xi32>
    %922 = arith.cmpi sge, %920, %921 : vector<1x256xi32>
    %923 = arith.andi %918, %922 : vector<1x256xi1>
    %c15_i32_457 = arith.constant 15 : i32
    %924 = vector.broadcast %c15_i32_457 : i32 to vector<1x256xi32>
    %925 = arith.addi %9, %924 : vector<1x256xi32>
    %c256_i32_458 = arith.constant 256 : i32
    %926 = vector.broadcast %c256_i32_458 : i32 to vector<1x256xi32>
    %927 = arith.cmpi slt, %925, %926 : vector<1x256xi32>
    %928 = arith.andi %923, %927 : vector<1x256xi1>
    %cst_459 = arith.constant 0.000000e+00 : f32
    %929 = vector.shape_cast %928 : vector<1x256xi1> to vector<1x256xi1>
    %930 = vector.broadcast %929 : vector<1x256xi1> to vector<16x256xi1>
    %931 = vector.broadcast %cst_459 : f32 to vector<16x256xf32>
    %932 = arith.select %930, %909, %931 : vector<16x256xi1>, vector<16x256xf32>
    %933 = arith.truncf %932 : vector<16x256xf32> to vector<16x256xbf16>
    %c96_460 = arith.constant 96 : index
    %c0_461 = arith.constant 0 : index
    %934 = vector.load %arg9[%c96_460, %c0_461] : memref<144x256xbf16, #tpu.memory_space<vmem>>, vector<16x256xbf16>
    tpu.vector_store %arg9[%c96_460, %c0_461], %933 {strides = array<i32>} : memref<144x256xbf16, #tpu.memory_space<vmem>>, vector<16x256xbf16>,
    %c240_i32_462 = arith.constant 240 : i32
    %935 = tpu.dynamic_rotate %776 by %c240_i32_462 dim 1 : vector<16x256xf32>, i32 -> vector<16x256xf32>
    %c0_i32_463 = arith.constant 0 : i32
    %936 = vector.broadcast %c0_i32_463 : i32 to vector<1x256xi32>
    %937 = arith.addi %25, %936 : vector<1x256xi32>
    %c0_i32_464 = arith.constant 0 : i32
    %938 = vector.broadcast %c0_i32_464 : i32 to vector<1x256xi32>
    %939 = arith.cmpi sge, %937, %938 : vector<1x256xi32>
    %c0_i32_465 = arith.constant 0 : i32
    %940 = vector.broadcast %c0_i32_465 : i32 to vector<1x256xi32>
    %941 = arith.addi %25, %940 : vector<1x256xi32>
    %c16_i32_466 = arith.constant 16 : i32
    %942 = vector.broadcast %c16_i32_466 : i32 to vector<1x256xi32>
    %943 = arith.cmpi slt, %941, %942 : vector<1x256xi32>
    %944 = arith.andi %939, %943 : vector<1x256xi1>
    %c16_i32_467 = arith.constant 16 : i32
    %945 = vector.broadcast %c16_i32_467 : i32 to vector<1x256xi32>
    %946 = arith.addi %9, %945 : vector<1x256xi32>
    %c0_i32_468 = arith.constant 0 : i32
    %947 = vector.broadcast %c0_i32_468 : i32 to vector<1x256xi32>
    %948 = arith.cmpi sge, %946, %947 : vector<1x256xi32>
    %949 = arith.andi %944, %948 : vector<1x256xi1>
    %c16_i32_469 = arith.constant 16 : i32
    %950 = vector.broadcast %c16_i32_469 : i32 to vector<1x256xi32>
    %951 = arith.addi %9, %950 : vector<1x256xi32>
    %c256_i32_470 = arith.constant 256 : i32
    %952 = vector.broadcast %c256_i32_470 : i32 to vector<1x256xi32>
    %953 = arith.cmpi slt, %951, %952 : vector<1x256xi32>
    %954 = arith.andi %949, %953 : vector<1x256xi1>
    %cst_471 = arith.constant 0.000000e+00 : f32
    %955 = vector.shape_cast %954 : vector<1x256xi1> to vector<1x256xi1>
    %956 = vector.broadcast %955 : vector<1x256xi1> to vector<16x256xi1>
    %957 = vector.broadcast %cst_471 : f32 to vector<16x256xf32>
    %958 = arith.select %956, %935, %957 : vector<16x256xi1>, vector<16x256xf32>
    %959 = arith.truncf %958 : vector<16x256xf32> to vector<16x256xbf16>
    %c112_472 = arith.constant 112 : index
    %c0_473 = arith.constant 0 : index
    %960 = vector.load %arg9[%c112_472, %c0_473] : memref<144x256xbf16, #tpu.memory_space<vmem>>, vector<16x256xbf16>
    tpu.vector_store %arg9[%c112_472, %c0_473], %959 {strides = array<i32>} : memref<144x256xbf16, #tpu.memory_space<vmem>>, vector<16x256xbf16>,
    %c239_i32_474 = arith.constant 239 : i32
    %961 = tpu.dynamic_rotate %776 by %c239_i32_474 dim 1 : vector<16x256xf32>, i32 -> vector<16x256xf32>
    %c1_i32_475 = arith.constant 1 : i32
    %962 = vector.broadcast %c1_i32_475 : i32 to vector<1x256xi32>
    %963 = arith.addi %25, %962 : vector<1x256xi32>
    %c0_i32_476 = arith.constant 0 : i32
    %964 = vector.broadcast %c0_i32_476 : i32 to vector<1x256xi32>
    %965 = arith.cmpi sge, %963, %964 : vector<1x256xi32>
    %c1_i32_477 = arith.constant 1 : i32
    %966 = vector.broadcast %c1_i32_477 : i32 to vector<1x256xi32>
    %967 = arith.addi %25, %966 : vector<1x256xi32>
    %c16_i32_478 = arith.constant 16 : i32
    %968 = vector.broadcast %c16_i32_478 : i32 to vector<1x256xi32>
    %969 = arith.cmpi slt, %967, %968 : vector<1x256xi32>
    %970 = arith.andi %965, %969 : vector<1x256xi1>
    %c17_i32_479 = arith.constant 17 : i32
    %971 = vector.broadcast %c17_i32_479 : i32 to vector<1x256xi32>
    %972 = arith.addi %9, %971 : vector<1x256xi32>
    %c0_i32_480 = arith.constant 0 : i32
    %973 = vector.broadcast %c0_i32_480 : i32 to vector<1x256xi32>
    %974 = arith.cmpi sge, %972, %973 : vector<1x256xi32>
    %975 = arith.andi %970, %974 : vector<1x256xi1>
    %c17_i32_481 = arith.constant 17 : i32
    %976 = vector.broadcast %c17_i32_481 : i32 to vector<1x256xi32>
    %977 = arith.addi %9, %976 : vector<1x256xi32>
    %c256_i32_482 = arith.constant 256 : i32
    %978 = vector.broadcast %c256_i32_482 : i32 to vector<1x256xi32>
    %979 = arith.cmpi slt, %977, %978 : vector<1x256xi32>
    %980 = arith.andi %975, %979 : vector<1x256xi1>
    %cst_483 = arith.constant 0.000000e+00 : f32
    %981 = vector.shape_cast %980 : vector<1x256xi1> to vector<1x256xi1>
    %982 = vector.broadcast %981 : vector<1x256xi1> to vector<16x256xi1>
    %983 = vector.broadcast %cst_483 : f32 to vector<16x256xf32>
    %984 = arith.select %982, %961, %983 : vector<16x256xi1>, vector<16x256xf32>
    %985 = arith.truncf %984 : vector<16x256xf32> to vector<16x256xbf16>
    %c128_484 = arith.constant 128 : index
    %c0_485 = arith.constant 0 : index
    %986 = vector.load %arg9[%c128_484, %c0_485] : memref<144x256xbf16, #tpu.memory_space<vmem>>, vector<16x256xbf16>
    tpu.vector_store %arg9[%c128_484, %c0_485], %985 {strides = array<i32>} : memref<144x256xbf16, #tpu.memory_space<vmem>>, vector<16x256xbf16>,
    %c3_486 = arith.constant 3 : index
    %c0_487 = arith.constant 0 : index
    %c0_488 = arith.constant 0 : index
    %987 = vector.load %arg6[%c3_486, %c0_487, %c0_488] : memref<6x4x144xbf16, #tpu.memory_space<vmem>>, vector<1x4x144xbf16>
    %988 = vector.shape_cast %987 : vector<1x4x144xbf16> to vector<4x144xbf16>
    %c0_489 = arith.constant 0 : index
    %c0_490 = arith.constant 0 : index
    %989 = vector.load %arg9[%c0_489, %c0_490] : memref<144x256xbf16, #tpu.memory_space<vmem>>, vector<144x256xbf16>
    %cst_491 = arith.constant dense<0.000000e+00> : vector<4x256xf32>
    %990 = tpu.matmul %988, %989, %cst_491 {dimension_numbers = #tpu.dot_dimension_numbers<[1], [0], [0], [1], [0, 0, 1, 1], [], []>} : vector<4x144xbf16>, vector<144x256xbf16>, vector<4x256xf32> -> vector<4x256xf32>
    %c3_492 = arith.constant 3 : index
    %c0_493 = arith.constant 0 : index
    %c0_494 = arith.constant 0 : index
    %991 = vector.load %arg7[%c3_492, %c0_493, %c0_494] : memref<6x4x1xf32, #tpu.memory_space<vmem>>, vector<1x4x1xf32>
    %992 = vector.shape_cast %991 : vector<1x4x1xf32> to vector<4x1xf32>
    %993 = vector.broadcast %992 : vector<4x1xf32> to vector<4x256xf32>
    %994 = arith.addf %990, %993 : vector<4x256xf32>
    %c0_495 = arith.constant 0 : index
    %c16_496 = arith.constant 16 : index
    %c0_497 = arith.constant 0 : index
    %995 = vector.load %arg8[%c0_495, %c16_496, %c0_497] : memref<1x28x256xf32, #tpu.memory_space<vmem>>, vector<1x4x256xf32>
    %996 = vector.shape_cast %995 : vector<1x4x256xf32> to vector<4x256xf32>
    %997 = vector.shape_cast %994 : vector<4x256xf32> to vector<1x4x256xf32>
    tpu.vector_store %arg8[%c0_495, %c16_496, %c0_497], %997 {strides = array<i32>} : memref<1x28x256xf32, #tpu.memory_space<vmem>>, vector<1x4x256xf32>,
    %c0_498 = arith.constant 0 : index
    %c0_499 = arith.constant 0 : index
    %c0_500 = arith.constant 0 : index
    %998 = vector.load %arg8[%c0_498, %c0_499, %c0_500] : memref<1x28x256xf32, #tpu.memory_space<vmem>>, vector<1x28x256xf32>
    %999 = vector.shape_cast %998 : vector<1x28x256xf32> to vector<28x256xf32>
    %c4_501 = arith.constant 4 : index
    %c0_502 = arith.constant 0 : index
    %c0_503 = arith.constant 0 : index
    %1000 = vector.load %arg2[%c4_501, %c0_502, %c0_503] : memref<6x28x1xf32, #tpu.memory_space<vmem>>, vector<1x28x1xf32>
    %1001 = vector.shape_cast %1000 : vector<1x28x1xf32> to vector<28x1xf32>
    %1002 = vector.broadcast %1001 : vector<28x1xf32> to vector<28x256xf32>
    %1003 = arith.mulf %999, %1002 : vector<28x256xf32>
    %c4_504 = arith.constant 4 : index
    %c0_505 = arith.constant 0 : index
    %c0_506 = arith.constant 0 : index
    %1004 = vector.load %arg3[%c4_504, %c0_505, %c0_506] : memref<6x28x1xf32, #tpu.memory_space<vmem>>, vector<1x28x1xf32>
    %1005 = vector.shape_cast %1004 : vector<1x28x1xf32> to vector<28x1xf32>
    %1006 = vector.broadcast %1005 : vector<28x1xf32> to vector<28x256xf32>
    %1007 = arith.addf %1003, %1006 : vector<28x256xf32>
    %cst_507 = arith.constant 0.000000e+00 : f32
    %1008 = vector.broadcast %cst_507 : f32 to vector<28x256xf32>
    %1009 = arith.maximumf %1007, %1008 : vector<28x256xf32>
    %c4_508 = arith.constant 4 : index
    %c0_509 = arith.constant 0 : index
    %c0_510 = arith.constant 0 : index
    %1010 = vector.load %arg4[%c4_508, %c0_509, %c0_510] : memref<6x16x28xbf16, #tpu.memory_space<vmem>>, vector<1x16x28xbf16>
    %1011 = vector.shape_cast %1010 : vector<1x16x28xbf16> to vector<16x28xbf16>
    %1012 = arith.truncf %1009 : vector<28x256xf32> to vector<28x256xbf16>
    %cst_511 = arith.constant dense<0.000000e+00> : vector<16x256xf32>
    %1013 = tpu.matmul %1011, %1012, %cst_511 {dimension_numbers = #tpu.dot_dimension_numbers<[1], [0], [0], [1], [0, 0, 1, 1], [], []>} : vector<16x28xbf16>, vector<28x256xbf16>, vector<16x256xf32> -> vector<16x256xf32>
    %c4_512 = arith.constant 4 : index
    %c0_513 = arith.constant 0 : index
    %c0_514 = arith.constant 0 : index
    %1014 = vector.load %arg5[%c4_512, %c0_513, %c0_514] : memref<6x16x1xf32, #tpu.memory_space<vmem>>, vector<1x16x1xf32>
    %1015 = vector.shape_cast %1014 : vector<1x16x1xf32> to vector<16x1xf32>
    %1016 = vector.broadcast %1015 : vector<16x1xf32> to vector<16x256xf32>
    %1017 = arith.addf %1013, %1016 : vector<16x256xf32>
    %cst_515 = arith.constant 0.000000e+00 : f32
    %1018 = vector.broadcast %cst_515 : f32 to vector<16x256xf32>
    %1019 = arith.maximumf %1017, %1018 : vector<16x256xf32>
    %c17_i32_516 = arith.constant 17 : i32
    %1020 = tpu.dynamic_rotate %1019 by %c17_i32_516 dim 1 : vector<16x256xf32>, i32 -> vector<16x256xf32>
    %c-1_i32_517 = arith.constant -1 : i32
    %1021 = vector.broadcast %c-1_i32_517 : i32 to vector<1x256xi32>
    %1022 = arith.addi %25, %1021 : vector<1x256xi32>
    %c0_i32_518 = arith.constant 0 : i32
    %1023 = vector.broadcast %c0_i32_518 : i32 to vector<1x256xi32>
    %1024 = arith.cmpi sge, %1022, %1023 : vector<1x256xi32>
    %c-1_i32_519 = arith.constant -1 : i32
    %1025 = vector.broadcast %c-1_i32_519 : i32 to vector<1x256xi32>
    %1026 = arith.addi %25, %1025 : vector<1x256xi32>
    %c16_i32_520 = arith.constant 16 : i32
    %1027 = vector.broadcast %c16_i32_520 : i32 to vector<1x256xi32>
    %1028 = arith.cmpi slt, %1026, %1027 : vector<1x256xi32>
    %1029 = arith.andi %1024, %1028 : vector<1x256xi1>
    %c-17_i32_521 = arith.constant -17 : i32
    %1030 = vector.broadcast %c-17_i32_521 : i32 to vector<1x256xi32>
    %1031 = arith.addi %9, %1030 : vector<1x256xi32>
    %c0_i32_522 = arith.constant 0 : i32
    %1032 = vector.broadcast %c0_i32_522 : i32 to vector<1x256xi32>
    %1033 = arith.cmpi sge, %1031, %1032 : vector<1x256xi32>
    %1034 = arith.andi %1029, %1033 : vector<1x256xi1>
    %c-17_i32_523 = arith.constant -17 : i32
    %1035 = vector.broadcast %c-17_i32_523 : i32 to vector<1x256xi32>
    %1036 = arith.addi %9, %1035 : vector<1x256xi32>
    %c256_i32_524 = arith.constant 256 : i32
    %1037 = vector.broadcast %c256_i32_524 : i32 to vector<1x256xi32>
    %1038 = arith.cmpi slt, %1036, %1037 : vector<1x256xi32>
    %1039 = arith.andi %1034, %1038 : vector<1x256xi1>
    %cst_525 = arith.constant 0.000000e+00 : f32
    %1040 = vector.shape_cast %1039 : vector<1x256xi1> to vector<1x256xi1>
    %1041 = vector.broadcast %1040 : vector<1x256xi1> to vector<16x256xi1>
    %1042 = vector.broadcast %cst_525 : f32 to vector<16x256xf32>
    %1043 = arith.select %1041, %1020, %1042 : vector<16x256xi1>, vector<16x256xf32>
    %1044 = arith.truncf %1043 : vector<16x256xf32> to vector<16x256xbf16>
    %c0_526 = arith.constant 0 : index
    %c0_527 = arith.constant 0 : index
    %1045 = vector.load %arg9[%c0_526, %c0_527] : memref<144x256xbf16, #tpu.memory_space<vmem>>, vector<16x256xbf16>
    tpu.vector_store %arg9[%c0_526, %c0_527], %1044 {strides = array<i32>} : memref<144x256xbf16, #tpu.memory_space<vmem>>, vector<16x256xbf16>,
    %c16_i32_528 = arith.constant 16 : i32
    %1046 = tpu.dynamic_rotate %1019 by %c16_i32_528 dim 1 : vector<16x256xf32>, i32 -> vector<16x256xf32>
    %c0_i32_529 = arith.constant 0 : i32
    %1047 = vector.broadcast %c0_i32_529 : i32 to vector<1x256xi32>
    %1048 = arith.addi %25, %1047 : vector<1x256xi32>
    %c0_i32_530 = arith.constant 0 : i32
    %1049 = vector.broadcast %c0_i32_530 : i32 to vector<1x256xi32>
    %1050 = arith.cmpi sge, %1048, %1049 : vector<1x256xi32>
    %c0_i32_531 = arith.constant 0 : i32
    %1051 = vector.broadcast %c0_i32_531 : i32 to vector<1x256xi32>
    %1052 = arith.addi %25, %1051 : vector<1x256xi32>
    %c16_i32_532 = arith.constant 16 : i32
    %1053 = vector.broadcast %c16_i32_532 : i32 to vector<1x256xi32>
    %1054 = arith.cmpi slt, %1052, %1053 : vector<1x256xi32>
    %1055 = arith.andi %1050, %1054 : vector<1x256xi1>
    %c-16_i32_533 = arith.constant -16 : i32
    %1056 = vector.broadcast %c-16_i32_533 : i32 to vector<1x256xi32>
    %1057 = arith.addi %9, %1056 : vector<1x256xi32>
    %c0_i32_534 = arith.constant 0 : i32
    %1058 = vector.broadcast %c0_i32_534 : i32 to vector<1x256xi32>
    %1059 = arith.cmpi sge, %1057, %1058 : vector<1x256xi32>
    %1060 = arith.andi %1055, %1059 : vector<1x256xi1>
    %c-16_i32_535 = arith.constant -16 : i32
    %1061 = vector.broadcast %c-16_i32_535 : i32 to vector<1x256xi32>
    %1062 = arith.addi %9, %1061 : vector<1x256xi32>
    %c256_i32_536 = arith.constant 256 : i32
    %1063 = vector.broadcast %c256_i32_536 : i32 to vector<1x256xi32>
    %1064 = arith.cmpi slt, %1062, %1063 : vector<1x256xi32>
    %1065 = arith.andi %1060, %1064 : vector<1x256xi1>
    %cst_537 = arith.constant 0.000000e+00 : f32
    %1066 = vector.shape_cast %1065 : vector<1x256xi1> to vector<1x256xi1>
    %1067 = vector.broadcast %1066 : vector<1x256xi1> to vector<16x256xi1>
    %1068 = vector.broadcast %cst_537 : f32 to vector<16x256xf32>
    %1069 = arith.select %1067, %1046, %1068 : vector<16x256xi1>, vector<16x256xf32>
    %1070 = arith.truncf %1069 : vector<16x256xf32> to vector<16x256xbf16>
    %c16_538 = arith.constant 16 : index
    %c0_539 = arith.constant 0 : index
    %1071 = vector.load %arg9[%c16_538, %c0_539] : memref<144x256xbf16, #tpu.memory_space<vmem>>, vector<16x256xbf16>
    tpu.vector_store %arg9[%c16_538, %c0_539], %1070 {strides = array<i32>} : memref<144x256xbf16, #tpu.memory_space<vmem>>, vector<16x256xbf16>,
    %c15_i32_540 = arith.constant 15 : i32
    %1072 = tpu.dynamic_rotate %1019 by %c15_i32_540 dim 1 : vector<16x256xf32>, i32 -> vector<16x256xf32>
    %c1_i32_541 = arith.constant 1 : i32
    %1073 = vector.broadcast %c1_i32_541 : i32 to vector<1x256xi32>
    %1074 = arith.addi %25, %1073 : vector<1x256xi32>
    %c0_i32_542 = arith.constant 0 : i32
    %1075 = vector.broadcast %c0_i32_542 : i32 to vector<1x256xi32>
    %1076 = arith.cmpi sge, %1074, %1075 : vector<1x256xi32>
    %c1_i32_543 = arith.constant 1 : i32
    %1077 = vector.broadcast %c1_i32_543 : i32 to vector<1x256xi32>
    %1078 = arith.addi %25, %1077 : vector<1x256xi32>
    %c16_i32_544 = arith.constant 16 : i32
    %1079 = vector.broadcast %c16_i32_544 : i32 to vector<1x256xi32>
    %1080 = arith.cmpi slt, %1078, %1079 : vector<1x256xi32>
    %1081 = arith.andi %1076, %1080 : vector<1x256xi1>
    %c-15_i32_545 = arith.constant -15 : i32
    %1082 = vector.broadcast %c-15_i32_545 : i32 to vector<1x256xi32>
    %1083 = arith.addi %9, %1082 : vector<1x256xi32>
    %c0_i32_546 = arith.constant 0 : i32
    %1084 = vector.broadcast %c0_i32_546 : i32 to vector<1x256xi32>
    %1085 = arith.cmpi sge, %1083, %1084 : vector<1x256xi32>
    %1086 = arith.andi %1081, %1085 : vector<1x256xi1>
    %c-15_i32_547 = arith.constant -15 : i32
    %1087 = vector.broadcast %c-15_i32_547 : i32 to vector<1x256xi32>
    %1088 = arith.addi %9, %1087 : vector<1x256xi32>
    %c256_i32_548 = arith.constant 256 : i32
    %1089 = vector.broadcast %c256_i32_548 : i32 to vector<1x256xi32>
    %1090 = arith.cmpi slt, %1088, %1089 : vector<1x256xi32>
    %1091 = arith.andi %1086, %1090 : vector<1x256xi1>
    %cst_549 = arith.constant 0.000000e+00 : f32
    %1092 = vector.shape_cast %1091 : vector<1x256xi1> to vector<1x256xi1>
    %1093 = vector.broadcast %1092 : vector<1x256xi1> to vector<16x256xi1>
    %1094 = vector.broadcast %cst_549 : f32 to vector<16x256xf32>
    %1095 = arith.select %1093, %1072, %1094 : vector<16x256xi1>, vector<16x256xf32>
    %1096 = arith.truncf %1095 : vector<16x256xf32> to vector<16x256xbf16>
    %c32_550 = arith.constant 32 : index
    %c0_551 = arith.constant 0 : index
    %1097 = vector.load %arg9[%c32_550, %c0_551] : memref<144x256xbf16, #tpu.memory_space<vmem>>, vector<16x256xbf16>
    tpu.vector_store %arg9[%c32_550, %c0_551], %1096 {strides = array<i32>} : memref<144x256xbf16, #tpu.memory_space<vmem>>, vector<16x256xbf16>,
    %c1_i32_552 = arith.constant 1 : i32
    %1098 = tpu.dynamic_rotate %1019 by %c1_i32_552 dim 1 : vector<16x256xf32>, i32 -> vector<16x256xf32>
    %c-1_i32_553 = arith.constant -1 : i32
    %1099 = vector.broadcast %c-1_i32_553 : i32 to vector<1x256xi32>
    %1100 = arith.addi %25, %1099 : vector<1x256xi32>
    %c0_i32_554 = arith.constant 0 : i32
    %1101 = vector.broadcast %c0_i32_554 : i32 to vector<1x256xi32>
    %1102 = arith.cmpi sge, %1100, %1101 : vector<1x256xi32>
    %c-1_i32_555 = arith.constant -1 : i32
    %1103 = vector.broadcast %c-1_i32_555 : i32 to vector<1x256xi32>
    %1104 = arith.addi %25, %1103 : vector<1x256xi32>
    %c16_i32_556 = arith.constant 16 : i32
    %1105 = vector.broadcast %c16_i32_556 : i32 to vector<1x256xi32>
    %1106 = arith.cmpi slt, %1104, %1105 : vector<1x256xi32>
    %1107 = arith.andi %1102, %1106 : vector<1x256xi1>
    %c-1_i32_557 = arith.constant -1 : i32
    %1108 = vector.broadcast %c-1_i32_557 : i32 to vector<1x256xi32>
    %1109 = arith.addi %9, %1108 : vector<1x256xi32>
    %c0_i32_558 = arith.constant 0 : i32
    %1110 = vector.broadcast %c0_i32_558 : i32 to vector<1x256xi32>
    %1111 = arith.cmpi sge, %1109, %1110 : vector<1x256xi32>
    %1112 = arith.andi %1107, %1111 : vector<1x256xi1>
    %c-1_i32_559 = arith.constant -1 : i32
    %1113 = vector.broadcast %c-1_i32_559 : i32 to vector<1x256xi32>
    %1114 = arith.addi %9, %1113 : vector<1x256xi32>
    %c256_i32_560 = arith.constant 256 : i32
    %1115 = vector.broadcast %c256_i32_560 : i32 to vector<1x256xi32>
    %1116 = arith.cmpi slt, %1114, %1115 : vector<1x256xi32>
    %1117 = arith.andi %1112, %1116 : vector<1x256xi1>
    %cst_561 = arith.constant 0.000000e+00 : f32
    %1118 = vector.shape_cast %1117 : vector<1x256xi1> to vector<1x256xi1>
    %1119 = vector.broadcast %1118 : vector<1x256xi1> to vector<16x256xi1>
    %1120 = vector.broadcast %cst_561 : f32 to vector<16x256xf32>
    %1121 = arith.select %1119, %1098, %1120 : vector<16x256xi1>, vector<16x256xf32>
    %1122 = arith.truncf %1121 : vector<16x256xf32> to vector<16x256xbf16>
    %c48_562 = arith.constant 48 : index
    %c0_563 = arith.constant 0 : index
    %1123 = vector.load %arg9[%c48_562, %c0_563] : memref<144x256xbf16, #tpu.memory_space<vmem>>, vector<16x256xbf16>
    tpu.vector_store %arg9[%c48_562, %c0_563], %1122 {strides = array<i32>} : memref<144x256xbf16, #tpu.memory_space<vmem>>, vector<16x256xbf16>,
    %1124 = arith.truncf %1019 : vector<16x256xf32> to vector<16x256xbf16>
    %c64_564 = arith.constant 64 : index
    %c0_565 = arith.constant 0 : index
    %1125 = vector.load %arg9[%c64_564, %c0_565] : memref<144x256xbf16, #tpu.memory_space<vmem>>, vector<16x256xbf16>
    tpu.vector_store %arg9[%c64_564, %c0_565], %1124 {strides = array<i32>} : memref<144x256xbf16, #tpu.memory_space<vmem>>, vector<16x256xbf16>,
    %c255_i32_566 = arith.constant 255 : i32
    %1126 = tpu.dynamic_rotate %1019 by %c255_i32_566 dim 1 : vector<16x256xf32>, i32 -> vector<16x256xf32>
    %c1_i32_567 = arith.constant 1 : i32
    %1127 = vector.broadcast %c1_i32_567 : i32 to vector<1x256xi32>
    %1128 = arith.addi %25, %1127 : vector<1x256xi32>
    %c0_i32_568 = arith.constant 0 : i32
    %1129 = vector.broadcast %c0_i32_568 : i32 to vector<1x256xi32>
    %1130 = arith.cmpi sge, %1128, %1129 : vector<1x256xi32>
    %c1_i32_569 = arith.constant 1 : i32
    %1131 = vector.broadcast %c1_i32_569 : i32 to vector<1x256xi32>
    %1132 = arith.addi %25, %1131 : vector<1x256xi32>
    %c16_i32_570 = arith.constant 16 : i32
    %1133 = vector.broadcast %c16_i32_570 : i32 to vector<1x256xi32>
    %1134 = arith.cmpi slt, %1132, %1133 : vector<1x256xi32>
    %1135 = arith.andi %1130, %1134 : vector<1x256xi1>
    %c1_i32_571 = arith.constant 1 : i32
    %1136 = vector.broadcast %c1_i32_571 : i32 to vector<1x256xi32>
    %1137 = arith.addi %9, %1136 : vector<1x256xi32>
    %c0_i32_572 = arith.constant 0 : i32
    %1138 = vector.broadcast %c0_i32_572 : i32 to vector<1x256xi32>
    %1139 = arith.cmpi sge, %1137, %1138 : vector<1x256xi32>
    %1140 = arith.andi %1135, %1139 : vector<1x256xi1>
    %c1_i32_573 = arith.constant 1 : i32
    %1141 = vector.broadcast %c1_i32_573 : i32 to vector<1x256xi32>
    %1142 = arith.addi %9, %1141 : vector<1x256xi32>
    %c256_i32_574 = arith.constant 256 : i32
    %1143 = vector.broadcast %c256_i32_574 : i32 to vector<1x256xi32>
    %1144 = arith.cmpi slt, %1142, %1143 : vector<1x256xi32>
    %1145 = arith.andi %1140, %1144 : vector<1x256xi1>
    %cst_575 = arith.constant 0.000000e+00 : f32
    %1146 = vector.shape_cast %1145 : vector<1x256xi1> to vector<1x256xi1>
    %1147 = vector.broadcast %1146 : vector<1x256xi1> to vector<16x256xi1>
    %1148 = vector.broadcast %cst_575 : f32 to vector<16x256xf32>
    %1149 = arith.select %1147, %1126, %1148 : vector<16x256xi1>, vector<16x256xf32>
    %1150 = arith.truncf %1149 : vector<16x256xf32> to vector<16x256xbf16>
    %c80_576 = arith.constant 80 : index
    %c0_577 = arith.constant 0 : index
    %1151 = vector.load %arg9[%c80_576, %c0_577] : memref<144x256xbf16, #tpu.memory_space<vmem>>, vector<16x256xbf16>
    tpu.vector_store %arg9[%c80_576, %c0_577], %1150 {strides = array<i32>} : memref<144x256xbf16, #tpu.memory_space<vmem>>, vector<16x256xbf16>,
    %c241_i32_578 = arith.constant 241 : i32
    %1152 = tpu.dynamic_rotate %1019 by %c241_i32_578 dim 1 : vector<16x256xf32>, i32 -> vector<16x256xf32>
    %c-1_i32_579 = arith.constant -1 : i32
    %1153 = vector.broadcast %c-1_i32_579 : i32 to vector<1x256xi32>
    %1154 = arith.addi %25, %1153 : vector<1x256xi32>
    %c0_i32_580 = arith.constant 0 : i32
    %1155 = vector.broadcast %c0_i32_580 : i32 to vector<1x256xi32>
    %1156 = arith.cmpi sge, %1154, %1155 : vector<1x256xi32>
    %c-1_i32_581 = arith.constant -1 : i32
    %1157 = vector.broadcast %c-1_i32_581 : i32 to vector<1x256xi32>
    %1158 = arith.addi %25, %1157 : vector<1x256xi32>
    %c16_i32_582 = arith.constant 16 : i32
    %1159 = vector.broadcast %c16_i32_582 : i32 to vector<1x256xi32>
    %1160 = arith.cmpi slt, %1158, %1159 : vector<1x256xi32>
    %1161 = arith.andi %1156, %1160 : vector<1x256xi1>
    %c15_i32_583 = arith.constant 15 : i32
    %1162 = vector.broadcast %c15_i32_583 : i32 to vector<1x256xi32>
    %1163 = arith.addi %9, %1162 : vector<1x256xi32>
    %c0_i32_584 = arith.constant 0 : i32
    %1164 = vector.broadcast %c0_i32_584 : i32 to vector<1x256xi32>
    %1165 = arith.cmpi sge, %1163, %1164 : vector<1x256xi32>
    %1166 = arith.andi %1161, %1165 : vector<1x256xi1>
    %c15_i32_585 = arith.constant 15 : i32
    %1167 = vector.broadcast %c15_i32_585 : i32 to vector<1x256xi32>
    %1168 = arith.addi %9, %1167 : vector<1x256xi32>
    %c256_i32_586 = arith.constant 256 : i32
    %1169 = vector.broadcast %c256_i32_586 : i32 to vector<1x256xi32>
    %1170 = arith.cmpi slt, %1168, %1169 : vector<1x256xi32>
    %1171 = arith.andi %1166, %1170 : vector<1x256xi1>
    %cst_587 = arith.constant 0.000000e+00 : f32
    %1172 = vector.shape_cast %1171 : vector<1x256xi1> to vector<1x256xi1>
    %1173 = vector.broadcast %1172 : vector<1x256xi1> to vector<16x256xi1>
    %1174 = vector.broadcast %cst_587 : f32 to vector<16x256xf32>
    %1175 = arith.select %1173, %1152, %1174 : vector<16x256xi1>, vector<16x256xf32>
    %1176 = arith.truncf %1175 : vector<16x256xf32> to vector<16x256xbf16>
    %c96_588 = arith.constant 96 : index
    %c0_589 = arith.constant 0 : index
    %1177 = vector.load %arg9[%c96_588, %c0_589] : memref<144x256xbf16, #tpu.memory_space<vmem>>, vector<16x256xbf16>
    tpu.vector_store %arg9[%c96_588, %c0_589], %1176 {strides = array<i32>} : memref<144x256xbf16, #tpu.memory_space<vmem>>, vector<16x256xbf16>,
    %c240_i32_590 = arith.constant 240 : i32
    %1178 = tpu.dynamic_rotate %1019 by %c240_i32_590 dim 1 : vector<16x256xf32>, i32 -> vector<16x256xf32>
    %c0_i32_591 = arith.constant 0 : i32
    %1179 = vector.broadcast %c0_i32_591 : i32 to vector<1x256xi32>
    %1180 = arith.addi %25, %1179 : vector<1x256xi32>
    %c0_i32_592 = arith.constant 0 : i32
    %1181 = vector.broadcast %c0_i32_592 : i32 to vector<1x256xi32>
    %1182 = arith.cmpi sge, %1180, %1181 : vector<1x256xi32>
    %c0_i32_593 = arith.constant 0 : i32
    %1183 = vector.broadcast %c0_i32_593 : i32 to vector<1x256xi32>
    %1184 = arith.addi %25, %1183 : vector<1x256xi32>
    %c16_i32_594 = arith.constant 16 : i32
    %1185 = vector.broadcast %c16_i32_594 : i32 to vector<1x256xi32>
    %1186 = arith.cmpi slt, %1184, %1185 : vector<1x256xi32>
    %1187 = arith.andi %1182, %1186 : vector<1x256xi1>
    %c16_i32_595 = arith.constant 16 : i32
    %1188 = vector.broadcast %c16_i32_595 : i32 to vector<1x256xi32>
    %1189 = arith.addi %9, %1188 : vector<1x256xi32>
    %c0_i32_596 = arith.constant 0 : i32
    %1190 = vector.broadcast %c0_i32_596 : i32 to vector<1x256xi32>
    %1191 = arith.cmpi sge, %1189, %1190 : vector<1x256xi32>
    %1192 = arith.andi %1187, %1191 : vector<1x256xi1>
    %c16_i32_597 = arith.constant 16 : i32
    %1193 = vector.broadcast %c16_i32_597 : i32 to vector<1x256xi32>
    %1194 = arith.addi %9, %1193 : vector<1x256xi32>
    %c256_i32_598 = arith.constant 256 : i32
    %1195 = vector.broadcast %c256_i32_598 : i32 to vector<1x256xi32>
    %1196 = arith.cmpi slt, %1194, %1195 : vector<1x256xi32>
    %1197 = arith.andi %1192, %1196 : vector<1x256xi1>
    %cst_599 = arith.constant 0.000000e+00 : f32
    %1198 = vector.shape_cast %1197 : vector<1x256xi1> to vector<1x256xi1>
    %1199 = vector.broadcast %1198 : vector<1x256xi1> to vector<16x256xi1>
    %1200 = vector.broadcast %cst_599 : f32 to vector<16x256xf32>
    %1201 = arith.select %1199, %1178, %1200 : vector<16x256xi1>, vector<16x256xf32>
    %1202 = arith.truncf %1201 : vector<16x256xf32> to vector<16x256xbf16>
    %c112_600 = arith.constant 112 : index
    %c0_601 = arith.constant 0 : index
    %1203 = vector.load %arg9[%c112_600, %c0_601] : memref<144x256xbf16, #tpu.memory_space<vmem>>, vector<16x256xbf16>
    tpu.vector_store %arg9[%c112_600, %c0_601], %1202 {strides = array<i32>} : memref<144x256xbf16, #tpu.memory_space<vmem>>, vector<16x256xbf16>,
    %c239_i32_602 = arith.constant 239 : i32
    %1204 = tpu.dynamic_rotate %1019 by %c239_i32_602 dim 1 : vector<16x256xf32>, i32 -> vector<16x256xf32>
    %c1_i32_603 = arith.constant 1 : i32
    %1205 = vector.broadcast %c1_i32_603 : i32 to vector<1x256xi32>
    %1206 = arith.addi %25, %1205 : vector<1x256xi32>
    %c0_i32_604 = arith.constant 0 : i32
    %1207 = vector.broadcast %c0_i32_604 : i32 to vector<1x256xi32>
    %1208 = arith.cmpi sge, %1206, %1207 : vector<1x256xi32>
    %c1_i32_605 = arith.constant 1 : i32
    %1209 = vector.broadcast %c1_i32_605 : i32 to vector<1x256xi32>
    %1210 = arith.addi %25, %1209 : vector<1x256xi32>
    %c16_i32_606 = arith.constant 16 : i32
    %1211 = vector.broadcast %c16_i32_606 : i32 to vector<1x256xi32>
    %1212 = arith.cmpi slt, %1210, %1211 : vector<1x256xi32>
    %1213 = arith.andi %1208, %1212 : vector<1x256xi1>
    %c17_i32_607 = arith.constant 17 : i32
    %1214 = vector.broadcast %c17_i32_607 : i32 to vector<1x256xi32>
    %1215 = arith.addi %9, %1214 : vector<1x256xi32>
    %c0_i32_608 = arith.constant 0 : i32
    %1216 = vector.broadcast %c0_i32_608 : i32 to vector<1x256xi32>
    %1217 = arith.cmpi sge, %1215, %1216 : vector<1x256xi32>
    %1218 = arith.andi %1213, %1217 : vector<1x256xi1>
    %c17_i32_609 = arith.constant 17 : i32
    %1219 = vector.broadcast %c17_i32_609 : i32 to vector<1x256xi32>
    %1220 = arith.addi %9, %1219 : vector<1x256xi32>
    %c256_i32_610 = arith.constant 256 : i32
    %1221 = vector.broadcast %c256_i32_610 : i32 to vector<1x256xi32>
    %1222 = arith.cmpi slt, %1220, %1221 : vector<1x256xi32>
    %1223 = arith.andi %1218, %1222 : vector<1x256xi1>
    %cst_611 = arith.constant 0.000000e+00 : f32
    %1224 = vector.shape_cast %1223 : vector<1x256xi1> to vector<1x256xi1>
    %1225 = vector.broadcast %1224 : vector<1x256xi1> to vector<16x256xi1>
    %1226 = vector.broadcast %cst_611 : f32 to vector<16x256xf32>
    %1227 = arith.select %1225, %1204, %1226 : vector<16x256xi1>, vector<16x256xf32>
    %1228 = arith.truncf %1227 : vector<16x256xf32> to vector<16x256xbf16>
    %c128_612 = arith.constant 128 : index
    %c0_613 = arith.constant 0 : index
    %1229 = vector.load %arg9[%c128_612, %c0_613] : memref<144x256xbf16, #tpu.memory_space<vmem>>, vector<16x256xbf16>
    tpu.vector_store %arg9[%c128_612, %c0_613], %1228 {strides = array<i32>} : memref<144x256xbf16, #tpu.memory_space<vmem>>, vector<16x256xbf16>,
    %c4_614 = arith.constant 4 : index
    %c0_615 = arith.constant 0 : index
    %c0_616 = arith.constant 0 : index
    %1230 = vector.load %arg6[%c4_614, %c0_615, %c0_616] : memref<6x4x144xbf16, #tpu.memory_space<vmem>>, vector<1x4x144xbf16>
    %1231 = vector.shape_cast %1230 : vector<1x4x144xbf16> to vector<4x144xbf16>
    %c0_617 = arith.constant 0 : index
    %c0_618 = arith.constant 0 : index
    %1232 = vector.load %arg9[%c0_617, %c0_618] : memref<144x256xbf16, #tpu.memory_space<vmem>>, vector<144x256xbf16>
    %cst_619 = arith.constant dense<0.000000e+00> : vector<4x256xf32>
    %1233 = tpu.matmul %1231, %1232, %cst_619 {dimension_numbers = #tpu.dot_dimension_numbers<[1], [0], [0], [1], [0, 0, 1, 1], [], []>} : vector<4x144xbf16>, vector<144x256xbf16>, vector<4x256xf32> -> vector<4x256xf32>
    %c4_620 = arith.constant 4 : index
    %c0_621 = arith.constant 0 : index
    %c0_622 = arith.constant 0 : index
    %1234 = vector.load %arg7[%c4_620, %c0_621, %c0_622] : memref<6x4x1xf32, #tpu.memory_space<vmem>>, vector<1x4x1xf32>
    %1235 = vector.shape_cast %1234 : vector<1x4x1xf32> to vector<4x1xf32>
    %1236 = vector.broadcast %1235 : vector<4x1xf32> to vector<4x256xf32>
    %1237 = arith.addf %1233, %1236 : vector<4x256xf32>
    %c0_623 = arith.constant 0 : index
    %c20 = arith.constant 20 : index
    %c0_624 = arith.constant 0 : index
    %1238 = vector.load %arg8[%c0_623, %c20, %c0_624] : memref<1x28x256xf32, #tpu.memory_space<vmem>>, vector<1x4x256xf32>
    %1239 = vector.shape_cast %1238 : vector<1x4x256xf32> to vector<4x256xf32>
    %1240 = vector.shape_cast %1237 : vector<4x256xf32> to vector<1x4x256xf32>
    tpu.vector_store %arg8[%c0_623, %c20, %c0_624], %1240 {strides = array<i32>} : memref<1x28x256xf32, #tpu.memory_space<vmem>>, vector<1x4x256xf32>,
    %c0_625 = arith.constant 0 : index
    %c0_626 = arith.constant 0 : index
    %c0_627 = arith.constant 0 : index
    %1241 = vector.load %arg8[%c0_625, %c0_626, %c0_627] : memref<1x28x256xf32, #tpu.memory_space<vmem>>, vector<1x28x256xf32>
    %1242 = vector.shape_cast %1241 : vector<1x28x256xf32> to vector<28x256xf32>
    %c5 = arith.constant 5 : index
    %c0_628 = arith.constant 0 : index
    %c0_629 = arith.constant 0 : index
    %1243 = vector.load %arg2[%c5, %c0_628, %c0_629] : memref<6x28x1xf32, #tpu.memory_space<vmem>>, vector<1x28x1xf32>
    %1244 = vector.shape_cast %1243 : vector<1x28x1xf32> to vector<28x1xf32>
    %1245 = vector.broadcast %1244 : vector<28x1xf32> to vector<28x256xf32>
    %1246 = arith.mulf %1242, %1245 : vector<28x256xf32>
    %c5_630 = arith.constant 5 : index
    %c0_631 = arith.constant 0 : index
    %c0_632 = arith.constant 0 : index
    %1247 = vector.load %arg3[%c5_630, %c0_631, %c0_632] : memref<6x28x1xf32, #tpu.memory_space<vmem>>, vector<1x28x1xf32>
    %1248 = vector.shape_cast %1247 : vector<1x28x1xf32> to vector<28x1xf32>
    %1249 = vector.broadcast %1248 : vector<28x1xf32> to vector<28x256xf32>
    %1250 = arith.addf %1246, %1249 : vector<28x256xf32>
    %cst_633 = arith.constant 0.000000e+00 : f32
    %1251 = vector.broadcast %cst_633 : f32 to vector<28x256xf32>
    %1252 = arith.maximumf %1250, %1251 : vector<28x256xf32>
    %c5_634 = arith.constant 5 : index
    %c0_635 = arith.constant 0 : index
    %c0_636 = arith.constant 0 : index
    %1253 = vector.load %arg4[%c5_634, %c0_635, %c0_636] : memref<6x16x28xbf16, #tpu.memory_space<vmem>>, vector<1x16x28xbf16>
    %1254 = vector.shape_cast %1253 : vector<1x16x28xbf16> to vector<16x28xbf16>
    %1255 = arith.truncf %1252 : vector<28x256xf32> to vector<28x256xbf16>
    %cst_637 = arith.constant dense<0.000000e+00> : vector<16x256xf32>
    %1256 = tpu.matmul %1254, %1255, %cst_637 {dimension_numbers = #tpu.dot_dimension_numbers<[1], [0], [0], [1], [0, 0, 1, 1], [], []>} : vector<16x28xbf16>, vector<28x256xbf16>, vector<16x256xf32> -> vector<16x256xf32>
    %c5_638 = arith.constant 5 : index
    %c0_639 = arith.constant 0 : index
    %c0_640 = arith.constant 0 : index
    %1257 = vector.load %arg5[%c5_638, %c0_639, %c0_640] : memref<6x16x1xf32, #tpu.memory_space<vmem>>, vector<1x16x1xf32>
    %1258 = vector.shape_cast %1257 : vector<1x16x1xf32> to vector<16x1xf32>
    %1259 = vector.broadcast %1258 : vector<16x1xf32> to vector<16x256xf32>
    %1260 = arith.addf %1256, %1259 : vector<16x256xf32>
    %cst_641 = arith.constant 0.000000e+00 : f32
    %1261 = vector.broadcast %cst_641 : f32 to vector<16x256xf32>
    %1262 = arith.maximumf %1260, %1261 : vector<16x256xf32>
    %c17_i32_642 = arith.constant 17 : i32
    %1263 = tpu.dynamic_rotate %1262 by %c17_i32_642 dim 1 : vector<16x256xf32>, i32 -> vector<16x256xf32>
    %c-1_i32_643 = arith.constant -1 : i32
    %1264 = vector.broadcast %c-1_i32_643 : i32 to vector<1x256xi32>
    %1265 = arith.addi %25, %1264 : vector<1x256xi32>
    %c0_i32_644 = arith.constant 0 : i32
    %1266 = vector.broadcast %c0_i32_644 : i32 to vector<1x256xi32>
    %1267 = arith.cmpi sge, %1265, %1266 : vector<1x256xi32>
    %c-1_i32_645 = arith.constant -1 : i32
    %1268 = vector.broadcast %c-1_i32_645 : i32 to vector<1x256xi32>
    %1269 = arith.addi %25, %1268 : vector<1x256xi32>
    %c16_i32_646 = arith.constant 16 : i32
    %1270 = vector.broadcast %c16_i32_646 : i32 to vector<1x256xi32>
    %1271 = arith.cmpi slt, %1269, %1270 : vector<1x256xi32>
    %1272 = arith.andi %1267, %1271 : vector<1x256xi1>
    %c-17_i32_647 = arith.constant -17 : i32
    %1273 = vector.broadcast %c-17_i32_647 : i32 to vector<1x256xi32>
    %1274 = arith.addi %9, %1273 : vector<1x256xi32>
    %c0_i32_648 = arith.constant 0 : i32
    %1275 = vector.broadcast %c0_i32_648 : i32 to vector<1x256xi32>
    %1276 = arith.cmpi sge, %1274, %1275 : vector<1x256xi32>
    %1277 = arith.andi %1272, %1276 : vector<1x256xi1>
    %c-17_i32_649 = arith.constant -17 : i32
    %1278 = vector.broadcast %c-17_i32_649 : i32 to vector<1x256xi32>
    %1279 = arith.addi %9, %1278 : vector<1x256xi32>
    %c256_i32_650 = arith.constant 256 : i32
    %1280 = vector.broadcast %c256_i32_650 : i32 to vector<1x256xi32>
    %1281 = arith.cmpi slt, %1279, %1280 : vector<1x256xi32>
    %1282 = arith.andi %1277, %1281 : vector<1x256xi1>
    %cst_651 = arith.constant 0.000000e+00 : f32
    %1283 = vector.shape_cast %1282 : vector<1x256xi1> to vector<1x256xi1>
    %1284 = vector.broadcast %1283 : vector<1x256xi1> to vector<16x256xi1>
    %1285 = vector.broadcast %cst_651 : f32 to vector<16x256xf32>
    %1286 = arith.select %1284, %1263, %1285 : vector<16x256xi1>, vector<16x256xf32>
    %1287 = arith.truncf %1286 : vector<16x256xf32> to vector<16x256xbf16>
    %c0_652 = arith.constant 0 : index
    %c0_653 = arith.constant 0 : index
    %1288 = vector.load %arg9[%c0_652, %c0_653] : memref<144x256xbf16, #tpu.memory_space<vmem>>, vector<16x256xbf16>
    tpu.vector_store %arg9[%c0_652, %c0_653], %1287 {strides = array<i32>} : memref<144x256xbf16, #tpu.memory_space<vmem>>, vector<16x256xbf16>,
    %c16_i32_654 = arith.constant 16 : i32
    %1289 = tpu.dynamic_rotate %1262 by %c16_i32_654 dim 1 : vector<16x256xf32>, i32 -> vector<16x256xf32>
    %c0_i32_655 = arith.constant 0 : i32
    %1290 = vector.broadcast %c0_i32_655 : i32 to vector<1x256xi32>
    %1291 = arith.addi %25, %1290 : vector<1x256xi32>
    %c0_i32_656 = arith.constant 0 : i32
    %1292 = vector.broadcast %c0_i32_656 : i32 to vector<1x256xi32>
    %1293 = arith.cmpi sge, %1291, %1292 : vector<1x256xi32>
    %c0_i32_657 = arith.constant 0 : i32
    %1294 = vector.broadcast %c0_i32_657 : i32 to vector<1x256xi32>
    %1295 = arith.addi %25, %1294 : vector<1x256xi32>
    %c16_i32_658 = arith.constant 16 : i32
    %1296 = vector.broadcast %c16_i32_658 : i32 to vector<1x256xi32>
    %1297 = arith.cmpi slt, %1295, %1296 : vector<1x256xi32>
    %1298 = arith.andi %1293, %1297 : vector<1x256xi1>
    %c-16_i32_659 = arith.constant -16 : i32
    %1299 = vector.broadcast %c-16_i32_659 : i32 to vector<1x256xi32>
    %1300 = arith.addi %9, %1299 : vector<1x256xi32>
    %c0_i32_660 = arith.constant 0 : i32
    %1301 = vector.broadcast %c0_i32_660 : i32 to vector<1x256xi32>
    %1302 = arith.cmpi sge, %1300, %1301 : vector<1x256xi32>
    %1303 = arith.andi %1298, %1302 : vector<1x256xi1>
    %c-16_i32_661 = arith.constant -16 : i32
    %1304 = vector.broadcast %c-16_i32_661 : i32 to vector<1x256xi32>
    %1305 = arith.addi %9, %1304 : vector<1x256xi32>
    %c256_i32_662 = arith.constant 256 : i32
    %1306 = vector.broadcast %c256_i32_662 : i32 to vector<1x256xi32>
    %1307 = arith.cmpi slt, %1305, %1306 : vector<1x256xi32>
    %1308 = arith.andi %1303, %1307 : vector<1x256xi1>
    %cst_663 = arith.constant 0.000000e+00 : f32
    %1309 = vector.shape_cast %1308 : vector<1x256xi1> to vector<1x256xi1>
    %1310 = vector.broadcast %1309 : vector<1x256xi1> to vector<16x256xi1>
    %1311 = vector.broadcast %cst_663 : f32 to vector<16x256xf32>
    %1312 = arith.select %1310, %1289, %1311 : vector<16x256xi1>, vector<16x256xf32>
    %1313 = arith.truncf %1312 : vector<16x256xf32> to vector<16x256xbf16>
    %c16_664 = arith.constant 16 : index
    %c0_665 = arith.constant 0 : index
    %1314 = vector.load %arg9[%c16_664, %c0_665] : memref<144x256xbf16, #tpu.memory_space<vmem>>, vector<16x256xbf16>
    tpu.vector_store %arg9[%c16_664, %c0_665], %1313 {strides = array<i32>} : memref<144x256xbf16, #tpu.memory_space<vmem>>, vector<16x256xbf16>,
    %c15_i32_666 = arith.constant 15 : i32
    %1315 = tpu.dynamic_rotate %1262 by %c15_i32_666 dim 1 : vector<16x256xf32>, i32 -> vector<16x256xf32>
    %c1_i32_667 = arith.constant 1 : i32
    %1316 = vector.broadcast %c1_i32_667 : i32 to vector<1x256xi32>
    %1317 = arith.addi %25, %1316 : vector<1x256xi32>
    %c0_i32_668 = arith.constant 0 : i32
    %1318 = vector.broadcast %c0_i32_668 : i32 to vector<1x256xi32>
    %1319 = arith.cmpi sge, %1317, %1318 : vector<1x256xi32>
    %c1_i32_669 = arith.constant 1 : i32
    %1320 = vector.broadcast %c1_i32_669 : i32 to vector<1x256xi32>
    %1321 = arith.addi %25, %1320 : vector<1x256xi32>
    %c16_i32_670 = arith.constant 16 : i32
    %1322 = vector.broadcast %c16_i32_670 : i32 to vector<1x256xi32>
    %1323 = arith.cmpi slt, %1321, %1322 : vector<1x256xi32>
    %1324 = arith.andi %1319, %1323 : vector<1x256xi1>
    %c-15_i32_671 = arith.constant -15 : i32
    %1325 = vector.broadcast %c-15_i32_671 : i32 to vector<1x256xi32>
    %1326 = arith.addi %9, %1325 : vector<1x256xi32>
    %c0_i32_672 = arith.constant 0 : i32
    %1327 = vector.broadcast %c0_i32_672 : i32 to vector<1x256xi32>
    %1328 = arith.cmpi sge, %1326, %1327 : vector<1x256xi32>
    %1329 = arith.andi %1324, %1328 : vector<1x256xi1>
    %c-15_i32_673 = arith.constant -15 : i32
    %1330 = vector.broadcast %c-15_i32_673 : i32 to vector<1x256xi32>
    %1331 = arith.addi %9, %1330 : vector<1x256xi32>
    %c256_i32_674 = arith.constant 256 : i32
    %1332 = vector.broadcast %c256_i32_674 : i32 to vector<1x256xi32>
    %1333 = arith.cmpi slt, %1331, %1332 : vector<1x256xi32>
    %1334 = arith.andi %1329, %1333 : vector<1x256xi1>
    %cst_675 = arith.constant 0.000000e+00 : f32
    %1335 = vector.shape_cast %1334 : vector<1x256xi1> to vector<1x256xi1>
    %1336 = vector.broadcast %1335 : vector<1x256xi1> to vector<16x256xi1>
    %1337 = vector.broadcast %cst_675 : f32 to vector<16x256xf32>
    %1338 = arith.select %1336, %1315, %1337 : vector<16x256xi1>, vector<16x256xf32>
    %1339 = arith.truncf %1338 : vector<16x256xf32> to vector<16x256xbf16>
    %c32_676 = arith.constant 32 : index
    %c0_677 = arith.constant 0 : index
    %1340 = vector.load %arg9[%c32_676, %c0_677] : memref<144x256xbf16, #tpu.memory_space<vmem>>, vector<16x256xbf16>
    tpu.vector_store %arg9[%c32_676, %c0_677], %1339 {strides = array<i32>} : memref<144x256xbf16, #tpu.memory_space<vmem>>, vector<16x256xbf16>,
    %c1_i32_678 = arith.constant 1 : i32
    %1341 = tpu.dynamic_rotate %1262 by %c1_i32_678 dim 1 : vector<16x256xf32>, i32 -> vector<16x256xf32>
    %c-1_i32_679 = arith.constant -1 : i32
    %1342 = vector.broadcast %c-1_i32_679 : i32 to vector<1x256xi32>
    %1343 = arith.addi %25, %1342 : vector<1x256xi32>
    %c0_i32_680 = arith.constant 0 : i32
    %1344 = vector.broadcast %c0_i32_680 : i32 to vector<1x256xi32>
    %1345 = arith.cmpi sge, %1343, %1344 : vector<1x256xi32>
    %c-1_i32_681 = arith.constant -1 : i32
    %1346 = vector.broadcast %c-1_i32_681 : i32 to vector<1x256xi32>
    %1347 = arith.addi %25, %1346 : vector<1x256xi32>
    %c16_i32_682 = arith.constant 16 : i32
    %1348 = vector.broadcast %c16_i32_682 : i32 to vector<1x256xi32>
    %1349 = arith.cmpi slt, %1347, %1348 : vector<1x256xi32>
    %1350 = arith.andi %1345, %1349 : vector<1x256xi1>
    %c-1_i32_683 = arith.constant -1 : i32
    %1351 = vector.broadcast %c-1_i32_683 : i32 to vector<1x256xi32>
    %1352 = arith.addi %9, %1351 : vector<1x256xi32>
    %c0_i32_684 = arith.constant 0 : i32
    %1353 = vector.broadcast %c0_i32_684 : i32 to vector<1x256xi32>
    %1354 = arith.cmpi sge, %1352, %1353 : vector<1x256xi32>
    %1355 = arith.andi %1350, %1354 : vector<1x256xi1>
    %c-1_i32_685 = arith.constant -1 : i32
    %1356 = vector.broadcast %c-1_i32_685 : i32 to vector<1x256xi32>
    %1357 = arith.addi %9, %1356 : vector<1x256xi32>
    %c256_i32_686 = arith.constant 256 : i32
    %1358 = vector.broadcast %c256_i32_686 : i32 to vector<1x256xi32>
    %1359 = arith.cmpi slt, %1357, %1358 : vector<1x256xi32>
    %1360 = arith.andi %1355, %1359 : vector<1x256xi1>
    %cst_687 = arith.constant 0.000000e+00 : f32
    %1361 = vector.shape_cast %1360 : vector<1x256xi1> to vector<1x256xi1>
    %1362 = vector.broadcast %1361 : vector<1x256xi1> to vector<16x256xi1>
    %1363 = vector.broadcast %cst_687 : f32 to vector<16x256xf32>
    %1364 = arith.select %1362, %1341, %1363 : vector<16x256xi1>, vector<16x256xf32>
    %1365 = arith.truncf %1364 : vector<16x256xf32> to vector<16x256xbf16>
    %c48_688 = arith.constant 48 : index
    %c0_689 = arith.constant 0 : index
    %1366 = vector.load %arg9[%c48_688, %c0_689] : memref<144x256xbf16, #tpu.memory_space<vmem>>, vector<16x256xbf16>
    tpu.vector_store %arg9[%c48_688, %c0_689], %1365 {strides = array<i32>} : memref<144x256xbf16, #tpu.memory_space<vmem>>, vector<16x256xbf16>,
    %1367 = arith.truncf %1262 : vector<16x256xf32> to vector<16x256xbf16>
    %c64_690 = arith.constant 64 : index
    %c0_691 = arith.constant 0 : index
    %1368 = vector.load %arg9[%c64_690, %c0_691] : memref<144x256xbf16, #tpu.memory_space<vmem>>, vector<16x256xbf16>
    tpu.vector_store %arg9[%c64_690, %c0_691], %1367 {strides = array<i32>} : memref<144x256xbf16, #tpu.memory_space<vmem>>, vector<16x256xbf16>,
    %c255_i32_692 = arith.constant 255 : i32
    %1369 = tpu.dynamic_rotate %1262 by %c255_i32_692 dim 1 : vector<16x256xf32>, i32 -> vector<16x256xf32>
    %c1_i32_693 = arith.constant 1 : i32
    %1370 = vector.broadcast %c1_i32_693 : i32 to vector<1x256xi32>
    %1371 = arith.addi %25, %1370 : vector<1x256xi32>
    %c0_i32_694 = arith.constant 0 : i32
    %1372 = vector.broadcast %c0_i32_694 : i32 to vector<1x256xi32>
    %1373 = arith.cmpi sge, %1371, %1372 : vector<1x256xi32>
    %c1_i32_695 = arith.constant 1 : i32
    %1374 = vector.broadcast %c1_i32_695 : i32 to vector<1x256xi32>
    %1375 = arith.addi %25, %1374 : vector<1x256xi32>
    %c16_i32_696 = arith.constant 16 : i32
    %1376 = vector.broadcast %c16_i32_696 : i32 to vector<1x256xi32>
    %1377 = arith.cmpi slt, %1375, %1376 : vector<1x256xi32>
    %1378 = arith.andi %1373, %1377 : vector<1x256xi1>
    %c1_i32_697 = arith.constant 1 : i32
    %1379 = vector.broadcast %c1_i32_697 : i32 to vector<1x256xi32>
    %1380 = arith.addi %9, %1379 : vector<1x256xi32>
    %c0_i32_698 = arith.constant 0 : i32
    %1381 = vector.broadcast %c0_i32_698 : i32 to vector<1x256xi32>
    %1382 = arith.cmpi sge, %1380, %1381 : vector<1x256xi32>
    %1383 = arith.andi %1378, %1382 : vector<1x256xi1>
    %c1_i32_699 = arith.constant 1 : i32
    %1384 = vector.broadcast %c1_i32_699 : i32 to vector<1x256xi32>
    %1385 = arith.addi %9, %1384 : vector<1x256xi32>
    %c256_i32_700 = arith.constant 256 : i32
    %1386 = vector.broadcast %c256_i32_700 : i32 to vector<1x256xi32>
    %1387 = arith.cmpi slt, %1385, %1386 : vector<1x256xi32>
    %1388 = arith.andi %1383, %1387 : vector<1x256xi1>
    %cst_701 = arith.constant 0.000000e+00 : f32
    %1389 = vector.shape_cast %1388 : vector<1x256xi1> to vector<1x256xi1>
    %1390 = vector.broadcast %1389 : vector<1x256xi1> to vector<16x256xi1>
    %1391 = vector.broadcast %cst_701 : f32 to vector<16x256xf32>
    %1392 = arith.select %1390, %1369, %1391 : vector<16x256xi1>, vector<16x256xf32>
    %1393 = arith.truncf %1392 : vector<16x256xf32> to vector<16x256xbf16>
    %c80_702 = arith.constant 80 : index
    %c0_703 = arith.constant 0 : index
    %1394 = vector.load %arg9[%c80_702, %c0_703] : memref<144x256xbf16, #tpu.memory_space<vmem>>, vector<16x256xbf16>
    tpu.vector_store %arg9[%c80_702, %c0_703], %1393 {strides = array<i32>} : memref<144x256xbf16, #tpu.memory_space<vmem>>, vector<16x256xbf16>,
    %c241_i32_704 = arith.constant 241 : i32
    %1395 = tpu.dynamic_rotate %1262 by %c241_i32_704 dim 1 : vector<16x256xf32>, i32 -> vector<16x256xf32>
    %c-1_i32_705 = arith.constant -1 : i32
    %1396 = vector.broadcast %c-1_i32_705 : i32 to vector<1x256xi32>
    %1397 = arith.addi %25, %1396 : vector<1x256xi32>
    %c0_i32_706 = arith.constant 0 : i32
    %1398 = vector.broadcast %c0_i32_706 : i32 to vector<1x256xi32>
    %1399 = arith.cmpi sge, %1397, %1398 : vector<1x256xi32>
    %c-1_i32_707 = arith.constant -1 : i32
    %1400 = vector.broadcast %c-1_i32_707 : i32 to vector<1x256xi32>
    %1401 = arith.addi %25, %1400 : vector<1x256xi32>
    %c16_i32_708 = arith.constant 16 : i32
    %1402 = vector.broadcast %c16_i32_708 : i32 to vector<1x256xi32>
    %1403 = arith.cmpi slt, %1401, %1402 : vector<1x256xi32>
    %1404 = arith.andi %1399, %1403 : vector<1x256xi1>
    %c15_i32_709 = arith.constant 15 : i32
    %1405 = vector.broadcast %c15_i32_709 : i32 to vector<1x256xi32>
    %1406 = arith.addi %9, %1405 : vector<1x256xi32>
    %c0_i32_710 = arith.constant 0 : i32
    %1407 = vector.broadcast %c0_i32_710 : i32 to vector<1x256xi32>
    %1408 = arith.cmpi sge, %1406, %1407 : vector<1x256xi32>
    %1409 = arith.andi %1404, %1408 : vector<1x256xi1>
    %c15_i32_711 = arith.constant 15 : i32
    %1410 = vector.broadcast %c15_i32_711 : i32 to vector<1x256xi32>
    %1411 = arith.addi %9, %1410 : vector<1x256xi32>
    %c256_i32_712 = arith.constant 256 : i32
    %1412 = vector.broadcast %c256_i32_712 : i32 to vector<1x256xi32>
    %1413 = arith.cmpi slt, %1411, %1412 : vector<1x256xi32>
    %1414 = arith.andi %1409, %1413 : vector<1x256xi1>
    %cst_713 = arith.constant 0.000000e+00 : f32
    %1415 = vector.shape_cast %1414 : vector<1x256xi1> to vector<1x256xi1>
    %1416 = vector.broadcast %1415 : vector<1x256xi1> to vector<16x256xi1>
    %1417 = vector.broadcast %cst_713 : f32 to vector<16x256xf32>
    %1418 = arith.select %1416, %1395, %1417 : vector<16x256xi1>, vector<16x256xf32>
    %1419 = arith.truncf %1418 : vector<16x256xf32> to vector<16x256xbf16>
    %c96_714 = arith.constant 96 : index
    %c0_715 = arith.constant 0 : index
    %1420 = vector.load %arg9[%c96_714, %c0_715] : memref<144x256xbf16, #tpu.memory_space<vmem>>, vector<16x256xbf16>
    tpu.vector_store %arg9[%c96_714, %c0_715], %1419 {strides = array<i32>} : memref<144x256xbf16, #tpu.memory_space<vmem>>, vector<16x256xbf16>,
    %c240_i32_716 = arith.constant 240 : i32
    %1421 = tpu.dynamic_rotate %1262 by %c240_i32_716 dim 1 : vector<16x256xf32>, i32 -> vector<16x256xf32>
    %c0_i32_717 = arith.constant 0 : i32
    %1422 = vector.broadcast %c0_i32_717 : i32 to vector<1x256xi32>
    %1423 = arith.addi %25, %1422 : vector<1x256xi32>
    %c0_i32_718 = arith.constant 0 : i32
    %1424 = vector.broadcast %c0_i32_718 : i32 to vector<1x256xi32>
    %1425 = arith.cmpi sge, %1423, %1424 : vector<1x256xi32>
    %c0_i32_719 = arith.constant 0 : i32
    %1426 = vector.broadcast %c0_i32_719 : i32 to vector<1x256xi32>
    %1427 = arith.addi %25, %1426 : vector<1x256xi32>
    %c16_i32_720 = arith.constant 16 : i32
    %1428 = vector.broadcast %c16_i32_720 : i32 to vector<1x256xi32>
    %1429 = arith.cmpi slt, %1427, %1428 : vector<1x256xi32>
    %1430 = arith.andi %1425, %1429 : vector<1x256xi1>
    %c16_i32_721 = arith.constant 16 : i32
    %1431 = vector.broadcast %c16_i32_721 : i32 to vector<1x256xi32>
    %1432 = arith.addi %9, %1431 : vector<1x256xi32>
    %c0_i32_722 = arith.constant 0 : i32
    %1433 = vector.broadcast %c0_i32_722 : i32 to vector<1x256xi32>
    %1434 = arith.cmpi sge, %1432, %1433 : vector<1x256xi32>
    %1435 = arith.andi %1430, %1434 : vector<1x256xi1>
    %c16_i32_723 = arith.constant 16 : i32
    %1436 = vector.broadcast %c16_i32_723 : i32 to vector<1x256xi32>
    %1437 = arith.addi %9, %1436 : vector<1x256xi32>
    %c256_i32_724 = arith.constant 256 : i32
    %1438 = vector.broadcast %c256_i32_724 : i32 to vector<1x256xi32>
    %1439 = arith.cmpi slt, %1437, %1438 : vector<1x256xi32>
    %1440 = arith.andi %1435, %1439 : vector<1x256xi1>
    %cst_725 = arith.constant 0.000000e+00 : f32
    %1441 = vector.shape_cast %1440 : vector<1x256xi1> to vector<1x256xi1>
    %1442 = vector.broadcast %1441 : vector<1x256xi1> to vector<16x256xi1>
    %1443 = vector.broadcast %cst_725 : f32 to vector<16x256xf32>
    %1444 = arith.select %1442, %1421, %1443 : vector<16x256xi1>, vector<16x256xf32>
    %1445 = arith.truncf %1444 : vector<16x256xf32> to vector<16x256xbf16>
    %c112_726 = arith.constant 112 : index
    %c0_727 = arith.constant 0 : index
    %1446 = vector.load %arg9[%c112_726, %c0_727] : memref<144x256xbf16, #tpu.memory_space<vmem>>, vector<16x256xbf16>
    tpu.vector_store %arg9[%c112_726, %c0_727], %1445 {strides = array<i32>} : memref<144x256xbf16, #tpu.memory_space<vmem>>, vector<16x256xbf16>,
    %c239_i32_728 = arith.constant 239 : i32
    %1447 = tpu.dynamic_rotate %1262 by %c239_i32_728 dim 1 : vector<16x256xf32>, i32 -> vector<16x256xf32>
    %c1_i32_729 = arith.constant 1 : i32
    %1448 = vector.broadcast %c1_i32_729 : i32 to vector<1x256xi32>
    %1449 = arith.addi %25, %1448 : vector<1x256xi32>
    %c0_i32_730 = arith.constant 0 : i32
    %1450 = vector.broadcast %c0_i32_730 : i32 to vector<1x256xi32>
    %1451 = arith.cmpi sge, %1449, %1450 : vector<1x256xi32>
    %c1_i32_731 = arith.constant 1 : i32
    %1452 = vector.broadcast %c1_i32_731 : i32 to vector<1x256xi32>
    %1453 = arith.addi %25, %1452 : vector<1x256xi32>
    %c16_i32_732 = arith.constant 16 : i32
    %1454 = vector.broadcast %c16_i32_732 : i32 to vector<1x256xi32>
    %1455 = arith.cmpi slt, %1453, %1454 : vector<1x256xi32>
    %1456 = arith.andi %1451, %1455 : vector<1x256xi1>
    %c17_i32_733 = arith.constant 17 : i32
    %1457 = vector.broadcast %c17_i32_733 : i32 to vector<1x256xi32>
    %1458 = arith.addi %9, %1457 : vector<1x256xi32>
    %c0_i32_734 = arith.constant 0 : i32
    %1459 = vector.broadcast %c0_i32_734 : i32 to vector<1x256xi32>
    %1460 = arith.cmpi sge, %1458, %1459 : vector<1x256xi32>
    %1461 = arith.andi %1456, %1460 : vector<1x256xi1>
    %c17_i32_735 = arith.constant 17 : i32
    %1462 = vector.broadcast %c17_i32_735 : i32 to vector<1x256xi32>
    %1463 = arith.addi %9, %1462 : vector<1x256xi32>
    %c256_i32_736 = arith.constant 256 : i32
    %1464 = vector.broadcast %c256_i32_736 : i32 to vector<1x256xi32>
    %1465 = arith.cmpi slt, %1463, %1464 : vector<1x256xi32>
    %1466 = arith.andi %1461, %1465 : vector<1x256xi1>
    %cst_737 = arith.constant 0.000000e+00 : f32
    %1467 = vector.shape_cast %1466 : vector<1x256xi1> to vector<1x256xi1>
    %1468 = vector.broadcast %1467 : vector<1x256xi1> to vector<16x256xi1>
    %1469 = vector.broadcast %cst_737 : f32 to vector<16x256xf32>
    %1470 = arith.select %1468, %1447, %1469 : vector<16x256xi1>, vector<16x256xf32>
    %1471 = arith.truncf %1470 : vector<16x256xf32> to vector<16x256xbf16>
    %c128_738 = arith.constant 128 : index
    %c0_739 = arith.constant 0 : index
    %1472 = vector.load %arg9[%c128_738, %c0_739] : memref<144x256xbf16, #tpu.memory_space<vmem>>, vector<16x256xbf16>
    tpu.vector_store %arg9[%c128_738, %c0_739], %1471 {strides = array<i32>} : memref<144x256xbf16, #tpu.memory_space<vmem>>, vector<16x256xbf16>,
    %c5_740 = arith.constant 5 : index
    %c0_741 = arith.constant 0 : index
    %c0_742 = arith.constant 0 : index
    %1473 = vector.load %arg6[%c5_740, %c0_741, %c0_742] : memref<6x4x144xbf16, #tpu.memory_space<vmem>>, vector<1x4x144xbf16>
    %1474 = vector.shape_cast %1473 : vector<1x4x144xbf16> to vector<4x144xbf16>
    %c0_743 = arith.constant 0 : index
    %c0_744 = arith.constant 0 : index
    %1475 = vector.load %arg9[%c0_743, %c0_744] : memref<144x256xbf16, #tpu.memory_space<vmem>>, vector<144x256xbf16>
    %cst_745 = arith.constant dense<0.000000e+00> : vector<4x256xf32>
    %1476 = tpu.matmul %1474, %1475, %cst_745 {dimension_numbers = #tpu.dot_dimension_numbers<[1], [0], [0], [1], [0, 0, 1, 1], [], []>} : vector<4x144xbf16>, vector<144x256xbf16>, vector<4x256xf32> -> vector<4x256xf32>
    %c5_746 = arith.constant 5 : index
    %c0_747 = arith.constant 0 : index
    %c0_748 = arith.constant 0 : index
    %1477 = vector.load %arg7[%c5_746, %c0_747, %c0_748] : memref<6x4x1xf32, #tpu.memory_space<vmem>>, vector<1x4x1xf32>
    %1478 = vector.shape_cast %1477 : vector<1x4x1xf32> to vector<4x1xf32>
    %1479 = vector.broadcast %1478 : vector<4x1xf32> to vector<4x256xf32>
    %1480 = arith.addf %1476, %1479 : vector<4x256xf32>
    %c0_749 = arith.constant 0 : index
    %c24 = arith.constant 24 : index
    %c0_750 = arith.constant 0 : index
    %1481 = vector.load %arg8[%c0_749, %c24, %c0_750] : memref<1x28x256xf32, #tpu.memory_space<vmem>>, vector<1x4x256xf32>
    %1482 = vector.shape_cast %1481 : vector<1x4x256xf32> to vector<4x256xf32>
    %1483 = vector.shape_cast %1480 : vector<4x256xf32> to vector<1x4x256xf32>
    tpu.vector_store %arg8[%c0_749, %c24, %c0_750], %1483 {strides = array<i32>} : memref<1x28x256xf32, #tpu.memory_space<vmem>>, vector<1x4x256xf32>,
    return
  }
  func.func @transform_0(%arg0: i32) -> (i32, i32, i32) {
    %c0_i32 = arith.constant 0 : i32
    %c0_i32_0 = arith.constant 0 : i32
    %c0_i32_1 = arith.constant 0 : i32
    return %arg0, %c0_i32, %c0_i32_0 : i32, i32, i32
  }
  func.func @transform_1(%arg0: i32) -> (i32, i32, i32) {
    %c0_i32 = arith.constant 0 : i32
    %c0_i32_0 = arith.constant 0 : i32
    %c0_i32_1 = arith.constant 0 : i32
    %c0_i32_2 = arith.constant 0 : i32
    return %c0_i32, %c0_i32_0, %c0_i32_1 : i32, i32, i32
  }
  func.func @transform_2(%arg0: i32) -> (i32, i32, i32) {
    %c0_i32 = arith.constant 0 : i32
    %c0_i32_0 = arith.constant 0 : i32
    %c0_i32_1 = arith.constant 0 : i32
    %c0_i32_2 = arith.constant 0 : i32
    return %c0_i32, %c0_i32_0, %c0_i32_1 : i32, i32, i32
  }
  func.func @transform_3(%arg0: i32) -> (i32, i32, i32) {
    %c0_i32 = arith.constant 0 : i32
    %c0_i32_0 = arith.constant 0 : i32
    %c0_i32_1 = arith.constant 0 : i32
    %c0_i32_2 = arith.constant 0 : i32
    return %c0_i32, %c0_i32_0, %c0_i32_1 : i32, i32, i32
  }
  func.func @transform_4(%arg0: i32) -> (i32, i32, i32) {
    %c0_i32 = arith.constant 0 : i32
    %c0_i32_0 = arith.constant 0 : i32
    %c0_i32_1 = arith.constant 0 : i32
    %c0_i32_2 = arith.constant 0 : i32
    return %c0_i32, %c0_i32_0, %c0_i32_1 : i32, i32, i32
  }
  func.func @transform_5(%arg0: i32) -> (i32, i32, i32) {
    %c0_i32 = arith.constant 0 : i32
    %c0_i32_0 = arith.constant 0 : i32
    %c0_i32_1 = arith.constant 0 : i32
    %c0_i32_2 = arith.constant 0 : i32
    return %c0_i32, %c0_i32_0, %c0_i32_1 : i32, i32, i32
  }
  func.func @transform_6(%arg0: i32) -> (i32, i32, i32) {
    %c0_i32 = arith.constant 0 : i32
    %c0_i32_0 = arith.constant 0 : i32
    %c0_i32_1 = arith.constant 0 : i32
    %c0_i32_2 = arith.constant 0 : i32
    return %c0_i32, %c0_i32_0, %c0_i32_1 : i32, i32, i32
  }
  func.func @transform_7(%arg0: i32) -> (i32, i32, i32) {
    %c0_i32 = arith.constant 0 : i32
    %c0_i32_0 = arith.constant 0 : i32
    %c0_i32_1 = arith.constant 0 : i32
    return %arg0, %c0_i32, %c0_i32_0 : i32, i32, i32
  }
}

</mosaic_0001>

<llo_original>
// kernel: dense_block_forward.1
$region0: #{dense_block_forward.1}
  #allocation0 [shape = 'u32[]', space=smem, size = 0x4, offset = 0x4, fixed_abs, tag = 'smem constant byte address 0x4 - core index']
  #allocation1 [shape = 'u32[144,128]{1,0:T(1,128)}', space=vmem, size = 0x12000, scoped, tag = 'internal scratch']
  #allocation2 [shape = 'bf16[144,256]{1,0:T(8,128)(2,1)}', space=vmem, size = 0x12000, scoped, tag = 'scratch operand']
  %s0 = inlined_call_operand.vmem [shape: f32[2,4,256], index: 0, kind: input, shape index: {}]
  %s1 = inlined_call_operand.vmem [shape: f32[6,28,1], index: 1, kind: input, shape index: {}]
  %s2 = inlined_call_operand.vmem [shape: f32[6,28,1], index: 2, kind: input, shape index: {}]
  %s3 = inlined_call_operand.vmem [shape: bf16[6,16,28], index: 3, kind: input, shape index: {}]
  %s4 = inlined_call_operand.vmem [shape: f32[6,16,1], index: 4, kind: input, shape index: {}]
  %s5 = inlined_call_operand.vmem [shape: bf16[6,4,144], index: 5, kind: input, shape index: {}]
  %s6 = inlined_call_operand.vmem [shape: f32[6,4,1], index: 6, kind: input, shape index: {}]
  %s7 = inlined_call_operand.vmem [shape: f32[2,28,256], index: 7, kind: output, shape index: {}]
  %s8 = sld [smem:[#allocation0]]
  $region61: #{dense_block_forward.1} parent=0
    _
  %s10 = ssub.s32 1, %s8
  %s11 = scalar_select 0, %s10, %s8
  loop: start=0, step=1, limit=4
  $region2: #{dense_block_forward.1} parent=0 // loop_pre_header
    _
  $region3: #{dense_block_forward.1} parent=0 // loop_header
    %s13 = sphi 0, %s17
    %p14 = scmp.ge.s32.totalorder %s13, 4
    %s23 = sphi 0, %s25
    %s26 = sphi 0, %s23
    %s27 = sphi 0, %s26
    %s43 = sphi 0, %s27
    %s47 = sphi 0, %s47
    %s49 = sphi 0, %s47
    %s50 = sphi 0, %s49
    %s64 = sphi 0, %s50
    %s68 = sphi 0, %s68
    %s70 = sphi 0, %s68
    %s71 = sphi 0, %s70
    %s85 = sphi 0, %s71
    %s89 = sphi 0, %s89
    %s91 = sphi 0, %s89
    %s92 = sphi 0, %s91
    %s106 = sphi 0, %s92
    %s110 = sphi 0, %s110
    %s112 = sphi 0, %s110
    %s113 = sphi 0, %s112
    %s127 = sphi 0, %s113
    %s131 = sphi 0, %s131
    %s133 = sphi 0, %s131
    %s134 = sphi 0, %s133
    %s148 = sphi 0, %s134
    %s152 = sphi 0, %s152
    %s154 = sphi 0, %s152
    %s155 = sphi 0, %s154
    %s169 = sphi 0, %s155
    %s175 = sphi 0, %s177
    %s178 = sphi 0, %s175
    %s179 = sphi 0, %s178
    %s195 = sphi 0, %s179
  $region4: #{dense_block_forward.1} parent=0 // loop_header_branch
    %16 = sbr.rel (%p14) target = $region8
  $region5: #{dense_block_forward.1} parent=0 // loop_body
    %s18 = ssub.s32 %s13, 1
    %s19 = ssub.s32 %s13, 2
    %s20 = sadd.s32 %s13, 1
    %s21 = ssub.s32 %s13, %s20
    %p22 = scmp.eq.s32.totalorder %s21, 0
    %s24 = sadd.s32 %s23, 1
    %s25 = scalar_select %p22, %s23, %s24
    %p28 = pneg %p22
    %p29 = scmp.eq.s32.totalorder %s13, 1
    %p30 = por %p28, %p29
    %p31 = scmp.ne.s32.totalorder %s23, %s26
    %p32 = scmp.eq.s32.totalorder %s13, 0
    %p33 = por %p31, %p32
    %p34 = scmp.ne.s32.totalorder %s23, %s26
    %p35 = scmp.eq.s32.totalorder %s18, 1
    %p36 = por %p34, %p35
    %p37 = scmp.ne.s32.totalorder %s26, %s27
    %p38 = scmp.eq.s32.totalorder %s18, 0
    %p39 = por %p37, %p38
    %p40 = scmp.ne.s32.totalorder %s26, %s27
    %p41 = scmp.eq.s32.totalorder %s19, 1
    %p42 = por %p40, %p41
    %p44 = scmp.ne.s32.totalorder %s27, %s43
    %p45 = scmp.eq.s32.totalorder %s19, 0
    %p46 = por %p44, %p45
    %s48 = sadd.s32 %s47, 1
    %p51 = scmp.eq.s32.totalorder %s13, 1
    %p52 = scmp.ne.s32.totalorder %s47, %s49
    %p53 = scmp.eq.s32.totalorder %s13, 0
    %p54 = por %p52, %p53
    %p55 = scmp.ne.s32.totalorder %s47, %s49
    %p56 = scmp.eq.s32.totalorder %s18, 1
    %p57 = por %p55, %p56
    %p58 = scmp.ne.s32.totalorder %s49, %s50
    %p59 = scmp.eq.s32.totalorder %s18, 0
    %p60 = por %p58, %p59
    %p61 = scmp.ne.s32.totalorder %s49, %s50
    %p62 = scmp.eq.s32.totalorder %s19, 1
    %p63 = por %p61, %p62
    %p65 = scmp.ne.s32.totalorder %s50, %s64
    %p66 = scmp.eq.s32.totalorder %s19, 0
    %p67 = por %p65, %p66
    %s69 = sadd.s32 %s68, 1
    %p72 = scmp.eq.s32.totalorder %s13, 1
    %p73 = scmp.ne.s32.totalorder %s68, %s70
    %p74 = scmp.eq.s32.totalorder %s13, 0
    %p75 = por %p73, %p74
    %p76 = scmp.ne.s32.totalorder %s68, %s70
    %p77 = scmp.eq.s32.totalorder %s18, 1
    %p78 = por %p76, %p77
    %p79 = scmp.ne.s32.totalorder %s70, %s71
    %p80 = scmp.eq.s32.totalorder %s18, 0
    %p81 = por %p79, %p80
    %p82 = scmp.ne.s32.totalorder %s70, %s71
    %p83 = scmp.eq.s32.totalorder %s19, 1
    %p84 = por %p82, %p83
    %p86 = scmp.ne.s32.totalorder %s71, %s85
    %p87 = scmp.eq.s32.totalorder %s19, 0
    %p88 = por %p86, %p87
    %s90 = sadd.s32 %s89, 1
    %p93 = scmp.eq.s32.totalorder %s13, 1
    %p94 = scmp.ne.s32.totalorder %s89, %s91
    %p95 = scmp.eq.s32.totalorder %s13, 0
    %p96 = por %p94, %p95
    %p97 = scmp.ne.s32.totalorder %s89, %s91
    %p98 = scmp.eq.s32.totalorder %s18, 1
    %p99 = por %p97, %p98
    %p100 = scmp.ne.s32.totalorder %s91, %s92
    %p101 = scmp.eq.s32.totalorder %s18, 0
    %p102 = por %p100, %p101
    %p103 = scmp.ne.s32.totalorder %s91, %s92
    %p104 = scmp.eq.s32.totalorder %s19, 1
    %p105 = por %p103, %p104
    %p107 = scmp.ne.s32.totalorder %s92, %s106
    %p108 = scmp.eq.s32.totalorder %s19, 0
    %p109 = por %p107, %p108
    %s111 = sadd.s32 %s110, 1
    %p114 = scmp.eq.s32.totalorder %s13, 1
    %p115 = scmp.ne.s32.totalorder %s110, %s112
    %p116 = scmp.eq.s32.totalorder %s13, 0
    %p117 = por %p115, %p116
    %p118 = scmp.ne.s32.totalorder %s110, %s112
    %p119 = scmp.eq.s32.totalorder %s18, 1
    %p120 = por %p118, %p119
    %p121 = scmp.ne.s32.totalorder %s112, %s113
    %p122 = scmp.eq.s32.totalorder %s18, 0
    %p123 = por %p121, %p122
    %p124 = scmp.ne.s32.totalorder %s112, %s113
    %p125 = scmp.eq.s32.totalorder %s19, 1
    %p126 = por %p124, %p125
    %p128 = scmp.ne.s32.totalorder %s113, %s127
    %p129 = scmp.eq.s32.totalorder %s19, 0
    %p130 = por %p128, %p129
    %s132 = sadd.s32 %s131, 1
    %p135 = scmp.eq.s32.totalorder %s13, 1
    %p136 = scmp.ne.s32.totalorder %s131, %s133
    %p137 = scmp.eq.s32.totalorder %s13, 0
    %p138 = por %p136, %p137
    %p139 = scmp.ne.s32.totalorder %s131, %s133
    %p140 = scmp.eq.s32.totalorder %s18, 1
    %p141 = por %p139, %p140
    %p142 = scmp.ne.s32.totalorder %s133, %s134
    %p143 = scmp.eq.s32.totalorder %s18, 0
    %p144 = por %p142, %p143
    %p145 = scmp.ne.s32.totalorder %s133, %s134
    %p146 = scmp.eq.s32.totalorder %s19, 1
    %p147 = por %p145, %p146
    %p149 = scmp.ne.s32.totalorder %s134, %s148
    %p150 = scmp.eq.s32.totalorder %s19, 0
    %p151 = por %p149, %p150
    %s153 = sadd.s32 %s152, 1
    %p156 = scmp.eq.s32.totalorder %s13, 1
    %p157 = scmp.ne.s32.totalorder %s152, %s154
    %p158 = scmp.eq.s32.totalorder %s13, 0
    %p159 = por %p157, %p158
    %p160 = scmp.ne.s32.totalorder %s152, %s154
    %p161 = scmp.eq.s32.totalorder %s18, 1
    %p162 = por %p160, %p161
    %p163 = scmp.ne.s32.totalorder %s154, %s155
    %p164 = scmp.eq.s32.totalorder %s18, 0
    %p165 = por %p163, %p164
    %p166 = scmp.ne.s32.totalorder %s154, %s155
    %p167 = scmp.eq.s32.totalorder %s19, 1
    %p168 = por %p166, %p167
    %p170 = scmp.ne.s32.totalorder %s155, %s169
    %p171 = scmp.eq.s32.totalorder %s19, 0
    %p172 = por %p170, %p171
    %s173 = ssub.s32 %s13, %s20
    %p174 = scmp.eq.s32.totalorder %s173, 0
    %s176 = sadd.s32 %s175, 1
    %s177 = scalar_select %p174, %s175, %s176
    %p180 = pneg %p174
    %p181 = scmp.eq.s32.totalorder %s13, 1
    %p182 = por %p180, %p181
    %p183 = scmp.ne.s32.totalorder %s175, %s178
    %p184 = scmp.eq.s32.totalorder %s13, 0
    %p185 = por %p183, %p184
    %p186 = scmp.ne.s32.totalorder %s175, %s178
    %p187 = scmp.eq.s32.totalorder %s18, 1
    %p188 = por %p186, %p187
    %p189 = scmp.ne.s32.totalorder %s178, %s179
    %p190 = scmp.eq.s32.totalorder %s18, 0
    %p191 = por %p189, %p190
    %p192 = scmp.ne.s32.totalorder %s178, %s179
    %p193 = scmp.eq.s32.totalorder %s19, 1
    %p194 = por %p192, %p193
    %p196 = scmp.ne.s32.totalorder %s179, %s195
    %p197 = scmp.eq.s32.totalorder %s19, 0
    %p198 = por %p196, %p197
    %p199 = scmp.le.s32.totalorder 1, %s13
    %p200 = scmp.lt.s32.totalorder %s13, 3
    %p201 = pnand %p199, %p200
    %p202 = pneg %p201
    // Predicated region
    $region9: #{dense_block_forward.1} parent=5 // pred_check
      _
    $region10: #{dense_block_forward.1} parent=5 // pred_check_branch
      %204 = sbr.rel (%p201) target = $region12
    $region11: #{dense_block_forward.1} parent=5 // pred_region
      %s205 = ssub.s32 %s13, 1
      // Predicated region
      $region13: #{dense_block_forward.1} parent=11 // pred_check
        %p206 = pneg %p60
      $region14: #{dense_block_forward.1} parent=11 // pred_check_branch
        %208 = sbr.rel (%p206) target = $region16
      $region15: #{dense_block_forward.1} parent=11 // pred_region
        _
      $region16: #{dense_block_forward.1} parent=11 // pred_fallthru
        _
      // Predicated region
      $region17: #{dense_block_forward.1} parent=11 // pred_check
        %p209 = pneg %p81
      $region18: #{dense_block_forward.1} parent=11 // pred_check_branch
        %211 = sbr.rel (%p209) target = $region20
      $region19: #{dense_block_forward.1} parent=11 // pred_region
        _
      $region20: #{dense_block_forward.1} parent=11 // pred_fallthru
        _
      // Predicated region
      $region21: #{dense_block_forward.1} parent=11 // pred_check
        %p212 = pneg %p102
      $region22: #{dense_block_forward.1} parent=11 // pred_check_branch
        %214 = sbr.rel (%p212) target = $region24
      $region23: #{dense_block_forward.1} parent=11 // pred_region
        _
      $region24: #{dense_block_forward.1} parent=11 // pred_fallthru
        _
      // Predicated region
      $region25: #{dense_block_forward.1} parent=11 // pred_check
        %p215 = pneg %p123
      $region26: #{dense_block_forward.1} parent=11 // pred_check_branch
        %217 = sbr.rel (%p215) target = $region28
      $region27: #{dense_block_forward.1} parent=11 // pred_region
        _
      $region28: #{dense_block_forward.1} parent=11 // pred_fallthru
        _
      // Predicated region
      $region29: #{dense_block_forward.1} parent=11 // pred_check
        %p218 = pneg %p144
      $region30: #{dense_block_forward.1} parent=11 // pred_check_branch
        %220 = sbr.rel (%p218) target = $region32
      $region31: #{dense_block_forward.1} parent=11 // pred_region
        _
      $region32: #{dense_block_forward.1} parent=11 // pred_fallthru
        _
      // Predicated region
      $region33: #{dense_block_forward.1} parent=11 // pred_check
        %p221 = pneg %p165
      $region34: #{dense_block_forward.1} parent=11 // pred_check_branch
        %223 = sbr.rel (%p221) target = $region36
      $region35: #{dense_block_forward.1} parent=11 // pred_region
        _
      $region36: #{dense_block_forward.1} parent=11 // pred_fallthru
        _
    $region12: #{dense_block_forward.1} parent=5 // pred_fallthru
      _
    %p224 = scmp.lt.s32.totalorder %s13, 2
    // Predicated region
    $region37: #{dense_block_forward.1} parent=5 // pred_check
      %p225 = pneg %p224
    $region38: #{dense_block_forward.1} parent=5 // pred_check_branch
      %227 = sbr.rel (%p225) target = $region40
    $region39: #{dense_block_forward.1} parent=5 // pred_region
      // Predicated region
      $region41: #{dense_block_forward.1} parent=39 // pred_check
        %p228 = pneg %p33
      $region42: #{dense_block_forward.1} parent=39 // pred_check_branch
        %230 = sbr.rel (%p228) target = $region44
      $region43: #{dense_block_forward.1} parent=39 // pred_region
        %p231 = scmp.lt.s32.totalorder %s13, 1
        %s232 = scalar_select %p231, %s13, 1
        %s233 = smul.addr %s232, 2
        %s234 = smul.addr %s233, 4
        %s235 = scalar_lea.vmem %s0, %s234
      $region44: #{dense_block_forward.1} parent=39 // pred_fallthru
        _
    $region40: #{dense_block_forward.1} parent=5 // pred_fallthru
      _
    %p236 = scmp.le.s32.totalorder 1, %s13
    %p237 = scmp.lt.s32.totalorder %s13, 3
    %p238 = pnand %p236, %p237
    %p239 = pneg %p238
    // Predicated region
    $region45: #{dense_block_forward.1} parent=5 // pred_check
      _
    $region46: #{dense_block_forward.1} parent=5 // pred_check_branch
      %241 = sbr.rel (%p238) target = $region48
    $region47: #{dense_block_forward.1} parent=5 // pred_region
      %s242 = ssub.s32 %s13, 1
      %p243 = scmp.lt.s32.totalorder %s18, 1
      %s244 = scalar_select %p243, %s18, 1
      %s245 = smul.addr %s244, 2
      %s246 = smul.addr %s245, 4
      %s247 = scalar_lea.vmem %s0, %s246
      %p248 = pneg %p39
      %p249 = pneg %p36
      %p250 = pneg %p60
      %p251 = pneg %p57
      %p252 = pneg %p81
      %p253 = pneg %p78
      %p254 = pneg %p102
      %p255 = pneg %p99
      %p256 = pneg %p123
      %p257 = pneg %p120
      %p258 = pneg %p144
      %p259 = pneg %p141
      %p260 = pneg %p165
      %p261 = pneg %p162
      %p262 = pneg %p191
      %p263 = pneg %p188
      %p264 = scmp.lt.s32.totalorder %s18, 1
      %s265 = scalar_select %p264, %s18, 1
      %s266 = smul.addr %s265, 8
      %s267 = smul.addr %s266, 8
      %s268 = scalar_lea.vmem %s7, %s267
      %p269 = scmp.lt.s32.totalorder %s18, 1
      %s270 = scalar_select %p269, %s18, 1
      %s271 = smul.addr %s270, 2
      %s272 = smul.addr %s271, 4
      %s273 = scalar_lea.vmem %s0, %s272
      %p274 = scmp.lt.s32.totalorder %s18, 1
      %s275 = scalar_select %p274, %s18, 1
      %s276 = smul.addr %s275, 8
      %s277 = smul.addr %s276, 8
      %s278 = scalar_lea.vmem %s7, %s277
      %v280 = vld [vmem:[%s273] sm:$0xff]
      %v282 = vcombine.high %v280, %v280
      %284 = vst [vmem:[%s278] sm:$0xf] %v280
      %285 = vst [vmem:[%s278 + $0x8] sm:$0xf] %v282
      %286 = vst [vmem:[%s278] sm:$0xf0] 0.0
      %287 = vst [vmem:[%s278 + $0x8] sm:$0xf0] 0.0
      %288 = vst [vmem:[%s278 + $0x10] sm:$0xff] 0.0
      %289 = vst [vmem:[%s278 + $0x18] sm:$0xff] 0.0
      %290 = vst [vmem:[%s278 + $0x20] sm:$0xff] 0.0
      %291 = vst [vmem:[%s278 + $0x28] sm:$0xff] 0.0
      %292 = vst [vmem:[%s278 + $0x30] sm:$0xf] 0.0
      %293 = vst [vmem:[%s278 + $0x38] sm:$0xf] 0.0
      %v294 = vlaneseq
      %v295 = vand.u32 %v294, 127
      %v296 = vadd.s32 %v295, 128
      %vm297 = vcmp.lt.s32.totalorder %v295, 0
      %v298 = vsub.s32 0, %v295
      %v299 = vsel %vm297, %v298, %v295
      %v300 = vshrl.u32 %v299, 4
      %v301 = vand.u32 %v299, 15
      %v302 = vsub.s32 0, %v301
      %v303 = vsel %vm297, %v302, %v301
      %vm304 = vcmp.lt.s32.totalorder %v296, 0
      %v305 = vsub.s32 0, %v296
      %v306 = vsel %vm304, %v305, %v296
      %v307 = vshrl.u32 %v306, 4
      %v308 = vand.u32 %v306, 15
      %v309 = vsub.s32 0, %v308
      %v310 = vsel %vm304, %v309, %v308
      %vm311 = vcmp.ne.s32.totalorder %v303, 0
      %vm312 = vcmp.ne.s32.totalorder %v310, 0
      %vm313 = vcmp.lt.s32.totalorder %v303, 0
      %vm314 = vcmp.lt.s32.totalorder %v310, 0
      %vm315 = vmand %vm313, %vm311
      %vm316 = vmand %vm314, %vm312
      %v317 = vadd.s32 %v303, 16
      %v318 = vadd.s32 %v310, 16
      %v319 = vsel %vm315, %v317, %v303
      %v320 = vsel %vm316, %v318, %v310
      %v321 = vld [vmem:[%s278] sm:$0xff]
      %v322 = vld [vmem:[%s278 + $0x8] sm:$0xff]
      %v323 = vld [vmem:[%s278 + $0x10] sm:$0xff]
      %v324 = vld [vmem:[%s278 + $0x18] sm:$0xff]
      %v325 = vld [vmem:[%s278 + $0x20] sm:$0xff]
      %v326 = vld [vmem:[%s278 + $0x28] sm:$0xff]
      %v327 = vld [vmem:[%s278 + $0x30] sm:$0xf]
      %v328 = vld [vmem:[%s278 + $0x38] sm:$0xf]
      %v329 = vld [vmem:[%s1] sm:$0xff]
      %v330 = vld [vmem:[%s1 + $0x8] sm:$0xff]
      %v331 = vld [vmem:[%s1 + $0x10] sm:$0xff]
      %v332 = vld [vmem:[%s1 + $0x18] sm:$0xf]
      %334 = vset.pattern.permute.xlu0 0
      %335 = vperm.xlu0 %334, %v329
      %v336 = vpop.permute.xlu0 %335
      %339 = vset.pattern.permute.xlu0 0
      %340 = vperm.xlu0 %339, %v330
      %v341 = vpop.permute.xlu0 %340
      %344 = vset.pattern.permute.xlu0 0
      %345 = vperm.xlu0 %344, %v331
      %v346 = vpop.permute.xlu0 %345
      %349 = vset.pattern.permute.xlu0 0
      %350 = vperm.xlu0 %349, %v332
      %v351 = vpop.permute.xlu0 %350
      %v353 = vmul.f32 %v321, %v336
      %v354 = vmul.f32 %v322, %v336
      %v355 = vmul.f32 %v323, %v341
      %v356 = vmul.f32 %v324, %v341
      %v357 = vmul.f32 %v325, %v346
      %v358 = vmul.f32 %v326, %v346
      %v359 = vmul.f32 %v327, %v351
      %v360 = vmul.f32 %v328, %v351
      %v361 = vld [vmem:[%s2] sm:$0xff]
      %v362 = vld [vmem:[%s2 + $0x8] sm:$0xff]
      %v363 = vld [vmem:[%s2 + $0x10] sm:$0xff]
      %v364 = vld [vmem:[%s2 + $0x18] sm:$0xf]
      %366 = vset.pattern.permute.xlu0 0
      %367 = vperm.xlu0 %366, %v361
      %v368 = vpop.permute.xlu0 %367
      %371 = vset.pattern.permute.xlu0 0
      %372 = vperm.xlu0 %371, %v362
      %v373 = vpop.permute.xlu0 %372
      %376 = vset.pattern.permute.xlu0 0
      %377 = vperm.xlu0 %376, %v363
      %v378 = vpop.permute.xlu0 %377
      %381 = vset.pattern.permute.xlu0 0
      %382 = vperm.xlu0 %381, %v364
      %v383 = vpop.permute.xlu0 %382
      %v385 = vadd.f32 %v353, %v368
      %v386 = vadd.f32 %v354, %v368
      %v387 = vadd.f32 %v355, %v373
      %v388 = vadd.f32 %v356, %v373
      %v389 = vadd.f32 %v357, %v378
      %v390 = vadd.f32 %v358, %v378
      %v391 = vadd.f32 %v359, %v383
      %v392 = vadd.f32 %v360, %v383
      %v393 = vmax.f32 %v385, 0.0
      %v394 = vmax.f32 %v386, 0.0
      %v395 = vmax.f32 %v387, 0.0
      %v396 = vmax.f32 %v388, 0.0
      %v397 = vmax.f32 %v389, 0.0
      %v398 = vmax.f32 %v390, 0.0
      %v399 = vmax.f32 %v391, 0.0
      %v400 = vmax.f32 %v392, 0.0
      %v401 = vld [vmem:[%s3] sm:$0xf]
      %v402 = vld [vmem:[%s3 + $0x4] sm:$0xf]
      %v403 = vpack.c.bf16 %v395, %v393
      %v404 = vpack.c.bf16 %v396, %v394
      %v405 = vpack.c.bf16 %v399, %v397
      %v406 = vpack.c.bf16 %v400, %v398
      %v407 = vld [vmem:[%s4] sm:$0xff]
      %v408 = vld [vmem:[%s4 + $0x8] sm:$0xff]
      %410 = vset.pattern.permute.xlu0 0
      %411 = vperm.xlu0 %410, %v407
      %v412 = vpop.permute.xlu0 %411
      %415 = vset.pattern.permute.xlu0 0
      %416 = vperm.xlu0 %415, %v408
      %v417 = vpop.permute.xlu0 %416
      %v421 = vunpack.c.l.b16 %v401
      %v422 = vunpack.c.l.b16 %v402
      %v423 = vpack.c.b16 %v422, %v421
      %vm424 = vcmask 228352
      %v426 = vsel %vm424, %v423, 0
      %vm428 = vcmask 1045504
      %v430 = vsel %vm428, %v405, 0
      %v433 = vsel %vm428, %v406, 0
      %435 = vmatprep.subr.bf16.mxu0 0
      %436 = vmatpush1.bf16.msra.mxu0 0
      %437 = vmatprep.subr.bf16.mxu0 0
      %438 = vmatpush1.bf16.msra.mxu0 0
      %439 = vmatprep.subr.bf16.mxu0 0
      %440 = vmatpush1.bf16.msra.mxu0 0
      %441 = vmatprep.subr.bf16.mxu0 0
      %442 = vmatpush1.bf16.msra.mxu0 0
      %443 = vmatprep.subr.bf16.mxu0 0
      %444 = vmatpush1.bf16.msra.mxu0 0
      %445 = vmatprep.subr.bf16.mxu0 0
      %446 = vmatpush1.bf16.msra.mxu0 0
      %447 = vmatprep.subr.bf16.mxu0 %v433
      %448 = vmatpush1.bf16.msra.mxu0 %v430
      %449 = vmatprep.subr.bf16.mxu0 %v404
      %450 = vmatpush1.bf16.msra.mxu0 %v403
      %451 = vmatprep.subr.bf16.mxu0 0
      %452 = vmatpush2.bf16.msra.mxu0 0
      %453 = vmatprep.subr.bf16.mxu0 0
      %454 = vmatpush2.bf16.msra.mxu0 0
      %455 = vmatprep.subr.bf16.mxu0 0
      %456 = vmatpush2.bf16.msra.mxu0 0
      %457 = vmatprep.subr.bf16.mxu0 0
      %458 = vmatpush2.bf16.msra.mxu0 0
      %459 = vmatprep.subr.bf16.mxu0 0
      %460 = vmatpush2.bf16.msra.mxu0 0
      %461 = vmatprep.subr.bf16.mxu0 0
      %462 = vmatpush2.bf16.msra.mxu0 0
      %463 = vmatprep.subr.bf16.mxu0 0
      %464 = vmatpush2.bf16.msra.mxu0 0
      %465 = vmatprep.subr.bf16.mxu0 0
      %466 = vmatpush2.bf16.msra.mxu0 0
      %467 = vmatprep.mubr.bf16.mxu0 0
      %468 = vmatmul.mubr.bf16.gmra.mxu0 %v426
      %v469 = vpop.f32.mrf.mxu0
      %v470 = vadd.f32 %v412, %v469
      %v471 = vpop.f32.mrf.mxu0
      %v472 = vadd.f32 %v412, %v471
      %v473 = vpop.f32.mrf.mxu0
      %v474 = vadd.f32 %v417, %v473
      %v475 = vpop.f32.mrf.mxu0
      %v476 = vadd.f32 %v417, %v475
      %477 = vdwg.mxu0
      %v478 = vmax.f32 %v470, 0.0
      %v479 = vmax.f32 %v472, 0.0
      %v480 = vmax.f32 %v474, 0.0
      %v481 = vmax.f32 %v476, 0.0
      %482 = vrot.lane.b32.xlu0 %v478, 17
      %v483 = vpop.permute.xlu0 %482
      %484 = vrot.lane.b32.xlu0 %v480, 17
      %v485 = vpop.permute.xlu0 %484
      %486 = vrot.lane.b32.xlu0 %v479, 17
      %v487 = vpop.permute.xlu0 %486
      %488 = vrot.lane.b32.xlu0 %v481, 17
      %v489 = vpop.permute.xlu0 %488
      %vm490 = vcmp.lt.s32.totalorder %v295, 17
      %v491 = vsel %vm490, %v483, %v487
      %v492 = vsel %vm490, %v485, %v489
      %v493 = vsel %vm490, %v487, %v483
      %v494 = vsel %vm490, %v489, %v485
      %v495 = vadd.s32 %v319, 4294967295
      %v496 = vadd.s32 %v320, 4294967295
      %vm497 = vcmp.ge.s32.totalorder %v495, 0
      %vm498 = vcmp.ge.s32.totalorder %v496, 0
      %vm499 = vcmp.lt.s32.totalorder %v495, 16
      %vm500 = vcmp.lt.s32.totalorder %v496, 16
      %vm501 = vmand %vm497, %vm499
      %vm502 = vmand %vm498, %vm500
      %v503 = vadd.s32 %v295, 4294967279
      %v504 = vadd.s32 %v296, 4294967279
      %vm505 = vcmp.ge.s32.totalorder %v503, 0
      %vm506 = vcmp.ge.s32.totalorder %v504, 0
      %vm507 = vmand %vm501, %vm505
      %vm508 = vmand %vm502, %vm506
      %vm509 = vcmp.lt.s32.totalorder %v503, 256
      %vm510 = vcmp.lt.s32.totalorder %v504, 256
      %vm511 = vmand %vm507, %vm509
      %vm512 = vmand %vm508, %vm510
      %v513 = vsel %vm511, 1, 0
      %v514 = vsel %vm512, 1, 0
      %vm515 = vcmp.eq.s32.totalorder %v513, 1
      %vm516 = vcmp.eq.s32.totalorder %v514, 1
      %v517 = vsel %vm515, %v493, 0.0
      %v518 = vsel %vm516, %v491, 0.0
      %v519 = vsel %vm515, %v494, 0.0
      %v520 = vsel %vm516, %v492, 0.0
      %v521 = vpack.c.bf16 %v519, %v517
      %v522 = vpack.c.bf16 %v520, %v518
      %v525 = vunpack.c.l.b16 %v521
      %v526 = vunpack.c.l.b16 %v522
      %v527 = vunpack.c.h.b16 %v521
      %v528 = vunpack.c.h.b16 %v522
      %v529 = vpack.c.b16 %v526, %v525
      %v530 = vpack.c.b16 %v528, %v527
      %533 = vst [vmem:[#allocation2] sm:$0xff] %v529
      %534 = vst [vmem:[#allocation2 + $0x8] sm:$0xff] %v530
      %535 = vrot.lane.b32.xlu0 %v478, 16
      %v536 = vpop.permute.xlu0 %535
      %537 = vrot.lane.b32.xlu0 %v480, 16
      %v538 = vpop.permute.xlu0 %537
      %539 = vrot.lane.b32.xlu0 %v479, 16
      %v540 = vpop.permute.xlu0 %539
      %541 = vrot.lane.b32.xlu0 %v481, 16
      %v542 = vpop.permute.xlu0 %541
      %vm543 = vcmp.lt.s32.totalorder %v295, 16
      %v544 = vsel %vm543, %v536, %v540
      %v545 = vsel %vm543, %v538, %v542
      %v546 = vsel %vm543, %v540, %v536
      %v547 = vsel %vm543, %v542, %v538
      %vm548 = vcmp.ge.s32.totalorder %v319, 0
      %vm549 = vcmp.ge.s32.totalorder %v320, 0
      %vm550 = vcmp.lt.s32.totalorder %v319, 16
      %vm551 = vcmp.lt.s32.totalorder %v320, 16
      %vm552 = vmand %vm548, %vm550
      %vm553 = vmand %vm549, %vm551
      %v554 = vadd.s32 %v295, 4294967280
      %v555 = vadd.s32 %v296, 4294967280
      %vm556 = vcmp.ge.s32.totalorder %v554, 0
      %vm557 = vcmp.ge.s32.totalorder %v555, 0
      %vm558 = vmand %vm552, %vm556
      %vm559 = vmand %vm553, %vm557
      %vm560 = vcmp.lt.s32.totalorder %v554, 256
      %vm561 = vcmp.lt.s32.totalorder %v555, 256
      %vm562 = vmand %vm558, %vm560
      %vm563 = vmand %vm559, %vm561
      %v564 = vsel %vm562, 1, 0
      %v565 = vsel %vm563, 1, 0
      %vm566 = vcmp.eq.s32.totalorder %v564, 1
      %vm567 = vcmp.eq.s32.totalorder %v565, 1
      %v568 = vsel %vm566, %v546, 0.0
      %v569 = vsel %vm567, %v544, 0.0
      %v570 = vsel %vm566, %v547, 0.0
      %v571 = vsel %vm567, %v545, 0.0
      %v572 = vpack.c.bf16 %v570, %v568
      %v573 = vpack.c.bf16 %v571, %v569
      %v576 = vunpack.c.l.b16 %v572
      %v577 = vunpack.c.l.b16 %v573
      %v578 = vunpack.c.h.b16 %v572
      %v579 = vunpack.c.h.b16 %v573
      %v580 = vpack.c.b16 %v577, %v576
      %v581 = vpack.c.b16 %v579, %v578
      %584 = vst [vmem:[#allocation2 + $0x10] sm:$0xff] %v580
      %585 = vst [vmem:[#allocation2 + $0x18] sm:$0xff] %v581
      %586 = vrot.lane.b32.xlu0 %v478, 15
      %v587 = vpop.permute.xlu0 %586
      %588 = vrot.lane.b32.xlu0 %v480, 15
      %v589 = vpop.permute.xlu0 %588
      %590 = vrot.lane.b32.xlu0 %v479, 15
      %v591 = vpop.permute.xlu0 %590
      %592 = vrot.lane.b32.xlu0 %v481, 15
      %v593 = vpop.permute.xlu0 %592
      %vm594 = vcmp.lt.s32.totalorder %v295, 15
      %v595 = vsel %vm594, %v587, %v591
      %v596 = vsel %vm594, %v589, %v593
      %v597 = vsel %vm594, %v591, %v587
      %v598 = vsel %vm594, %v593, %v589
      %v599 = vadd.s32 %v319, 1
      %v600 = vadd.s32 %v320, 1
      %vm601 = vcmp.ge.s32.totalorder %v599, 0
      %vm602 = vcmp.ge.s32.totalorder %v600, 0
      %vm603 = vcmp.lt.s32.totalorder %v599, 16
      %vm604 = vcmp.lt.s32.totalorder %v600, 16
      %vm605 = vmand %vm601, %vm603
      %vm606 = vmand %vm602, %vm604
      %v607 = vadd.s32 %v295, 4294967281
      %v608 = vadd.s32 %v296, 4294967281
      %vm609 = vcmp.ge.s32.totalorder %v607, 0
      %vm610 = vcmp.ge.s32.totalorder %v608, 0
      %vm611 = vmand %vm605, %vm609
      %vm612 = vmand %vm606, %vm610
      %vm613 = vcmp.lt.s32.totalorder %v607, 256
      %vm614 = vcmp.lt.s32.totalorder %v608, 256
      %vm615 = vmand %vm611, %vm613
      %vm616 = vmand %vm612, %vm614
      %v617 = vsel %vm615, 1, 0
      %v618 = vsel %vm616, 1, 0
      %vm619 = vcmp.eq.s32.totalorder %v617, 1
      %vm620 = vcmp.eq.s32.totalorder %v618, 1
      %v621 = vsel %vm619, %v597, 0.0
      %v622 = vsel %vm620, %v595, 0.0
      %v623 = vsel %vm619, %v598, 0.0
      %v624 = vsel %vm620, %v596, 0.0
      %v625 = vpack.c.bf16 %v623, %v621
      %v626 = vpack.c.bf16 %v624, %v622
      %v629 = vunpack.c.l.b16 %v625
      %v630 = vunpack.c.l.b16 %v626
      %v631 = vunpack.c.h.b16 %v625
      %v632 = vunpack.c.h.b16 %v626
      %v633 = vpack.c.b16 %v630, %v629
      %v634 = vpack.c.b16 %v632, %v631
      %637 = vst [vmem:[#allocation2 + $0x20] sm:$0xff] %v633
      %638 = vst [vmem:[#allocation2 + $0x28] sm:$0xff] %v634
      %639 = vrot.lane.b32.xlu0 %v478, 1
      %v640 = vpop.permute.xlu0 %639
      %641 = vrot.lane.b32.xlu0 %v480, 1
      %v642 = vpop.permute.xlu0 %641
      %643 = vrot.lane.b32.xlu0 %v479, 1
      %v644 = vpop.permute.xlu0 %643
      %645 = vrot.lane.b32.xlu0 %v481, 1
      %v646 = vpop.permute.xlu0 %645
      %vm647 = vcmp.lt.s32.totalorder %v295, 1
      %v648 = vsel %vm647, %v640, %v644
      %v649 = vsel %vm647, %v642, %v646
      %v650 = vsel %vm647, %v644, %v640
      %v651 = vsel %vm647, %v646, %v642
      %v652 = vadd.s32 %v295, 4294967295
      %v653 = vadd.s32 %v296, 4294967295
      %vm654 = vcmp.ge.s32.totalorder %v652, 0
      %vm655 = vcmp.ge.s32.totalorder %v653, 0
      %vm656 = vmand %vm501, %vm654
      %vm657 = vmand %vm502, %vm655
      %vm658 = vcmp.lt.s32.totalorder %v652, 256
      %vm659 = vcmp.lt.s32.totalorder %v653, 256
      %vm660 = vmand %vm656, %vm658
      %vm661 = vmand %vm657, %vm659
      %v662 = vsel %vm660, 1, 0
      %v663 = vsel %vm661, 1, 0
      %vm664 = vcmp.eq.s32.totalorder %v662, 1
      %vm665 = vcmp.eq.s32.totalorder %v663, 1
      %v666 = vsel %vm664, %v650, 0.0
      %v667 = vsel %vm665, %v648, 0.0
      %v668 = vsel %vm664, %v651, 0.0
      %v669 = vsel %vm665, %v649, 0.0
      %v670 = vpack.c.bf16 %v668, %v666
      %v671 = vpack.c.bf16 %v669, %v667
      %v674 = vunpack.c.l.b16 %v670
      %v675 = vunpack.c.l.b16 %v671
      %v676 = vunpack.c.h.b16 %v670
      %v677 = vunpack.c.h.b16 %v671
      %v678 = vpack.c.b16 %v675, %v674
      %v679 = vpack.c.b16 %v677, %v676
      %682 = vst [vmem:[#allocation2 + $0x30] sm:$0xff] %v678
      %683 = vst [vmem:[#allocation2 + $0x38] sm:$0xff] %v679
      %v684 = vpack.c.bf16 %v480, %v478
      %v685 = vpack.c.bf16 %v481, %v479
      %v688 = vunpack.c.l.b16 %v684
      %v689 = vunpack.c.l.b16 %v685
      %v690 = vunpack.c.h.b16 %v684
      %v691 = vunpack.c.h.b16 %v685
      %v692 = vpack.c.b16 %v689, %v688
      %v693 = vpack.c.b16 %v691, %v690
      %696 = vst [vmem:[#allocation2 + $0x40] sm:$0xff] %v692
      %697 = vst [vmem:[#allocation2 + $0x48] sm:$0xff] %v693
      %698 = vrot.lane.b32.xlu0 %v478, 127
      %v699 = vpop.permute.xlu0 %698
      %700 = vrot.lane.b32.xlu0 %v480, 127
      %v701 = vpop.permute.xlu0 %700
      %702 = vrot.lane.b32.xlu0 %v479, 127
      %v703 = vpop.permute.xlu0 %702
      %704 = vrot.lane.b32.xlu0 %v481, 127
      %v705 = vpop.permute.xlu0 %704
      %vm706 = vcmp.lt.s32.totalorder %v295, 127
      %v707 = vsel %vm706, %v699, %v703
      %v708 = vsel %vm706, %v701, %v705
      %v709 = vsel %vm706, %v703, %v699
      %v710 = vsel %vm706, %v705, %v701
      %v711 = vadd.s32 %v295, 1
      %v712 = vadd.s32 %v296, 1
      %vm713 = vcmp.ge.s32.totalorder %v711, 0
      %vm714 = vcmp.ge.s32.totalorder %v712, 0
      %vm715 = vmand %vm605, %vm713
      %vm716 = vmand %vm606, %vm714
      %vm717 = vcmp.lt.s32.totalorder %v711, 256
      %vm718 = vcmp.lt.s32.totalorder %v712, 256
      %vm719 = vmand %vm715, %vm717
      %vm720 = vmand %vm716, %vm718
      %v721 = vsel %vm719, 1, 0
      %v722 = vsel %vm720, 1, 0
      %vm723 = vcmp.eq.s32.totalorder %v721, 1
      %vm724 = vcmp.eq.s32.totalorder %v722, 1
      %v725 = vsel %vm723, %v707, 0.0
      %v726 = vsel %vm724, %v709, 0.0
      %v727 = vsel %vm723, %v708, 0.0
      %v728 = vsel %vm724, %v710, 0.0
      %v729 = vpack.c.bf16 %v727, %v725
      %v730 = vpack.c.bf16 %v728, %v726
      %v733 = vunpack.c.l.b16 %v729
      %v734 = vunpack.c.l.b16 %v730
      %v735 = vunpack.c.h.b16 %v729
      %v736 = vunpack.c.h.b16 %v730
      %v737 = vpack.c.b16 %v734, %v733
      %v738 = vpack.c.b16 %v736, %v735
      %741 = vst [vmem:[#allocation2 + $0x50] sm:$0xff] %v737
      %742 = vst [vmem:[#allocation2 + $0x58] sm:$0xff] %v738
      %743 = vrot.lane.b32.xlu0 %v478, 113
      %v744 = vpop.permute.xlu0 %743
      %745 = vrot.lane.b32.xlu0 %v480, 113
      %v746 = vpop.permute.xlu0 %745
      %747 = vrot.lane.b32.xlu0 %v479, 113
      %v748 = vpop.permute.xlu0 %747
      %749 = vrot.lane.b32.xlu0 %v481, 113
      %v750 = vpop.permute.xlu0 %749
      %vm751 = vcmp.lt.s32.totalorder %v295, 113
      %v752 = vsel %vm751, %v744, %v748
      %v753 = vsel %vm751, %v746, %v750
      %v754 = vsel %vm751, %v748, %v744
      %v755 = vsel %vm751, %v750, %v746
      %v756 = vadd.s32 %v295, 15
      %v757 = vadd.s32 %v296, 15
      %vm758 = vcmp.ge.s32.totalorder %v756, 0
      %vm759 = vcmp.ge.s32.totalorder %v757, 0
      %vm760 = vmand %vm501, %vm758
      %vm761 = vmand %vm502, %vm759
      %vm762 = vcmp.lt.s32.totalorder %v756, 256
      %vm763 = vcmp.lt.s32.totalorder %v757, 256
      %vm764 = vmand %vm760, %vm762
      %vm765 = vmand %vm761, %vm763
      %v766 = vsel %vm764, 1, 0
      %v767 = vsel %vm765, 1, 0
      %vm768 = vcmp.eq.s32.totalorder %v766, 1
      %vm769 = vcmp.eq.s32.totalorder %v767, 1
      %v770 = vsel %vm768, %v752, 0.0
      %v771 = vsel %vm769, %v754, 0.0
      %v772 = vsel %vm768, %v753, 0.0
      %v773 = vsel %vm769, %v755, 0.0
      %v774 = vpack.c.bf16 %v772, %v770
      %v775 = vpack.c.bf16 %v773, %v771
      %v778 = vunpack.c.l.b16 %v774
      %v779 = vunpack.c.l.b16 %v775
      %v780 = vunpack.c.h.b16 %v774
      %v781 = vunpack.c.h.b16 %v775
      %v782 = vpack.c.b16 %v779, %v778
      %v783 = vpack.c.b16 %v781, %v780
      %786 = vst [vmem:[#allocation2 + $0x60] sm:$0xff] %v782
      %787 = vst [vmem:[#allocation2 + $0x68] sm:$0xff] %v783
      %788 = vrot.lane.b32.xlu0 %v478, 112
      %v789 = vpop.permute.xlu0 %788
      %790 = vrot.lane.b32.xlu0 %v480, 112
      %v791 = vpop.permute.xlu0 %790
      %792 = vrot.lane.b32.xlu0 %v479, 112
      %v793 = vpop.permute.xlu0 %792
      %794 = vrot.lane.b32.xlu0 %v481, 112
      %v795 = vpop.permute.xlu0 %794
      %vm796 = vcmp.lt.s32.totalorder %v295, 112
      %v797 = vsel %vm796, %v789, %v793
      %v798 = vsel %vm796, %v791, %v795
      %v799 = vsel %vm796, %v793, %v789
      %v800 = vsel %vm796, %v795, %v791
      %v801 = vadd.s32 %v295, 16
      %v802 = vadd.s32 %v296, 16
      %vm803 = vcmp.ge.s32.totalorder %v801, 0
      %vm804 = vcmp.ge.s32.totalorder %v802, 0
      %vm805 = vmand %vm552, %vm803
      %vm806 = vmand %vm553, %vm804
      %vm807 = vcmp.lt.s32.totalorder %v801, 256
      %vm808 = vcmp.lt.s32.totalorder %v802, 256
      %vm809 = vmand %vm805, %vm807
      %vm810 = vmand %vm806, %vm808
      %v811 = vsel %vm809, 1, 0
      %v812 = vsel %vm810, 1, 0
      %vm813 = vcmp.eq.s32.totalorder %v811, 1
      %vm814 = vcmp.eq.s32.totalorder %v812, 1
      %v815 = vsel %vm813, %v797, 0.0
      %v816 = vsel %vm814, %v799, 0.0
      %v817 = vsel %vm813, %v798, 0.0
      %v818 = vsel %vm814, %v800, 0.0
      %v819 = vpack.c.bf16 %v817, %v815
      %v820 = vpack.c.bf16 %v818, %v816
      %v823 = vunpack.c.l.b16 %v819
      %v824 = vunpack.c.l.b16 %v820
      %v825 = vunpack.c.h.b16 %v819
      %v826 = vunpack.c.h.b16 %v820
      %v827 = vpack.c.b16 %v824, %v823
      %v828 = vpack.c.b16 %v826, %v825
      %831 = vst [vmem:[#allocation2 + $0x70] sm:$0xff] %v827
      %832 = vst [vmem:[#allocation2 + $0x78] sm:$0xff] %v828
      %833 = vrot.lane.b32.xlu0 %v478, 111
      %v834 = vpop.permute.xlu0 %833
      %835 = vrot.lane.b32.xlu0 %v480, 111
      %v836 = vpop.permute.xlu0 %835
      %837 = vrot.lane.b32.xlu0 %v479, 111
      %v838 = vpop.permute.xlu0 %837
      %839 = vrot.lane.b32.xlu0 %v481, 111
      %v840 = vpop.permute.xlu0 %839
      %vm841 = vcmp.lt.s32.totalorder %v295, 111
      %v842 = vsel %vm841, %v834, %v838
      %v843 = vsel %vm841, %v836, %v840
      %v844 = vsel %vm841, %v838, %v834
      %v845 = vsel %vm841, %v840, %v836
      %v846 = vadd.s32 %v295, 17
      %v847 = vadd.s32 %v296, 17
      %vm848 = vcmp.ge.s32.totalorder %v846, 0
      %vm849 = vcmp.ge.s32.totalorder %v847, 0
      %vm850 = vmand %vm605, %vm848
      %vm851 = vmand %vm606, %vm849
      %vm852 = vcmp.lt.s32.totalorder %v846, 256
      %vm853 = vcmp.lt.s32.totalorder %v847, 256
      %vm854 = vmand %vm850, %vm852
      %vm855 = vmand %vm851, %vm853
      %v856 = vsel %vm854, 1, 0
      %v857 = vsel %vm855, 1, 0
      %vm858 = vcmp.eq.s32.totalorder %v856, 1
      %vm859 = vcmp.eq.s32.totalorder %v857, 1
      %v860 = vsel %vm858, %v842, 0.0
      %v861 = vsel %vm859, %v844, 0.0
      %v862 = vsel %vm858, %v843, 0.0
      %v863 = vsel %vm859, %v845, 0.0
      %v864 = vpack.c.bf16 %v862, %v860
      %v865 = vpack.c.bf16 %v863, %v861
      %v868 = vunpack.c.l.b16 %v864
      %v869 = vunpack.c.l.b16 %v865
      %v870 = vunpack.c.h.b16 %v864
      %v871 = vunpack.c.h.b16 %v865
      %v872 = vpack.c.b16 %v869, %v868
      %v873 = vpack.c.b16 %v871, %v870
      %876 = vst [vmem:[#allocation2 + $0x80] sm:$0xff] %v872
      %877 = vst [vmem:[#allocation2 + $0x88] sm:$0xff] %v873
      %v878 = vld [vmem:[%s5] sm:$0xf]
      %v879 = vld [vmem:[#allocation2] sm:$0xff]
      %v880 = vld [vmem:[#allocation2 + $0x8] sm:$0xff]
      %v881 = vld [vmem:[#allocation2 + $0x10] sm:$0xff]
      %v882 = vld [vmem:[#allocation2 + $0x18] sm:$0xff]
      %v883 = vld [vmem:[#allocation2 + $0x20] sm:$0xff]
      %v884 = vld [vmem:[#allocation2 + $0x28] sm:$0xff]
      %v885 = vld [vmem:[#allocation2 + $0x30] sm:$0xff]
      %v886 = vld [vmem:[#allocation2 + $0x38] sm:$0xff]
      %v887 = vld [vmem:[#allocation2 + $0x40] sm:$0xff]
      %v888 = vld [vmem:[#allocation2 + $0x48] sm:$0xff]
      %v889 = vld [vmem:[#allocation2 + $0x50] sm:$0xff]
      %v890 = vld [vmem:[#allocation2 + $0x58] sm:$0xff]
      %v891 = vld [vmem:[#allocation2 + $0x60] sm:$0xff]
      %v892 = vld [vmem:[#allocation2 + $0x68] sm:$0xff]
      %v893 = vld [vmem:[#allocation2 + $0x70] sm:$0xff]
      %v894 = vld [vmem:[#allocation2 + $0x78] sm:$0xff]
      %v895 = vld [vmem:[#allocation2 + $0x80] sm:$0xff]
      %v896 = vld [vmem:[#allocation2 + $0x88] sm:$0xff]
      %v897 = vld [vmem:[%s6] sm:$0xf]
      %899 = vset.pattern.permute.xlu0 0
      %900 = vperm.xlu0 %899, %v897
      %v901 = vpop.permute.xlu0 %900
      %v905 = vunpack.c.l.s4 1983009808
      %v906 = vunpack.c.0.s8 %v905
      %v907 = vlaneseq
      %v908 = vshrl.u32 %v907, 7
      %v909 = vsub.s32 %v906, %v908
      %v910 = vrot.slane %v878, %v909
      %v911 = vcombine.high %v910, %v910
      %v931 = vunpack.c.l.b16 %v879
      %v932 = vunpack.c.h.b16 %v879
      %v933 = vunpack.c.l.b16 %v880
      %v934 = vunpack.c.h.b16 %v880
      %v935 = vunpack.c.l.b16 %v881
      %v936 = vunpack.c.h.b16 %v881
      %v937 = vunpack.c.l.b16 %v882
      %v938 = vunpack.c.h.b16 %v882
      %v939 = vunpack.c.l.b16 %v883
      %v940 = vunpack.c.h.b16 %v883
      %v941 = vunpack.c.l.b16 %v884
      %v942 = vunpack.c.h.b16 %v884
      %v943 = vunpack.c.l.b16 %v885
      %v944 = vunpack.c.h.b16 %v885
      %v945 = vunpack.c.l.b16 %v886
      %v946 = vunpack.c.h.b16 %v886
      %v947 = vunpack.c.l.b16 %v887
      %v948 = vunpack.c.h.b16 %v887
      %v949 = vunpack.c.l.b16 %v888
      %v950 = vunpack.c.h.b16 %v888
      %v951 = vunpack.c.l.b16 %v889
      %v952 = vunpack.c.h.b16 %v889
      %v953 = vunpack.c.l.b16 %v890
      %v954 = vunpack.c.h.b16 %v890
      %v955 = vunpack.c.l.b16 %v891
      %v956 = vunpack.c.h.b16 %v891
      %v957 = vunpack.c.l.b16 %v892
      %v958 = vunpack.c.h.b16 %v892
      %v959 = vunpack.c.l.b16 %v893
      %v960 = vunpack.c.h.b16 %v893
      %v961 = vunpack.c.l.b16 %v894
      %v962 = vunpack.c.h.b16 %v894
      %v963 = vunpack.c.l.b16 %v895
      %v964 = vunpack.c.h.b16 %v895
      %v965 = vunpack.c.l.b16 %v896
      %v966 = vunpack.c.h.b16 %v896
      %v967 = vpack.c.b16 %v933, %v931
      %v968 = vpack.c.b16 %v934, %v932
      %v969 = vpack.c.b16 %v937, %v935
      %v970 = vpack.c.b16 %v938, %v936
      %v971 = vpack.c.b16 %v941, %v939
      %v972 = vpack.c.b16 %v942, %v940
      %v973 = vpack.c.b16 %v945, %v943
      %v974 = vpack.c.b16 %v946, %v944
      %v975 = vpack.c.b16 %v949, %v947
      %v976 = vpack.c.b16 %v950, %v948
      %v977 = vpack.c.b16 %v953, %v951
      %v978 = vpack.c.b16 %v954, %v952
      %v979 = vpack.c.b16 %v957, %v955
      %v980 = vpack.c.b16 %v958, %v956
      %v981 = vpack.c.b16 %v961, %v959
      %v982 = vpack.c.b16 %v962, %v960
      %v983 = vpack.c.b16 %v965, %v963
      %v984 = vpack.c.b16 %v966, %v964
      %vm1003 = vcmask 130048
      %v1005 = vsel %vm1003, %v911, 0
      %1007 = vmatprep.subr.bf16.mxu0 %v982
      %1008 = vmatpush1.bf16.msra.mxu0 %v981
      %1009 = vmatprep.subr.bf16.mxu0 %v980
      %1010 = vmatpush1.bf16.msra.mxu0 %v979
      %1011 = vmatprep.subr.bf16.mxu0 %v978
      %1012 = vmatpush1.bf16.msra.mxu0 %v977
      %1013 = vmatprep.subr.bf16.mxu0 %v976
      %1014 = vmatpush1.bf16.msra.mxu0 %v975
      %1015 = vmatprep.subr.bf16.mxu0 %v974
      %1016 = vmatpush1.bf16.msra.mxu0 %v973
      %1017 = vmatprep.subr.bf16.mxu0 %v972
      %1018 = vmatpush1.bf16.msra.mxu0 %v971
      %1019 = vmatprep.subr.bf16.mxu0 %v970
      %1020 = vmatpush1.bf16.msra.mxu0 %v969
      %1021 = vmatprep.subr.bf16.mxu0 %v968
      %1022 = vmatpush1.bf16.msra.mxu0 %v967
      %1023 = vmatprep.subr.bf16.mxu0 0
      %1024 = vmatpush2.bf16.msra.mxu0 0
      %1025 = vmatprep.subr.bf16.mxu0 0
      %1026 = vmatpush2.bf16.msra.mxu0 0
      %1027 = vmatprep.subr.bf16.mxu0 0
      %1028 = vmatpush2.bf16.msra.mxu0 0
      %1029 = vmatprep.subr.bf16.mxu0 0
      %1030 = vmatpush2.bf16.msra.mxu0 0
      %1031 = vmatprep.subr.bf16.mxu0 0
      %1032 = vmatpush2.bf16.msra.mxu0 0
      %1033 = vmatprep.subr.bf16.mxu0 0
      %1034 = vmatpush2.bf16.msra.mxu0 0
      %1035 = vmatprep.subr.bf16.mxu0 0
      %1036 = vmatpush2.bf16.msra.mxu0 0
      %1037 = vmatprep.subr.bf16.mxu0 %v984
      %1038 = vmatpush2.bf16.msra.mxu0 %v983
      %1039 = vmatprep.mubr.bf16.mxu0 %v1005
      %1040 = vmatmul.mubr.bf16.gmra.mxu0 %v910
      %v1041 = vpop.f32.mrf.mxu0
      %v1042 = vadd.f32 %v901, %v1041
      %v1043 = vpop.f32.mrf.mxu0
      %v1044 = vadd.f32 %v901, %v1043
      %v1045 = vpop.f32.mrf.mxu0
      %v1046 = vpop.f32.mrf.mxu0
      %1047 = vdwg.mxu0
      %v1050 = vrot.slane %v1042, 4
      %v1051 = vrot.slane %v1044, 4
      %1054 = vst [vmem:[%s278] sm:$0xf0] %v1050
      %1055 = vst [vmem:[%s278 + $0x8] sm:$0xf0] %v1051
      %v1056 = vld [vmem:[%s278] sm:$0xff]
      %v1057 = vld [vmem:[%s278 + $0x8] sm:$0xff]
      %v1058 = vld [vmem:[%s278 + $0x10] sm:$0xff]
      %v1059 = vld [vmem:[%s278 + $0x18] sm:$0xff]
      %v1060 = vld [vmem:[%s278 + $0x20] sm:$0xff]
      %v1061 = vld [vmem:[%s278 + $0x28] sm:$0xff]
      %v1062 = vld [vmem:[%s278 + $0x30] sm:$0xf]
      %v1063 = vld [vmem:[%s278 + $0x38] sm:$0xf]
      %s1064 = scalar_lea.vmem %s1, 32
      %v1065 = vld [vmem:[%s1064] sm:$0xff]
      %v1066 = vld [vmem:[%s1064 + $0x8] sm:$0xff]
      %v1067 = vld [vmem:[%s1064 + $0x10] sm:$0xff]
      %v1068 = vld [vmem:[%s1064 + $0x18] sm:$0xf]
      %1070 = vset.pattern.permute.xlu0 0
      %1071 = vperm.xlu0 %1070, %v1065
      %v1072 = vpop.permute.xlu0 %1071
      %1075 = vset.pattern.permute.xlu0 0
      %1076 = vperm.xlu0 %1075, %v1066
      %v1077 = vpop.permute.xlu0 %1076
      %1080 = vset.pattern.permute.xlu0 0
      %1081 = vperm.xlu0 %1080, %v1067
      %v1082 = vpop.permute.xlu0 %1081
      %1085 = vset.pattern.permute.xlu0 0
      %1086 = vperm.xlu0 %1085, %v1068
      %v1087 = vpop.permute.xlu0 %1086
      %v1089 = vmul.f32 %v1056, %v1072
      %v1090 = vmul.f32 %v1057, %v1072
      %v1091 = vmul.f32 %v1058, %v1077
      %v1092 = vmul.f32 %v1059, %v1077
      %v1093 = vmul.f32 %v1060, %v1082
      %v1094 = vmul.f32 %v1061, %v1082
      %v1095 = vmul.f32 %v1062, %v1087
      %v1096 = vmul.f32 %v1063, %v1087
      %s1097 = scalar_lea.vmem %s2, 32
      %v1098 = vld [vmem:[%s1097] sm:$0xff]
      %v1099 = vld [vmem:[%s1097 + $0x8] sm:$0xff]
      %v1100 = vld [vmem:[%s1097 + $0x10] sm:$0xff]
      %v1101 = vld [vmem:[%s1097 + $0x18] sm:$0xf]
      %1103 = vset.pattern.permute.xlu0 0
      %1104 = vperm.xlu0 %1103, %v1098
      %v1105 = vpop.permute.xlu0 %1104
      %1108 = vset.pattern.permute.xlu0 0
      %1109 = vperm.xlu0 %1108, %v1099
      %v1110 = vpop.permute.xlu0 %1109
      %1113 = vset.pattern.permute.xlu0 0
      %1114 = vperm.xlu0 %1113, %v1100
      %v1115 = vpop.permute.xlu0 %1114
      %1118 = vset.pattern.permute.xlu0 0
      %1119 = vperm.xlu0 %1118, %v1101
      %v1120 = vpop.permute.xlu0 %1119
      %v1122 = vadd.f32 %v1089, %v1105
      %v1123 = vadd.f32 %v1090, %v1105
      %v1124 = vadd.f32 %v1091, %v1110
      %v1125 = vadd.f32 %v1092, %v1110
      %v1126 = vadd.f32 %v1093, %v1115
      %v1127 = vadd.f32 %v1094, %v1115
      %v1128 = vadd.f32 %v1095, %v1120
      %v1129 = vadd.f32 %v1096, %v1120
      %v1130 = vmax.f32 %v1122, 0.0
      %v1131 = vmax.f32 %v1123, 0.0
      %v1132 = vmax.f32 %v1124, 0.0
      %v1133 = vmax.f32 %v1125, 0.0
      %v1134 = vmax.f32 %v1126, 0.0
      %v1135 = vmax.f32 %v1127, 0.0
      %v1136 = vmax.f32 %v1128, 0.0
      %v1137 = vmax.f32 %v1129, 0.0
      %s1138 = scalar_lea.vmem %s3, 8
      %v1139 = vld [vmem:[%s1138] sm:$0xf]
      %v1140 = vld [vmem:[%s1138 + $0x4] sm:$0xf]
      %v1141 = vpack.c.bf16 %v1132, %v1130
      %v1142 = vpack.c.bf16 %v1133, %v1131
      %v1143 = vpack.c.bf16 %v1136, %v1134
      %v1144 = vpack.c.bf16 %v1137, %v1135
      %s1145 = scalar_lea.vmem %s4, 16
      %v1146 = vld [vmem:[%s1145] sm:$0xff]
      %v1147 = vld [vmem:[%s1145 + $0x8] sm:$0xff]
      %1149 = vset.pattern.permute.xlu0 0
      %1150 = vperm.xlu0 %1149, %v1146
      %v1151 = vpop.permute.xlu0 %1150
      %1154 = vset.pattern.permute.xlu0 0
      %1155 = vperm.xlu0 %1154, %v1147
      %v1156 = vpop.permute.xlu0 %1155
      %v1160 = vunpack.c.l.b16 %v1139
      %v1161 = vunpack.c.l.b16 %v1140
      %v1162 = vpack.c.b16 %v1161, %v1160
      %v1164 = vsel %vm424, %v1162, 0
      %v1167 = vsel %vm428, %v1143, 0
      %v1170 = vsel %vm428, %v1144, 0
      %1172 = vmatprep.subr.bf16.mxu0 0
      %1173 = vmatpush1.bf16.msra.mxu0 0
      %1174 = vmatprep.subr.bf16.mxu0 0
      %1175 = vmatpush1.bf16.msra.mxu0 0
      %1176 = vmatprep.subr.bf16.mxu0 0
      %1177 = vmatpush1.bf16.msra.mxu0 0
      %1178 = vmatprep.subr.bf16.mxu0 0
      %1179 = vmatpush1.bf16.msra.mxu0 0
      %1180 = vmatprep.subr.bf16.mxu0 0
      %1181 = vmatpush1.bf16.msra.mxu0 0
      %1182 = vmatprep.subr.bf16.mxu0 0
      %1183 = vmatpush1.bf16.msra.mxu0 0
      %1184 = vmatprep.subr.bf16.mxu0 %v1170
      %1185 = vmatpush1.bf16.msra.mxu0 %v1167
      %1186 = vmatprep.subr.bf16.mxu0 %v1142
      %1187 = vmatpush1.bf16.msra.mxu0 %v1141
      %1188 = vmatprep.subr.bf16.mxu0 0
      %1189 = vmatpush2.bf16.msra.mxu0 0
      %1190 = vmatprep.subr.bf16.mxu0 0
      %1191 = vmatpush2.bf16.msra.mxu0 0
      %1192 = vmatprep.subr.bf16.mxu0 0
      %1193 = vmatpush2.bf16.msra.mxu0 0
      %1194 = vmatprep.subr.bf16.mxu0 0
      %1195 = vmatpush2.bf16.msra.mxu0 0
      %1196 = vmatprep.subr.bf16.mxu0 0
      %1197 = vmatpush2.bf16.msra.mxu0 0
      %1198 = vmatprep.subr.bf16.mxu0 0
      %1199 = vmatpush2.bf16.msra.mxu0 0
      %1200 = vmatprep.subr.bf16.mxu0 0
      %1201 = vmatpush2.bf16.msra.mxu0 0
      %1202 = vmatprep.subr.bf16.mxu0 0
      %1203 = vmatpush2.bf16.msra.mxu0 0
      %1204 = vmatprep.mubr.bf16.mxu0 0
      %1205 = vmatmul.mubr.bf16.gmra.mxu0 %v1164
      %v1206 = vpop.f32.mrf.mxu0
      %v1207 = vadd.f32 %v1151, %v1206
      %v1208 = vpop.f32.mrf.mxu0
      %v1209 = vadd.f32 %v1151, %v1208
      %v1210 = vpop.f32.mrf.mxu0
      %v1211 = vadd.f32 %v1156, %v1210
      %v1212 = vpop.f32.mrf.mxu0
      %v1213 = vadd.f32 %v1156, %v1212
      %1214 = vdwg.mxu0
      %v1215 = vmax.f32 %v1207, 0.0
      %v1216 = vmax.f32 %v1209, 0.0
      %v1217 = vmax.f32 %v1211, 0.0
      %v1218 = vmax.f32 %v1213, 0.0
      %1219 = vrot.lane.b32.xlu0 %v1215, 17
      %v1220 = vpop.permute.xlu0 %1219
      %1221 = vrot.lane.b32.xlu0 %v1217, 17
      %v1222 = vpop.permute.xlu0 %1221
      %1223 = vrot.lane.b32.xlu0 %v1216, 17
      %v1224 = vpop.permute.xlu0 %1223
      %1225 = vrot.lane.b32.xlu0 %v1218, 17
      %v1226 = vpop.permute.xlu0 %1225
      %v1227 = vsel %vm490, %v1220, %v1224
      %v1228 = vsel %vm490, %v1222, %v1226
      %v1229 = vsel %vm490, %v1224, %v1220
      %v1230 = vsel %vm490, %v1226, %v1222
      %v1231 = vsel %vm515, %v1229, 0.0
      %v1232 = vsel %vm516, %v1227, 0.0
      %v1233 = vsel %vm515, %v1230, 0.0
      %v1234 = vsel %vm516, %v1228, 0.0
      %v1235 = vpack.c.bf16 %v1233, %v1231
      %v1236 = vpack.c.bf16 %v1234, %v1232
      %v1239 = vunpack.c.l.b16 %v1235
      %v1240 = vunpack.c.l.b16 %v1236
      %v1241 = vunpack.c.h.b16 %v1235
      %v1242 = vunpack.c.h.b16 %v1236
      %v1243 = vpack.c.b16 %v1240, %v1239
      %v1244 = vpack.c.b16 %v1242, %v1241
      %1247 = vst [vmem:[#allocation2] sm:$0xff] %v1243
      %1248 = vst [vmem:[#allocation2 + $0x8] sm:$0xff] %v1244
      %1249 = vrot.lane.b32.xlu0 %v1215, 16
      %v1250 = vpop.permute.xlu0 %1249
      %1251 = vrot.lane.b32.xlu0 %v1217, 16
      %v1252 = vpop.permute.xlu0 %1251
      %1253 = vrot.lane.b32.xlu0 %v1216, 16
      %v1254 = vpop.permute.xlu0 %1253
      %1255 = vrot.lane.b32.xlu0 %v1218, 16
      %v1256 = vpop.permute.xlu0 %1255
      %v1257 = vsel %vm543, %v1250, %v1254
      %v1258 = vsel %vm543, %v1252, %v1256
      %v1259 = vsel %vm543, %v1254, %v1250
      %v1260 = vsel %vm543, %v1256, %v1252
      %v1261 = vsel %vm566, %v1259, 0.0
      %v1262 = vsel %vm567, %v1257, 0.0
      %v1263 = vsel %vm566, %v1260, 0.0
      %v1264 = vsel %vm567, %v1258, 0.0
      %v1265 = vpack.c.bf16 %v1263, %v1261
      %v1266 = vpack.c.bf16 %v1264, %v1262
      %v1269 = vunpack.c.l.b16 %v1265
      %v1270 = vunpack.c.l.b16 %v1266
      %v1271 = vunpack.c.h.b16 %v1265
      %v1272 = vunpack.c.h.b16 %v1266
      %v1273 = vpack.c.b16 %v1270, %v1269
      %v1274 = vpack.c.b16 %v1272, %v1271
      %1277 = vst [vmem:[#allocation2 + $0x10] sm:$0xff] %v1273
      %1278 = vst [vmem:[#allocation2 + $0x18] sm:$0xff] %v1274
      %1279 = vrot.lane.b32.xlu0 %v1215, 15
      %v1280 = vpop.permute.xlu0 %1279
      %1281 = vrot.lane.b32.xlu0 %v1217, 15
      %v1282 = vpop.permute.xlu0 %1281
      %1283 = vrot.lane.b32.xlu0 %v1216, 15
      %v1284 = vpop.permute.xlu0 %1283
      %1285 = vrot.lane.b32.xlu0 %v1218, 15
      %v1286 = vpop.permute.xlu0 %1285
      %v1287 = vsel %vm594, %v1280, %v1284
      %v1288 = vsel %vm594, %v1282, %v1286
      %v1289 = vsel %vm594, %v1284, %v1280
      %v1290 = vsel %vm594, %v1286, %v1282
      %v1291 = vsel %vm619, %v1289, 0.0
      %v1292 = vsel %vm620, %v1287, 0.0
      %v1293 = vsel %vm619, %v1290, 0.0
      %v1294 = vsel %vm620, %v1288, 0.0
      %v1295 = vpack.c.bf16 %v1293, %v1291
      %v1296 = vpack.c.bf16 %v1294, %v1292
      %v1299 = vunpack.c.l.b16 %v1295
      %v1300 = vunpack.c.l.b16 %v1296
      %v1301 = vunpack.c.h.b16 %v1295
      %v1302 = vunpack.c.h.b16 %v1296
      %v1303 = vpack.c.b16 %v1300, %v1299
      %v1304 = vpack.c.b16 %v1302, %v1301
      %1307 = vst [vmem:[#allocation2 + $0x20] sm:$0xff] %v1303
      %1308 = vst [vmem:[#allocation2 + $0x28] sm:$0xff] %v1304
      %1309 = vrot.lane.b32.xlu0 %v1215, 1
      %v1310 = vpop.permute.xlu0 %1309
      %1311 = vrot.lane.b32.xlu0 %v1217, 1
      %v1312 = vpop.permute.xlu0 %1311
      %1313 = vrot.lane.b32.xlu0 %v1216, 1
      %v1314 = vpop.permute.xlu0 %1313
      %1315 = vrot.lane.b32.xlu0 %v1218, 1
      %v1316 = vpop.permute.xlu0 %1315
      %v1317 = vsel %vm647, %v1310, %v1314
      %v1318 = vsel %vm647, %v1312, %v1316
      %v1319 = vsel %vm647, %v1314, %v1310
      %v1320 = vsel %vm647, %v1316, %v1312
      %v1321 = vsel %vm664, %v1319, 0.0
      %v1322 = vsel %vm665, %v1317, 0.0
      %v1323 = vsel %vm664, %v1320, 0.0
      %v1324 = vsel %vm665, %v1318, 0.0
      %v1325 = vpack.c.bf16 %v1323, %v1321
      %v1326 = vpack.c.bf16 %v1324, %v1322
      %v1329 = vunpack.c.l.b16 %v1325
      %v1330 = vunpack.c.l.b16 %v1326
      %v1331 = vunpack.c.h.b16 %v1325
      %v1332 = vunpack.c.h.b16 %v1326
      %v1333 = vpack.c.b16 %v1330, %v1329
      %v1334 = vpack.c.b16 %v1332, %v1331
      %1337 = vst [vmem:[#allocation2 + $0x30] sm:$0xff] %v1333
      %1338 = vst [vmem:[#allocation2 + $0x38] sm:$0xff] %v1334
      %v1339 = vpack.c.bf16 %v1217, %v1215
      %v1340 = vpack.c.bf16 %v1218, %v1216
      %v1343 = vunpack.c.l.b16 %v1339
      %v1344 = vunpack.c.l.b16 %v1340
      %v1345 = vunpack.c.h.b16 %v1339
      %v1346 = vunpack.c.h.b16 %v1340
      %v1347 = vpack.c.b16 %v1344, %v1343
      %v1348 = vpack.c.b16 %v1346, %v1345
      %1351 = vst [vmem:[#allocation2 + $0x40] sm:$0xff] %v1347
      %1352 = vst [vmem:[#allocation2 + $0x48] sm:$0xff] %v1348
      %1353 = vrot.lane.b32.xlu0 %v1215, 127
      %v1354 = vpop.permute.xlu0 %1353
      %1355 = vrot.lane.b32.xlu0 %v1217, 127
      %v1356 = vpop.permute.xlu0 %1355
      %1357 = vrot.lane.b32.xlu0 %v1216, 127
      %v1358 = vpop.permute.xlu0 %1357
      %1359 = vrot.lane.b32.xlu0 %v1218, 127
      %v1360 = vpop.permute.xlu0 %1359
      %v1361 = vsel %vm706, %v1354, %v1358
      %v1362 = vsel %vm706, %v1356, %v1360
      %v1363 = vsel %vm706, %v1358, %v1354
      %v1364 = vsel %vm706, %v1360, %v1356
      %v1365 = vsel %vm723, %v1361, 0.0
      %v1366 = vsel %vm724, %v1363, 0.0
      %v1367 = vsel %vm723, %v1362, 0.0
      %v1368 = vsel %vm724, %v1364, 0.0
      %v1369 = vpack.c.bf16 %v1367, %v1365
      %v1370 = vpack.c.bf16 %v1368, %v1366
      %v1373 = vunpack.c.l.b16 %v1369
      %v1374 = vunpack.c.l.b16 %v1370
      %v1375 = vunpack.c.h.b16 %v1369
      %v1376 = vunpack.c.h.b16 %v1370
      %v1377 = vpack.c.b16 %v1374, %v1373
      %v1378 = vpack.c.b16 %v1376, %v1375
      %1381 = vst [vmem:[#allocation2 + $0x50] sm:$0xff] %v1377
      %1382 = vst [vmem:[#allocation2 + $0x58] sm:$0xff] %v1378
      %1383 = vrot.lane.b32.xlu0 %v1215, 113
      %v1384 = vpop.permute.xlu0 %1383
      %1385 = vrot.lane.b32.xlu0 %v1217, 113
      %v1386 = vpop.permute.xlu0 %1385
      %1387 = vrot.lane.b32.xlu0 %v1216, 113
      %v1388 = vpop.permute.xlu0 %1387
      %1389 = vrot.lane.b32.xlu0 %v1218, 113
      %v1390 = vpop.permute.xlu0 %1389
      %v1391 = vsel %vm751, %v1384, %v1388
      %v1392 = vsel %vm751, %v1386, %v1390
      %v1393 = vsel %vm751, %v1388, %v1384
      %v1394 = vsel %vm751, %v1390, %v1386
      %v1395 = vsel %vm768, %v1391, 0.0
      %v1396 = vsel %vm769, %v1393, 0.0
      %v1397 = vsel %vm768, %v1392, 0.0
      %v1398 = vsel %vm769, %v1394, 0.0
      %v1399 = vpack.c.bf16 %v1397, %v1395
      %v1400 = vpack.c.bf16 %v1398, %v1396
      %v1403 = vunpack.c.l.b16 %v1399
      %v1404 = vunpack.c.l.b16 %v1400
      %v1405 = vunpack.c.h.b16 %v1399
      %v1406 = vunpack.c.h.b16 %v1400
      %v1407 = vpack.c.b16 %v1404, %v1403
      %v1408 = vpack.c.b16 %v1406, %v1405
      %1411 = vst [vmem:[#allocation2 + $0x60] sm:$0xff] %v1407
      %1412 = vst [vmem:[#allocation2 + $0x68] sm:$0xff] %v1408
      %1413 = vrot.lane.b32.xlu0 %v1215, 112
      %v1414 = vpop.permute.xlu0 %1413
      %1415 = vrot.lane.b32.xlu0 %v1217, 112
      %v1416 = vpop.permute.xlu0 %1415
      %1417 = vrot.lane.b32.xlu0 %v1216, 112
      %v1418 = vpop.permute.xlu0 %1417
      %1419 = vrot.lane.b32.xlu0 %v1218, 112
      %v1420 = vpop.permute.xlu0 %1419
      %v1421 = vsel %vm796, %v1414, %v1418
      %v1422 = vsel %vm796, %v1416, %v1420
      %v1423 = vsel %vm796, %v1418, %v1414
      %v1424 = vsel %vm796, %v1420, %v1416
      %v1425 = vsel %vm813, %v1421, 0.0
      %v1426 = vsel %vm814, %v1423, 0.0
      %v1427 = vsel %vm813, %v1422, 0.0
      %v1428 = vsel %vm814, %v1424, 0.0
      %v1429 = vpack.c.bf16 %v1427, %v1425
      %v1430 = vpack.c.bf16 %v1428, %v1426
      %v1433 = vunpack.c.l.b16 %v1429
      %v1434 = vunpack.c.l.b16 %v1430
      %v1435 = vunpack.c.h.b16 %v1429
      %v1436 = vunpack.c.h.b16 %v1430
      %v1437 = vpack.c.b16 %v1434, %v1433
      %v1438 = vpack.c.b16 %v1436, %v1435
      %1441 = vst [vmem:[#allocation2 + $0x70] sm:$0xff] %v1437
      %1442 = vst [vmem:[#allocation2 + $0x78] sm:$0xff] %v1438
      %1443 = vrot.lane.b32.xlu0 %v1215, 111
      %v1444 = vpop.permute.xlu0 %1443
      %1445 = vrot.lane.b32.xlu0 %v1217, 111
      %v1446 = vpop.permute.xlu0 %1445
      %1447 = vrot.lane.b32.xlu0 %v1216, 111
      %v1448 = vpop.permute.xlu0 %1447
      %1449 = vrot.lane.b32.xlu0 %v1218, 111
      %v1450 = vpop.permute.xlu0 %1449
      %v1451 = vsel %vm841, %v1444, %v1448
      %v1452 = vsel %vm841, %v1446, %v1450
      %v1453 = vsel %vm841, %v1448, %v1444
      %v1454 = vsel %vm841, %v1450, %v1446
      %v1455 = vsel %vm858, %v1451, 0.0
      %v1456 = vsel %vm859, %v1453, 0.0
      %v1457 = vsel %vm858, %v1452, 0.0
      %v1458 = vsel %vm859, %v1454, 0.0
      %v1459 = vpack.c.bf16 %v1457, %v1455
      %v1460 = vpack.c.bf16 %v1458, %v1456
      %v1463 = vunpack.c.l.b16 %v1459
      %v1464 = vunpack.c.l.b16 %v1460
      %v1465 = vunpack.c.h.b16 %v1459
      %v1466 = vunpack.c.h.b16 %v1460
      %v1467 = vpack.c.b16 %v1464, %v1463
      %v1468 = vpack.c.b16 %v1466, %v1465
      %1471 = vst [vmem:[#allocation2 + $0x80] sm:$0xff] %v1467
      %1472 = vst [vmem:[#allocation2 + $0x88] sm:$0xff] %v1468
      %s1473 = scalar_lea.vmem %s5, 4
      %v1474 = vld [vmem:[%s1473] sm:$0xf]
      %v1475 = vld [vmem:[#allocation2] sm:$0xff]
      %v1476 = vld [vmem:[#allocation2 + $0x8] sm:$0xff]
      %v1477 = vld [vmem:[#allocation2 + $0x10] sm:$0xff]
      %v1478 = vld [vmem:[#allocation2 + $0x18] sm:$0xff]
      %v1479 = vld [vmem:[#allocation2 + $0x20] sm:$0xff]
      %v1480 = vld [vmem:[#allocation2 + $0x28] sm:$0xff]
      %v1481 = vld [vmem:[#allocation2 + $0x30] sm:$0xff]
      %v1482 = vld [vmem:[#allocation2 + $0x38] sm:$0xff]
      %v1483 = vld [vmem:[#allocation2 + $0x40] sm:$0xff]
      %v1484 = vld [vmem:[#allocation2 + $0x48] sm:$0xff]
      %v1485 = vld [vmem:[#allocation2 + $0x50] sm:$0xff]
      %v1486 = vld [vmem:[#allocation2 + $0x58] sm:$0xff]
      %v1487 = vld [vmem:[#allocation2 + $0x60] sm:$0xff]
      %v1488 = vld [vmem:[#allocation2 + $0x68] sm:$0xff]
      %v1489 = vld [vmem:[#allocation2 + $0x70] sm:$0xff]
      %v1490 = vld [vmem:[#allocation2 + $0x78] sm:$0xff]
      %v1491 = vld [vmem:[#allocation2 + $0x80] sm:$0xff]
      %v1492 = vld [vmem:[#allocation2 + $0x88] sm:$0xff]
      %s1493 = scalar_lea.vmem %s6, 4
      %v1494 = vld [vmem:[%s1493] sm:$0xf]
      %1496 = vset.pattern.permute.xlu0 0
      %1497 = vperm.xlu0 %1496, %v1494
      %v1498 = vpop.permute.xlu0 %1497
      %v1502 = vunpack.c.l.s4 1983009808
      %v1503 = vunpack.c.0.s8 %v1502
      %v1504 = vlaneseq
      %v1505 = vshrl.u32 %v1504, 7
      %v1506 = vsub.s32 %v1503, %v1505
      %v1507 = vrot.slane %v1474, %v1506
      %v1508 = vcombine.high %v1507, %v1507
      %v1528 = vunpack.c.l.b16 %v1475
      %v1529 = vunpack.c.h.b16 %v1475
      %v1530 = vunpack.c.l.b16 %v1476
      %v1531 = vunpack.c.h.b16 %v1476
      %v1532 = vunpack.c.l.b16 %v1477
      %v1533 = vunpack.c.h.b16 %v1477
      %v1534 = vunpack.c.l.b16 %v1478
      %v1535 = vunpack.c.h.b16 %v1478
      %v1536 = vunpack.c.l.b16 %v1479
      %v1537 = vunpack.c.h.b16 %v1479
      %v1538 = vunpack.c.l.b16 %v1480
      %v1539 = vunpack.c.h.b16 %v1480
      %v1540 = vunpack.c.l.b16 %v1481
      %v1541 = vunpack.c.h.b16 %v1481
      %v1542 = vunpack.c.l.b16 %v1482
      %v1543 = vunpack.c.h.b16 %v1482
      %v1544 = vunpack.c.l.b16 %v1483
      %v1545 = vunpack.c.h.b16 %v1483
      %v1546 = vunpack.c.l.b16 %v1484
      %v1547 = vunpack.c.h.b16 %v1484
      %v1548 = vunpack.c.l.b16 %v1485
      %v1549 = vunpack.c.h.b16 %v1485
      %v1550 = vunpack.c.l.b16 %v1486
      %v1551 = vunpack.c.h.b16 %v1486
      %v1552 = vunpack.c.l.b16 %v1487
      %v1553 = vunpack.c.h.b16 %v1487
      %v1554 = vunpack.c.l.b16 %v1488
      %v1555 = vunpack.c.h.b16 %v1488
      %v1556 = vunpack.c.l.b16 %v1489
      %v1557 = vunpack.c.h.b16 %v1489
      %v1558 = vunpack.c.l.b16 %v1490
      %v1559 = vunpack.c.h.b16 %v1490
      %v1560 = vunpack.c.l.b16 %v1491
      %v1561 = vunpack.c.h.b16 %v1491
      %v1562 = vunpack.c.l.b16 %v1492
      %v1563 = vunpack.c.h.b16 %v1492
      %v1564 = vpack.c.b16 %v1530, %v1528
      %v1565 = vpack.c.b16 %v1531, %v1529
      %v1566 = vpack.c.b16 %v1534, %v1532
      %v1567 = vpack.c.b16 %v1535, %v1533
      %v1568 = vpack.c.b16 %v1538, %v1536
      %v1569 = vpack.c.b16 %v1539, %v1537
      %v1570 = vpack.c.b16 %v1542, %v1540
      %v1571 = vpack.c.b16 %v1543, %v1541
      %v1572 = vpack.c.b16 %v1546, %v1544
      %v1573 = vpack.c.b16 %v1547, %v1545
      %v1574 = vpack.c.b16 %v1550, %v1548
      %v1575 = vpack.c.b16 %v1551, %v1549
      %v1576 = vpack.c.b16 %v1554, %v1552
      %v1577 = vpack.c.b16 %v1555, %v1553
      %v1578 = vpack.c.b16 %v1558, %v1556
      %v1579 = vpack.c.b16 %v1559, %v1557
      %v1580 = vpack.c.b16 %v1562, %v1560
      %v1581 = vpack.c.b16 %v1563, %v1561
      %v1601 = vsel %vm1003, %v1508, 0
      %1603 = vmatprep.subr.bf16.mxu0 %v1579
      %1604 = vmatpush1.bf16.msra.mxu0 %v1578
      %1605 = vmatprep.subr.bf16.mxu0 %v1577
      %1606 = vmatpush1.bf16.msra.mxu0 %v1576
      %1607 = vmatprep.subr.bf16.mxu0 %v1575
      %1608 = vmatpush1.bf16.msra.mxu0 %v1574
      %1609 = vmatprep.subr.bf16.mxu0 %v1573
      %1610 = vmatpush1.bf16.msra.mxu0 %v1572
      %1611 = vmatprep.subr.bf16.mxu0 %v1571
      %1612 = vmatpush1.bf16.msra.mxu0 %v1570
      %1613 = vmatprep.subr.bf16.mxu0 %v1569
      %1614 = vmatpush1.bf16.msra.mxu0 %v1568
      %1615 = vmatprep.subr.bf16.mxu0 %v1567
      %1616 = vmatpush1.bf16.msra.mxu0 %v1566
      %1617 = vmatprep.subr.bf16.mxu0 %v1565
      %1618 = vmatpush1.bf16.msra.mxu0 %v1564
      %1619 = vmatprep.subr.bf16.mxu0 0
      %1620 = vmatpush2.bf16.msra.mxu0 0
      %1621 = vmatprep.subr.bf16.mxu0 0
      %1622 = vmatpush2.bf16.msra.mxu0 0
      %1623 = vmatprep.subr.bf16.mxu0 0
      %1624 = vmatpush2.bf16.msra.mxu0 0
      %1625 = vmatprep.subr.bf16.mxu0 0
      %1626 = vmatpush2.bf16.msra.mxu0 0
      %1627 = vmatprep.subr.bf16.mxu0 0
      %1628 = vmatpush2.bf16.msra.mxu0 0
      %1629 = vmatprep.subr.bf16.mxu0 0
      %1630 = vmatpush2.bf16.msra.mxu0 0
      %1631 = vmatprep.subr.bf16.mxu0 0
      %1632 = vmatpush2.bf16.msra.mxu0 0
      %1633 = vmatprep.subr.bf16.mxu0 %v1581
      %1634 = vmatpush2.bf16.msra.mxu0 %v1580
      %1635 = vmatprep.mubr.bf16.mxu0 %v1601
      %1636 = vmatmul.mubr.bf16.gmra.mxu0 %v1507
      %v1637 = vpop.f32.mrf.mxu0
      %v1638 = vadd.f32 %v1498, %v1637
      %v1639 = vpop.f32.mrf.mxu0
      %v1640 = vadd.f32 %v1498, %v1639
      %v1641 = vpop.f32.mrf.mxu0
      %v1642 = vpop.f32.mrf.mxu0
      %1643 = vdwg.mxu0
      %1644 = vst [vmem:[%s278 + $0x10] sm:$0xf] %v1638
      %1645 = vst [vmem:[%s278 + $0x18] sm:$0xf] %v1640
      %v1646 = vld [vmem:[%s278] sm:$0xff]
      %v1647 = vld [vmem:[%s278 + $0x8] sm:$0xff]
      %v1648 = vld [vmem:[%s278 + $0x10] sm:$0xff]
      %v1649 = vld [vmem:[%s278 + $0x18] sm:$0xff]
      %v1650 = vld [vmem:[%s278 + $0x20] sm:$0xff]
      %v1651 = vld [vmem:[%s278 + $0x28] sm:$0xff]
      %v1652 = vld [vmem:[%s278 + $0x30] sm:$0xf]
      %v1653 = vld [vmem:[%s278 + $0x38] sm:$0xf]
      %s1654 = scalar_lea.vmem %s1, 64
      %v1655 = vld [vmem:[%s1654] sm:$0xff]
      %v1656 = vld [vmem:[%s1654 + $0x8] sm:$0xff]
      %v1657 = vld [vmem:[%s1654 + $0x10] sm:$0xff]
      %v1658 = vld [vmem:[%s1654 + $0x18] sm:$0xf]
      %1660 = vset.pattern.permute.xlu0 0
      %1661 = vperm.xlu0 %1660, %v1655
      %v1662 = vpop.permute.xlu0 %1661
      %1665 = vset.pattern.permute.xlu0 0
      %1666 = vperm.xlu0 %1665, %v1656
      %v1667 = vpop.permute.xlu0 %1666
      %1670 = vset.pattern.permute.xlu0 0
      %1671 = vperm.xlu0 %1670, %v1657
      %v1672 = vpop.permute.xlu0 %1671
      %1675 = vset.pattern.permute.xlu0 0
      %1676 = vperm.xlu0 %1675, %v1658
      %v1677 = vpop.permute.xlu0 %1676
      %v1679 = vmul.f32 %v1646, %v1662
      %v1680 = vmul.f32 %v1647, %v1662
      %v1681 = vmul.f32 %v1648, %v1667
      %v1682 = vmul.f32 %v1649, %v1667
      %v1683 = vmul.f32 %v1650, %v1672
      %v1684 = vmul.f32 %v1651, %v1672
      %v1685 = vmul.f32 %v1652, %v1677
      %v1686 = vmul.f32 %v1653, %v1677
      %s1687 = scalar_lea.vmem %s2, 64
      %v1688 = vld [vmem:[%s1687] sm:$0xff]
      %v1689 = vld [vmem:[%s1687 + $0x8] sm:$0xff]
      %v1690 = vld [vmem:[%s1687 + $0x10] sm:$0xff]
      %v1691 = vld [vmem:[%s1687 + $0x18] sm:$0xf]
      %1693 = vset.pattern.permute.xlu0 0
      %1694 = vperm.xlu0 %1693, %v1688
      %v1695 = vpop.permute.xlu0 %1694
      %1698 = vset.pattern.permute.xlu0 0
      %1699 = vperm.xlu0 %1698, %v1689
      %v1700 = vpop.permute.xlu0 %1699
      %1703 = vset.pattern.permute.xlu0 0
      %1704 = vperm.xlu0 %1703, %v1690
      %v1705 = vpop.permute.xlu0 %1704
      %1708 = vset.pattern.permute.xlu0 0
      %1709 = vperm.xlu0 %1708, %v1691
      %v1710 = vpop.permute.xlu0 %1709
      %v1712 = vadd.f32 %v1679, %v1695
      %v1713 = vadd.f32 %v1680, %v1695
      %v1714 = vadd.f32 %v1681, %v1700
      %v1715 = vadd.f32 %v1682, %v1700
      %v1716 = vadd.f32 %v1683, %v1705
      %v1717 = vadd.f32 %v1684, %v1705
      %v1718 = vadd.f32 %v1685, %v1710
      %v1719 = vadd.f32 %v1686, %v1710
      %v1720 = vmax.f32 %v1712, 0.0
      %v1721 = vmax.f32 %v1713, 0.0
      %v1722 = vmax.f32 %v1714, 0.0
      %v1723 = vmax.f32 %v1715, 0.0
      %v1724 = vmax.f32 %v1716, 0.0
      %v1725 = vmax.f32 %v1717, 0.0
      %v1726 = vmax.f32 %v1718, 0.0
      %v1727 = vmax.f32 %v1719, 0.0
      %s1728 = scalar_lea.vmem %s3, 16
      %v1729 = vld [vmem:[%s1728] sm:$0xf]
      %v1730 = vld [vmem:[%s1728 + $0x4] sm:$0xf]
      %v1731 = vpack.c.bf16 %v1722, %v1720
      %v1732 = vpack.c.bf16 %v1723, %v1721
      %v1733 = vpack.c.bf16 %v1726, %v1724
      %v1734 = vpack.c.bf16 %v1727, %v1725
      %s1735 = scalar_lea.vmem %s4, 32
      %v1736 = vld [vmem:[%s1735] sm:$0xff]
      %v1737 = vld [vmem:[%s1735 + $0x8] sm:$0xff]
      %1739 = vset.pattern.permute.xlu0 0
      %1740 = vperm.xlu0 %1739, %v1736
      %v1741 = vpop.permute.xlu0 %1740
      %1744 = vset.pattern.permute.xlu0 0
      %1745 = vperm.xlu0 %1744, %v1737
      %v1746 = vpop.permute.xlu0 %1745
      %v1750 = vunpack.c.l.b16 %v1729
      %v1751 = vunpack.c.l.b16 %v1730
      %v1752 = vpack.c.b16 %v1751, %v1750
      %v1754 = vsel %vm424, %v1752, 0
      %v1757 = vsel %vm428, %v1733, 0
      %v1760 = vsel %vm428, %v1734, 0
      %1762 = vmatprep.subr.bf16.mxu0 0
      %1763 = vmatpush1.bf16.msra.mxu0 0
      %1764 = vmatprep.subr.bf16.mxu0 0
      %1765 = vmatpush1.bf16.msra.mxu0 0
      %1766 = vmatprep.subr.bf16.mxu0 0
      %1767 = vmatpush1.bf16.msra.mxu0 0
      %1768 = vmatprep.subr.bf16.mxu0 0
      %1769 = vmatpush1.bf16.msra.mxu0 0
      %1770 = vmatprep.subr.bf16.mxu0 0
      %1771 = vmatpush1.bf16.msra.mxu0 0
      %1772 = vmatprep.subr.bf16.mxu0 0
      %1773 = vmatpush1.bf16.msra.mxu0 0
      %1774 = vmatprep.subr.bf16.mxu0 %v1760
      %1775 = vmatpush1.bf16.msra.mxu0 %v1757
      %1776 = vmatprep.subr.bf16.mxu0 %v1732
      %1777 = vmatpush1.bf16.msra.mxu0 %v1731
      %1778 = vmatprep.subr.bf16.mxu0 0
      %1779 = vmatpush2.bf16.msra.mxu0 0
      %1780 = vmatprep.subr.bf16.mxu0 0
      %1781 = vmatpush2.bf16.msra.mxu0 0
      %1782 = vmatprep.subr.bf16.mxu0 0
      %1783 = vmatpush2.bf16.msra.mxu0 0
      %1784 = vmatprep.subr.bf16.mxu0 0
      %1785 = vmatpush2.bf16.msra.mxu0 0
      %1786 = vmatprep.subr.bf16.mxu0 0
      %1787 = vmatpush2.bf16.msra.mxu0 0
      %1788 = vmatprep.subr.bf16.mxu0 0
      %1789 = vmatpush2.bf16.msra.mxu0 0
      %1790 = vmatprep.subr.bf16.mxu0 0
      %1791 = vmatpush2.bf16.msra.mxu0 0
      %1792 = vmatprep.subr.bf16.mxu0 0
      %1793 = vmatpush2.bf16.msra.mxu0 0
      %1794 = vmatprep.mubr.bf16.mxu0 0
      %1795 = vmatmul.mubr.bf16.gmra.mxu0 %v1754
      %v1796 = vpop.f32.mrf.mxu0
      %v1797 = vadd.f32 %v1741, %v1796
      %v1798 = vpop.f32.mrf.mxu0
      %v1799 = vadd.f32 %v1741, %v1798
      %v1800 = vpop.f32.mrf.mxu0
      %v1801 = vadd.f32 %v1746, %v1800
      %v1802 = vpop.f32.mrf.mxu0
      %v1803 = vadd.f32 %v1746, %v1802
      %1804 = vdwg.mxu0
      %v1805 = vmax.f32 %v1797, 0.0
      %v1806 = vmax.f32 %v1799, 0.0
      %v1807 = vmax.f32 %v1801, 0.0
      %v1808 = vmax.f32 %v1803, 0.0
      %1809 = vrot.lane.b32.xlu0 %v1805, 17
      %v1810 = vpop.permute.xlu0 %1809
      %1811 = vrot.lane.b32.xlu0 %v1807, 17
      %v1812 = vpop.permute.xlu0 %1811
      %1813 = vrot.lane.b32.xlu0 %v1806, 17
      %v1814 = vpop.permute.xlu0 %1813
      %1815 = vrot.lane.b32.xlu0 %v1808, 17
      %v1816 = vpop.permute.xlu0 %1815
      %v1817 = vsel %vm490, %v1810, %v1814
      %v1818 = vsel %vm490, %v1812, %v1816
      %v1819 = vsel %vm490, %v1814, %v1810
      %v1820 = vsel %vm490, %v1816, %v1812
      %v1821 = vsel %vm515, %v1819, 0.0
      %v1822 = vsel %vm516, %v1817, 0.0
      %v1823 = vsel %vm515, %v1820, 0.0
      %v1824 = vsel %vm516, %v1818, 0.0
      %v1825 = vpack.c.bf16 %v1823, %v1821
      %v1826 = vpack.c.bf16 %v1824, %v1822
      %v1829 = vunpack.c.l.b16 %v1825
      %v1830 = vunpack.c.l.b16 %v1826
      %v1831 = vunpack.c.h.b16 %v1825
      %v1832 = vunpack.c.h.b16 %v1826
      %v1833 = vpack.c.b16 %v1830, %v1829
      %v1834 = vpack.c.b16 %v1832, %v1831
      %1837 = vst [vmem:[#allocation2] sm:$0xff] %v1833
      %1838 = vst [vmem:[#allocation2 + $0x8] sm:$0xff] %v1834
      %1839 = vrot.lane.b32.xlu0 %v1805, 16
      %v1840 = vpop.permute.xlu0 %1839
      %1841 = vrot.lane.b32.xlu0 %v1807, 16
      %v1842 = vpop.permute.xlu0 %1841
      %1843 = vrot.lane.b32.xlu0 %v1806, 16
      %v1844 = vpop.permute.xlu0 %1843
      %1845 = vrot.lane.b32.xlu0 %v1808, 16
      %v1846 = vpop.permute.xlu0 %1845
      %v1847 = vsel %vm543, %v1840, %v1844
      %v1848 = vsel %vm543, %v1842, %v1846
      %v1849 = vsel %vm543, %v1844, %v1840
      %v1850 = vsel %vm543, %v1846, %v1842
      %v1851 = vsel %vm566, %v1849, 0.0
      %v1852 = vsel %vm567, %v1847, 0.0
      %v1853 = vsel %vm566, %v1850, 0.0
      %v1854 = vsel %vm567, %v1848, 0.0
      %v1855 = vpack.c.bf16 %v1853, %v1851
      %v1856 = vpack.c.bf16 %v1854, %v1852
      %v1859 = vunpack.c.l.b16 %v1855
      %v1860 = vunpack.c.l.b16 %v1856
      %v1861 = vunpack.c.h.b16 %v1855
      %v1862 = vunpack.c.h.b16 %v1856
      %v1863 = vpack.c.b16 %v1860, %v1859
      %v1864 = vpack.c.b16 %v1862, %v1861
      %1867 = vst [vmem:[#allocation2 + $0x10] sm:$0xff] %v1863
      %1868 = vst [vmem:[#allocation2 + $0x18] sm:$0xff] %v1864
      %1869 = vrot.lane.b32.xlu0 %v1805, 15
      %v1870 = vpop.permute.xlu0 %1869
      %1871 = vrot.lane.b32.xlu0 %v1807, 15
      %v1872 = vpop.permute.xlu0 %1871
      %1873 = vrot.lane.b32.xlu0 %v1806, 15
      %v1874 = vpop.permute.xlu0 %1873
      %1875 = vrot.lane.b32.xlu0 %v1808, 15
      %v1876 = vpop.permute.xlu0 %1875
      %v1877 = vsel %vm594, %v1870, %v1874
      %v1878 = vsel %vm594, %v1872, %v1876
      %v1879 = vsel %vm594, %v1874, %v1870
      %v1880 = vsel %vm594, %v1876, %v1872
      %v1881 = vsel %vm619, %v1879, 0.0
      %v1882 = vsel %vm620, %v1877, 0.0
      %v1883 = vsel %vm619, %v1880, 0.0
      %v1884 = vsel %vm620, %v1878, 0.0
      %v1885 = vpack.c.bf16 %v1883, %v1881
      %v1886 = vpack.c.bf16 %v1884, %v1882
      %v1889 = vunpack.c.l.b16 %v1885
      %v1890 = vunpack.c.l.b16 %v1886
      %v1891 = vunpack.c.h.b16 %v1885
      %v1892 = vunpack.c.h.b16 %v1886
      %v1893 = vpack.c.b16 %v1890, %v1889
      %v1894 = vpack.c.b16 %v1892, %v1891
      %1897 = vst [vmem:[#allocation2 + $0x20] sm:$0xff] %v1893
      %1898 = vst [vmem:[#allocation2 + $0x28] sm:$0xff] %v1894
      %1899 = vrot.lane.b32.xlu0 %v1805, 1
      %v1900 = vpop.permute.xlu0 %1899
      %1901 = vrot.lane.b32.xlu0 %v1807, 1
      %v1902 = vpop.permute.xlu0 %1901
      %1903 = vrot.lane.b32.xlu0 %v1806, 1
      %v1904 = vpop.permute.xlu0 %1903
      %1905 = vrot.lane.b32.xlu0 %v1808, 1
      %v1906 = vpop.permute.xlu0 %1905
      %v1907 = vsel %vm647, %v1900, %v1904
      %v1908 = vsel %vm647, %v1902, %v1906
      %v1909 = vsel %vm647, %v1904, %v1900
      %v1910 = vsel %vm647, %v1906, %v1902
      %v1911 = vsel %vm664, %v1909, 0.0
      %v1912 = vsel %vm665, %v1907, 0.0
      %v1913 = vsel %vm664, %v1910, 0.0
      %v1914 = vsel %vm665, %v1908, 0.0
      %v1915 = vpack.c.bf16 %v1913, %v1911
      %v1916 = vpack.c.bf16 %v1914, %v1912
      %v1919 = vunpack.c.l.b16 %v1915
      %v1920 = vunpack.c.l.b16 %v1916
      %v1921 = vunpack.c.h.b16 %v1915
      %v1922 = vunpack.c.h.b16 %v1916
      %v1923 = vpack.c.b16 %v1920, %v1919
      %v1924 = vpack.c.b16 %v1922, %v1921
      %1927 = vst [vmem:[#allocation2 + $0x30] sm:$0xff] %v1923
      %1928 = vst [vmem:[#allocation2 + $0x38] sm:$0xff] %v1924
      %v1929 = vpack.c.bf16 %v1807, %v1805
      %v1930 = vpack.c.bf16 %v1808, %v1806
      %v1933 = vunpack.c.l.b16 %v1929
      %v1934 = vunpack.c.l.b16 %v1930
      %v1935 = vunpack.c.h.b16 %v1929
      %v1936 = vunpack.c.h.b16 %v1930
      %v1937 = vpack.c.b16 %v1934, %v1933
      %v1938 = vpack.c.b16 %v1936, %v1935
      %1941 = vst [vmem:[#allocation2 + $0x40] sm:$0xff] %v1937
      %1942 = vst [vmem:[#allocation2 + $0x48] sm:$0xff] %v1938
      %1943 = vrot.lane.b32.xlu0 %v1805, 127
      %v1944 = vpop.permute.xlu0 %1943
      %1945 = vrot.lane.b32.xlu0 %v1807, 127
      %v1946 = vpop.permute.xlu0 %1945
      %1947 = vrot.lane.b32.xlu0 %v1806, 127
      %v1948 = vpop.permute.xlu0 %1947
      %1949 = vrot.lane.b32.xlu0 %v1808, 127
      %v1950 = vpop.permute.xlu0 %1949
      %v1951 = vsel %vm706, %v1944, %v1948
      %v1952 = vsel %vm706, %v1946, %v1950
      %v1953 = vsel %vm706, %v1948, %v1944
      %v1954 = vsel %vm706, %v1950, %v1946
      %v1955 = vsel %vm723, %v1951, 0.0
      %v1956 = vsel %vm724, %v1953, 0.0
      %v1957 = vsel %vm723, %v1952, 0.0
      %v1958 = vsel %vm724, %v1954, 0.0
      %v1959 = vpack.c.bf16 %v1957, %v1955
      %v1960 = vpack.c.bf16 %v1958, %v1956
      %v1963 = vunpack.c.l.b16 %v1959
      %v1964 = vunpack.c.l.b16 %v1960
      %v1965 = vunpack.c.h.b16 %v1959
      %v1966 = vunpack.c.h.b16 %v1960
      %v1967 = vpack.c.b16 %v1964, %v1963
      %v1968 = vpack.c.b16 %v1966, %v1965
      %1971 = vst [vmem:[#allocation2 + $0x50] sm:$0xff] %v1967
      %1972 = vst [vmem:[#allocation2 + $0x58] sm:$0xff] %v1968
      %1973 = vrot.lane.b32.xlu0 %v1805, 113
      %v1974 = vpop.permute.xlu0 %1973
      %1975 = vrot.lane.b32.xlu0 %v1807, 113
      %v1976 = vpop.permute.xlu0 %1975
      %1977 = vrot.lane.b32.xlu0 %v1806, 113
      %v1978 = vpop.permute.xlu0 %1977
      %1979 = vrot.lane.b32.xlu0 %v1808, 113
      %v1980 = vpop.permute.xlu0 %1979
      %v1981 = vsel %vm751, %v1974, %v1978
      %v1982 = vsel %vm751, %v1976, %v1980
      %v1983 = vsel %vm751, %v1978, %v1974
      %v1984 = vsel %vm751, %v1980, %v1976
      %v1985 = vsel %vm768, %v1981, 0.0
      %v1986 = vsel %vm769, %v1983, 0.0
      %v1987 = vsel %vm768, %v1982, 0.0
      %v1988 = vsel %vm769, %v1984, 0.0
      %v1989 = vpack.c.bf16 %v1987, %v1985
      %v1990 = vpack.c.bf16 %v1988, %v1986
      %v1993 = vunpack.c.l.b16 %v1989
      %v1994 = vunpack.c.l.b16 %v1990
      %v1995 = vunpack.c.h.b16 %v1989
      %v1996 = vunpack.c.h.b16 %v1990
      %v1997 = vpack.c.b16 %v1994, %v1993
      %v1998 = vpack.c.b16 %v1996, %v1995
      %2001 = vst [vmem:[#allocation2 + $0x60] sm:$0xff] %v1997
      %2002 = vst [vmem:[#allocation2 + $0x68] sm:$0xff] %v1998
      %2003 = vrot.lane.b32.xlu0 %v1805, 112
      %v2004 = vpop.permute.xlu0 %2003
      %2005 = vrot.lane.b32.xlu0 %v1807, 112
      %v2006 = vpop.permute.xlu0 %2005
      %2007 = vrot.lane.b32.xlu0 %v1806, 112
      %v2008 = vpop.permute.xlu0 %2007
      %2009 = vrot.lane.b32.xlu0 %v1808, 112
      %v2010 = vpop.permute.xlu0 %2009
      %v2011 = vsel %vm796, %v2004, %v2008
      %v2012 = vsel %vm796, %v2006, %v2010
      %v2013 = vsel %vm796, %v2008, %v2004
      %v2014 = vsel %vm796, %v2010, %v2006
      %v2015 = vsel %vm813, %v2011, 0.0
      %v2016 = vsel %vm814, %v2013, 0.0
      %v2017 = vsel %vm813, %v2012, 0.0
      %v2018 = vsel %vm814, %v2014, 0.0
      %v2019 = vpack.c.bf16 %v2017, %v2015
      %v2020 = vpack.c.bf16 %v2018, %v2016
      %v2023 = vunpack.c.l.b16 %v2019
      %v2024 = vunpack.c.l.b16 %v2020
      %v2025 = vunpack.c.h.b16 %v2019
      %v2026 = vunpack.c.h.b16 %v2020
      %v2027 = vpack.c.b16 %v2024, %v2023
      %v2028 = vpack.c.b16 %v2026, %v2025
      %2031 = vst [vmem:[#allocation2 + $0x70] sm:$0xff] %v2027
      %2032 = vst [vmem:[#allocation2 + $0x78] sm:$0xff] %v2028
      %2033 = vrot.lane.b32.xlu0 %v1805, 111
      %v2034 = vpop.permute.xlu0 %2033
      %2035 = vrot.lane.b32.xlu0 %v1807, 111
      %v2036 = vpop.permute.xlu0 %2035
      %2037 = vrot.lane.b32.xlu0 %v1806, 111
      %v2038 = vpop.permute.xlu0 %2037
      %2039 = vrot.lane.b32.xlu0 %v1808, 111
      %v2040 = vpop.permute.xlu0 %2039
      %v2041 = vsel %vm841, %v2034, %v2038
      %v2042 = vsel %vm841, %v2036, %v2040
      %v2043 = vsel %vm841, %v2038, %v2034
      %v2044 = vsel %vm841, %v2040, %v2036
      %v2045 = vsel %vm858, %v2041, 0.0
      %v2046 = vsel %vm859, %v2043, 0.0
      %v2047 = vsel %vm858, %v2042, 0.0
      %v2048 = vsel %vm859, %v2044, 0.0
      %v2049 = vpack.c.bf16 %v2047, %v2045
      %v2050 = vpack.c.bf16 %v2048, %v2046
      %v2053 = vunpack.c.l.b16 %v2049
      %v2054 = vunpack.c.l.b16 %v2050
      %v2055 = vunpack.c.h.b16 %v2049
      %v2056 = vunpack.c.h.b16 %v2050
      %v2057 = vpack.c.b16 %v2054, %v2053
      %v2058 = vpack.c.b16 %v2056, %v2055
      %2061 = vst [vmem:[#allocation2 + $0x80] sm:$0xff] %v2057
      %2062 = vst [vmem:[#allocation2 + $0x88] sm:$0xff] %v2058
      %s2063 = scalar_lea.vmem %s5, 8
      %v2064 = vld [vmem:[%s2063] sm:$0xf]
      %v2065 = vld [vmem:[#allocation2] sm:$0xff]
      %v2066 = vld [vmem:[#allocation2 + $0x8] sm:$0xff]
      %v2067 = vld [vmem:[#allocation2 + $0x10] sm:$0xff]
      %v2068 = vld [vmem:[#allocation2 + $0x18] sm:$0xff]
      %v2069 = vld [vmem:[#allocation2 + $0x20] sm:$0xff]
      %v2070 = vld [vmem:[#allocation2 + $0x28] sm:$0xff]
      %v2071 = vld [vmem:[#allocation2 + $0x30] sm:$0xff]
      %v2072 = vld [vmem:[#allocation2 + $0x38] sm:$0xff]
      %v2073 = vld [vmem:[#allocation2 + $0x40] sm:$0xff]
      %v2074 = vld [vmem:[#allocation2 + $0x48] sm:$0xff]
      %v2075 = vld [vmem:[#allocation2 + $0x50] sm:$0xff]
      %v2076 = vld [vmem:[#allocation2 + $0x58] sm:$0xff]
      %v2077 = vld [vmem:[#allocation2 + $0x60] sm:$0xff]
      %v2078 = vld [vmem:[#allocation2 + $0x68] sm:$0xff]
      %v2079 = vld [vmem:[#allocation2 + $0x70] sm:$0xff]
      %v2080 = vld [vmem:[#allocation2 + $0x78] sm:$0xff]
      %v2081 = vld [vmem:[#allocation2 + $0x80] sm:$0xff]
      %v2082 = vld [vmem:[#allocation2 + $0x88] sm:$0xff]
      %s2083 = scalar_lea.vmem %s6, 8
      %v2084 = vld [vmem:[%s2083] sm:$0xf]
      %2086 = vset.pattern.permute.xlu0 0
      %2087 = vperm.xlu0 %2086, %v2084
      %v2088 = vpop.permute.xlu0 %2087
      %v2092 = vunpack.c.l.s4 1983009808
      %v2093 = vunpack.c.0.s8 %v2092
      %v2094 = vlaneseq
      %v2095 = vshrl.u32 %v2094, 7
      %v2096 = vsub.s32 %v2093, %v2095
      %v2097 = vrot.slane %v2064, %v2096
      %v2098 = vcombine.high %v2097, %v2097
      %v2118 = vunpack.c.l.b16 %v2065
      %v2119 = vunpack.c.h.b16 %v2065
      %v2120 = vunpack.c.l.b16 %v2066
      %v2121 = vunpack.c.h.b16 %v2066
      %v2122 = vunpack.c.l.b16 %v2067
      %v2123 = vunpack.c.h.b16 %v2067
      %v2124 = vunpack.c.l.b16 %v2068
      %v2125 = vunpack.c.h.b16 %v2068
      %v2126 = vunpack.c.l.b16 %v2069
      %v2127 = vunpack.c.h.b16 %v2069
      %v2128 = vunpack.c.l.b16 %v2070
      %v2129 = vunpack.c.h.b16 %v2070
      %v2130 = vunpack.c.l.b16 %v2071
      %v2131 = vunpack.c.h.b16 %v2071
      %v2132 = vunpack.c.l.b16 %v2072
      %v2133 = vunpack.c.h.b16 %v2072
      %v2134 = vunpack.c.l.b16 %v2073
      %v2135 = vunpack.c.h.b16 %v2073
      %v2136 = vunpack.c.l.b16 %v2074
      %v2137 = vunpack.c.h.b16 %v2074
      %v2138 = vunpack.c.l.b16 %v2075
      %v2139 = vunpack.c.h.b16 %v2075
      %v2140 = vunpack.c.l.b16 %v2076
      %v2141 = vunpack.c.h.b16 %v2076
      %v2142 = vunpack.c.l.b16 %v2077
      %v2143 = vunpack.c.h.b16 %v2077
      %v2144 = vunpack.c.l.b16 %v2078
      %v2145 = vunpack.c.h.b16 %v2078
      %v2146 = vunpack.c.l.b16 %v2079
      %v2147 = vunpack.c.h.b16 %v2079
      %v2148 = vunpack.c.l.b16 %v2080
      %v2149 = vunpack.c.h.b16 %v2080
      %v2150 = vunpack.c.l.b16 %v2081
      %v2151 = vunpack.c.h.b16 %v2081
      %v2152 = vunpack.c.l.b16 %v2082
      %v2153 = vunpack.c.h.b16 %v2082
      %v2154 = vpack.c.b16 %v2120, %v2118
      %v2155 = vpack.c.b16 %v2121, %v2119
      %v2156 = vpack.c.b16 %v2124, %v2122
      %v2157 = vpack.c.b16 %v2125, %v2123
      %v2158 = vpack.c.b16 %v2128, %v2126
      %v2159 = vpack.c.b16 %v2129, %v2127
      %v2160 = vpack.c.b16 %v2132, %v2130
      %v2161 = vpack.c.b16 %v2133, %v2131
      %v2162 = vpack.c.b16 %v2136, %v2134
      %v2163 = vpack.c.b16 %v2137, %v2135
      %v2164 = vpack.c.b16 %v2140, %v2138
      %v2165 = vpack.c.b16 %v2141, %v2139
      %v2166 = vpack.c.b16 %v2144, %v2142
      %v2167 = vpack.c.b16 %v2145, %v2143
      %v2168 = vpack.c.b16 %v2148, %v2146
      %v2169 = vpack.c.b16 %v2149, %v2147
      %v2170 = vpack.c.b16 %v2152, %v2150
      %v2171 = vpack.c.b16 %v2153, %v2151
      %v2191 = vsel %vm1003, %v2098, 0
      %2193 = vmatprep.subr.bf16.mxu0 %v2169
      %2194 = vmatpush1.bf16.msra.mxu0 %v2168
      %2195 = vmatprep.subr.bf16.mxu0 %v2167
      %2196 = vmatpush1.bf16.msra.mxu0 %v2166
      %2197 = vmatprep.subr.bf16.mxu0 %v2165
      %2198 = vmatpush1.bf16.msra.mxu0 %v2164
      %2199 = vmatprep.subr.bf16.mxu0 %v2163
      %2200 = vmatpush1.bf16.msra.mxu0 %v2162
      %2201 = vmatprep.subr.bf16.mxu0 %v2161
      %2202 = vmatpush1.bf16.msra.mxu0 %v2160
      %2203 = vmatprep.subr.bf16.mxu0 %v2159
      %2204 = vmatpush1.bf16.msra.mxu0 %v2158
      %2205 = vmatprep.subr.bf16.mxu0 %v2157
      %2206 = vmatpush1.bf16.msra.mxu0 %v2156
      %2207 = vmatprep.subr.bf16.mxu0 %v2155
      %2208 = vmatpush1.bf16.msra.mxu0 %v2154
      %2209 = vmatprep.subr.bf16.mxu0 0
      %2210 = vmatpush2.bf16.msra.mxu0 0
      %2211 = vmatprep.subr.bf16.mxu0 0
      %2212 = vmatpush2.bf16.msra.mxu0 0
      %2213 = vmatprep.subr.bf16.mxu0 0
      %2214 = vmatpush2.bf16.msra.mxu0 0
      %2215 = vmatprep.subr.bf16.mxu0 0
      %2216 = vmatpush2.bf16.msra.mxu0 0
      %2217 = vmatprep.subr.bf16.mxu0 0
      %2218 = vmatpush2.bf16.msra.mxu0 0
      %2219 = vmatprep.subr.bf16.mxu0 0
      %2220 = vmatpush2.bf16.msra.mxu0 0
      %2221 = vmatprep.subr.bf16.mxu0 0
      %2222 = vmatpush2.bf16.msra.mxu0 0
      %2223 = vmatprep.subr.bf16.mxu0 %v2171
      %2224 = vmatpush2.bf16.msra.mxu0 %v2170
      %2225 = vmatprep.mubr.bf16.mxu0 %v2191
      %2226 = vmatmul.mubr.bf16.gmra.mxu0 %v2097
      %v2227 = vpop.f32.mrf.mxu0
      %v2228 = vadd.f32 %v2088, %v2227
      %v2229 = vpop.f32.mrf.mxu0
      %v2230 = vadd.f32 %v2088, %v2229
      %v2231 = vpop.f32.mrf.mxu0
      %v2232 = vpop.f32.mrf.mxu0
      %2233 = vdwg.mxu0
      %v2236 = vrot.slane %v2228, 4
      %v2237 = vrot.slane %v2230, 4
      %2240 = vst [vmem:[%s278 + $0x10] sm:$0xf0] %v2236
      %2241 = vst [vmem:[%s278 + $0x18] sm:$0xf0] %v2237
      %v2242 = vld [vmem:[%s278] sm:$0xff]
      %v2243 = vld [vmem:[%s278 + $0x8] sm:$0xff]
      %v2244 = vld [vmem:[%s278 + $0x10] sm:$0xff]
      %v2245 = vld [vmem:[%s278 + $0x18] sm:$0xff]
      %v2246 = vld [vmem:[%s278 + $0x20] sm:$0xff]
      %v2247 = vld [vmem:[%s278 + $0x28] sm:$0xff]
      %v2248 = vld [vmem:[%s278 + $0x30] sm:$0xf]
      %v2249 = vld [vmem:[%s278 + $0x38] sm:$0xf]
      %s2250 = scalar_lea.vmem %s1, 96
      %v2251 = vld [vmem:[%s2250] sm:$0xff]
      %v2252 = vld [vmem:[%s2250 + $0x8] sm:$0xff]
      %v2253 = vld [vmem:[%s2250 + $0x10] sm:$0xff]
      %v2254 = vld [vmem:[%s2250 + $0x18] sm:$0xf]
      %2256 = vset.pattern.permute.xlu0 0
      %2257 = vperm.xlu0 %2256, %v2251
      %v2258 = vpop.permute.xlu0 %2257
      %2261 = vset.pattern.permute.xlu0 0
      %2262 = vperm.xlu0 %2261, %v2252
      %v2263 = vpop.permute.xlu0 %2262
      %2266 = vset.pattern.permute.xlu0 0
      %2267 = vperm.xlu0 %2266, %v2253
      %v2268 = vpop.permute.xlu0 %2267
      %2271 = vset.pattern.permute.xlu0 0
      %2272 = vperm.xlu0 %2271, %v2254
      %v2273 = vpop.permute.xlu0 %2272
      %v2275 = vmul.f32 %v2242, %v2258
      %v2276 = vmul.f32 %v2243, %v2258
      %v2277 = vmul.f32 %v2244, %v2263
      %v2278 = vmul.f32 %v2245, %v2263
      %v2279 = vmul.f32 %v2246, %v2268
      %v2280 = vmul.f32 %v2247, %v2268
      %v2281 = vmul.f32 %v2248, %v2273
      %v2282 = vmul.f32 %v2249, %v2273
      %s2283 = scalar_lea.vmem %s2, 96
      %v2284 = vld [vmem:[%s2283] sm:$0xff]
      %v2285 = vld [vmem:[%s2283 + $0x8] sm:$0xff]
      %v2286 = vld [vmem:[%s2283 + $0x10] sm:$0xff]
      %v2287 = vld [vmem:[%s2283 + $0x18] sm:$0xf]
      %2289 = vset.pattern.permute.xlu0 0
      %2290 = vperm.xlu0 %2289, %v2284
      %v2291 = vpop.permute.xlu0 %2290
      %2294 = vset.pattern.permute.xlu0 0
      %2295 = vperm.xlu0 %2294, %v2285
      %v2296 = vpop.permute.xlu0 %2295
      %2299 = vset.pattern.permute.xlu0 0
      %2300 = vperm.xlu0 %2299, %v2286
      %v2301 = vpop.permute.xlu0 %2300
      %2304 = vset.pattern.permute.xlu0 0
      %2305 = vperm.xlu0 %2304, %v2287
      %v2306 = vpop.permute.xlu0 %2305
      %v2308 = vadd.f32 %v2275, %v2291
      %v2309 = vadd.f32 %v2276, %v2291
      %v2310 = vadd.f32 %v2277, %v2296
      %v2311 = vadd.f32 %v2278, %v2296
      %v2312 = vadd.f32 %v2279, %v2301
      %v2313 = vadd.f32 %v2280, %v2301
      %v2314 = vadd.f32 %v2281, %v2306
      %v2315 = vadd.f32 %v2282, %v2306
      %v2316 = vmax.f32 %v2308, 0.0
      %v2317 = vmax.f32 %v2309, 0.0
      %v2318 = vmax.f32 %v2310, 0.0
      %v2319 = vmax.f32 %v2311, 0.0
      %v2320 = vmax.f32 %v2312, 0.0
      %v2321 = vmax.f32 %v2313, 0.0
      %v2322 = vmax.f32 %v2314, 0.0
      %v2323 = vmax.f32 %v2315, 0.0
      %s2324 = scalar_lea.vmem %s3, 24
      %v2325 = vld [vmem:[%s2324] sm:$0xf]
      %v2326 = vld [vmem:[%s2324 + $0x4] sm:$0xf]
      %v2327 = vpack.c.bf16 %v2318, %v2316
      %v2328 = vpack.c.bf16 %v2319, %v2317
      %v2329 = vpack.c.bf16 %v2322, %v2320
      %v2330 = vpack.c.bf16 %v2323, %v2321
      %s2331 = scalar_lea.vmem %s4, 48
      %v2332 = vld [vmem:[%s2331] sm:$0xff]
      %v2333 = vld [vmem:[%s2331 + $0x8] sm:$0xff]
      %2335 = vset.pattern.permute.xlu0 0
      %2336 = vperm.xlu0 %2335, %v2332
      %v2337 = vpop.permute.xlu0 %2336
      %2340 = vset.pattern.permute.xlu0 0
      %2341 = vperm.xlu0 %2340, %v2333
      %v2342 = vpop.permute.xlu0 %2341
      %v2346 = vunpack.c.l.b16 %v2325
      %v2347 = vunpack.c.l.b16 %v2326
      %v2348 = vpack.c.b16 %v2347, %v2346
      %v2350 = vsel %vm424, %v2348, 0
      %v2353 = vsel %vm428, %v2329, 0
      %v2356 = vsel %vm428, %v2330, 0
      %2358 = vmatprep.subr.bf16.mxu0 0
      %2359 = vmatpush1.bf16.msra.mxu0 0
      %2360 = vmatprep.subr.bf16.mxu0 0
      %2361 = vmatpush1.bf16.msra.mxu0 0
      %2362 = vmatprep.subr.bf16.mxu0 0
      %2363 = vmatpush1.bf16.msra.mxu0 0
      %2364 = vmatprep.subr.bf16.mxu0 0
      %2365 = vmatpush1.bf16.msra.mxu0 0
      %2366 = vmatprep.subr.bf16.mxu0 0
      %2367 = vmatpush1.bf16.msra.mxu0 0
      %2368 = vmatprep.subr.bf16.mxu0 0
      %2369 = vmatpush1.bf16.msra.mxu0 0
      %2370 = vmatprep.subr.bf16.mxu0 %v2356
      %2371 = vmatpush1.bf16.msra.mxu0 %v2353
      %2372 = vmatprep.subr.bf16.mxu0 %v2328
      %2373 = vmatpush1.bf16.msra.mxu0 %v2327
      %2374 = vmatprep.subr.bf16.mxu0 0
      %2375 = vmatpush2.bf16.msra.mxu0 0
      %2376 = vmatprep.subr.bf16.mxu0 0
      %2377 = vmatpush2.bf16.msra.mxu0 0
      %2378 = vmatprep.subr.bf16.mxu0 0
      %2379 = vmatpush2.bf16.msra.mxu0 0
      %2380 = vmatprep.subr.bf16.mxu0 0
      %2381 = vmatpush2.bf16.msra.mxu0 0
      %2382 = vmatprep.subr.bf16.mxu0 0
      %2383 = vmatpush2.bf16.msra.mxu0 0
      %2384 = vmatprep.subr.bf16.mxu0 0
      %2385 = vmatpush2.bf16.msra.mxu0 0
      %2386 = vmatprep.subr.bf16.mxu0 0
      %2387 = vmatpush2.bf16.msra.mxu0 0
      %2388 = vmatprep.subr.bf16.mxu0 0
      %2389 = vmatpush2.bf16.msra.mxu0 0
      %2390 = vmatprep.mubr.bf16.mxu0 0
      %2391 = vmatmul.mubr.bf16.gmra.mxu0 %v2350
      %v2392 = vpop.f32.mrf.mxu0
      %v2393 = vadd.f32 %v2337, %v2392
      %v2394 = vpop.f32.mrf.mxu0
      %v2395 = vadd.f32 %v2337, %v2394
      %v2396 = vpop.f32.mrf.mxu0
      %v2397 = vadd.f32 %v2342, %v2396
      %v2398 = vpop.f32.mrf.mxu0
      %v2399 = vadd.f32 %v2342, %v2398
      %2400 = vdwg.mxu0
      %v2401 = vmax.f32 %v2393, 0.0
      %v2402 = vmax.f32 %v2395, 0.0
      %v2403 = vmax.f32 %v2397, 0.0
      %v2404 = vmax.f32 %v2399, 0.0
      %2405 = vrot.lane.b32.xlu0 %v2401, 17
      %v2406 = vpop.permute.xlu0 %2405
      %2407 = vrot.lane.b32.xlu0 %v2403, 17
      %v2408 = vpop.permute.xlu0 %2407
      %2409 = vrot.lane.b32.xlu0 %v2402, 17
      %v2410 = vpop.permute.xlu0 %2409
      %2411 = vrot.lane.b32.xlu0 %v2404, 17
      %v2412 = vpop.permute.xlu0 %2411
      %v2413 = vsel %vm490, %v2406, %v2410
      %v2414 = vsel %vm490, %v2408, %v2412
      %v2415 = vsel %vm490, %v2410, %v2406
      %v2416 = vsel %vm490, %v2412, %v2408
      %v2417 = vsel %vm515, %v2415, 0.0
      %v2418 = vsel %vm516, %v2413, 0.0
      %v2419 = vsel %vm515, %v2416, 0.0
      %v2420 = vsel %vm516, %v2414, 0.0
      %v2421 = vpack.c.bf16 %v2419, %v2417
      %v2422 = vpack.c.bf16 %v2420, %v2418
      %v2425 = vunpack.c.l.b16 %v2421
      %v2426 = vunpack.c.l.b16 %v2422
      %v2427 = vunpack.c.h.b16 %v2421
      %v2428 = vunpack.c.h.b16 %v2422
      %v2429 = vpack.c.b16 %v2426, %v2425
      %v2430 = vpack.c.b16 %v2428, %v2427
      %2433 = vst [vmem:[#allocation2] sm:$0xff] %v2429
      %2434 = vst [vmem:[#allocation2 + $0x8] sm:$0xff] %v2430
      %2435 = vrot.lane.b32.xlu0 %v2401, 16
      %v2436 = vpop.permute.xlu0 %2435
      %2437 = vrot.lane.b32.xlu0 %v2403, 16
      %v2438 = vpop.permute.xlu0 %2437
      %2439 = vrot.lane.b32.xlu0 %v2402, 16
      %v2440 = vpop.permute.xlu0 %2439
      %2441 = vrot.lane.b32.xlu0 %v2404, 16
      %v2442 = vpop.permute.xlu0 %2441
      %v2443 = vsel %vm543, %v2436, %v2440
      %v2444 = vsel %vm543, %v2438, %v2442
      %v2445 = vsel %vm543, %v2440, %v2436
      %v2446 = vsel %vm543, %v2442, %v2438
      %v2447 = vsel %vm566, %v2445, 0.0
      %v2448 = vsel %vm567, %v2443, 0.0
      %v2449 = vsel %vm566, %v2446, 0.0
      %v2450 = vsel %vm567, %v2444, 0.0
      %v2451 = vpack.c.bf16 %v2449, %v2447
      %v2452 = vpack.c.bf16 %v2450, %v2448
      %v2455 = vunpack.c.l.b16 %v2451
      %v2456 = vunpack.c.l.b16 %v2452
      %v2457 = vunpack.c.h.b16 %v2451
      %v2458 = vunpack.c.h.b16 %v2452
      %v2459 = vpack.c.b16 %v2456, %v2455
      %v2460 = vpack.c.b16 %v2458, %v2457
      %2463 = vst [vmem:[#allocation2 + $0x10] sm:$0xff] %v2459
      %2464 = vst [vmem:[#allocation2 + $0x18] sm:$0xff] %v2460
      %2465 = vrot.lane.b32.xlu0 %v2401, 15
      %v2466 = vpop.permute.xlu0 %2465
      %2467 = vrot.lane.b32.xlu0 %v2403, 15
      %v2468 = vpop.permute.xlu0 %2467
      %2469 = vrot.lane.b32.xlu0 %v2402, 15
      %v2470 = vpop.permute.xlu0 %2469
      %2471 = vrot.lane.b32.xlu0 %v2404, 15
      %v2472 = vpop.permute.xlu0 %2471
      %v2473 = vsel %vm594, %v2466, %v2470
      %v2474 = vsel %vm594, %v2468, %v2472
      %v2475 = vsel %vm594, %v2470, %v2466
      %v2476 = vsel %vm594, %v2472, %v2468
      %v2477 = vsel %vm619, %v2475, 0.0
      %v2478 = vsel %vm620, %v2473, 0.0
      %v2479 = vsel %vm619, %v2476, 0.0
      %v2480 = vsel %vm620, %v2474, 0.0
      %v2481 = vpack.c.bf16 %v2479, %v2477
      %v2482 = vpack.c.bf16 %v2480, %v2478
      %v2485 = vunpack.c.l.b16 %v2481
      %v2486 = vunpack.c.l.b16 %v2482
      %v2487 = vunpack.c.h.b16 %v2481
      %v2488 = vunpack.c.h.b16 %v2482
      %v2489 = vpack.c.b16 %v2486, %v2485
      %v2490 = vpack.c.b16 %v2488, %v2487
      %2493 = vst [vmem:[#allocation2 + $0x20] sm:$0xff] %v2489
      %2494 = vst [vmem:[#allocation2 + $0x28] sm:$0xff] %v2490
      %2495 = vrot.lane.b32.xlu0 %v2401, 1
      %v2496 = vpop.permute.xlu0 %2495
      %2497 = vrot.lane.b32.xlu0 %v2403, 1
      %v2498 = vpop.permute.xlu0 %2497
      %2499 = vrot.lane.b32.xlu0 %v2402, 1
      %v2500 = vpop.permute.xlu0 %2499
      %2501 = vrot.lane.b32.xlu0 %v2404, 1
      %v2502 = vpop.permute.xlu0 %2501
      %v2503 = vsel %vm647, %v2496, %v2500
      %v2504 = vsel %vm647, %v2498, %v2502
      %v2505 = vsel %vm647, %v2500, %v2496
      %v2506 = vsel %vm647, %v2502, %v2498
      %v2507 = vsel %vm664, %v2505, 0.0
      %v2508 = vsel %vm665, %v2503, 0.0
      %v2509 = vsel %vm664, %v2506, 0.0
      %v2510 = vsel %vm665, %v2504, 0.0
      %v2511 = vpack.c.bf16 %v2509, %v2507
      %v2512 = vpack.c.bf16 %v2510, %v2508
      %v2515 = vunpack.c.l.b16 %v2511
      %v2516 = vunpack.c.l.b16 %v2512
      %v2517 = vunpack.c.h.b16 %v2511
      %v2518 = vunpack.c.h.b16 %v2512
      %v2519 = vpack.c.b16 %v2516, %v2515
      %v2520 = vpack.c.b16 %v2518, %v2517
      %2523 = vst [vmem:[#allocation2 + $0x30] sm:$0xff] %v2519
      %2524 = vst [vmem:[#allocation2 + $0x38] sm:$0xff] %v2520
      %v2525 = vpack.c.bf16 %v2403, %v2401
      %v2526 = vpack.c.bf16 %v2404, %v2402
      %v2529 = vunpack.c.l.b16 %v2525
      %v2530 = vunpack.c.l.b16 %v2526
      %v2531 = vunpack.c.h.b16 %v2525
      %v2532 = vunpack.c.h.b16 %v2526
      %v2533 = vpack.c.b16 %v2530, %v2529
      %v2534 = vpack.c.b16 %v2532, %v2531
      %2537 = vst [vmem:[#allocation2 + $0x40] sm:$0xff] %v2533
      %2538 = vst [vmem:[#allocation2 + $0x48] sm:$0xff] %v2534
      %2539 = vrot.lane.b32.xlu0 %v2401, 127
      %v2540 = vpop.permute.xlu0 %2539
      %2541 = vrot.lane.b32.xlu0 %v2403, 127
      %v2542 = vpop.permute.xlu0 %2541
      %2543 = vrot.lane.b32.xlu0 %v2402, 127
      %v2544 = vpop.permute.xlu0 %2543
      %2545 = vrot.lane.b32.xlu0 %v2404, 127
      %v2546 = vpop.permute.xlu0 %2545
      %v2547 = vsel %vm706, %v2540, %v2544
      %v2548 = vsel %vm706, %v2542, %v2546
      %v2549 = vsel %vm706, %v2544, %v2540
      %v2550 = vsel %vm706, %v2546, %v2542
      %v2551 = vsel %vm723, %v2547, 0.0
      %v2552 = vsel %vm724, %v2549, 0.0
      %v2553 = vsel %vm723, %v2548, 0.0
      %v2554 = vsel %vm724, %v2550, 0.0
      %v2555 = vpack.c.bf16 %v2553, %v2551
      %v2556 = vpack.c.bf16 %v2554, %v2552
      %v2559 = vunpack.c.l.b16 %v2555
      %v2560 = vunpack.c.l.b16 %v2556
      %v2561 = vunpack.c.h.b16 %v2555
      %v2562 = vunpack.c.h.b16 %v2556
      %v2563 = vpack.c.b16 %v2560, %v2559
      %v2564 = vpack.c.b16 %v2562, %v2561
      %2567 = vst [vmem:[#allocation2 + $0x50] sm:$0xff] %v2563
      %2568 = vst [vmem:[#allocation2 + $0x58] sm:$0xff] %v2564
      %2569 = vrot.lane.b32.xlu0 %v2401, 113
      %v2570 = vpop.permute.xlu0 %2569
      %2571 = vrot.lane.b32.xlu0 %v2403, 113
      %v2572 = vpop.permute.xlu0 %2571
      %2573 = vrot.lane.b32.xlu0 %v2402, 113
      %v2574 = vpop.permute.xlu0 %2573
      %2575 = vrot.lane.b32.xlu0 %v2404, 113
      %v2576 = vpop.permute.xlu0 %2575
      %v2577 = vsel %vm751, %v2570, %v2574
      %v2578 = vsel %vm751, %v2572, %v2576
      %v2579 = vsel %vm751, %v2574, %v2570
      %v2580 = vsel %vm751, %v2576, %v2572
      %v2581 = vsel %vm768, %v2577, 0.0
      %v2582 = vsel %vm769, %v2579, 0.0
      %v2583 = vsel %vm768, %v2578, 0.0
      %v2584 = vsel %vm769, %v2580, 0.0
      %v2585 = vpack.c.bf16 %v2583, %v2581
      %v2586 = vpack.c.bf16 %v2584, %v2582
      %v2589 = vunpack.c.l.b16 %v2585
      %v2590 = vunpack.c.l.b16 %v2586
      %v2591 = vunpack.c.h.b16 %v2585
      %v2592 = vunpack.c.h.b16 %v2586
      %v2593 = vpack.c.b16 %v2590, %v2589
      %v2594 = vpack.c.b16 %v2592, %v2591
      %2597 = vst [vmem:[#allocation2 + $0x60] sm:$0xff] %v2593
      %2598 = vst [vmem:[#allocation2 + $0x68] sm:$0xff] %v2594
      %2599 = vrot.lane.b32.xlu0 %v2401, 112
      %v2600 = vpop.permute.xlu0 %2599
      %2601 = vrot.lane.b32.xlu0 %v2403, 112
      %v2602 = vpop.permute.xlu0 %2601
      %2603 = vrot.lane.b32.xlu0 %v2402, 112
      %v2604 = vpop.permute.xlu0 %2603
      %2605 = vrot.lane.b32.xlu0 %v2404, 112
      %v2606 = vpop.permute.xlu0 %2605
      %v2607 = vsel %vm796, %v2600, %v2604
      %v2608 = vsel %vm796, %v2602, %v2606
      %v2609 = vsel %vm796, %v2604, %v2600
      %v2610 = vsel %vm796, %v2606, %v2602
      %v2611 = vsel %vm813, %v2607, 0.0
      %v2612 = vsel %vm814, %v2609, 0.0
      %v2613 = vsel %vm813, %v2608, 0.0
      %v2614 = vsel %vm814, %v2610, 0.0
      %v2615 = vpack.c.bf16 %v2613, %v2611
      %v2616 = vpack.c.bf16 %v2614, %v2612
      %v2619 = vunpack.c.l.b16 %v2615
      %v2620 = vunpack.c.l.b16 %v2616
      %v2621 = vunpack.c.h.b16 %v2615
      %v2622 = vunpack.c.h.b16 %v2616
      %v2623 = vpack.c.b16 %v2620, %v2619
      %v2624 = vpack.c.b16 %v2622, %v2621
      %2627 = vst [vmem:[#allocation2 + $0x70] sm:$0xff] %v2623
      %2628 = vst [vmem:[#allocation2 + $0x78] sm:$0xff] %v2624
      %2629 = vrot.lane.b32.xlu0 %v2401, 111
      %v2630 = vpop.permute.xlu0 %2629
      %2631 = vrot.lane.b32.xlu0 %v2403, 111
      %v2632 = vpop.permute.xlu0 %2631
      %2633 = vrot.lane.b32.xlu0 %v2402, 111
      %v2634 = vpop.permute.xlu0 %2633
      %2635 = vrot.lane.b32.xlu0 %v2404, 111
      %v2636 = vpop.permute.xlu0 %2635
      %v2637 = vsel %vm841, %v2630, %v2634
      %v2638 = vsel %vm841, %v2632, %v2636
      %v2639 = vsel %vm841, %v2634, %v2630
      %v2640 = vsel %vm841, %v2636, %v2632
      %v2641 = vsel %vm858, %v2637, 0.0
      %v2642 = vsel %vm859, %v2639, 0.0
      %v2643 = vsel %vm858, %v2638, 0.0
      %v2644 = vsel %vm859, %v2640, 0.0
      %v2645 = vpack.c.bf16 %v2643, %v2641
      %v2646 = vpack.c.bf16 %v2644, %v2642
      %v2649 = vunpack.c.l.b16 %v2645
      %v2650 = vunpack.c.l.b16 %v2646
      %v2651 = vunpack.c.h.b16 %v2645
      %v2652 = vunpack.c.h.b16 %v2646
      %v2653 = vpack.c.b16 %v2650, %v2649
      %v2654 = vpack.c.b16 %v2652, %v2651
      %2657 = vst [vmem:[#allocation2 + $0x80] sm:$0xff] %v2653
      %2658 = vst [vmem:[#allocation2 + $0x88] sm:$0xff] %v2654
      %s2659 = scalar_lea.vmem %s5, 12
      %v2660 = vld [vmem:[%s2659] sm:$0xf]
      %v2661 = vld [vmem:[#allocation2] sm:$0xff]
      %v2662 = vld [vmem:[#allocation2 + $0x8] sm:$0xff]
      %v2663 = vld [vmem:[#allocation2 + $0x10] sm:$0xff]
      %v2664 = vld [vmem:[#allocation2 + $0x18] sm:$0xff]
      %v2665 = vld [vmem:[#allocation2 + $0x20] sm:$0xff]
      %v2666 = vld [vmem:[#allocation2 + $0x28] sm:$0xff]
      %v2667 = vld [vmem:[#allocation2 + $0x30] sm:$0xff]
      %v2668 = vld [vmem:[#allocation2 + $0x38] sm:$0xff]
      %v2669 = vld [vmem:[#allocation2 + $0x40] sm:$0xff]
      %v2670 = vld [vmem:[#allocation2 + $0x48] sm:$0xff]
      %v2671 = vld [vmem:[#allocation2 + $0x50] sm:$0xff]
      %v2672 = vld [vmem:[#allocation2 + $0x58] sm:$0xff]
      %v2673 = vld [vmem:[#allocation2 + $0x60] sm:$0xff]
      %v2674 = vld [vmem:[#allocation2 + $0x68] sm:$0xff]
      %v2675 = vld [vmem:[#allocation2 + $0x70] sm:$0xff]
      %v2676 = vld [vmem:[#allocation2 + $0x78] sm:$0xff]
      %v2677 = vld [vmem:[#allocation2 + $0x80] sm:$0xff]
      %v2678 = vld [vmem:[#allocation2 + $0x88] sm:$0xff]
      %s2679 = scalar_lea.vmem %s6, 12
      %v2680 = vld [vmem:[%s2679] sm:$0xf]
      %2682 = vset.pattern.permute.xlu0 0
      %2683 = vperm.xlu0 %2682, %v2680
      %v2684 = vpop.permute.xlu0 %2683
      %v2688 = vunpack.c.l.s4 1983009808
      %v2689 = vunpack.c.0.s8 %v2688
      %v2690 = vlaneseq
      %v2691 = vshrl.u32 %v2690, 7
      %v2692 = vsub.s32 %v2689, %v2691
      %v2693 = vrot.slane %v2660, %v2692
      %v2694 = vcombine.high %v2693, %v2693
      %v2714 = vunpack.c.l.b16 %v2661
      %v2715 = vunpack.c.h.b16 %v2661
      %v2716 = vunpack.c.l.b16 %v2662
      %v2717 = vunpack.c.h.b16 %v2662
      %v2718 = vunpack.c.l.b16 %v2663
      %v2719 = vunpack.c.h.b16 %v2663
      %v2720 = vunpack.c.l.b16 %v2664
      %v2721 = vunpack.c.h.b16 %v2664
      %v2722 = vunpack.c.l.b16 %v2665
      %v2723 = vunpack.c.h.b16 %v2665
      %v2724 = vunpack.c.l.b16 %v2666
      %v2725 = vunpack.c.h.b16 %v2666
      %v2726 = vunpack.c.l.b16 %v2667
      %v2727 = vunpack.c.h.b16 %v2667
      %v2728 = vunpack.c.l.b16 %v2668
      %v2729 = vunpack.c.h.b16 %v2668
      %v2730 = vunpack.c.l.b16 %v2669
      %v2731 = vunpack.c.h.b16 %v2669
      %v2732 = vunpack.c.l.b16 %v2670
      %v2733 = vunpack.c.h.b16 %v2670
      %v2734 = vunpack.c.l.b16 %v2671
      %v2735 = vunpack.c.h.b16 %v2671
      %v2736 = vunpack.c.l.b16 %v2672
      %v2737 = vunpack.c.h.b16 %v2672
      %v2738 = vunpack.c.l.b16 %v2673
      %v2739 = vunpack.c.h.b16 %v2673
      %v2740 = vunpack.c.l.b16 %v2674
      %v2741 = vunpack.c.h.b16 %v2674
      %v2742 = vunpack.c.l.b16 %v2675
      %v2743 = vunpack.c.h.b16 %v2675
      %v2744 = vunpack.c.l.b16 %v2676
      %v2745 = vunpack.c.h.b16 %v2676
      %v2746 = vunpack.c.l.b16 %v2677
      %v2747 = vunpack.c.h.b16 %v2677
      %v2748 = vunpack.c.l.b16 %v2678
      %v2749 = vunpack.c.h.b16 %v2678
      %v2750 = vpack.c.b16 %v2716, %v2714
      %v2751 = vpack.c.b16 %v2717, %v2715
      %v2752 = vpack.c.b16 %v2720, %v2718
      %v2753 = vpack.c.b16 %v2721, %v2719
      %v2754 = vpack.c.b16 %v2724, %v2722
      %v2755 = vpack.c.b16 %v2725, %v2723
      %v2756 = vpack.c.b16 %v2728, %v2726
      %v2757 = vpack.c.b16 %v2729, %v2727
      %v2758 = vpack.c.b16 %v2732, %v2730
      %v2759 = vpack.c.b16 %v2733, %v2731
      %v2760 = vpack.c.b16 %v2736, %v2734
      %v2761 = vpack.c.b16 %v2737, %v2735
      %v2762 = vpack.c.b16 %v2740, %v2738
      %v2763 = vpack.c.b16 %v2741, %v2739
      %v2764 = vpack.c.b16 %v2744, %v2742
      %v2765 = vpack.c.b16 %v2745, %v2743
      %v2766 = vpack.c.b16 %v2748, %v2746
      %v2767 = vpack.c.b16 %v2749, %v2747
      %v2787 = vsel %vm1003, %v2694, 0
      %2789 = vmatprep.subr.bf16.mxu0 %v2765
      %2790 = vmatpush1.bf16.msra.mxu0 %v2764
      %2791 = vmatprep.subr.bf16.mxu0 %v2763
      %2792 = vmatpush1.bf16.msra.mxu0 %v2762
      %2793 = vmatprep.subr.bf16.mxu0 %v2761
      %2794 = vmatpush1.bf16.msra.mxu0 %v2760
      %2795 = vmatprep.subr.bf16.mxu0 %v2759
      %2796 = vmatpush1.bf16.msra.mxu0 %v2758
      %2797 = vmatprep.subr.bf16.mxu0 %v2757
      %2798 = vmatpush1.bf16.msra.mxu0 %v2756
      %2799 = vmatprep.subr.bf16.mxu0 %v2755
      %2800 = vmatpush1.bf16.msra.mxu0 %v2754
      %2801 = vmatprep.subr.bf16.mxu0 %v2753
      %2802 = vmatpush1.bf16.msra.mxu0 %v2752
      %2803 = vmatprep.subr.bf16.mxu0 %v2751
      %2804 = vmatpush1.bf16.msra.mxu0 %v2750
      %2805 = vmatprep.subr.bf16.mxu0 0
      %2806 = vmatpush2.bf16.msra.mxu0 0
      %2807 = vmatprep.subr.bf16.mxu0 0
      %2808 = vmatpush2.bf16.msra.mxu0 0
      %2809 = vmatprep.subr.bf16.mxu0 0
      %2810 = vmatpush2.bf16.msra.mxu0 0
      %2811 = vmatprep.subr.bf16.mxu0 0
      %2812 = vmatpush2.bf16.msra.mxu0 0
      %2813 = vmatprep.subr.bf16.mxu0 0
      %2814 = vmatpush2.bf16.msra.mxu0 0
      %2815 = vmatprep.subr.bf16.mxu0 0
      %2816 = vmatpush2.bf16.msra.mxu0 0
      %2817 = vmatprep.subr.bf16.mxu0 0
      %2818 = vmatpush2.bf16.msra.mxu0 0
      %2819 = vmatprep.subr.bf16.mxu0 %v2767
      %2820 = vmatpush2.bf16.msra.mxu0 %v2766
      %2821 = vmatprep.mubr.bf16.mxu0 %v2787
      %2822 = vmatmul.mubr.bf16.gmra.mxu0 %v2693
      %v2823 = vpop.f32.mrf.mxu0
      %v2824 = vadd.f32 %v2684, %v2823
      %v2825 = vpop.f32.mrf.mxu0
      %v2826 = vadd.f32 %v2684, %v2825
      %v2827 = vpop.f32.mrf.mxu0
      %v2828 = vpop.f32.mrf.mxu0
      %2829 = vdwg.mxu0
      %2830 = vst [vmem:[%s278 + $0x20] sm:$0xf] %v2824
      %2831 = vst [vmem:[%s278 + $0x28] sm:$0xf] %v2826
      %v2832 = vld [vmem:[%s278] sm:$0xff]
      %v2833 = vld [vmem:[%s278 + $0x8] sm:$0xff]
      %v2834 = vld [vmem:[%s278 + $0x10] sm:$0xff]
      %v2835 = vld [vmem:[%s278 + $0x18] sm:$0xff]
      %v2836 = vld [vmem:[%s278 + $0x20] sm:$0xff]
      %v2837 = vld [vmem:[%s278 + $0x28] sm:$0xff]
      %v2838 = vld [vmem:[%s278 + $0x30] sm:$0xf]
      %v2839 = vld [vmem:[%s278 + $0x38] sm:$0xf]
      %s2840 = scalar_lea.vmem %s1, 128
      %v2841 = vld [vmem:[%s2840] sm:$0xff]
      %v2842 = vld [vmem:[%s2840 + $0x8] sm:$0xff]
      %v2843 = vld [vmem:[%s2840 + $0x10] sm:$0xff]
      %v2844 = vld [vmem:[%s2840 + $0x18] sm:$0xf]
      %2846 = vset.pattern.permute.xlu0 0
      %2847 = vperm.xlu0 %2846, %v2841
      %v2848 = vpop.permute.xlu0 %2847
      %2851 = vset.pattern.permute.xlu0 0
      %2852 = vperm.xlu0 %2851, %v2842
      %v2853 = vpop.permute.xlu0 %2852
      %2856 = vset.pattern.permute.xlu0 0
      %2857 = vperm.xlu0 %2856, %v2843
      %v2858 = vpop.permute.xlu0 %2857
      %2861 = vset.pattern.permute.xlu0 0
      %2862 = vperm.xlu0 %2861, %v2844
      %v2863 = vpop.permute.xlu0 %2862
      %v2865 = vmul.f32 %v2832, %v2848
      %v2866 = vmul.f32 %v2833, %v2848
      %v2867 = vmul.f32 %v2834, %v2853
      %v2868 = vmul.f32 %v2835, %v2853
      %v2869 = vmul.f32 %v2836, %v2858
      %v2870 = vmul.f32 %v2837, %v2858
      %v2871 = vmul.f32 %v2838, %v2863
      %v2872 = vmul.f32 %v2839, %v2863
      %s2873 = scalar_lea.vmem %s2, 128
      %v2874 = vld [vmem:[%s2873] sm:$0xff]
      %v2875 = vld [vmem:[%s2873 + $0x8] sm:$0xff]
      %v2876 = vld [vmem:[%s2873 + $0x10] sm:$0xff]
      %v2877 = vld [vmem:[%s2873 + $0x18] sm:$0xf]
      %2879 = vset.pattern.permute.xlu0 0
      %2880 = vperm.xlu0 %2879, %v2874
      %v2881 = vpop.permute.xlu0 %2880
      %2884 = vset.pattern.permute.xlu0 0
      %2885 = vperm.xlu0 %2884, %v2875
      %v2886 = vpop.permute.xlu0 %2885
      %2889 = vset.pattern.permute.xlu0 0
      %2890 = vperm.xlu0 %2889, %v2876
      %v2891 = vpop.permute.xlu0 %2890
      %2894 = vset.pattern.permute.xlu0 0
      %2895 = vperm.xlu0 %2894, %v2877
      %v2896 = vpop.permute.xlu0 %2895
      %v2898 = vadd.f32 %v2865, %v2881
      %v2899 = vadd.f32 %v2866, %v2881
      %v2900 = vadd.f32 %v2867, %v2886
      %v2901 = vadd.f32 %v2868, %v2886
      %v2902 = vadd.f32 %v2869, %v2891
      %v2903 = vadd.f32 %v2870, %v2891
      %v2904 = vadd.f32 %v2871, %v2896
      %v2905 = vadd.f32 %v2872, %v2896
      %v2906 = vmax.f32 %v2898, 0.0
      %v2907 = vmax.f32 %v2899, 0.0
      %v2908 = vmax.f32 %v2900, 0.0
      %v2909 = vmax.f32 %v2901, 0.0
      %v2910 = vmax.f32 %v2902, 0.0
      %v2911 = vmax.f32 %v2903, 0.0
      %v2912 = vmax.f32 %v2904, 0.0
      %v2913 = vmax.f32 %v2905, 0.0
      %s2914 = scalar_lea.vmem %s3, 32
      %v2915 = vld [vmem:[%s2914] sm:$0xf]
      %v2916 = vld [vmem:[%s2914 + $0x4] sm:$0xf]
      %v2917 = vpack.c.bf16 %v2908, %v2906
      %v2918 = vpack.c.bf16 %v2909, %v2907
      %v2919 = vpack.c.bf16 %v2912, %v2910
      %v2920 = vpack.c.bf16 %v2913, %v2911
      %s2921 = scalar_lea.vmem %s4, 64
      %v2922 = vld [vmem:[%s2921] sm:$0xff]
      %v2923 = vld [vmem:[%s2921 + $0x8] sm:$0xff]
      %2925 = vset.pattern.permute.xlu0 0
      %2926 = vperm.xlu0 %2925, %v2922
      %v2927 = vpop.permute.xlu0 %2926
      %2930 = vset.pattern.permute.xlu0 0
      %2931 = vperm.xlu0 %2930, %v2923
      %v2932 = vpop.permute.xlu0 %2931
      %v2936 = vunpack.c.l.b16 %v2915
      %v2937 = vunpack.c.l.b16 %v2916
      %v2938 = vpack.c.b16 %v2937, %v2936
      %v2940 = vsel %vm424, %v2938, 0
      %v2943 = vsel %vm428, %v2919, 0
      %v2946 = vsel %vm428, %v2920, 0
      %2948 = vmatprep.subr.bf16.mxu0 0
      %2949 = vmatpush1.bf16.msra.mxu0 0
      %2950 = vmatprep.subr.bf16.mxu0 0
      %2951 = vmatpush1.bf16.msra.mxu0 0
      %2952 = vmatprep.subr.bf16.mxu0 0
      %2953 = vmatpush1.bf16.msra.mxu0 0
      %2954 = vmatprep.subr.bf16.mxu0 0
      %2955 = vmatpush1.bf16.msra.mxu0 0
      %2956 = vmatprep.subr.bf16.mxu0 0
      %2957 = vmatpush1.bf16.msra.mxu0 0
      %2958 = vmatprep.subr.bf16.mxu0 0
      %2959 = vmatpush1.bf16.msra.mxu0 0
      %2960 = vmatprep.subr.bf16.mxu0 %v2946
      %2961 = vmatpush1.bf16.msra.mxu0 %v2943
      %2962 = vmatprep.subr.bf16.mxu0 %v2918
      %2963 = vmatpush1.bf16.msra.mxu0 %v2917
      %2964 = vmatprep.subr.bf16.mxu0 0
      %2965 = vmatpush2.bf16.msra.mxu0 0
      %2966 = vmatprep.subr.bf16.mxu0 0
      %2967 = vmatpush2.bf16.msra.mxu0 0
      %2968 = vmatprep.subr.bf16.mxu0 0
      %2969 = vmatpush2.bf16.msra.mxu0 0
      %2970 = vmatprep.subr.bf16.mxu0 0
      %2971 = vmatpush2.bf16.msra.mxu0 0
      %2972 = vmatprep.subr.bf16.mxu0 0
      %2973 = vmatpush2.bf16.msra.mxu0 0
      %2974 = vmatprep.subr.bf16.mxu0 0
      %2975 = vmatpush2.bf16.msra.mxu0 0
      %2976 = vmatprep.subr.bf16.mxu0 0
      %2977 = vmatpush2.bf16.msra.mxu0 0
      %2978 = vmatprep.subr.bf16.mxu0 0
      %2979 = vmatpush2.bf16.msra.mxu0 0
      %2980 = vmatprep.mubr.bf16.mxu0 0
      %2981 = vmatmul.mubr.bf16.gmra.mxu0 %v2940
      %v2982 = vpop.f32.mrf.mxu0
      %v2983 = vadd.f32 %v2927, %v2982
      %v2984 = vpop.f32.mrf.mxu0
      %v2985 = vadd.f32 %v2927, %v2984
      %v2986 = vpop.f32.mrf.mxu0
      %v2987 = vadd.f32 %v2932, %v2986
      %v2988 = vpop.f32.mrf.mxu0
      %v2989 = vadd.f32 %v2932, %v2988
      %2990 = vdwg.mxu0
      %v2991 = vmax.f32 %v2983, 0.0
      %v2992 = vmax.f32 %v2985, 0.0
      %v2993 = vmax.f32 %v2987, 0.0
      %v2994 = vmax.f32 %v2989, 0.0
      %2995 = vrot.lane.b32.xlu0 %v2991, 17
      %v2996 = vpop.permute.xlu0 %2995
      %2997 = vrot.lane.b32.xlu0 %v2993, 17
      %v2998 = vpop.permute.xlu0 %2997
      %2999 = vrot.lane.b32.xlu0 %v2992, 17
      %v3000 = vpop.permute.xlu0 %2999
      %3001 = vrot.lane.b32.xlu0 %v2994, 17
      %v3002 = vpop.permute.xlu0 %3001
      %v3003 = vsel %vm490, %v2996, %v3000
      %v3004 = vsel %vm490, %v2998, %v3002
      %v3005 = vsel %vm490, %v3000, %v2996
      %v3006 = vsel %vm490, %v3002, %v2998
      %v3007 = vsel %vm515, %v3005, 0.0
      %v3008 = vsel %vm516, %v3003, 0.0
      %v3009 = vsel %vm515, %v3006, 0.0
      %v3010 = vsel %vm516, %v3004, 0.0
      %v3011 = vpack.c.bf16 %v3009, %v3007
      %v3012 = vpack.c.bf16 %v3010, %v3008
      %v3015 = vunpack.c.l.b16 %v3011
      %v3016 = vunpack.c.l.b16 %v3012
      %v3017 = vunpack.c.h.b16 %v3011
      %v3018 = vunpack.c.h.b16 %v3012
      %v3019 = vpack.c.b16 %v3016, %v3015
      %v3020 = vpack.c.b16 %v3018, %v3017
      %3023 = vst [vmem:[#allocation2] sm:$0xff] %v3019
      %3024 = vst [vmem:[#allocation2 + $0x8] sm:$0xff] %v3020
      %3025 = vrot.lane.b32.xlu0 %v2991, 16
      %v3026 = vpop.permute.xlu0 %3025
      %3027 = vrot.lane.b32.xlu0 %v2993, 16
      %v3028 = vpop.permute.xlu0 %3027
      %3029 = vrot.lane.b32.xlu0 %v2992, 16
      %v3030 = vpop.permute.xlu0 %3029
      %3031 = vrot.lane.b32.xlu0 %v2994, 16
      %v3032 = vpop.permute.xlu0 %3031
      %v3033 = vsel %vm543, %v3026, %v3030
      %v3034 = vsel %vm543, %v3028, %v3032
      %v3035 = vsel %vm543, %v3030, %v3026
      %v3036 = vsel %vm543, %v3032, %v3028
      %v3037 = vsel %vm566, %v3035, 0.0
      %v3038 = vsel %vm567, %v3033, 0.0
      %v3039 = vsel %vm566, %v3036, 0.0
      %v3040 = vsel %vm567, %v3034, 0.0
      %v3041 = vpack.c.bf16 %v3039, %v3037
      %v3042 = vpack.c.bf16 %v3040, %v3038
      %v3045 = vunpack.c.l.b16 %v3041
      %v3046 = vunpack.c.l.b16 %v3042
      %v3047 = vunpack.c.h.b16 %v3041
      %v3048 = vunpack.c.h.b16 %v3042
      %v3049 = vpack.c.b16 %v3046, %v3045
      %v3050 = vpack.c.b16 %v3048, %v3047
      %3053 = vst [vmem:[#allocation2 + $0x10] sm:$0xff] %v3049
      %3054 = vst [vmem:[#allocation2 + $0x18] sm:$0xff] %v3050
      %3055 = vrot.lane.b32.xlu0 %v2991, 15
      %v3056 = vpop.permute.xlu0 %3055
      %3057 = vrot.lane.b32.xlu0 %v2993, 15
      %v3058 = vpop.permute.xlu0 %3057
      %3059 = vrot.lane.b32.xlu0 %v2992, 15
      %v3060 = vpop.permute.xlu0 %3059
      %3061 = vrot.lane.b32.xlu0 %v2994, 15
      %v3062 = vpop.permute.xlu0 %3061
      %v3063 = vsel %vm594, %v3056, %v3060
      %v3064 = vsel %vm594, %v3058, %v3062
      %v3065 = vsel %vm594, %v3060, %v3056
      %v3066 = vsel %vm594, %v3062, %v3058
      %v3067 = vsel %vm619, %v3065, 0.0
      %v3068 = vsel %vm620, %v3063, 0.0
      %v3069 = vsel %vm619, %v3066, 0.0
      %v3070 = vsel %vm620, %v3064, 0.0
      %v3071 = vpack.c.bf16 %v3069, %v3067
      %v3072 = vpack.c.bf16 %v3070, %v3068
      %v3075 = vunpack.c.l.b16 %v3071
      %v3076 = vunpack.c.l.b16 %v3072
      %v3077 = vunpack.c.h.b16 %v3071
      %v3078 = vunpack.c.h.b16 %v3072
      %v3079 = vpack.c.b16 %v3076, %v3075
      %v3080 = vpack.c.b16 %v3078, %v3077
      %3083 = vst [vmem:[#allocation2 + $0x20] sm:$0xff] %v3079
      %3084 = vst [vmem:[#allocation2 + $0x28] sm:$0xff] %v3080
      %3085 = vrot.lane.b32.xlu0 %v2991, 1
      %v3086 = vpop.permute.xlu0 %3085
      %3087 = vrot.lane.b32.xlu0 %v2993, 1
      %v3088 = vpop.permute.xlu0 %3087
      %3089 = vrot.lane.b32.xlu0 %v2992, 1
      %v3090 = vpop.permute.xlu0 %3089
      %3091 = vrot.lane.b32.xlu0 %v2994, 1
      %v3092 = vpop.permute.xlu0 %3091
      %v3093 = vsel %vm647, %v3086, %v3090
      %v3094 = vsel %vm647, %v3088, %v3092
      %v3095 = vsel %vm647, %v3090, %v3086
      %v3096 = vsel %vm647, %v3092, %v3088
      %v3097 = vsel %vm664, %v3095, 0.0
      %v3098 = vsel %vm665, %v3093, 0.0
      %v3099 = vsel %vm664, %v3096, 0.0
      %v3100 = vsel %vm665, %v3094, 0.0
      %v3101 = vpack.c.bf16 %v3099, %v3097
      %v3102 = vpack.c.bf16 %v3100, %v3098
      %v3105 = vunpack.c.l.b16 %v3101
      %v3106 = vunpack.c.l.b16 %v3102
      %v3107 = vunpack.c.h.b16 %v3101
      %v3108 = vunpack.c.h.b16 %v3102
      %v3109 = vpack.c.b16 %v3106, %v3105
      %v3110 = vpack.c.b16 %v3108, %v3107
      %3113 = vst [vmem:[#allocation2 + $0x30] sm:$0xff] %v3109
      %3114 = vst [vmem:[#allocation2 + $0x38] sm:$0xff] %v3110
      %v3115 = vpack.c.bf16 %v2993, %v2991
      %v3116 = vpack.c.bf16 %v2994, %v2992
      %v3119 = vunpack.c.l.b16 %v3115
      %v3120 = vunpack.c.l.b16 %v3116
      %v3121 = vunpack.c.h.b16 %v3115
      %v3122 = vunpack.c.h.b16 %v3116
      %v3123 = vpack.c.b16 %v3120, %v3119
      %v3124 = vpack.c.b16 %v3122, %v3121
      %3127 = vst [vmem:[#allocation2 + $0x40] sm:$0xff] %v3123
      %3128 = vst [vmem:[#allocation2 + $0x48] sm:$0xff] %v3124
      %3129 = vrot.lane.b32.xlu0 %v2991, 127
      %v3130 = vpop.permute.xlu0 %3129
      %3131 = vrot.lane.b32.xlu0 %v2993, 127
      %v3132 = vpop.permute.xlu0 %3131
      %3133 = vrot.lane.b32.xlu0 %v2992, 127
      %v3134 = vpop.permute.xlu0 %3133
      %3135 = vrot.lane.b32.xlu0 %v2994, 127
      %v3136 = vpop.permute.xlu0 %3135
      %v3137 = vsel %vm706, %v3130, %v3134
      %v3138 = vsel %vm706, %v3132, %v3136
      %v3139 = vsel %vm706, %v3134, %v3130
      %v3140 = vsel %vm706, %v3136, %v3132
      %v3141 = vsel %vm723, %v3137, 0.0
      %v3142 = vsel %vm724, %v3139, 0.0
      %v3143 = vsel %vm723, %v3138, 0.0
      %v3144 = vsel %vm724, %v3140, 0.0
      %v3145 = vpack.c.bf16 %v3143, %v3141
      %v3146 = vpack.c.bf16 %v3144, %v3142
      %v3149 = vunpack.c.l.b16 %v3145
      %v3150 = vunpack.c.l.b16 %v3146
      %v3151 = vunpack.c.h.b16 %v3145
      %v3152 = vunpack.c.h.b16 %v3146
      %v3153 = vpack.c.b16 %v3150, %v3149
      %v3154 = vpack.c.b16 %v3152, %v3151
      %3157 = vst [vmem:[#allocation2 + $0x50] sm:$0xff] %v3153
      %3158 = vst [vmem:[#allocation2 + $0x58] sm:$0xff] %v3154
      %3159 = vrot.lane.b32.xlu0 %v2991, 113
      %v3160 = vpop.permute.xlu0 %3159
      %3161 = vrot.lane.b32.xlu0 %v2993, 113
      %v3162 = vpop.permute.xlu0 %3161
      %3163 = vrot.lane.b32.xlu0 %v2992, 113
      %v3164 = vpop.permute.xlu0 %3163
      %3165 = vrot.lane.b32.xlu0 %v2994, 113
      %v3166 = vpop.permute.xlu0 %3165
      %v3167 = vsel %vm751, %v3160, %v3164
      %v3168 = vsel %vm751, %v3162, %v3166
      %v3169 = vsel %vm751, %v3164, %v3160
      %v3170 = vsel %vm751, %v3166, %v3162
      %v3171 = vsel %vm768, %v3167, 0.0
      %v3172 = vsel %vm769, %v3169, 0.0
      %v3173 = vsel %vm768, %v3168, 0.0
      %v3174 = vsel %vm769, %v3170, 0.0
      %v3175 = vpack.c.bf16 %v3173, %v3171
      %v3176 = vpack.c.bf16 %v3174, %v3172
      %v3179 = vunpack.c.l.b16 %v3175
      %v3180 = vunpack.c.l.b16 %v3176
      %v3181 = vunpack.c.h.b16 %v3175
      %v3182 = vunpack.c.h.b16 %v3176
      %v3183 = vpack.c.b16 %v3180, %v3179
      %v3184 = vpack.c.b16 %v3182, %v3181
      %3187 = vst [vmem:[#allocation2 + $0x60] sm:$0xff] %v3183
      %3188 = vst [vmem:[#allocation2 + $0x68] sm:$0xff] %v3184
      %3189 = vrot.lane.b32.xlu0 %v2991, 112
      %v3190 = vpop.permute.xlu0 %3189
      %3191 = vrot.lane.b32.xlu0 %v2993, 112
      %v3192 = vpop.permute.xlu0 %3191
      %3193 = vrot.lane.b32.xlu0 %v2992, 112
      %v3194 = vpop.permute.xlu0 %3193
      %3195 = vrot.lane.b32.xlu0 %v2994, 112
      %v3196 = vpop.permute.xlu0 %3195
      %v3197 = vsel %vm796, %v3190, %v3194
      %v3198 = vsel %vm796, %v3192, %v3196
      %v3199 = vsel %vm796, %v3194, %v3190
      %v3200 = vsel %vm796, %v3196, %v3192
      %v3201 = vsel %vm813, %v3197, 0.0
      %v3202 = vsel %vm814, %v3199, 0.0
      %v3203 = vsel %vm813, %v3198, 0.0
      %v3204 = vsel %vm814, %v3200, 0.0
      %v3205 = vpack.c.bf16 %v3203, %v3201
      %v3206 = vpack.c.bf16 %v3204, %v3202
      %v3209 = vunpack.c.l.b16 %v3205
      %v3210 = vunpack.c.l.b16 %v3206
      %v3211 = vunpack.c.h.b16 %v3205
      %v3212 = vunpack.c.h.b16 %v3206
      %v3213 = vpack.c.b16 %v3210, %v3209
      %v3214 = vpack.c.b16 %v3212, %v3211
      %3217 = vst [vmem:[#allocation2 + $0x70] sm:$0xff] %v3213
      %3218 = vst [vmem:[#allocation2 + $0x78] sm:$0xff] %v3214
      %3219 = vrot.lane.b32.xlu0 %v2991, 111
      %v3220 = vpop.permute.xlu0 %3219
      %3221 = vrot.lane.b32.xlu0 %v2993, 111
      %v3222 = vpop.permute.xlu0 %3221
      %3223 = vrot.lane.b32.xlu0 %v2992, 111
      %v3224 = vpop.permute.xlu0 %3223
      %3225 = vrot.lane.b32.xlu0 %v2994, 111
      %v3226 = vpop.permute.xlu0 %3225
      %v3227 = vsel %vm841, %v3220, %v3224
      %v3228 = vsel %vm841, %v3222, %v3226
      %v3229 = vsel %vm841, %v3224, %v3220
      %v3230 = vsel %vm841, %v3226, %v3222
      %v3231 = vsel %vm858, %v3227, 0.0
      %v3232 = vsel %vm859, %v3229, 0.0
      %v3233 = vsel %vm858, %v3228, 0.0
      %v3234 = vsel %vm859, %v3230, 0.0
      %v3235 = vpack.c.bf16 %v3233, %v3231
      %v3236 = vpack.c.bf16 %v3234, %v3232
      %v3239 = vunpack.c.l.b16 %v3235
      %v3240 = vunpack.c.l.b16 %v3236
      %v3241 = vunpack.c.h.b16 %v3235
      %v3242 = vunpack.c.h.b16 %v3236
      %v3243 = vpack.c.b16 %v3240, %v3239
      %v3244 = vpack.c.b16 %v3242, %v3241
      %3247 = vst [vmem:[#allocation2 + $0x80] sm:$0xff] %v3243
      %3248 = vst [vmem:[#allocation2 + $0x88] sm:$0xff] %v3244
      %s3249 = scalar_lea.vmem %s5, 16
      %v3250 = vld [vmem:[%s3249] sm:$0xf]
      %v3251 = vld [vmem:[#allocation2] sm:$0xff]
      %v3252 = vld [vmem:[#allocation2 + $0x8] sm:$0xff]
      %v3253 = vld [vmem:[#allocation2 + $0x10] sm:$0xff]
      %v3254 = vld [vmem:[#allocation2 + $0x18] sm:$0xff]
      %v3255 = vld [vmem:[#allocation2 + $0x20] sm:$0xff]
      %v3256 = vld [vmem:[#allocation2 + $0x28] sm:$0xff]
      %v3257 = vld [vmem:[#allocation2 + $0x30] sm:$0xff]
      %v3258 = vld [vmem:[#allocation2 + $0x38] sm:$0xff]
      %v3259 = vld [vmem:[#allocation2 + $0x40] sm:$0xff]
      %v3260 = vld [vmem:[#allocation2 + $0x48] sm:$0xff]
      %v3261 = vld [vmem:[#allocation2 + $0x50] sm:$0xff]
      %v3262 = vld [vmem:[#allocation2 + $0x58] sm:$0xff]
      %v3263 = vld [vmem:[#allocation2 + $0x60] sm:$0xff]
      %v3264 = vld [vmem:[#allocation2 + $0x68] sm:$0xff]
      %v3265 = vld [vmem:[#allocation2 + $0x70] sm:$0xff]
      %v3266 = vld [vmem:[#allocation2 + $0x78] sm:$0xff]
      %v3267 = vld [vmem:[#allocation2 + $0x80] sm:$0xff]
      %v3268 = vld [vmem:[#allocation2 + $0x88] sm:$0xff]
      %s3269 = scalar_lea.vmem %s6, 16
      %v3270 = vld [vmem:[%s3269] sm:$0xf]
      %3272 = vset.pattern.permute.xlu0 0
      %3273 = vperm.xlu0 %3272, %v3270
      %v3274 = vpop.permute.xlu0 %3273
      %v3278 = vunpack.c.l.s4 1983009808
      %v3279 = vunpack.c.0.s8 %v3278
      %v3280 = vlaneseq
      %v3281 = vshrl.u32 %v3280, 7
      %v3282 = vsub.s32 %v3279, %v3281
      %v3283 = vrot.slane %v3250, %v3282
      %v3284 = vcombine.high %v3283, %v3283
      %v3304 = vunpack.c.l.b16 %v3251
      %v3305 = vunpack.c.h.b16 %v3251
      %v3306 = vunpack.c.l.b16 %v3252
      %v3307 = vunpack.c.h.b16 %v3252
      %v3308 = vunpack.c.l.b16 %v3253
      %v3309 = vunpack.c.h.b16 %v3253
      %v3310 = vunpack.c.l.b16 %v3254
      %v3311 = vunpack.c.h.b16 %v3254
      %v3312 = vunpack.c.l.b16 %v3255
      %v3313 = vunpack.c.h.b16 %v3255
      %v3314 = vunpack.c.l.b16 %v3256
      %v3315 = vunpack.c.h.b16 %v3256
      %v3316 = vunpack.c.l.b16 %v3257
      %v3317 = vunpack.c.h.b16 %v3257
      %v3318 = vunpack.c.l.b16 %v3258
      %v3319 = vunpack.c.h.b16 %v3258
      %v3320 = vunpack.c.l.b16 %v3259
      %v3321 = vunpack.c.h.b16 %v3259
      %v3322 = vunpack.c.l.b16 %v3260
      %v3323 = vunpack.c.h.b16 %v3260
      %v3324 = vunpack.c.l.b16 %v3261
      %v3325 = vunpack.c.h.b16 %v3261
      %v3326 = vunpack.c.l.b16 %v3262
      %v3327 = vunpack.c.h.b16 %v3262
      %v3328 = vunpack.c.l.b16 %v3263
      %v3329 = vunpack.c.h.b16 %v3263
      %v3330 = vunpack.c.l.b16 %v3264
      %v3331 = vunpack.c.h.b16 %v3264
      %v3332 = vunpack.c.l.b16 %v3265
      %v3333 = vunpack.c.h.b16 %v3265
      %v3334 = vunpack.c.l.b16 %v3266
      %v3335 = vunpack.c.h.b16 %v3266
      %v3336 = vunpack.c.l.b16 %v3267
      %v3337 = vunpack.c.h.b16 %v3267
      %v3338 = vunpack.c.l.b16 %v3268
      %v3339 = vunpack.c.h.b16 %v3268
      %v3340 = vpack.c.b16 %v3306, %v3304
      %v3341 = vpack.c.b16 %v3307, %v3305
      %v3342 = vpack.c.b16 %v3310, %v3308
      %v3343 = vpack.c.b16 %v3311, %v3309
      %v3344 = vpack.c.b16 %v3314, %v3312
      %v3345 = vpack.c.b16 %v3315, %v3313
      %v3346 = vpack.c.b16 %v3318, %v3316
      %v3347 = vpack.c.b16 %v3319, %v3317
      %v3348 = vpack.c.b16 %v3322, %v3320
      %v3349 = vpack.c.b16 %v3323, %v3321
      %v3350 = vpack.c.b16 %v3326, %v3324
      %v3351 = vpack.c.b16 %v3327, %v3325
      %v3352 = vpack.c.b16 %v3330, %v3328
      %v3353 = vpack.c.b16 %v3331, %v3329
      %v3354 = vpack.c.b16 %v3334, %v3332
      %v3355 = vpack.c.b16 %v3335, %v3333
      %v3356 = vpack.c.b16 %v3338, %v3336
      %v3357 = vpack.c.b16 %v3339, %v3337
      %v3377 = vsel %vm1003, %v3284, 0
      %3379 = vmatprep.subr.bf16.mxu0 %v3355
      %3380 = vmatpush1.bf16.msra.mxu0 %v3354
      %3381 = vmatprep.subr.bf16.mxu0 %v3353
      %3382 = vmatpush1.bf16.msra.mxu0 %v3352
      %3383 = vmatprep.subr.bf16.mxu0 %v3351
      %3384 = vmatpush1.bf16.msra.mxu0 %v3350
      %3385 = vmatprep.subr.bf16.mxu0 %v3349
      %3386 = vmatpush1.bf16.msra.mxu0 %v3348
      %3387 = vmatprep.subr.bf16.mxu0 %v3347
      %3388 = vmatpush1.bf16.msra.mxu0 %v3346
      %3389 = vmatprep.subr.bf16.mxu0 %v3345
      %3390 = vmatpush1.bf16.msra.mxu0 %v3344
      %3391 = vmatprep.subr.bf16.mxu0 %v3343
      %3392 = vmatpush1.bf16.msra.mxu0 %v3342
      %3393 = vmatprep.subr.bf16.mxu0 %v3341
      %3394 = vmatpush1.bf16.msra.mxu0 %v3340
      %3395 = vmatprep.subr.bf16.mxu0 0
      %3396 = vmatpush2.bf16.msra.mxu0 0
      %3397 = vmatprep.subr.bf16.mxu0 0
      %3398 = vmatpush2.bf16.msra.mxu0 0
      %3399 = vmatprep.subr.bf16.mxu0 0
      %3400 = vmatpush2.bf16.msra.mxu0 0
      %3401 = vmatprep.subr.bf16.mxu0 0
      %3402 = vmatpush2.bf16.msra.mxu0 0
      %3403 = vmatprep.subr.bf16.mxu0 0
      %3404 = vmatpush2.bf16.msra.mxu0 0
      %3405 = vmatprep.subr.bf16.mxu0 0
      %3406 = vmatpush2.bf16.msra.mxu0 0
      %3407 = vmatprep.subr.bf16.mxu0 0
      %3408 = vmatpush2.bf16.msra.mxu0 0
      %3409 = vmatprep.subr.bf16.mxu0 %v3357
      %3410 = vmatpush2.bf16.msra.mxu0 %v3356
      %3411 = vmatprep.mubr.bf16.mxu0 %v3377
      %3412 = vmatmul.mubr.bf16.gmra.mxu0 %v3283
      %v3413 = vpop.f32.mrf.mxu0
      %v3414 = vadd.f32 %v3274, %v3413
      %v3415 = vpop.f32.mrf.mxu0
      %v3416 = vadd.f32 %v3274, %v3415
      %v3417 = vpop.f32.mrf.mxu0
      %v3418 = vpop.f32.mrf.mxu0
      %3419 = vdwg.mxu0
      %v3422 = vrot.slane %v3414, 4
      %v3423 = vrot.slane %v3416, 4
      %3426 = vst [vmem:[%s278 + $0x20] sm:$0xf0] %v3422
      %3427 = vst [vmem:[%s278 + $0x28] sm:$0xf0] %v3423
      %v3428 = vld [vmem:[%s278] sm:$0xff]
      %v3429 = vld [vmem:[%s278 + $0x8] sm:$0xff]
      %v3430 = vld [vmem:[%s278 + $0x10] sm:$0xff]
      %v3431 = vld [vmem:[%s278 + $0x18] sm:$0xff]
      %v3432 = vld [vmem:[%s278 + $0x20] sm:$0xff]
      %v3433 = vld [vmem:[%s278 + $0x28] sm:$0xff]
      %v3434 = vld [vmem:[%s278 + $0x30] sm:$0xf]
      %v3435 = vld [vmem:[%s278 + $0x38] sm:$0xf]
      %s3436 = scalar_lea.vmem %s1, 160
      %v3437 = vld [vmem:[%s3436] sm:$0xff]
      %v3438 = vld [vmem:[%s3436 + $0x8] sm:$0xff]
      %v3439 = vld [vmem:[%s3436 + $0x10] sm:$0xff]
      %v3440 = vld [vmem:[%s3436 + $0x18] sm:$0xf]
      %3442 = vset.pattern.permute.xlu0 0
      %3443 = vperm.xlu0 %3442, %v3437
      %v3444 = vpop.permute.xlu0 %3443
      %3447 = vset.pattern.permute.xlu0 0
      %3448 = vperm.xlu0 %3447, %v3438
      %v3449 = vpop.permute.xlu0 %3448
      %3452 = vset.pattern.permute.xlu0 0
      %3453 = vperm.xlu0 %3452, %v3439
      %v3454 = vpop.permute.xlu0 %3453
      %3457 = vset.pattern.permute.xlu0 0
      %3458 = vperm.xlu0 %3457, %v3440
      %v3459 = vpop.permute.xlu0 %3458
      %v3461 = vmul.f32 %v3428, %v3444
      %v3462 = vmul.f32 %v3429, %v3444
      %v3463 = vmul.f32 %v3430, %v3449
      %v3464 = vmul.f32 %v3431, %v3449
      %v3465 = vmul.f32 %v3432, %v3454
      %v3466 = vmul.f32 %v3433, %v3454
      %v3467 = vmul.f32 %v3434, %v3459
      %v3468 = vmul.f32 %v3435, %v3459
      %s3469 = scalar_lea.vmem %s2, 160
      %v3470 = vld [vmem:[%s3469] sm:$0xff]
      %v3471 = vld [vmem:[%s3469 + $0x8] sm:$0xff]
      %v3472 = vld [vmem:[%s3469 + $0x10] sm:$0xff]
      %v3473 = vld [vmem:[%s3469 + $0x18] sm:$0xf]
      %3475 = vset.pattern.permute.xlu0 0
      %3476 = vperm.xlu0 %3475, %v3470
      %v3477 = vpop.permute.xlu0 %3476
      %3480 = vset.pattern.permute.xlu0 0
      %3481 = vperm.xlu0 %3480, %v3471
      %v3482 = vpop.permute.xlu0 %3481
      %3485 = vset.pattern.permute.xlu0 0
      %3486 = vperm.xlu0 %3485, %v3472
      %v3487 = vpop.permute.xlu0 %3486
      %3490 = vset.pattern.permute.xlu0 0
      %3491 = vperm.xlu0 %3490, %v3473
      %v3492 = vpop.permute.xlu0 %3491
      %v3494 = vadd.f32 %v3461, %v3477
      %v3495 = vadd.f32 %v3462, %v3477
      %v3496 = vadd.f32 %v3463, %v3482
      %v3497 = vadd.f32 %v3464, %v3482
      %v3498 = vadd.f32 %v3465, %v3487
      %v3499 = vadd.f32 %v3466, %v3487
      %v3500 = vadd.f32 %v3467, %v3492
      %v3501 = vadd.f32 %v3468, %v3492
      %v3502 = vmax.f32 %v3494, 0.0
      %v3503 = vmax.f32 %v3495, 0.0
      %v3504 = vmax.f32 %v3496, 0.0
      %v3505 = vmax.f32 %v3497, 0.0
      %v3506 = vmax.f32 %v3498, 0.0
      %v3507 = vmax.f32 %v3499, 0.0
      %v3508 = vmax.f32 %v3500, 0.0
      %v3509 = vmax.f32 %v3501, 0.0
      %s3510 = scalar_lea.vmem %s3, 40
      %v3511 = vld [vmem:[%s3510] sm:$0xf]
      %v3512 = vld [vmem:[%s3510 + $0x4] sm:$0xf]
      %v3513 = vpack.c.bf16 %v3504, %v3502
      %v3514 = vpack.c.bf16 %v3505, %v3503
      %v3515 = vpack.c.bf16 %v3508, %v3506
      %v3516 = vpack.c.bf16 %v3509, %v3507
      %s3517 = scalar_lea.vmem %s4, 80
      %v3518 = vld [vmem:[%s3517] sm:$0xff]
      %v3519 = vld [vmem:[%s3517 + $0x8] sm:$0xff]
      %3521 = vset.pattern.permute.xlu0 0
      %3522 = vperm.xlu0 %3521, %v3518
      %v3523 = vpop.permute.xlu0 %3522
      %3526 = vset.pattern.permute.xlu0 0
      %3527 = vperm.xlu0 %3526, %v3519
      %v3528 = vpop.permute.xlu0 %3527
      %v3532 = vunpack.c.l.b16 %v3511
      %v3533 = vunpack.c.l.b16 %v3512
      %v3534 = vpack.c.b16 %v3533, %v3532
      %v3536 = vsel %vm424, %v3534, 0
      %v3539 = vsel %vm428, %v3515, 0
      %v3542 = vsel %vm428, %v3516, 0
      %3544 = vmatprep.subr.bf16.mxu0 0
      %3545 = vmatpush1.bf16.msra.mxu0 0
      %3546 = vmatprep.subr.bf16.mxu0 0
      %3547 = vmatpush1.bf16.msra.mxu0 0
      %3548 = vmatprep.subr.bf16.mxu0 0
      %3549 = vmatpush1.bf16.msra.mxu0 0
      %3550 = vmatprep.subr.bf16.mxu0 0
      %3551 = vmatpush1.bf16.msra.mxu0 0
      %3552 = vmatprep.subr.bf16.mxu0 0
      %3553 = vmatpush1.bf16.msra.mxu0 0
      %3554 = vmatprep.subr.bf16.mxu0 0
      %3555 = vmatpush1.bf16.msra.mxu0 0
      %3556 = vmatprep.subr.bf16.mxu0 %v3542
      %3557 = vmatpush1.bf16.msra.mxu0 %v3539
      %3558 = vmatprep.subr.bf16.mxu0 %v3514
      %3559 = vmatpush1.bf16.msra.mxu0 %v3513
      %3560 = vmatprep.subr.bf16.mxu0 0
      %3561 = vmatpush2.bf16.msra.mxu0 0
      %3562 = vmatprep.subr.bf16.mxu0 0
      %3563 = vmatpush2.bf16.msra.mxu0 0
      %3564 = vmatprep.subr.bf16.mxu0 0
      %3565 = vmatpush2.bf16.msra.mxu0 0
      %3566 = vmatprep.subr.bf16.mxu0 0
      %3567 = vmatpush2.bf16.msra.mxu0 0
      %3568 = vmatprep.subr.bf16.mxu0 0
      %3569 = vmatpush2.bf16.msra.mxu0 0
      %3570 = vmatprep.subr.bf16.mxu0 0
      %3571 = vmatpush2.bf16.msra.mxu0 0
      %3572 = vmatprep.subr.bf16.mxu0 0
      %3573 = vmatpush2.bf16.msra.mxu0 0
      %3574 = vmatprep.subr.bf16.mxu0 0
      %3575 = vmatpush2.bf16.msra.mxu0 0
      %3576 = vmatprep.mubr.bf16.mxu0 0
      %3577 = vmatmul.mubr.bf16.gmra.mxu0 %v3536
      %v3578 = vpop.f32.mrf.mxu0
      %v3579 = vadd.f32 %v3523, %v3578
      %v3580 = vpop.f32.mrf.mxu0
      %v3581 = vadd.f32 %v3523, %v3580
      %v3582 = vpop.f32.mrf.mxu0
      %v3583 = vadd.f32 %v3528, %v3582
      %v3584 = vpop.f32.mrf.mxu0
      %v3585 = vadd.f32 %v3528, %v3584
      %3586 = vdwg.mxu0
      %v3587 = vmax.f32 %v3579, 0.0
      %v3588 = vmax.f32 %v3581, 0.0
      %v3589 = vmax.f32 %v3583, 0.0
      %v3590 = vmax.f32 %v3585, 0.0
      %3591 = vrot.lane.b32.xlu0 %v3587, 17
      %v3592 = vpop.permute.xlu0 %3591
      %3593 = vrot.lane.b32.xlu0 %v3589, 17
      %v3594 = vpop.permute.xlu0 %3593
      %3595 = vrot.lane.b32.xlu0 %v3588, 17
      %v3596 = vpop.permute.xlu0 %3595
      %3597 = vrot.lane.b32.xlu0 %v3590, 17
      %v3598 = vpop.permute.xlu0 %3597
      %v3599 = vsel %vm490, %v3592, %v3596
      %v3600 = vsel %vm490, %v3594, %v3598
      %v3601 = vsel %vm490, %v3596, %v3592
      %v3602 = vsel %vm490, %v3598, %v3594
      %v3603 = vsel %vm515, %v3601, 0.0
      %v3604 = vsel %vm516, %v3599, 0.0
      %v3605 = vsel %vm515, %v3602, 0.0
      %v3606 = vsel %vm516, %v3600, 0.0
      %v3607 = vpack.c.bf16 %v3605, %v3603
      %v3608 = vpack.c.bf16 %v3606, %v3604
      %v3611 = vunpack.c.l.b16 %v3607
      %v3612 = vunpack.c.l.b16 %v3608
      %v3613 = vunpack.c.h.b16 %v3607
      %v3614 = vunpack.c.h.b16 %v3608
      %v3615 = vpack.c.b16 %v3612, %v3611
      %v3616 = vpack.c.b16 %v3614, %v3613
      %3619 = vst [vmem:[#allocation2] sm:$0xff] %v3615
      %3620 = vst [vmem:[#allocation2 + $0x8] sm:$0xff] %v3616
      %3621 = vrot.lane.b32.xlu0 %v3587, 16
      %v3622 = vpop.permute.xlu0 %3621
      %3623 = vrot.lane.b32.xlu0 %v3589, 16
      %v3624 = vpop.permute.xlu0 %3623
      %3625 = vrot.lane.b32.xlu0 %v3588, 16
      %v3626 = vpop.permute.xlu0 %3625
      %3627 = vrot.lane.b32.xlu0 %v3590, 16
      %v3628 = vpop.permute.xlu0 %3627
      %v3629 = vsel %vm543, %v3622, %v3626
      %v3630 = vsel %vm543, %v3624, %v3628
      %v3631 = vsel %vm543, %v3626, %v3622
      %v3632 = vsel %vm543, %v3628, %v3624
      %v3633 = vsel %vm566, %v3631, 0.0
      %v3634 = vsel %vm567, %v3629, 0.0
      %v3635 = vsel %vm566, %v3632, 0.0
      %v3636 = vsel %vm567, %v3630, 0.0
      %v3637 = vpack.c.bf16 %v3635, %v3633
      %v3638 = vpack.c.bf16 %v3636, %v3634
      %v3641 = vunpack.c.l.b16 %v3637
      %v3642 = vunpack.c.l.b16 %v3638
      %v3643 = vunpack.c.h.b16 %v3637
      %v3644 = vunpack.c.h.b16 %v3638
      %v3645 = vpack.c.b16 %v3642, %v3641
      %v3646 = vpack.c.b16 %v3644, %v3643
      %3649 = vst [vmem:[#allocation2 + $0x10] sm:$0xff] %v3645
      %3650 = vst [vmem:[#allocation2 + $0x18] sm:$0xff] %v3646
      %3651 = vrot.lane.b32.xlu0 %v3587, 15
      %v3652 = vpop.permute.xlu0 %3651
      %3653 = vrot.lane.b32.xlu0 %v3589, 15
      %v3654 = vpop.permute.xlu0 %3653
      %3655 = vrot.lane.b32.xlu0 %v3588, 15
      %v3656 = vpop.permute.xlu0 %3655
      %3657 = vrot.lane.b32.xlu0 %v3590, 15
      %v3658 = vpop.permute.xlu0 %3657
      %v3659 = vsel %vm594, %v3652, %v3656
      %v3660 = vsel %vm594, %v3654, %v3658
      %v3661 = vsel %vm594, %v3656, %v3652
      %v3662 = vsel %vm594, %v3658, %v3654
      %v3663 = vsel %vm619, %v3661, 0.0
      %v3664 = vsel %vm620, %v3659, 0.0
      %v3665 = vsel %vm619, %v3662, 0.0
      %v3666 = vsel %vm620, %v3660, 0.0
      %v3667 = vpack.c.bf16 %v3665, %v3663
      %v3668 = vpack.c.bf16 %v3666, %v3664
      %v3671 = vunpack.c.l.b16 %v3667
      %v3672 = vunpack.c.l.b16 %v3668
      %v3673 = vunpack.c.h.b16 %v3667
      %v3674 = vunpack.c.h.b16 %v3668
      %v3675 = vpack.c.b16 %v3672, %v3671
      %v3676 = vpack.c.b16 %v3674, %v3673
      %3679 = vst [vmem:[#allocation2 + $0x20] sm:$0xff] %v3675
      %3680 = vst [vmem:[#allocation2 + $0x28] sm:$0xff] %v3676
      %3681 = vrot.lane.b32.xlu0 %v3587, 1
      %v3682 = vpop.permute.xlu0 %3681
      %3683 = vrot.lane.b32.xlu0 %v3589, 1
      %v3684 = vpop.permute.xlu0 %3683
      %3685 = vrot.lane.b32.xlu0 %v3588, 1
      %v3686 = vpop.permute.xlu0 %3685
      %3687 = vrot.lane.b32.xlu0 %v3590, 1
      %v3688 = vpop.permute.xlu0 %3687
      %v3689 = vsel %vm647, %v3682, %v3686
      %v3690 = vsel %vm647, %v3684, %v3688
      %v3691 = vsel %vm647, %v3686, %v3682
      %v3692 = vsel %vm647, %v3688, %v3684
      %v3693 = vsel %vm664, %v3691, 0.0
      %v3694 = vsel %vm665, %v3689, 0.0
      %v3695 = vsel %vm664, %v3692, 0.0
      %v3696 = vsel %vm665, %v3690, 0.0
      %v3697 = vpack.c.bf16 %v3695, %v3693
      %v3698 = vpack.c.bf16 %v3696, %v3694
      %v3701 = vunpack.c.l.b16 %v3697
      %v3702 = vunpack.c.l.b16 %v3698
      %v3703 = vunpack.c.h.b16 %v3697
      %v3704 = vunpack.c.h.b16 %v3698
      %v3705 = vpack.c.b16 %v3702, %v3701
      %v3706 = vpack.c.b16 %v3704, %v3703
      %3709 = vst [vmem:[#allocation2 + $0x30] sm:$0xff] %v3705
      %3710 = vst [vmem:[#allocation2 + $0x38] sm:$0xff] %v3706
      %v3711 = vpack.c.bf16 %v3589, %v3587
      %v3712 = vpack.c.bf16 %v3590, %v3588
      %v3715 = vunpack.c.l.b16 %v3711
      %v3716 = vunpack.c.l.b16 %v3712
      %v3717 = vunpack.c.h.b16 %v3711
      %v3718 = vunpack.c.h.b16 %v3712
      %v3719 = vpack.c.b16 %v3716, %v3715
      %v3720 = vpack.c.b16 %v3718, %v3717
      %3723 = vst [vmem:[#allocation2 + $0x40] sm:$0xff] %v3719
      %3724 = vst [vmem:[#allocation2 + $0x48] sm:$0xff] %v3720
      %3725 = vrot.lane.b32.xlu0 %v3587, 127
      %v3726 = vpop.permute.xlu0 %3725
      %3727 = vrot.lane.b32.xlu0 %v3589, 127
      %v3728 = vpop.permute.xlu0 %3727
      %3729 = vrot.lane.b32.xlu0 %v3588, 127
      %v3730 = vpop.permute.xlu0 %3729
      %3731 = vrot.lane.b32.xlu0 %v3590, 127
      %v3732 = vpop.permute.xlu0 %3731
      %v3733 = vsel %vm706, %v3726, %v3730
      %v3734 = vsel %vm706, %v3728, %v3732
      %v3735 = vsel %vm706, %v3730, %v3726
      %v3736 = vsel %vm706, %v3732, %v3728
      %v3737 = vsel %vm723, %v3733, 0.0
      %v3738 = vsel %vm724, %v3735, 0.0
      %v3739 = vsel %vm723, %v3734, 0.0
      %v3740 = vsel %vm724, %v3736, 0.0
      %v3741 = vpack.c.bf16 %v3739, %v3737
      %v3742 = vpack.c.bf16 %v3740, %v3738
      %v3745 = vunpack.c.l.b16 %v3741
      %v3746 = vunpack.c.l.b16 %v3742
      %v3747 = vunpack.c.h.b16 %v3741
      %v3748 = vunpack.c.h.b16 %v3742
      %v3749 = vpack.c.b16 %v3746, %v3745
      %v3750 = vpack.c.b16 %v3748, %v3747
      %3753 = vst [vmem:[#allocation2 + $0x50] sm:$0xff] %v3749
      %3754 = vst [vmem:[#allocation2 + $0x58] sm:$0xff] %v3750
      %3755 = vrot.lane.b32.xlu0 %v3587, 113
      %v3756 = vpop.permute.xlu0 %3755
      %3757 = vrot.lane.b32.xlu0 %v3589, 113
      %v3758 = vpop.permute.xlu0 %3757
      %3759 = vrot.lane.b32.xlu0 %v3588, 113
      %v3760 = vpop.permute.xlu0 %3759
      %3761 = vrot.lane.b32.xlu0 %v3590, 113
      %v3762 = vpop.permute.xlu0 %3761
      %v3763 = vsel %vm751, %v3756, %v3760
      %v3764 = vsel %vm751, %v3758, %v3762
      %v3765 = vsel %vm751, %v3760, %v3756
      %v3766 = vsel %vm751, %v3762, %v3758
      %v3767 = vsel %vm768, %v3763, 0.0
      %v3768 = vsel %vm769, %v3765, 0.0
      %v3769 = vsel %vm768, %v3764, 0.0
      %v3770 = vsel %vm769, %v3766, 0.0
      %v3771 = vpack.c.bf16 %v3769, %v3767
      %v3772 = vpack.c.bf16 %v3770, %v3768
      %v3775 = vunpack.c.l.b16 %v3771
      %v3776 = vunpack.c.l.b16 %v3772
      %v3777 = vunpack.c.h.b16 %v3771
      %v3778 = vunpack.c.h.b16 %v3772
      %v3779 = vpack.c.b16 %v3776, %v3775
      %v3780 = vpack.c.b16 %v3778, %v3777
      %3783 = vst [vmem:[#allocation2 + $0x60] sm:$0xff] %v3779
      %3784 = vst [vmem:[#allocation2 + $0x68] sm:$0xff] %v3780
      %3785 = vrot.lane.b32.xlu0 %v3587, 112
      %v3786 = vpop.permute.xlu0 %3785
      %3787 = vrot.lane.b32.xlu0 %v3589, 112
      %v3788 = vpop.permute.xlu0 %3787
      %3789 = vrot.lane.b32.xlu0 %v3588, 112
      %v3790 = vpop.permute.xlu0 %3789
      %3791 = vrot.lane.b32.xlu0 %v3590, 112
      %v3792 = vpop.permute.xlu0 %3791
      %v3793 = vsel %vm796, %v3786, %v3790
      %v3794 = vsel %vm796, %v3788, %v3792
      %v3795 = vsel %vm796, %v3790, %v3786
      %v3796 = vsel %vm796, %v3792, %v3788
      %v3797 = vsel %vm813, %v3793, 0.0
      %v3798 = vsel %vm814, %v3795, 0.0
      %v3799 = vsel %vm813, %v3794, 0.0
      %v3800 = vsel %vm814, %v3796, 0.0
      %v3801 = vpack.c.bf16 %v3799, %v3797
      %v3802 = vpack.c.bf16 %v3800, %v3798
      %v3805 = vunpack.c.l.b16 %v3801
      %v3806 = vunpack.c.l.b16 %v3802
      %v3807 = vunpack.c.h.b16 %v3801
      %v3808 = vunpack.c.h.b16 %v3802
      %v3809 = vpack.c.b16 %v3806, %v3805
      %v3810 = vpack.c.b16 %v3808, %v3807
      %3813 = vst [vmem:[#allocation2 + $0x70] sm:$0xff] %v3809
      %3814 = vst [vmem:[#allocation2 + $0x78] sm:$0xff] %v3810
      %3815 = vrot.lane.b32.xlu0 %v3587, 111
      %v3816 = vpop.permute.xlu0 %3815
      %3817 = vrot.lane.b32.xlu0 %v3589, 111
      %v3818 = vpop.permute.xlu0 %3817
      %3819 = vrot.lane.b32.xlu0 %v3588, 111
      %v3820 = vpop.permute.xlu0 %3819
      %3821 = vrot.lane.b32.xlu0 %v3590, 111
      %v3822 = vpop.permute.xlu0 %3821
      %v3823 = vsel %vm841, %v3816, %v3820
      %v3824 = vsel %vm841, %v3818, %v3822
      %v3825 = vsel %vm841, %v3820, %v3816
      %v3826 = vsel %vm841, %v3822, %v3818
      %v3827 = vsel %vm858, %v3823, 0.0
      %v3828 = vsel %vm859, %v3825, 0.0
      %v3829 = vsel %vm858, %v3824, 0.0
      %v3830 = vsel %vm859, %v3826, 0.0
      %v3831 = vpack.c.bf16 %v3829, %v3827
      %v3832 = vpack.c.bf16 %v3830, %v3828
      %v3835 = vunpack.c.l.b16 %v3831
      %v3836 = vunpack.c.l.b16 %v3832
      %v3837 = vunpack.c.h.b16 %v3831
      %v3838 = vunpack.c.h.b16 %v3832
      %v3839 = vpack.c.b16 %v3836, %v3835
      %v3840 = vpack.c.b16 %v3838, %v3837
      %3843 = vst [vmem:[#allocation2 + $0x80] sm:$0xff] %v3839
      %3844 = vst [vmem:[#allocation2 + $0x88] sm:$0xff] %v3840
      %s3845 = scalar_lea.vmem %s5, 20
      %v3846 = vld [vmem:[%s3845] sm:$0xf]
      %v3847 = vld [vmem:[#allocation2] sm:$0xff]
      %v3848 = vld [vmem:[#allocation2 + $0x8] sm:$0xff]
      %v3849 = vld [vmem:[#allocation2 + $0x10] sm:$0xff]
      %v3850 = vld [vmem:[#allocation2 + $0x18] sm:$0xff]
      %v3851 = vld [vmem:[#allocation2 + $0x20] sm:$0xff]
      %v3852 = vld [vmem:[#allocation2 + $0x28] sm:$0xff]
      %v3853 = vld [vmem:[#allocation2 + $0x30] sm:$0xff]
      %v3854 = vld [vmem:[#allocation2 + $0x38] sm:$0xff]
      %v3855 = vld [vmem:[#allocation2 + $0x40] sm:$0xff]
      %v3856 = vld [vmem:[#allocation2 + $0x48] sm:$0xff]
      %v3857 = vld [vmem:[#allocation2 + $0x50] sm:$0xff]
      %v3858 = vld [vmem:[#allocation2 + $0x58] sm:$0xff]
      %v3859 = vld [vmem:[#allocation2 + $0x60] sm:$0xff]
      %v3860 = vld [vmem:[#allocation2 + $0x68] sm:$0xff]
      %v3861 = vld [vmem:[#allocation2 + $0x70] sm:$0xff]
      %v3862 = vld [vmem:[#allocation2 + $0x78] sm:$0xff]
      %v3863 = vld [vmem:[#allocation2 + $0x80] sm:$0xff]
      %v3864 = vld [vmem:[#allocation2 + $0x88] sm:$0xff]
      %s3865 = scalar_lea.vmem %s6, 20
      %v3866 = vld [vmem:[%s3865] sm:$0xf]
      %3868 = vset.pattern.permute.xlu0 0
      %3869 = vperm.xlu0 %3868, %v3866
      %v3870 = vpop.permute.xlu0 %3869
      %v3874 = vunpack.c.l.s4 1983009808
      %v3875 = vunpack.c.0.s8 %v3874
      %v3876 = vlaneseq
      %v3877 = vshrl.u32 %v3876, 7
      %v3878 = vsub.s32 %v3875, %v3877
      %v3879 = vrot.slane %v3846, %v3878
      %v3880 = vcombine.high %v3879, %v3879
      %v3900 = vunpack.c.l.b16 %v3847
      %v3901 = vunpack.c.h.b16 %v3847
      %v3902 = vunpack.c.l.b16 %v3848
      %v3903 = vunpack.c.h.b16 %v3848
      %v3904 = vunpack.c.l.b16 %v3849
      %v3905 = vunpack.c.h.b16 %v3849
      %v3906 = vunpack.c.l.b16 %v3850
      %v3907 = vunpack.c.h.b16 %v3850
      %v3908 = vunpack.c.l.b16 %v3851
      %v3909 = vunpack.c.h.b16 %v3851
      %v3910 = vunpack.c.l.b16 %v3852
      %v3911 = vunpack.c.h.b16 %v3852
      %v3912 = vunpack.c.l.b16 %v3853
      %v3913 = vunpack.c.h.b16 %v3853
      %v3914 = vunpack.c.l.b16 %v3854
      %v3915 = vunpack.c.h.b16 %v3854
      %v3916 = vunpack.c.l.b16 %v3855
      %v3917 = vunpack.c.h.b16 %v3855
      %v3918 = vunpack.c.l.b16 %v3856
      %v3919 = vunpack.c.h.b16 %v3856
      %v3920 = vunpack.c.l.b16 %v3857
      %v3921 = vunpack.c.h.b16 %v3857
      %v3922 = vunpack.c.l.b16 %v3858
      %v3923 = vunpack.c.h.b16 %v3858
      %v3924 = vunpack.c.l.b16 %v3859
      %v3925 = vunpack.c.h.b16 %v3859
      %v3926 = vunpack.c.l.b16 %v3860
      %v3927 = vunpack.c.h.b16 %v3860
      %v3928 = vunpack.c.l.b16 %v3861
      %v3929 = vunpack.c.h.b16 %v3861
      %v3930 = vunpack.c.l.b16 %v3862
      %v3931 = vunpack.c.h.b16 %v3862
      %v3932 = vunpack.c.l.b16 %v3863
      %v3933 = vunpack.c.h.b16 %v3863
      %v3934 = vunpack.c.l.b16 %v3864
      %v3935 = vunpack.c.h.b16 %v3864
      %v3936 = vpack.c.b16 %v3902, %v3900
      %v3937 = vpack.c.b16 %v3903, %v3901
      %v3938 = vpack.c.b16 %v3906, %v3904
      %v3939 = vpack.c.b16 %v3907, %v3905
      %v3940 = vpack.c.b16 %v3910, %v3908
      %v3941 = vpack.c.b16 %v3911, %v3909
      %v3942 = vpack.c.b16 %v3914, %v3912
      %v3943 = vpack.c.b16 %v3915, %v3913
      %v3944 = vpack.c.b16 %v3918, %v3916
      %v3945 = vpack.c.b16 %v3919, %v3917
      %v3946 = vpack.c.b16 %v3922, %v3920
      %v3947 = vpack.c.b16 %v3923, %v3921
      %v3948 = vpack.c.b16 %v3926, %v3924
      %v3949 = vpack.c.b16 %v3927, %v3925
      %v3950 = vpack.c.b16 %v3930, %v3928
      %v3951 = vpack.c.b16 %v3931, %v3929
      %v3952 = vpack.c.b16 %v3934, %v3932
      %v3953 = vpack.c.b16 %v3935, %v3933
      %v3973 = vsel %vm1003, %v3880, 0
      %3975 = vmatprep.subr.bf16.mxu0 %v3951
      %3976 = vmatpush1.bf16.msra.mxu0 %v3950
      %3977 = vmatprep.subr.bf16.mxu0 %v3949
      %3978 = vmatpush1.bf16.msra.mxu0 %v3948
      %3979 = vmatprep.subr.bf16.mxu0 %v3947
      %3980 = vmatpush1.bf16.msra.mxu0 %v3946
      %3981 = vmatprep.subr.bf16.mxu0 %v3945
      %3982 = vmatpush1.bf16.msra.mxu0 %v3944
      %3983 = vmatprep.subr.bf16.mxu0 %v3943
      %3984 = vmatpush1.bf16.msra.mxu0 %v3942
      %3985 = vmatprep.subr.bf16.mxu0 %v3941
      %3986 = vmatpush1.bf16.msra.mxu0 %v3940
      %3987 = vmatprep.subr.bf16.mxu0 %v3939
      %3988 = vmatpush1.bf16.msra.mxu0 %v3938
      %3989 = vmatprep.subr.bf16.mxu0 %v3937
      %3990 = vmatpush1.bf16.msra.mxu0 %v3936
      %3991 = vmatprep.subr.bf16.mxu0 0
      %3992 = vmatpush2.bf16.msra.mxu0 0
      %3993 = vmatprep.subr.bf16.mxu0 0
      %3994 = vmatpush2.bf16.msra.mxu0 0
      %3995 = vmatprep.subr.bf16.mxu0 0
      %3996 = vmatpush2.bf16.msra.mxu0 0
      %3997 = vmatprep.subr.bf16.mxu0 0
      %3998 = vmatpush2.bf16.msra.mxu0 0
      %3999 = vmatprep.subr.bf16.mxu0 0
      %4000 = vmatpush2.bf16.msra.mxu0 0
      %4001 = vmatprep.subr.bf16.mxu0 0
      %4002 = vmatpush2.bf16.msra.mxu0 0
      %4003 = vmatprep.subr.bf16.mxu0 0
      %4004 = vmatpush2.bf16.msra.mxu0 0
      %4005 = vmatprep.subr.bf16.mxu0 %v3953
      %4006 = vmatpush2.bf16.msra.mxu0 %v3952
      %4007 = vmatprep.mubr.bf16.mxu0 %v3973
      %4008 = vmatmul.mubr.bf16.gmra.mxu0 %v3879
      %v4009 = vpop.f32.mrf.mxu0
      %v4010 = vadd.f32 %v3870, %v4009
      %v4011 = vpop.f32.mrf.mxu0
      %v4012 = vadd.f32 %v3870, %v4011
      %v4013 = vpop.f32.mrf.mxu0
      %v4014 = vpop.f32.mrf.mxu0
      %4015 = vdwg.mxu0
      %4016 = vst [vmem:[%s278 + $0x30] sm:$0xf] %v4010
      %4017 = vst [vmem:[%s278 + $0x38] sm:$0xf] %v4012
      %p4018 = scmp.lt.s32.totalorder %s18, 1
      %s4019 = scalar_select %p4018, %s18, 1
      %s4020 = smul.addr %s4019, 8
      %s4021 = smul.addr %s4020, 8
      %s4022 = scalar_lea.vmem %s7, %s4021
      // Predicated region
      $region49: #{dense_block_forward.1} parent=47 // pred_check
        %p4023 = pneg %p188
      $region50: #{dense_block_forward.1} parent=47 // pred_check_branch
        %4025 = sbr.rel (%p4023) target = $region52
      $region51: #{dense_block_forward.1} parent=47 // pred_region
        _
      $region52: #{dense_block_forward.1} parent=47 // pred_fallthru
        _
    $region48: #{dense_block_forward.1} parent=5 // pred_fallthru
      _
    %p4026 = scmp.le.s32.totalorder 2, %s13
    // Predicated region
    $region53: #{dense_block_forward.1} parent=5 // pred_check
      %p4027 = pneg %p4026
    $region54: #{dense_block_forward.1} parent=5 // pred_check_branch
      %4029 = sbr.rel (%p4027) target = $region56
    $region55: #{dense_block_forward.1} parent=5 // pred_region
      %s4030 = ssub.s32 %s13, 2
      // Predicated region
      $region57: #{dense_block_forward.1} parent=55 // pred_check
        %p4031 = pneg %p194
      $region58: #{dense_block_forward.1} parent=55 // pred_check_branch
        %4033 = sbr.rel (%p4031) target = $region60
      $region59: #{dense_block_forward.1} parent=55 // pred_region
        %p4034 = scmp.lt.s32.totalorder %s19, 1
        %s4035 = scalar_select %p4034, %s19, 1
        %s4036 = smul.addr %s4035, 8
        %s4037 = smul.addr %s4036, 8
        %s4038 = scalar_lea.vmem %s7, %s4037
      $region60: #{dense_block_forward.1} parent=55 // pred_fallthru
        _
    $region56: #{dense_block_forward.1} parent=5 // pred_fallthru
      _
  $region6: #{dense_block_forward.1} parent=0 // loop_footer
    %s17 = sadd.s32 1, %s13
  $region7: #{dense_block_forward.1} parent=0 // loop_footer_branch
    %12 = sbr.rel target = $region3
  $region8: #{dense_block_forward.1} parent=0 // loop_exit
    _

</llo_original>
